<compile_context>
chip_gen: v6e
topology: v6e:2x2x1
jax: 0.10.0
libtpu: 0.0.40
codegen_flags: <defaults>
</compile_context>

<pallas_src>
import functools

import jax
import jax.numpy as jnp
from jax.experimental import pallas as pl
from jax.experimental.pallas import tpu as pltpu


# --------------------------------------------------------------------------
# Fused kernel: patch-embed matmul + LayerNorm + MLP(GELU) + residual
#               + global average pool + 1x1x1 proj(->768) + Linear(->classes)
# Grid: (B, T_pad // tm)  --  batch parallel, token tiles arbitrary (reduction)
# --------------------------------------------------------------------------
def _backbone_pool_kernel(xp_ref, wpe_ref, bpe_ref, lng_ref, lnb_ref,
                          w1_ref, b1_ref, w2_ref, b2_ref,
                          wp_ref, bp_ref, wc_ref, bc_ref,
                          o_ref, acc_ref, *,
                          inv_fs, eps, inv_tokens, tokens_real, tm, n_sub,
                          need_mask):
    s = pl.program_id(1)

    @pl.when(s == 0)
    def _():
        acc_ref[...] = jnp.zeros_like(acc_ref)

    sub_m = tm // n_sub
    base = s * tm

    def sub_body(j, part):
        r0 = pl.multiple_of(j * sub_m, sub_m)
        xp = xp_ref[pl.ds(r0, sub_m), :]                       # (sub_m, 8C) bf16
        # ---- patch embedding: (sub_m, 8C) @ (8C, 128) on the MXU (f32 acc)
        t = jnp.dot(xp, wpe_ref[...],
                    preferred_element_type=jnp.float32) + bpe_ref[...]
        # ---- LayerNorm over the real fs channels (padded lanes of t are 0)
        s1 = jnp.sum(t, axis=-1, keepdims=True)
        s2 = jnp.sum(t * t, axis=-1, keepdims=True)
        mu = s1 * inv_fs
        var = s2 * inv_fs - mu * mu
        t_ln = (t - mu) * jax.lax.rsqrt(var + eps) * lng_ref[...] + lnb_ref[...]
        # ---- MLP (GELU tanh approx -> EUP slot, overlaps MXU of next sub-tile)
        h = jnp.dot(t_ln.astype(jnp.bfloat16), w1_ref[...],
                    preferred_element_type=jnp.float32) + b1_ref[...]
        h = jax.nn.gelu(h, approximate=True)
        h = jnp.dot(h.astype(jnp.bfloat16), w2_ref[...],
                    preferred_element_type=jnp.float32) + b2_ref[...]
        t = t + h                                              # residual
        if need_mask:                                          # padded token rows
            row = base + r0 + jax.lax.broadcasted_iota(jnp.int32, t.shape, 0)
            t = jnp.where(row < tokens_real, t, 0.0)
        # partial global-average-pool: row sum of the trunk features
        return part + jnp.sum(t, axis=0, keepdims=True)

    part = jax.lax.fori_loop(
        0, n_sub, sub_body,
        jnp.zeros((1, acc_ref.shape[-1]), jnp.float32), unroll=True)
    acc_ref[...] += part

    @pl.when(s == pl.num_programs(1) - 1)
    def _():
        pooled = acc_ref[...] * inv_tokens                     # (1, 128) f32
        # 1x1x1 projection + classifier, once per batch, in f32
        f = jnp.dot(pooled, wp_ref[...],
                    preferred_element_type=jnp.float32) + bp_ref[...]
        logits = jnp.dot(f, wc_ref[...],
                         preferred_element_type=jnp.float32) + bc_ref[...]
        o_ref[0] = logits.astype(o_ref.dtype)


def backbone_pool_classify(xp, wpe, bpe, lng, lnb, w1, b1, w2, b2,
                           wp, bp, wc, bc, *, fs_real, tokens_real, tm, n_sub):
    """xp: (B, T_pad, 8C) bf16 patch tokens -> (B, num_classes) f32 logits."""
    B, T_pad, kpe = xp.shape
    fs_pad = wpe.shape[1]
    hid = w1.shape[1]
    oc = wp.shape[1]
    nc = wc.shape[1]
    assert T_pad % tm == 0 and tm % (8 * n_sub) == 0

    kernel = functools.partial(
        _backbone_pool_kernel,
        inv_fs=1.0 / fs_real, eps=1e-5, inv_tokens=1.0 / tokens_real,
        tokens_real=tokens_real, tm=tm, n_sub=n_sub,
        need_mask=(T_pad != tokens_real))

    flops = (2 * B * T_pad * (kpe * fs_pad + fs_pad * hid + hid * fs_pad)
             + 2 * B * (fs_pad * oc + oc * nc))
    bytes_accessed = (B * T_pad * kpe * 2 + B * nc * 4
                      + (kpe * fs_pad + fs_pad * hid + hid * fs_pad) * 2
                      + (fs_pad * oc + oc * nc) * 4)
    cost = pl.CostEstimate(flops=flops,
                           transcendentals=B * T_pad * (hid + 1),
                           bytes_accessed=bytes_accessed)

    out = pl.pallas_call(
        kernel,
        out_shape=jax.ShapeDtypeStruct((B, 1, nc), jnp.float32),
        grid_spec=pltpu.PrefetchScalarGridSpec(
            num_scalar_prefetch=0,
            grid=(B, T_pad // tm),
            in_specs=[
                pl.BlockSpec((None, tm, kpe), lambda b, s: (b, s, 0)),  # tokens
                pl.BlockSpec((kpe, fs_pad), lambda b, s: (0, 0)),       # w_pe bf16
                pl.BlockSpec((1, fs_pad), lambda b, s: (0, 0)),         # b_pe
                pl.BlockSpec((1, fs_pad), lambda b, s: (0, 0)),         # ln_g
                pl.BlockSpec((1, fs_pad), lambda b, s: (0, 0)),         # ln_b
                pl.BlockSpec((fs_pad, hid), lambda b, s: (0, 0)),       # w1 bf16
                pl.BlockSpec((1, hid), lambda b, s: (0, 0)),            # b1
                pl.BlockSpec((hid, fs_pad), lambda b, s: (0, 0)),       # w2 bf16
                pl.BlockSpec((1, fs_pad), lambda b, s: (0, 0)),         # b2
                pl.BlockSpec((fs_pad, oc), lambda b, s: (0, 0)),        # w_proj f32
                pl.BlockSpec((1, oc), lambda b, s: (0, 0)),             # b_proj
                pl.BlockSpec((oc, nc), lambda b, s: (0, 0)),            # wc f32
                pl.BlockSpec((1, nc), lambda b, s: (0, 0)),             # bc
            ],
            out_specs=pl.BlockSpec((1, 1, nc), lambda b, s: (b, 0, 0)),
            scratch_shapes=[pltpu.VMEM((1, fs_pad), jnp.float32)],
        ),
        compiler_params=pltpu.CompilerParams(
            dimension_semantics=("parallel", "arbitrary"),
            vmem_limit_bytes=32 * 1024 * 1024),
        cost_estimate=cost,
    )(xp, wpe, bpe, lng, lnb, w1, b1, w2, b2, wp, bp, wc, bc)
    return out.reshape(B, nc)


# --------------------------------------------------------------------------
# Helpers, parameters (deterministic, synthetic)
# --------------------------------------------------------------------------
def _round_up(x, m):
    return ((x + m - 1) // m) * m


def _choose_tm(tokens, tm_max=1024, tm_min=256):
    if tokens >= tm_max:
        return tm_max
    return max(tm_min, _round_up(tokens, 256))


def _pad_to(a, axis, target):
    pad = target - a.shape[axis]
    if pad <= 0:
        return a
    widths = [(0, 0)] * a.ndim
    widths[axis] = (0, pad)
    return jnp.pad(a, widths)


def init_params(key, in_channels, feature_size, out_channels, num_classes):
    ks = jax.random.split(key, 8)
    std = 0.02
    p = {}
    p["w_pe"] = std * jax.random.normal(ks[0], (8 * in_channels, feature_size), jnp.float32)
    p["b_pe"] = jnp.zeros((feature_size,), jnp.float32)
    p["ln_g"] = jnp.ones((feature_size,), jnp.float32)
    p["ln_b"] = jnp.zeros((feature_size,), jnp.float32)
    p["w1"] = std * jax.random.normal(ks[1], (feature_size, 4 * feature_size), jnp.float32)
    p["b1"] = jnp.zeros((4 * feature_size,), jnp.float32)
    p["w2"] = std * jax.random.normal(ks[2], (4 * feature_size, feature_size), jnp.float32)
    p["b2"] = jnp.zeros((feature_size,), jnp.float32)
    p["w_proj"] = std * jax.random.normal(ks[3], (feature_size, out_channels), jnp.float32)
    p["b_proj"] = std * jax.random.normal(ks[4], (out_channels,), jnp.float32)
    p["wc"] = std * jax.random.normal(ks[5], (out_channels, num_classes), jnp.float32)
    p["bc"] = std * jax.random.normal(ks[6], (num_classes,), jnp.float32)
    return p


# --------------------------------------------------------------------------
# Forward pass: im2col glue in plain JAX, everything else in ONE Pallas kernel
# --------------------------------------------------------------------------
def forward(params, x):
    """x: (B, C, D, H, W) float32 (NCDHW, like the PyTorch module)."""
    B, C, D, H, W = x.shape
    fs = params["w_pe"].shape[1]
    fs_pad = _round_up(fs, 128)
    bf = jnp.bfloat16

    D2, H2, W2 = D // 2, H // 2, W // 2
    T = D2 * H2 * W2

    # NCDHW -> NDHWC, im2col for Conv3d(C, fs, kernel=2, stride=2); the bf16
    # cast fuses with the transpose in XLA (single HBM round trip of tokens).
    x = jnp.transpose(x, (0, 2, 3, 4, 1))
    xp = x.reshape(B, D2, 2, H2, 2, W2, 2, C)
    xp = jnp.transpose(xp, (0, 1, 3, 5, 2, 4, 6, 7)).reshape(B, T, 8 * C)
    xp = xp.astype(bf)

    # tile selection: tm >= 256; tokens zero-padded to a multiple of tm and
    # masked out of the pooled sum inside the kernel.
    tm = _choose_tm(T)
    T_pad = _round_up(T, tm)
    if T_pad != T:
        xp = jnp.pad(xp, ((0, 0), (0, T_pad - T), (0, 0)))
    n_sub = 2 if tm >= 512 else 1

    # zero-pad the 96-wide feature dim to a lane-dense 128; the padded lanes of
    # every intermediate are exactly zero (zero-padded wpe/bpe/ln_g/ln_b/w1
    # rows/w2 cols/b2/wp rows), so the math is unchanged.
    wpe = _pad_to(params["w_pe"], 1, fs_pad).astype(bf)
    bpe = _pad_to(params["b_pe"], 0, fs_pad).reshape(1, fs_pad)
    lng = _pad_to(params["ln_g"], 0, fs_pad).reshape(1, fs_pad)
    lnb = _pad_to(params["ln_b"], 0, fs_pad).reshape(1, fs_pad)
    w1 = _pad_to(params["w1"], 0, fs_pad).astype(bf)
    b1 = params["b1"].reshape(1, -1)
    w2 = _pad_to(params["w2"], 1, fs_pad).astype(bf)
    b2 = _pad_to(params["b2"], 0, fs_pad).reshape(1, fs_pad)
    wp = _pad_to(params["w_proj"], 0, fs_pad)            # f32, used once/batch
    bp = params["b_proj"].reshape(1, -1)
    wc = params["wc"]
    bc = params["bc"].reshape(1, -1)

    return backbone_pool_classify(
        xp, wpe, bpe, lng, lnb, w1, b1, w2, b2, wp, bp, wc, bc,
        fs_real=fs, tokens_real=T, tm=tm, n_sub=n_sub)


def forward_reference(params, x):
    """Pure-jnp reference mirroring the kernel's bf16-matmul / f32-acc math."""
    bf = jnp.bfloat16
    B, C, D, H, W = x.shape
    fs = params["w_pe"].shape[1]
    x = jnp.transpose(x, (0, 2, 3, 4, 1))
    D2, H2, W2 = D // 2, H // 2, W // 2
    xp = x.reshape(B, D2, 2, H2, 2, W2, 2, C)
    xp = jnp.transpose(xp, (0, 1, 3, 5, 2, 4, 6, 7)).reshape(B * D2 * H2 * W2, 8 * C)
    xp = xp.astype(bf)

    def bdot(a, b):
        return jnp.dot(a.astype(bf), b.astype(bf), preferred_element_type=jnp.float32)

    t = bdot(xp, params["w_pe"]) + params["b_pe"]
    mu = jnp.sum(t, axis=-1, keepdims=True) / fs
    var = jnp.sum(t * t, axis=-1, keepdims=True) / fs - mu * mu
    t_ln = (t - mu) * jax.lax.rsqrt(var + 1e-5) * params["ln_g"] + params["ln_b"]
    h = jax.nn.gelu(bdot(t_ln, params["w1"]) + params["b1"], approximate=True)
    h = bdot(h, params["w2"]) + params["b2"]
    t = t + h
    # AdaptiveAvgPool3d(1) over the 8x nearest-upsampled grid == mean over the
    # (D2,H2,W2) grid; the 1x1x1 projection and classifier are linear, so
    # pool-then-project equals project-then-pool.
    pooled = jnp.mean(t.reshape(B, D2 * H2 * W2, fs), axis=1)        # f32
    f = jnp.dot(pooled, params["w_proj"],
                preferred_element_type=jnp.float32) + params["b_proj"]
    return jnp.dot(f, params["wc"],
                   preferred_element_type=jnp.float32) + params["bc"]


if __name__ == "__main__":
    # Small shapes consistent with the module: in_channels=2, num_classes=4,
    # spatial 16^3 (scaled down from 64^3), batch 2.
    B, C, S = 2, 2, 16
    num_classes, feature_size, out_channels = 4, 96, 768

    key = jax.random.PRNGKey(0)
    k_x, k_p = jax.random.split(key)
    x = jax.random.normal(k_x, (B, C, S, S, S), jnp.float32)
    params = init_params(k_p, C, feature_size, out_channels, num_classes)

    logits = jax.jit(forward)(params, x)
    logits = jax.block_until_ready(logits)
    assert logits.shape == (B, num_classes) and logits.dtype == jnp.float32

    ref = jax.block_until_ready(jax.jit(forward_reference)(params, x))
    assert jnp.allclose(logits, ref, atol=1e-3, rtol=1e-2), (logits, ref)

    print("KERNEL_OK")
</pallas_src>

<mosaic_0001>
module attributes {stable_mosaic.version = 11 : i64} {
  func.func @_backbone_pool_kernel(%arg0: i32, %arg1: i32, %arg2: memref<1x512x16xbf16, #tpu.memory_space<vmem>>, %arg3: memref<16x128xbf16, #tpu.memory_space<vmem>>, %arg4: memref<1x128xf32, #tpu.memory_space<vmem>>, %arg5: memref<1x128xf32, #tpu.memory_space<vmem>>, %arg6: memref<1x128xf32, #tpu.memory_space<vmem>>, %arg7: memref<128x384xbf16, #tpu.memory_space<vmem>>, %arg8: memref<1x384xf32, #tpu.memory_space<vmem>>, %arg9: memref<384x128xbf16, #tpu.memory_space<vmem>>, %arg10: memref<1x128xf32, #tpu.memory_space<vmem>>, %arg11: memref<128x768xf32, #tpu.memory_space<vmem>>, %arg12: memref<1x768xf32, #tpu.memory_space<vmem>>, %arg13: memref<768x4xf32, #tpu.memory_space<vmem>>, %arg14: memref<1x4xf32, #tpu.memory_space<vmem>>, %arg15: memref<1x1x4xf32, #tpu.memory_space<vmem>>, %arg16: memref<1x128xf32, #tpu.memory_space<vmem>>) attributes {dimension_semantics = [#tpu.dimension_semantics<parallel>, #tpu.dimension_semantics<arbitrary>], iteration_bounds = array<i64: 2, 1>, scalar_prefetch = 0 : i64, scratch_operands = 1 : i64, tpu.core_type = #tpu.core_type<tc>, window_params = [{transform_indices = @transform_0, window_bounds = array<i64: 1, 512, 16>}, {pipeline_mode = #tpu.pipeline_mode<synchronous>, transform_indices = @transform_1, window_bounds = array<i64: 16, 128>}, {pipeline_mode = #tpu.pipeline_mode<synchronous>, transform_indices = @transform_2, window_bounds = array<i64: 1, 128>}, {pipeline_mode = #tpu.pipeline_mode<synchronous>, transform_indices = @transform_3, window_bounds = array<i64: 1, 128>}, {pipeline_mode = #tpu.pipeline_mode<synchronous>, transform_indices = @transform_4, window_bounds = array<i64: 1, 128>}, {pipeline_mode = #tpu.pipeline_mode<synchronous>, transform_indices = @transform_5, window_bounds = array<i64: 128, 384>}, {pipeline_mode = #tpu.pipeline_mode<synchronous>, transform_indices = @transform_6, window_bounds = array<i64: 1, 384>}, {pipeline_mode = #tpu.pipeline_mode<synchronous>, transform_indices = @transform_7, window_bounds = array<i64: 384, 128>}, {pipeline_mode = #tpu.pipeline_mode<synchronous>, transform_indices = @transform_8, window_bounds = array<i64: 1, 128>}, {pipeline_mode = #tpu.pipeline_mode<synchronous>, transform_indices = @transform_9, window_bounds = array<i64: 128, 768>}, {pipeline_mode = #tpu.pipeline_mode<synchronous>, transform_indices = @transform_10, window_bounds = array<i64: 1, 768>}, {pipeline_mode = #tpu.pipeline_mode<synchronous>, transform_indices = @transform_11, window_bounds = array<i64: 768, 4>}, {pipeline_mode = #tpu.pipeline_mode<synchronous>, transform_indices = @transform_12, window_bounds = array<i64: 1, 4>}, {transform_indices = @transform_13, window_bounds = array<i64: 1, 1, 4>}]} {
    %c0_i32 = arith.constant 0 : i32
    %0 = arith.cmpi eq, %arg1, %c0_i32 : i32
    %1 = arith.extui %0 : i1 to i32
    %c0_i32_0 = arith.constant 0 : i32
    %2 = arith.cmpi ne, %1, %c0_i32_0 : i32
    scf.if %2 {
      %cst_70 = arith.constant 0.000000e+00 : f32
      %136 = vector.broadcast %cst_70 : f32 to vector<1x128xf32>
      %c0_71 = arith.constant 0 : index
      %c0_72 = arith.constant 0 : index
      %137 = vector.load %arg16[%c0_71, %c0_72] : memref<1x128xf32, #tpu.memory_space<vmem>>, vector<1x128xf32>
      tpu.vector_store %arg16[%c0_71, %c0_72], %136 {strides = array<i32>} : memref<1x128xf32, #tpu.memory_space<vmem>>, vector<1x128xf32>,
    } else {
    }
    %cst = arith.constant 0.000000e+00 : f32
    %3 = vector.broadcast %cst : f32 to vector<1x128xf32>
    %c0_i32_1 = arith.constant 0 : i32
    %c256_i32 = arith.constant 256 : i32
    %4 = arith.muli %c0_i32_1, %c256_i32 : i32
    %5 = tpu.assume_multiple %4, 256 : i32
    %c0 = arith.constant 0 : index
    %6 = arith.index_cast %5 : i32 to index
    %c0_2 = arith.constant 0 : index
    %7 = vector.load %arg2[%c0, %6, %c0_2] : memref<1x512x16xbf16, #tpu.memory_space<vmem>>, vector<1x256x16xbf16>
    %8 = vector.shape_cast %7 : vector<1x256x16xbf16> to vector<256x16xbf16>
    %c0_3 = arith.constant 0 : index
    %c0_4 = arith.constant 0 : index
    %9 = vector.load %arg3[%c0_3, %c0_4] : memref<16x128xbf16, #tpu.memory_space<vmem>>, vector<16x128xbf16>
    %cst_5 = arith.constant dense<0.000000e+00> : vector<256x128xf32>
    %10 = tpu.matmul %8, %9, %cst_5 {dimension_numbers = #tpu.dot_dimension_numbers<[1], [0], [0], [1], [0, 0, 1, 1], [], []>} : vector<256x16xbf16>, vector<16x128xbf16>, vector<256x128xf32> -> vector<256x128xf32>
    %c0_6 = arith.constant 0 : index
    %c0_7 = arith.constant 0 : index
    %11 = vector.load %arg4[%c0_6, %c0_7] : memref<1x128xf32, #tpu.memory_space<vmem>>, vector<1x128xf32>
    %12 = vector.broadcast %11 : vector<1x128xf32> to vector<256x128xf32>
    %13 = arith.addf %10, %12 : vector<256x128xf32>
    %cst_8 = arith.constant dense<0.000000e+00> : vector<256xf32>
    %14 = vector.multi_reduction <add>, %13, %cst_8 [1] : vector<256x128xf32> to vector<256xf32>
    %15 = vector.shape_cast %14 : vector<256xf32> to vector<256x1xf32>
    %16 = arith.mulf %13, %13 : vector<256x128xf32>
    %cst_9 = arith.constant dense<0.000000e+00> : vector<256xf32>
    %17 = vector.multi_reduction <add>, %16, %cst_9 [1] : vector<256x128xf32> to vector<256xf32>
    %18 = vector.shape_cast %17 : vector<256xf32> to vector<256x1xf32>
    %cst_10 = arith.constant 0.010416667 : f32
    %19 = vector.broadcast %cst_10 : f32 to vector<256x1xf32>
    %20 = arith.mulf %15, %19 : vector<256x1xf32>
    %cst_11 = arith.constant 0.010416667 : f32
    %21 = vector.broadcast %cst_11 : f32 to vector<256x1xf32>
    %22 = arith.mulf %18, %21 : vector<256x1xf32>
    %23 = arith.mulf %20, %20 : vector<256x1xf32>
    %24 = arith.subf %22, %23 : vector<256x1xf32>
    %25 = vector.broadcast %20 : vector<256x1xf32> to vector<256x128xf32>
    %26 = arith.subf %13, %25 : vector<256x128xf32>
    %cst_12 = arith.constant 9.99999974E-6 : f32
    %27 = vector.broadcast %cst_12 : f32 to vector<256x1xf32>
    %28 = arith.addf %24, %27 : vector<256x1xf32>
    %29 = math.rsqrt %28 : vector<256x1xf32>
    %30 = vector.broadcast %29 : vector<256x1xf32> to vector<256x128xf32>
    %31 = arith.mulf %26, %30 : vector<256x128xf32>
    %c0_13 = arith.constant 0 : index
    %c0_14 = arith.constant 0 : index
    %32 = vector.load %arg5[%c0_13, %c0_14] : memref<1x128xf32, #tpu.memory_space<vmem>>, vector<1x128xf32>
    %33 = vector.broadcast %32 : vector<1x128xf32> to vector<256x128xf32>
    %34 = arith.mulf %31, %33 : vector<256x128xf32>
    %c0_15 = arith.constant 0 : index
    %c0_16 = arith.constant 0 : index
    %35 = vector.load %arg6[%c0_15, %c0_16] : memref<1x128xf32, #tpu.memory_space<vmem>>, vector<1x128xf32>
    %36 = vector.broadcast %35 : vector<1x128xf32> to vector<256x128xf32>
    %37 = arith.addf %34, %36 : vector<256x128xf32>
    %38 = arith.truncf %37 : vector<256x128xf32> to vector<256x128xbf16>
    %c0_17 = arith.constant 0 : index
    %c0_18 = arith.constant 0 : index
    %39 = vector.load %arg7[%c0_17, %c0_18] : memref<128x384xbf16, #tpu.memory_space<vmem>>, vector<128x384xbf16>
    %cst_19 = arith.constant dense<0.000000e+00> : vector<256x384xf32>
    %40 = tpu.matmul %38, %39, %cst_19 {dimension_numbers = #tpu.dot_dimension_numbers<[1], [0], [0], [1], [0, 0, 1, 1], [], []>} : vector<256x128xbf16>, vector<128x384xbf16>, vector<256x384xf32> -> vector<256x384xf32>
    %c0_20 = arith.constant 0 : index
    %c0_21 = arith.constant 0 : index
    %41 = vector.load %arg8[%c0_20, %c0_21] : memref<1x384xf32, #tpu.memory_space<vmem>>, vector<1x384xf32>
    %42 = vector.broadcast %41 : vector<1x384xf32> to vector<256x384xf32>
    %43 = arith.addf %40, %42 : vector<256x384xf32>
    %44 = arith.mulf %43, %43 : vector<256x384xf32>
    %45 = arith.mulf %43, %44 : vector<256x384xf32>
    %cst_22 = arith.constant 4.471500e-02 : f32
    %46 = vector.broadcast %cst_22 : f32 to vector<256x384xf32>
    %47 = arith.mulf %46, %45 : vector<256x384xf32>
    %48 = arith.addf %43, %47 : vector<256x384xf32>
    %cst_23 = arith.constant 0.797884583 : f32
    %49 = vector.broadcast %cst_23 : f32 to vector<256x384xf32>
    %50 = arith.mulf %49, %48 : vector<256x384xf32>
    %51 = math.tanh %50 : vector<256x384xf32>
    %cst_24 = arith.constant 1.000000e+00 : f32
    %52 = vector.broadcast %cst_24 : f32 to vector<256x384xf32>
    %53 = arith.addf %52, %51 : vector<256x384xf32>
    %cst_25 = arith.constant 5.000000e-01 : f32
    %54 = vector.broadcast %cst_25 : f32 to vector<256x384xf32>
    %55 = arith.mulf %54, %53 : vector<256x384xf32>
    %56 = arith.mulf %43, %55 : vector<256x384xf32>
    %57 = arith.truncf %56 : vector<256x384xf32> to vector<256x384xbf16>
    %c0_26 = arith.constant 0 : index
    %c0_27 = arith.constant 0 : index
    %58 = vector.load %arg9[%c0_26, %c0_27] : memref<384x128xbf16, #tpu.memory_space<vmem>>, vector<384x128xbf16>
    %cst_28 = arith.constant dense<0.000000e+00> : vector<256x128xf32>
    %59 = tpu.matmul %57, %58, %cst_28 {dimension_numbers = #tpu.dot_dimension_numbers<[1], [0], [0], [1], [0, 0, 1, 1], [], []>} : vector<256x384xbf16>, vector<384x128xbf16>, vector<256x128xf32> -> vector<256x128xf32>
    %c0_29 = arith.constant 0 : index
    %c0_30 = arith.constant 0 : index
    %60 = vector.load %arg10[%c0_29, %c0_30] : memref<1x128xf32, #tpu.memory_space<vmem>>, vector<1x128xf32>
    %61 = vector.broadcast %60 : vector<1x128xf32> to vector<256x128xf32>
    %62 = arith.addf %59, %61 : vector<256x128xf32>
    %63 = arith.addf %13, %62 : vector<256x128xf32>
    %cst_31 = arith.constant dense<0.000000e+00> : vector<128xf32>
    %64 = vector.multi_reduction <add>, %63, %cst_31 [0] : vector<256x128xf32> to vector<128xf32>
    %65 = vector.shape_cast %64 : vector<128xf32> to vector<1x128xf32>
    %66 = arith.addf %3, %65 : vector<1x128xf32>
    %c1_i32 = arith.constant 1 : i32
    %c256_i32_32 = arith.constant 256 : i32
    %67 = arith.muli %c1_i32, %c256_i32_32 : i32
    %68 = tpu.assume_multiple %67, 256 : i32
    %c0_33 = arith.constant 0 : index
    %69 = arith.index_cast %68 : i32 to index
    %c0_34 = arith.constant 0 : index
    %70 = vector.load %arg2[%c0_33, %69, %c0_34] : memref<1x512x16xbf16, #tpu.memory_space<vmem>>, vector<1x256x16xbf16>
    %71 = vector.shape_cast %70 : vector<1x256x16xbf16> to vector<256x16xbf16>
    %c0_35 = arith.constant 0 : index
    %c0_36 = arith.constant 0 : index
    %72 = vector.load %arg3[%c0_35, %c0_36] : memref<16x128xbf16, #tpu.memory_space<vmem>>, vector<16x128xbf16>
    %cst_37 = arith.constant dense<0.000000e+00> : vector<256x128xf32>
    %73 = tpu.matmul %71, %72, %cst_37 {dimension_numbers = #tpu.dot_dimension_numbers<[1], [0], [0], [1], [0, 0, 1, 1], [], []>} : vector<256x16xbf16>, vector<16x128xbf16>, vector<256x128xf32> -> vector<256x128xf32>
    %c0_38 = arith.constant 0 : index
    %c0_39 = arith.constant 0 : index
    %74 = vector.load %arg4[%c0_38, %c0_39] : memref<1x128xf32, #tpu.memory_space<vmem>>, vector<1x128xf32>
    %75 = vector.broadcast %74 : vector<1x128xf32> to vector<256x128xf32>
    %76 = arith.addf %73, %75 : vector<256x128xf32>
    %cst_40 = arith.constant dense<0.000000e+00> : vector<256xf32>
    %77 = vector.multi_reduction <add>, %76, %cst_40 [1] : vector<256x128xf32> to vector<256xf32>
    %78 = vector.shape_cast %77 : vector<256xf32> to vector<256x1xf32>
    %79 = arith.mulf %76, %76 : vector<256x128xf32>
    %cst_41 = arith.constant dense<0.000000e+00> : vector<256xf32>
    %80 = vector.multi_reduction <add>, %79, %cst_41 [1] : vector<256x128xf32> to vector<256xf32>
    %81 = vector.shape_cast %80 : vector<256xf32> to vector<256x1xf32>
    %cst_42 = arith.constant 0.010416667 : f32
    %82 = vector.broadcast %cst_42 : f32 to vector<256x1xf32>
    %83 = arith.mulf %78, %82 : vector<256x1xf32>
    %cst_43 = arith.constant 0.010416667 : f32
    %84 = vector.broadcast %cst_43 : f32 to vector<256x1xf32>
    %85 = arith.mulf %81, %84 : vector<256x1xf32>
    %86 = arith.mulf %83, %83 : vector<256x1xf32>
    %87 = arith.subf %85, %86 : vector<256x1xf32>
    %88 = vector.broadcast %83 : vector<256x1xf32> to vector<256x128xf32>
    %89 = arith.subf %76, %88 : vector<256x128xf32>
    %cst_44 = arith.constant 9.99999974E-6 : f32
    %90 = vector.broadcast %cst_44 : f32 to vector<256x1xf32>
    %91 = arith.addf %87, %90 : vector<256x1xf32>
    %92 = math.rsqrt %91 : vector<256x1xf32>
    %93 = vector.broadcast %92 : vector<256x1xf32> to vector<256x128xf32>
    %94 = arith.mulf %89, %93 : vector<256x128xf32>
    %c0_45 = arith.constant 0 : index
    %c0_46 = arith.constant 0 : index
    %95 = vector.load %arg5[%c0_45, %c0_46] : memref<1x128xf32, #tpu.memory_space<vmem>>, vector<1x128xf32>
    %96 = vector.broadcast %95 : vector<1x128xf32> to vector<256x128xf32>
    %97 = arith.mulf %94, %96 : vector<256x128xf32>
    %c0_47 = arith.constant 0 : index
    %c0_48 = arith.constant 0 : index
    %98 = vector.load %arg6[%c0_47, %c0_48] : memref<1x128xf32, #tpu.memory_space<vmem>>, vector<1x128xf32>
    %99 = vector.broadcast %98 : vector<1x128xf32> to vector<256x128xf32>
    %100 = arith.addf %97, %99 : vector<256x128xf32>
    %101 = arith.truncf %100 : vector<256x128xf32> to vector<256x128xbf16>
    %c0_49 = arith.constant 0 : index
    %c0_50 = arith.constant 0 : index
    %102 = vector.load %arg7[%c0_49, %c0_50] : memref<128x384xbf16, #tpu.memory_space<vmem>>, vector<128x384xbf16>
    %cst_51 = arith.constant dense<0.000000e+00> : vector<256x384xf32>
    %103 = tpu.matmul %101, %102, %cst_51 {dimension_numbers = #tpu.dot_dimension_numbers<[1], [0], [0], [1], [0, 0, 1, 1], [], []>} : vector<256x128xbf16>, vector<128x384xbf16>, vector<256x384xf32> -> vector<256x384xf32>
    %c0_52 = arith.constant 0 : index
    %c0_53 = arith.constant 0 : index
    %104 = vector.load %arg8[%c0_52, %c0_53] : memref<1x384xf32, #tpu.memory_space<vmem>>, vector<1x384xf32>
    %105 = vector.broadcast %104 : vector<1x384xf32> to vector<256x384xf32>
    %106 = arith.addf %103, %105 : vector<256x384xf32>
    %107 = arith.mulf %106, %106 : vector<256x384xf32>
    %108 = arith.mulf %106, %107 : vector<256x384xf32>
    %cst_54 = arith.constant 4.471500e-02 : f32
    %109 = vector.broadcast %cst_54 : f32 to vector<256x384xf32>
    %110 = arith.mulf %109, %108 : vector<256x384xf32>
    %111 = arith.addf %106, %110 : vector<256x384xf32>
    %cst_55 = arith.constant 0.797884583 : f32
    %112 = vector.broadcast %cst_55 : f32 to vector<256x384xf32>
    %113 = arith.mulf %112, %111 : vector<256x384xf32>
    %114 = math.tanh %113 : vector<256x384xf32>
    %cst_56 = arith.constant 1.000000e+00 : f32
    %115 = vector.broadcast %cst_56 : f32 to vector<256x384xf32>
    %116 = arith.addf %115, %114 : vector<256x384xf32>
    %cst_57 = arith.constant 5.000000e-01 : f32
    %117 = vector.broadcast %cst_57 : f32 to vector<256x384xf32>
    %118 = arith.mulf %117, %116 : vector<256x384xf32>
    %119 = arith.mulf %106, %118 : vector<256x384xf32>
    %120 = arith.truncf %119 : vector<256x384xf32> to vector<256x384xbf16>
    %c0_58 = arith.constant 0 : index
    %c0_59 = arith.constant 0 : index
    %121 = vector.load %arg9[%c0_58, %c0_59] : memref<384x128xbf16, #tpu.memory_space<vmem>>, vector<384x128xbf16>
    %cst_60 = arith.constant dense<0.000000e+00> : vector<256x128xf32>
    %122 = tpu.matmul %120, %121, %cst_60 {dimension_numbers = #tpu.dot_dimension_numbers<[1], [0], [0], [1], [0, 0, 1, 1], [], []>} : vector<256x384xbf16>, vector<384x128xbf16>, vector<256x128xf32> -> vector<256x128xf32>
    %c0_61 = arith.constant 0 : index
    %c0_62 = arith.constant 0 : index
    %123 = vector.load %arg10[%c0_61, %c0_62] : memref<1x128xf32, #tpu.memory_space<vmem>>, vector<1x128xf32>
    %124 = vector.broadcast %123 : vector<1x128xf32> to vector<256x128xf32>
    %125 = arith.addf %122, %124 : vector<256x128xf32>
    %126 = arith.addf %76, %125 : vector<256x128xf32>
    %cst_63 = arith.constant dense<0.000000e+00> : vector<128xf32>
    %127 = vector.multi_reduction <add>, %126, %cst_63 [0] : vector<256x128xf32> to vector<128xf32>
    %128 = vector.shape_cast %127 : vector<128xf32> to vector<1x128xf32>
    %129 = arith.addf %66, %128 : vector<1x128xf32>
    %c2_i32 = arith.constant 2 : i32
    %c0_64 = arith.constant 0 : index
    %c0_65 = arith.constant 0 : index
    %130 = vector.load %arg16[%c0_64, %c0_65] : memref<1x128xf32, #tpu.memory_space<vmem>>, vector<1x128xf32>
    %131 = arith.addf %130, %129 : vector<1x128xf32>
    %c0_66 = arith.constant 0 : index
    %c0_67 = arith.constant 0 : index
    %132 = vector.load %arg16[%c0_66, %c0_67] : memref<1x128xf32, #tpu.memory_space<vmem>>, vector<1x128xf32>
    tpu.vector_store %arg16[%c0_66, %c0_67], %131 {strides = array<i32>} : memref<1x128xf32, #tpu.memory_space<vmem>>, vector<1x128xf32>,
    %c0_i32_68 = arith.constant 0 : i32
    %133 = arith.cmpi eq, %arg1, %c0_i32_68 : i32
    %134 = arith.extui %133 : i1 to i32
    %c0_i32_69 = arith.constant 0 : i32
    %135 = arith.cmpi ne, %134, %c0_i32_69 : i32
    scf.if %135 {
      %c0_70 = arith.constant 0 : index
      %c0_71 = arith.constant 0 : index
      %136 = vector.load %arg16[%c0_70, %c0_71] : memref<1x128xf32, #tpu.memory_space<vmem>>, vector<1x128xf32>
      %cst_72 = arith.constant 0.001953125 : f32
      %137 = vector.broadcast %cst_72 : f32 to vector<1x128xf32>
      %138 = arith.mulf %136, %137 : vector<1x128xf32>
      %c0_73 = arith.constant 0 : index
      %c0_74 = arith.constant 0 : index
      %139 = vector.load %arg11[%c0_73, %c0_74] : memref<128x768xf32, #tpu.memory_space<vmem>>, vector<128x768xf32>
      %cst_75 = arith.constant dense<0.000000e+00> : vector<1x768xf32>
      %140 = tpu.matmul %138, %139, %cst_75 {dimension_numbers = #tpu.dot_dimension_numbers<[1], [0], [0], [1], [0, 0, 1, 1], [], []>} : vector<1x128xf32>, vector<128x768xf32>, vector<1x768xf32> -> vector<1x768xf32>
      %c0_76 = arith.constant 0 : index
      %c0_77 = arith.constant 0 : index
      %141 = vector.load %arg12[%c0_76, %c0_77] : memref<1x768xf32, #tpu.memory_space<vmem>>, vector<1x768xf32>
      %142 = arith.addf %140, %141 : vector<1x768xf32>
      %c0_78 = arith.constant 0 : index
      %c0_79 = arith.constant 0 : index
      %143 = vector.load %arg13[%c0_78, %c0_79] : memref<768x4xf32, #tpu.memory_space<vmem>>, vector<768x4xf32>
      %cst_80 = arith.constant dense<0.000000e+00> : vector<1x4xf32>
      %144 = tpu.matmul %142, %143, %cst_80 {dimension_numbers = #tpu.dot_dimension_numbers<[1], [0], [0], [1], [0, 0, 1, 1], [], []>} : vector<1x768xf32>, vector<768x4xf32>, vector<1x4xf32> -> vector<1x4xf32>
      %c0_81 = arith.constant 0 : index
      %c0_82 = arith.constant 0 : index
      %145 = vector.load %arg14[%c0_81, %c0_82] : memref<1x4xf32, #tpu.memory_space<vmem>>, vector<1x4xf32>
      %146 = arith.addf %144, %145 : vector<1x4xf32>
      %c0_83 = arith.constant 0 : index
      %c0_84 = arith.constant 0 : index
      %c0_85 = arith.constant 0 : index
      %147 = vector.load %arg15[%c0_83, %c0_84, %c0_85] : memref<1x1x4xf32, #tpu.memory_space<vmem>>, vector<1x1x4xf32>
      %148 = vector.shape_cast %147 : vector<1x1x4xf32> to vector<1x4xf32>
      %149 = vector.shape_cast %146 : vector<1x4xf32> to vector<1x1x4xf32>
      tpu.vector_store %arg15[%c0_83, %c0_84, %c0_85], %149 {strides = array<i32>} : memref<1x1x4xf32, #tpu.memory_space<vmem>>, vector<1x1x4xf32>,
    } else {
    }
    return
  }
  func.func @transform_0(%arg0: i32, %arg1: i32) -> (i32, i32, i32) {
    %c0_i32 = arith.constant 0 : i32
    %c0_i32_0 = arith.constant 0 : i32
    return %arg0, %arg1, %c0_i32 : i32, i32, i32
  }
  func.func @transform_1(%arg0: i32, %arg1: i32) -> (i32, i32) {
    %c0_i32 = arith.constant 0 : i32
    %c0_i32_0 = arith.constant 0 : i32
    %c0_i32_1 = arith.constant 0 : i32
    return %c0_i32, %c0_i32_0 : i32, i32
  }
  func.func @transform_2(%arg0: i32, %arg1: i32) -> (i32, i32) {
    %c0_i32 = arith.constant 0 : i32
    %c0_i32_0 = arith.constant 0 : i32
    %c0_i32_1 = arith.constant 0 : i32
    return %c0_i32, %c0_i32_0 : i32, i32
  }
  func.func @transform_3(%arg0: i32, %arg1: i32) -> (i32, i32) {
    %c0_i32 = arith.constant 0 : i32
    %c0_i32_0 = arith.constant 0 : i32
    %c0_i32_1 = arith.constant 0 : i32
    return %c0_i32, %c0_i32_0 : i32, i32
  }
  func.func @transform_4(%arg0: i32, %arg1: i32) -> (i32, i32) {
    %c0_i32 = arith.constant 0 : i32
    %c0_i32_0 = arith.constant 0 : i32
    %c0_i32_1 = arith.constant 0 : i32
    return %c0_i32, %c0_i32_0 : i32, i32
  }
  func.func @transform_5(%arg0: i32, %arg1: i32) -> (i32, i32) {
    %c0_i32 = arith.constant 0 : i32
    %c0_i32_0 = arith.constant 0 : i32
    %c0_i32_1 = arith.constant 0 : i32
    return %c0_i32, %c0_i32_0 : i32, i32
  }
  func.func @transform_6(%arg0: i32, %arg1: i32) -> (i32, i32) {
    %c0_i32 = arith.constant 0 : i32
    %c0_i32_0 = arith.constant 0 : i32
    %c0_i32_1 = arith.constant 0 : i32
    return %c0_i32, %c0_i32_0 : i32, i32
  }
  func.func @transform_7(%arg0: i32, %arg1: i32) -> (i32, i32) {
    %c0_i32 = arith.constant 0 : i32
    %c0_i32_0 = arith.constant 0 : i32
    %c0_i32_1 = arith.constant 0 : i32
    return %c0_i32, %c0_i32_0 : i32, i32
  }
  func.func @transform_8(%arg0: i32, %arg1: i32) -> (i32, i32) {
    %c0_i32 = arith.constant 0 : i32
    %c0_i32_0 = arith.constant 0 : i32
    %c0_i32_1 = arith.constant 0 : i32
    return %c0_i32, %c0_i32_0 : i32, i32
  }
  func.func @transform_9(%arg0: i32, %arg1: i32) -> (i32, i32) {
    %c0_i32 = arith.constant 0 : i32
    %c0_i32_0 = arith.constant 0 : i32
    %c0_i32_1 = arith.constant 0 : i32
    return %c0_i32, %c0_i32_0 : i32, i32
  }
  func.func @transform_10(%arg0: i32, %arg1: i32) -> (i32, i32) {
    %c0_i32 = arith.constant 0 : i32
    %c0_i32_0 = arith.constant 0 : i32
    %c0_i32_1 = arith.constant 0 : i32
    return %c0_i32, %c0_i32_0 : i32, i32
  }
  func.func @transform_11(%arg0: i32, %arg1: i32) -> (i32, i32) {
    %c0_i32 = arith.constant 0 : i32
    %c0_i32_0 = arith.constant 0 : i32
    %c0_i32_1 = arith.constant 0 : i32
    return %c0_i32, %c0_i32_0 : i32, i32
  }
  func.func @transform_12(%arg0: i32, %arg1: i32) -> (i32, i32) {
    %c0_i32 = arith.constant 0 : i32
    %c0_i32_0 = arith.constant 0 : i32
    %c0_i32_1 = arith.constant 0 : i32
    return %c0_i32, %c0_i32_0 : i32, i32
  }
  func.func @transform_13(%arg0: i32, %arg1: i32) -> (i32, i32, i32) {
    %c0_i32 = arith.constant 0 : i32
    %c0_i32_0 = arith.constant 0 : i32
    %c0_i32_1 = arith.constant 0 : i32
    return %arg0, %c0_i32, %c0_i32_0 : i32, i32, i32
  }
}

</mosaic_0001>

<llo_original>
// kernel: forward.1
$region0: #{forward.1}
  #allocation0 [shape = 'u32[]', space=smem, size = 0x4, offset = 0x4, fixed_abs, tag = 'smem constant byte address 0x4 - core index']
  #allocation1 [shape = 'u32[144,128]{1,0:T(1,128)}', space=vmem, size = 0x12000, scoped, tag = 'internal scratch']
  #allocation2 [shape = 'f32[1,128]{1,0:T(1,128)}', space=vmem, size = 0x200, scoped, tag = 'scratch operand']
  %s0 = inlined_call_operand.vmem [shape: bf16[2,512,16], index: 0, kind: input, shape index: {}]
  %s1 = inlined_call_operand.vmem [shape: bf16[16,128], index: 1, kind: input, shape index: {}]
  %s2 = inlined_call_operand.vmem [shape: f32[1,128], index: 2, kind: input, shape index: {}]
  %s3 = inlined_call_operand.vmem [shape: f32[1,128], index: 3, kind: input, shape index: {}]
  %s4 = inlined_call_operand.vmem [shape: f32[1,128], index: 4, kind: input, shape index: {}]
  %s5 = inlined_call_operand.vmem [shape: bf16[128,384], index: 5, kind: input, shape index: {}]
  %s6 = inlined_call_operand.vmem [shape: f32[1,384], index: 6, kind: input, shape index: {}]
  %s7 = inlined_call_operand.vmem [shape: bf16[384,128], index: 7, kind: input, shape index: {}]
  %s8 = inlined_call_operand.vmem [shape: f32[1,128], index: 8, kind: input, shape index: {}]
  %s9 = inlined_call_operand.vmem [shape: f32[128,768], index: 9, kind: input, shape index: {}]
  %s10 = inlined_call_operand.vmem [shape: f32[1,768], index: 10, kind: input, shape index: {}]
  %s11 = inlined_call_operand.vmem [shape: f32[768,4], index: 11, kind: input, shape index: {}]
  %s12 = inlined_call_operand.vmem [shape: f32[1,4], index: 12, kind: input, shape index: {}]
  %s13 = inlined_call_operand.hbm [shape: f32[2,1,4], index: 13, kind: output, shape index: {}]
  %s14 = sld [smem:[#allocation0]]
  $region93: #{forward.1} parent=0
    _
  %s16 = ssub.s32 1, %s14
  %s17 = scalar_select 0, %s16, %s14
  $region1: #{forward.1} parent=0
    #allocation3 [shape = 'u8[1024]{0}', space=vmem, size = 0x400, scoped, tag = 'output window, operand 0']
    #allocation4 [shape = 's32[2]{0}', space=sflag, size = 0x8, scoped, tag = 'scoped memory for forward.1']
    %18 = vsyncpa [#allocation4], 0
    %s19 = scalar_lea.sflag [#allocation4], 1
    %20 = vsyncpa %s19, 0
    loop: start=0, step=1, limit=4
    $region2: #{forward.1} parent=1 // loop_pre_header
      _
    $region3: #{forward.1} parent=1 // loop_header
      %s22 = sphi 0, %s26
      %p23 = scmp.ge.s32.totalorder %s22, 4
      %s29 = sphi 0, %s41
      %s30 = sphi 0, %s37
      %s31 = sphi 0, %s29
      %s32 = sphi 0, %s30
      %s33 = sphi 0, %s31
      %s34 = sphi 0, %s32
      %s46 = sphi 0, %s48
      %s49 = sphi 0, %s46
      %s50 = sphi 0, %s49
      %s66 = sphi 0, %s50
      %s70 = sphi 0, %s70
      %s72 = sphi 0, %s70
      %s73 = sphi 0, %s72
      %s87 = sphi 0, %s73
      %s91 = sphi 0, %s91
      %s93 = sphi 0, %s91
      %s94 = sphi 0, %s93
      %s108 = sphi 0, %s94
      %s112 = sphi 0, %s112
      %s114 = sphi 0, %s112
      %s115 = sphi 0, %s114
      %s129 = sphi 0, %s115
      %s133 = sphi 0, %s133
      %s135 = sphi 0, %s133
      %s136 = sphi 0, %s135
      %s150 = sphi 0, %s136
      %s154 = sphi 0, %s154
      %s156 = sphi 0, %s154
      %s157 = sphi 0, %s156
      %s171 = sphi 0, %s157
      %s175 = sphi 0, %s175
      %s177 = sphi 0, %s175
      %s178 = sphi 0, %s177
      %s192 = sphi 0, %s178
      %s196 = sphi 0, %s196
      %s198 = sphi 0, %s196
      %s199 = sphi 0, %s198
      %s213 = sphi 0, %s199
      %s217 = sphi 0, %s217
      %s219 = sphi 0, %s217
      %s220 = sphi 0, %s219
      %s234 = sphi 0, %s220
      %s238 = sphi 0, %s238
      %s240 = sphi 0, %s238
      %s241 = sphi 0, %s240
      %s255 = sphi 0, %s241
      %s259 = sphi 0, %s259
      %s261 = sphi 0, %s259
      %s262 = sphi 0, %s261
      %s276 = sphi 0, %s262
      %s280 = sphi 0, %s280
      %s282 = sphi 0, %s280
      %s283 = sphi 0, %s282
      %s297 = sphi 0, %s283
      %s301 = sphi 0, %s301
      %s303 = sphi 0, %s301
      %s304 = sphi 0, %s303
      %s318 = sphi 0, %s304
      %s324 = sphi 0, %s326
      %s327 = sphi 0, %s324
      %s328 = sphi 0, %s327
      %s344 = sphi 0, %s328
    $region4: #{forward.1} parent=1 // loop_header_branch
      %25 = sbr.rel (%p23) target = $region8
    $region5: #{forward.1} parent=1 // loop_body
      %s27 = ssub.s32 %s22, 1
      %s28 = ssub.s32 %s22, 2
      %s35 = sadd.s32 1, %s30
      %p36 = scmp.ge.s32.totalorder %s35, 1
      %s37 = scalar_select %p36, 0, %s35
      %s38 = sadd.s32 1, %s29
      %s39 = scalar_select %p36, %s38, %s29
      %p40 = scmp.ge.s32.totalorder %s39, 2
      %s41 = scalar_select %p40, 0, %s39
      %s42 = ssub.s32 %s29, %s41
      %s43 = ssub.s32 %s30, %s37
      %s44 = sor.u32 %s42, %s43
      %p45 = scmp.eq.s32.totalorder %s44, 0
      %s47 = sadd.s32 %s46, 1
      %s48 = scalar_select %p45, %s46, %s47
      %p51 = pneg %p45
      %p52 = scmp.eq.s32.totalorder %s22, 1
      %p53 = por %p51, %p52
      %p54 = scmp.ne.s32.totalorder %s46, %s49
      %p55 = scmp.eq.s32.totalorder %s22, 0
      %p56 = por %p54, %p55
      %p57 = scmp.ne.s32.totalorder %s46, %s49
      %p58 = scmp.eq.s32.totalorder %s27, 1
      %p59 = por %p57, %p58
      %p60 = scmp.ne.s32.totalorder %s49, %s50
      %p61 = scmp.eq.s32.totalorder %s27, 0
      %p62 = por %p60, %p61
      %p63 = scmp.ne.s32.totalorder %s49, %s50
      %p64 = scmp.eq.s32.totalorder %s28, 1
      %p65 = por %p63, %p64
      %p67 = scmp.ne.s32.totalorder %s50, %s66
      %p68 = scmp.eq.s32.totalorder %s28, 0
      %p69 = por %p67, %p68
      %s71 = sadd.s32 %s70, 1
      %p74 = scmp.eq.s32.totalorder %s22, 1
      %p75 = scmp.ne.s32.totalorder %s70, %s72
      %p76 = scmp.eq.s32.totalorder %s22, 0
      %p77 = por %p75, %p76
      %p78 = scmp.ne.s32.totalorder %s70, %s72
      %p79 = scmp.eq.s32.totalorder %s27, 1
      %p80 = por %p78, %p79
      %p81 = scmp.ne.s32.totalorder %s72, %s73
      %p82 = scmp.eq.s32.totalorder %s27, 0
      %p83 = por %p81, %p82
      %p84 = scmp.ne.s32.totalorder %s72, %s73
      %p85 = scmp.eq.s32.totalorder %s28, 1
      %p86 = por %p84, %p85
      %p88 = scmp.ne.s32.totalorder %s73, %s87
      %p89 = scmp.eq.s32.totalorder %s28, 0
      %p90 = por %p88, %p89
      %s92 = sadd.s32 %s91, 1
      %p95 = scmp.eq.s32.totalorder %s22, 1
      %p96 = scmp.ne.s32.totalorder %s91, %s93
      %p97 = scmp.eq.s32.totalorder %s22, 0
      %p98 = por %p96, %p97
      %p99 = scmp.ne.s32.totalorder %s91, %s93
      %p100 = scmp.eq.s32.totalorder %s27, 1
      %p101 = por %p99, %p100
      %p102 = scmp.ne.s32.totalorder %s93, %s94
      %p103 = scmp.eq.s32.totalorder %s27, 0
      %p104 = por %p102, %p103
      %p105 = scmp.ne.s32.totalorder %s93, %s94
      %p106 = scmp.eq.s32.totalorder %s28, 1
      %p107 = por %p105, %p106
      %p109 = scmp.ne.s32.totalorder %s94, %s108
      %p110 = scmp.eq.s32.totalorder %s28, 0
      %p111 = por %p109, %p110
      %s113 = sadd.s32 %s112, 1
      %p116 = scmp.eq.s32.totalorder %s22, 1
      %p117 = scmp.ne.s32.totalorder %s112, %s114
      %p118 = scmp.eq.s32.totalorder %s22, 0
      %p119 = por %p117, %p118
      %p120 = scmp.ne.s32.totalorder %s112, %s114
      %p121 = scmp.eq.s32.totalorder %s27, 1
      %p122 = por %p120, %p121
      %p123 = scmp.ne.s32.totalorder %s114, %s115
      %p124 = scmp.eq.s32.totalorder %s27, 0
      %p125 = por %p123, %p124
      %p126 = scmp.ne.s32.totalorder %s114, %s115
      %p127 = scmp.eq.s32.totalorder %s28, 1
      %p128 = por %p126, %p127
      %p130 = scmp.ne.s32.totalorder %s115, %s129
      %p131 = scmp.eq.s32.totalorder %s28, 0
      %p132 = por %p130, %p131
      %s134 = sadd.s32 %s133, 1
      %p137 = scmp.eq.s32.totalorder %s22, 1
      %p138 = scmp.ne.s32.totalorder %s133, %s135
      %p139 = scmp.eq.s32.totalorder %s22, 0
      %p140 = por %p138, %p139
      %p141 = scmp.ne.s32.totalorder %s133, %s135
      %p142 = scmp.eq.s32.totalorder %s27, 1
      %p143 = por %p141, %p142
      %p144 = scmp.ne.s32.totalorder %s135, %s136
      %p145 = scmp.eq.s32.totalorder %s27, 0
      %p146 = por %p144, %p145
      %p147 = scmp.ne.s32.totalorder %s135, %s136
      %p148 = scmp.eq.s32.totalorder %s28, 1
      %p149 = por %p147, %p148
      %p151 = scmp.ne.s32.totalorder %s136, %s150
      %p152 = scmp.eq.s32.totalorder %s28, 0
      %p153 = por %p151, %p152
      %s155 = sadd.s32 %s154, 1
      %p158 = scmp.eq.s32.totalorder %s22, 1
      %p159 = scmp.ne.s32.totalorder %s154, %s156
      %p160 = scmp.eq.s32.totalorder %s22, 0
      %p161 = por %p159, %p160
      %p162 = scmp.ne.s32.totalorder %s154, %s156
      %p163 = scmp.eq.s32.totalorder %s27, 1
      %p164 = por %p162, %p163
      %p165 = scmp.ne.s32.totalorder %s156, %s157
      %p166 = scmp.eq.s32.totalorder %s27, 0
      %p167 = por %p165, %p166
      %p168 = scmp.ne.s32.totalorder %s156, %s157
      %p169 = scmp.eq.s32.totalorder %s28, 1
      %p170 = por %p168, %p169
      %p172 = scmp.ne.s32.totalorder %s157, %s171
      %p173 = scmp.eq.s32.totalorder %s28, 0
      %p174 = por %p172, %p173
      %s176 = sadd.s32 %s175, 1
      %p179 = scmp.eq.s32.totalorder %s22, 1
      %p180 = scmp.ne.s32.totalorder %s175, %s177
      %p181 = scmp.eq.s32.totalorder %s22, 0
      %p182 = por %p180, %p181
      %p183 = scmp.ne.s32.totalorder %s175, %s177
      %p184 = scmp.eq.s32.totalorder %s27, 1
      %p185 = por %p183, %p184
      %p186 = scmp.ne.s32.totalorder %s177, %s178
      %p187 = scmp.eq.s32.totalorder %s27, 0
      %p188 = por %p186, %p187
      %p189 = scmp.ne.s32.totalorder %s177, %s178
      %p190 = scmp.eq.s32.totalorder %s28, 1
      %p191 = por %p189, %p190
      %p193 = scmp.ne.s32.totalorder %s178, %s192
      %p194 = scmp.eq.s32.totalorder %s28, 0
      %p195 = por %p193, %p194
      %s197 = sadd.s32 %s196, 1
      %p200 = scmp.eq.s32.totalorder %s22, 1
      %p201 = scmp.ne.s32.totalorder %s196, %s198
      %p202 = scmp.eq.s32.totalorder %s22, 0
      %p203 = por %p201, %p202
      %p204 = scmp.ne.s32.totalorder %s196, %s198
      %p205 = scmp.eq.s32.totalorder %s27, 1
      %p206 = por %p204, %p205
      %p207 = scmp.ne.s32.totalorder %s198, %s199
      %p208 = scmp.eq.s32.totalorder %s27, 0
      %p209 = por %p207, %p208
      %p210 = scmp.ne.s32.totalorder %s198, %s199
      %p211 = scmp.eq.s32.totalorder %s28, 1
      %p212 = por %p210, %p211
      %p214 = scmp.ne.s32.totalorder %s199, %s213
      %p215 = scmp.eq.s32.totalorder %s28, 0
      %p216 = por %p214, %p215
      %s218 = sadd.s32 %s217, 1
      %p221 = scmp.eq.s32.totalorder %s22, 1
      %p222 = scmp.ne.s32.totalorder %s217, %s219
      %p223 = scmp.eq.s32.totalorder %s22, 0
      %p224 = por %p222, %p223
      %p225 = scmp.ne.s32.totalorder %s217, %s219
      %p226 = scmp.eq.s32.totalorder %s27, 1
      %p227 = por %p225, %p226
      %p228 = scmp.ne.s32.totalorder %s219, %s220
      %p229 = scmp.eq.s32.totalorder %s27, 0
      %p230 = por %p228, %p229
      %p231 = scmp.ne.s32.totalorder %s219, %s220
      %p232 = scmp.eq.s32.totalorder %s28, 1
      %p233 = por %p231, %p232
      %p235 = scmp.ne.s32.totalorder %s220, %s234
      %p236 = scmp.eq.s32.totalorder %s28, 0
      %p237 = por %p235, %p236
      %s239 = sadd.s32 %s238, 1
      %p242 = scmp.eq.s32.totalorder %s22, 1
      %p243 = scmp.ne.s32.totalorder %s238, %s240
      %p244 = scmp.eq.s32.totalorder %s22, 0
      %p245 = por %p243, %p244
      %p246 = scmp.ne.s32.totalorder %s238, %s240
      %p247 = scmp.eq.s32.totalorder %s27, 1
      %p248 = por %p246, %p247
      %p249 = scmp.ne.s32.totalorder %s240, %s241
      %p250 = scmp.eq.s32.totalorder %s27, 0
      %p251 = por %p249, %p250
      %p252 = scmp.ne.s32.totalorder %s240, %s241
      %p253 = scmp.eq.s32.totalorder %s28, 1
      %p254 = por %p252, %p253
      %p256 = scmp.ne.s32.totalorder %s241, %s255
      %p257 = scmp.eq.s32.totalorder %s28, 0
      %p258 = por %p256, %p257
      %s260 = sadd.s32 %s259, 1
      %p263 = scmp.eq.s32.totalorder %s22, 1
      %p264 = scmp.ne.s32.totalorder %s259, %s261
      %p265 = scmp.eq.s32.totalorder %s22, 0
      %p266 = por %p264, %p265
      %p267 = scmp.ne.s32.totalorder %s259, %s261
      %p268 = scmp.eq.s32.totalorder %s27, 1
      %p269 = por %p267, %p268
      %p270 = scmp.ne.s32.totalorder %s261, %s262
      %p271 = scmp.eq.s32.totalorder %s27, 0
      %p272 = por %p270, %p271
      %p273 = scmp.ne.s32.totalorder %s261, %s262
      %p274 = scmp.eq.s32.totalorder %s28, 1
      %p275 = por %p273, %p274
      %p277 = scmp.ne.s32.totalorder %s262, %s276
      %p278 = scmp.eq.s32.totalorder %s28, 0
      %p279 = por %p277, %p278
      %s281 = sadd.s32 %s280, 1
      %p284 = scmp.eq.s32.totalorder %s22, 1
      %p285 = scmp.ne.s32.totalorder %s280, %s282
      %p286 = scmp.eq.s32.totalorder %s22, 0
      %p287 = por %p285, %p286
      %p288 = scmp.ne.s32.totalorder %s280, %s282
      %p289 = scmp.eq.s32.totalorder %s27, 1
      %p290 = por %p288, %p289
      %p291 = scmp.ne.s32.totalorder %s282, %s283
      %p292 = scmp.eq.s32.totalorder %s27, 0
      %p293 = por %p291, %p292
      %p294 = scmp.ne.s32.totalorder %s282, %s283
      %p295 = scmp.eq.s32.totalorder %s28, 1
      %p296 = por %p294, %p295
      %p298 = scmp.ne.s32.totalorder %s283, %s297
      %p299 = scmp.eq.s32.totalorder %s28, 0
      %p300 = por %p298, %p299
      %s302 = sadd.s32 %s301, 1
      %p305 = scmp.eq.s32.totalorder %s22, 1
      %p306 = scmp.ne.s32.totalorder %s301, %s303
      %p307 = scmp.eq.s32.totalorder %s22, 0
      %p308 = por %p306, %p307
      %p309 = scmp.ne.s32.totalorder %s301, %s303
      %p310 = scmp.eq.s32.totalorder %s27, 1
      %p311 = por %p309, %p310
      %p312 = scmp.ne.s32.totalorder %s303, %s304
      %p313 = scmp.eq.s32.totalorder %s27, 0
      %p314 = por %p312, %p313
      %p315 = scmp.ne.s32.totalorder %s303, %s304
      %p316 = scmp.eq.s32.totalorder %s28, 1
      %p317 = por %p315, %p316
      %p319 = scmp.ne.s32.totalorder %s304, %s318
      %p320 = scmp.eq.s32.totalorder %s28, 0
      %p321 = por %p319, %p320
      %s322 = ssub.s32 %s29, %s41
      %p323 = scmp.eq.s32.totalorder %s322, 0
      %s325 = sadd.s32 %s324, 1
      %s326 = scalar_select %p323, %s324, %s325
      %p329 = pneg %p323
      %p330 = scmp.eq.s32.totalorder %s22, 1
      %p331 = por %p329, %p330
      %p332 = scmp.ne.s32.totalorder %s324, %s327
      %p333 = scmp.eq.s32.totalorder %s22, 0
      %p334 = por %p332, %p333
      %p335 = scmp.ne.s32.totalorder %s324, %s327
      %p336 = scmp.eq.s32.totalorder %s27, 1
      %p337 = por %p335, %p336
      %p338 = scmp.ne.s32.totalorder %s327, %s328
      %p339 = scmp.eq.s32.totalorder %s27, 0
      %p340 = por %p338, %p339
      %p341 = scmp.ne.s32.totalorder %s327, %s328
      %p342 = scmp.eq.s32.totalorder %s28, 1
      %p343 = por %p341, %p342
      %p345 = scmp.ne.s32.totalorder %s328, %s344
      %p346 = scmp.eq.s32.totalorder %s28, 0
      %p347 = por %p345, %p346
      %p348 = scmp.le.s32.totalorder 1, %s22
      %p349 = scmp.lt.s32.totalorder %s22, 3
      %p350 = pnand %p348, %p349
      %p351 = pneg %p350
      // Predicated region
      $region9: #{forward.1} parent=5 // pred_check
        _
      $region10: #{forward.1} parent=5 // pred_check_branch
        %353 = sbr.rel (%p350) target = $region12
      $region11: #{forward.1} parent=5 // pred_region
        %s354 = ssub.s32 %s22, 1
        // Predicated region
        $region13: #{forward.1} parent=11 // pred_check
          %p355 = pneg %p83
        $region14: #{forward.1} parent=11 // pred_check_branch
          %357 = sbr.rel (%p355) target = $region16
        $region15: #{forward.1} parent=11 // pred_region
          _
        $region16: #{forward.1} parent=11 // pred_fallthru
          _
        // Predicated region
        $region17: #{forward.1} parent=11 // pred_check
          %p358 = pneg %p104
        $region18: #{forward.1} parent=11 // pred_check_branch
          %360 = sbr.rel (%p358) target = $region20
        $region19: #{forward.1} parent=11 // pred_region
          _
        $region20: #{forward.1} parent=11 // pred_fallthru
          _
        // Predicated region
        $region21: #{forward.1} parent=11 // pred_check
          %p361 = pneg %p125
        $region22: #{forward.1} parent=11 // pred_check_branch
          %363 = sbr.rel (%p361) target = $region24
        $region23: #{forward.1} parent=11 // pred_region
          _
        $region24: #{forward.1} parent=11 // pred_fallthru
          _
        // Predicated region
        $region25: #{forward.1} parent=11 // pred_check
          %p364 = pneg %p146
        $region26: #{forward.1} parent=11 // pred_check_branch
          %366 = sbr.rel (%p364) target = $region28
        $region27: #{forward.1} parent=11 // pred_region
          _
        $region28: #{forward.1} parent=11 // pred_fallthru
          _
        // Predicated region
        $region29: #{forward.1} parent=11 // pred_check
          %p367 = pneg %p167
        $region30: #{forward.1} parent=11 // pred_check_branch
          %369 = sbr.rel (%p367) target = $region32
        $region31: #{forward.1} parent=11 // pred_region
          _
        $region32: #{forward.1} parent=11 // pred_fallthru
          _
        // Predicated region
        $region33: #{forward.1} parent=11 // pred_check
          %p370 = pneg %p188
        $region34: #{forward.1} parent=11 // pred_check_branch
          %372 = sbr.rel (%p370) target = $region36
        $region35: #{forward.1} parent=11 // pred_region
          _
        $region36: #{forward.1} parent=11 // pred_fallthru
          _
        // Predicated region
        $region37: #{forward.1} parent=11 // pred_check
          %p373 = pneg %p209
        $region38: #{forward.1} parent=11 // pred_check_branch
          %375 = sbr.rel (%p373) target = $region40
        $region39: #{forward.1} parent=11 // pred_region
          _
        $region40: #{forward.1} parent=11 // pred_fallthru
          _
        // Predicated region
        $region41: #{forward.1} parent=11 // pred_check
          %p376 = pneg %p230
        $region42: #{forward.1} parent=11 // pred_check_branch
          %378 = sbr.rel (%p376) target = $region44
        $region43: #{forward.1} parent=11 // pred_region
          _
        $region44: #{forward.1} parent=11 // pred_fallthru
          _
        // Predicated region
        $region45: #{forward.1} parent=11 // pred_check
          %p379 = pneg %p251
        $region46: #{forward.1} parent=11 // pred_check_branch
          %381 = sbr.rel (%p379) target = $region48
        $region47: #{forward.1} parent=11 // pred_region
          _
        $region48: #{forward.1} parent=11 // pred_fallthru
          _
        // Predicated region
        $region49: #{forward.1} parent=11 // pred_check
          %p382 = pneg %p272
        $region50: #{forward.1} parent=11 // pred_check_branch
          %384 = sbr.rel (%p382) target = $region52
        $region51: #{forward.1} parent=11 // pred_region
          _
        $region52: #{forward.1} parent=11 // pred_fallthru
          _
        // Predicated region
        $region53: #{forward.1} parent=11 // pred_check
          %p385 = pneg %p293
        $region54: #{forward.1} parent=11 // pred_check_branch
          %387 = sbr.rel (%p385) target = $region56
        $region55: #{forward.1} parent=11 // pred_region
          _
        $region56: #{forward.1} parent=11 // pred_fallthru
          _
        // Predicated region
        $region57: #{forward.1} parent=11 // pred_check
          %p388 = pneg %p314
        $region58: #{forward.1} parent=11 // pred_check_branch
          %390 = sbr.rel (%p388) target = $region60
        $region59: #{forward.1} parent=11 // pred_region
          _
        $region60: #{forward.1} parent=11 // pred_fallthru
          _
      $region12: #{forward.1} parent=5 // pred_fallthru
        _
      %p391 = scmp.lt.s32.totalorder %s22, 2
      // Predicated region
      $region61: #{forward.1} parent=5 // pred_check
        %p392 = pneg %p391
      $region62: #{forward.1} parent=5 // pred_check_branch
        %394 = sbr.rel (%p392) target = $region64
      $region63: #{forward.1} parent=5 // pred_region
        // Predicated region
        $region65: #{forward.1} parent=63 // pred_check
          %p395 = pneg %p56
        $region66: #{forward.1} parent=63 // pred_check_branch
          %397 = sbr.rel (%p395) target = $region68
        $region67: #{forward.1} parent=63 // pred_region
          %s398 = smul.u32 64, %s30
          %p399 = scmp.lt.s32.totalorder %s29, 1
          %s400 = scalar_select %p399, %s29, 1
          %p401 = scmp.lt.s32.totalorder %s398, 63
          %s402 = scalar_select %p401, %s398, 63
          %s403 = smul.addr %s400, 64
          %s404 = sadd.s32 %s402, %s403
          %s405 = smul.addr %s404, 4
          %s406 = scalar_lea.vmem %s0, %s405
          %s407 = smul.u32 64, %s30
        $region68: #{forward.1} parent=63 // pred_fallthru
          _
      $region64: #{forward.1} parent=5 // pred_fallthru
        _
      %p408 = scmp.le.s32.totalorder 1, %s22
      %p409 = scmp.lt.s32.totalorder %s22, 3
      %p410 = pnand %p408, %p409
      %p411 = pneg %p410
      // Predicated region
      $region69: #{forward.1} parent=5 // pred_check
        _
      $region70: #{forward.1} parent=5 // pred_check_branch
        %413 = sbr.rel (%p410) target = $region72
      $region71: #{forward.1} parent=5 // pred_region
        %s414 = ssub.s32 %s22, 1
        %s415 = smul.u32 64, %s32
        %p416 = scmp.lt.s32.totalorder %s31, 1
        %s417 = scalar_select %p416, %s31, 1
        %p418 = scmp.lt.s32.totalorder %s415, 63
        %s419 = scalar_select %p418, %s415, 63
        %s420 = smul.addr %s417, 64
        %s421 = sadd.s32 %s419, %s420
        %s422 = smul.addr %s421, 4
        %s423 = scalar_lea.vmem %s0, %s422
        %p424 = pneg %p62
        %p425 = pneg %p59
        %p426 = pneg %p83
        %p427 = pneg %p80
        %p428 = pneg %p104
        %p429 = pneg %p101
        %p430 = pneg %p125
        %p431 = pneg %p122
        %p432 = pneg %p146
        %p433 = pneg %p143
        %p434 = pneg %p167
        %p435 = pneg %p164
        %p436 = pneg %p188
        %p437 = pneg %p185
        %p438 = pneg %p209
        %p439 = pneg %p206
        %p440 = pneg %p230
        %p441 = pneg %p227
        %p442 = pneg %p251
        %p443 = pneg %p248
        %p444 = pneg %p272
        %p445 = pneg %p269
        %p446 = pneg %p293
        %p447 = pneg %p290
        %p448 = pneg %p314
        %p449 = pneg %p311
        %p450 = pneg %p340
        %p451 = pneg %p337
        %s452 = sand.u32 %s327, 1
        %s453 = scalar_lea.sflag [#allocation4], %s452
        %s454 = sand.u32 %s327, 1
        %s455 = scalar_lea.vmem [#allocation3], %s454
        %s456 = smul.u32 64, %s32
        %p457 = scmp.lt.s32.totalorder %s31, 1
        %s458 = scalar_select %p457, %s31, 1
        %p459 = scmp.lt.s32.totalorder %s456, 63
        %s460 = scalar_select %p459, %s456, 63
        %s461 = smul.addr %s458, 64
        %s462 = sadd.s32 %s460, %s461
        %s463 = smul.addr %s462, 4
        %s464 = scalar_lea.vmem %s0, %s463
        %s465 = smul.u32 64, %s32
        %p467 = scmp.eq.s32.totalorder %s32, 0
        // Predicated region
        $region73: #{forward.1} parent=71 // pred_check
          %p468 = pneg %p467
        $region74: #{forward.1} parent=71 // pred_check_branch
          %470 = sbr.rel (%p468) target = $region76
        $region75: #{forward.1} parent=71 // pred_region
          %471 = vst [vmem:[#allocation2] sm:$0x1] 0.0
        $region76: #{forward.1} parent=71 // pred_fallthru
          _
        %v472 = vld [vmem:[%s464] sm:$0xf]
        %v473 = vld [vmem:[%s464 + $0x4] sm:$0xf]
        %v474 = vld [vmem:[%s464 + $0x8] sm:$0xf]
        %v475 = vld [vmem:[%s464 + $0xc] sm:$0xf]
        %v476 = vld [vmem:[%s464 + $0x10] sm:$0xf]
        %v477 = vld [vmem:[%s464 + $0x14] sm:$0xf]
        %v478 = vld [vmem:[%s464 + $0x18] sm:$0xf]
        %v479 = vld [vmem:[%s464 + $0x1c] sm:$0xf]
        %v480 = vld [vmem:[%s464 + $0x20] sm:$0xf]
        %v481 = vld [vmem:[%s464 + $0x24] sm:$0xf]
        %v482 = vld [vmem:[%s464 + $0x28] sm:$0xf]
        %v483 = vld [vmem:[%s464 + $0x2c] sm:$0xf]
        %v484 = vld [vmem:[%s464 + $0x30] sm:$0xf]
        %v485 = vld [vmem:[%s464 + $0x34] sm:$0xf]
        %v486 = vld [vmem:[%s464 + $0x38] sm:$0xf]
        %v487 = vld [vmem:[%s464 + $0x3c] sm:$0xf]
        %v488 = vld [vmem:[%s464 + $0x40] sm:$0xf]
        %v489 = vld [vmem:[%s464 + $0x44] sm:$0xf]
        %v490 = vld [vmem:[%s464 + $0x48] sm:$0xf]
        %v491 = vld [vmem:[%s464 + $0x4c] sm:$0xf]
        %v492 = vld [vmem:[%s464 + $0x50] sm:$0xf]
        %v493 = vld [vmem:[%s464 + $0x54] sm:$0xf]
        %v494 = vld [vmem:[%s464 + $0x58] sm:$0xf]
        %v495 = vld [vmem:[%s464 + $0x5c] sm:$0xf]
        %v496 = vld [vmem:[%s464 + $0x60] sm:$0xf]
        %v497 = vld [vmem:[%s464 + $0x64] sm:$0xf]
        %v498 = vld [vmem:[%s464 + $0x68] sm:$0xf]
        %v499 = vld [vmem:[%s464 + $0x6c] sm:$0xf]
        %v500 = vld [vmem:[%s464 + $0x70] sm:$0xf]
        %v501 = vld [vmem:[%s464 + $0x74] sm:$0xf]
        %v502 = vld [vmem:[%s464 + $0x78] sm:$0xf]
        %v503 = vld [vmem:[%s464 + $0x7c] sm:$0xf]
        %v504 = vld [vmem:[%s1] sm:$0xf]
        %v505 = vld [vmem:[%s1 + $0x4] sm:$0xf]
        %v506 = vld [vmem:[%s2] sm:$0x1]
        %v508 = vlaneseq
        %v509 = vshrl.u32 %v508, 7
        %v510 = vsub.s32 0, %v509
        %v511 = vrot.slane %v506, %v510
        %v545 = vunpack.c.l.b16 %v472
        %v546 = vunpack.c.l.b16 %v473
        %v547 = vunpack.c.l.b16 %v474
        %v548 = vunpack.c.l.b16 %v475
        %v549 = vunpack.c.l.b16 %v476
        %v550 = vunpack.c.l.b16 %v477
        %v551 = vunpack.c.l.b16 %v478
        %v552 = vunpack.c.l.b16 %v479
        %v553 = vunpack.c.l.b16 %v480
        %v554 = vunpack.c.l.b16 %v481
        %v555 = vunpack.c.l.b16 %v482
        %v556 = vunpack.c.l.b16 %v483
        %v557 = vunpack.c.l.b16 %v484
        %v558 = vunpack.c.l.b16 %v485
        %v559 = vunpack.c.l.b16 %v486
        %v560 = vunpack.c.l.b16 %v487
        %v561 = vunpack.c.l.b16 %v488
        %v562 = vunpack.c.l.b16 %v489
        %v563 = vunpack.c.l.b16 %v490
        %v564 = vunpack.c.l.b16 %v491
        %v565 = vunpack.c.l.b16 %v492
        %v566 = vunpack.c.l.b16 %v493
        %v567 = vunpack.c.l.b16 %v494
        %v568 = vunpack.c.l.b16 %v495
        %v569 = vunpack.c.l.b16 %v496
        %v570 = vunpack.c.l.b16 %v497
        %v571 = vunpack.c.l.b16 %v498
        %v572 = vunpack.c.l.b16 %v499
        %v573 = vunpack.c.l.b16 %v500
        %v574 = vunpack.c.l.b16 %v501
        %v575 = vunpack.c.l.b16 %v502
        %v576 = vunpack.c.l.b16 %v503
        %v577 = vpack.c.b16 %v546, %v545
        %v578 = vpack.c.b16 %v548, %v547
        %v579 = vpack.c.b16 %v550, %v549
        %v580 = vpack.c.b16 %v552, %v551
        %v581 = vpack.c.b16 %v554, %v553
        %v582 = vpack.c.b16 %v556, %v555
        %v583 = vpack.c.b16 %v558, %v557
        %v584 = vpack.c.b16 %v560, %v559
        %v585 = vpack.c.b16 %v562, %v561
        %v586 = vpack.c.b16 %v564, %v563
        %v587 = vpack.c.b16 %v566, %v565
        %v588 = vpack.c.b16 %v568, %v567
        %v589 = vpack.c.b16 %v570, %v569
        %v590 = vpack.c.b16 %v572, %v571
        %v591 = vpack.c.b16 %v574, %v573
        %v592 = vpack.c.b16 %v576, %v575
        %v595 = vunpack.c.l.b16 %v504
        %v596 = vunpack.c.l.b16 %v505
        %v597 = vpack.c.b16 %v596, %v595
        %vm599 = vcmask 130048
        %v601 = vsel %vm599, %v577, 0
        %v604 = vsel %vm599, %v578, 0
        %v607 = vsel %vm599, %v579, 0
        %v610 = vsel %vm599, %v580, 0
        %v613 = vsel %vm599, %v581, 0
        %v616 = vsel %vm599, %v582, 0
        %v619 = vsel %vm599, %v583, 0
        %v622 = vsel %vm599, %v584, 0
        %v625 = vsel %vm599, %v585, 0
        %v628 = vsel %vm599, %v586, 0
        %v631 = vsel %vm599, %v587, 0
        %v634 = vsel %vm599, %v588, 0
        %v637 = vsel %vm599, %v589, 0
        %v640 = vsel %vm599, %v590, 0
        %v643 = vsel %vm599, %v591, 0
        %v646 = vsel %vm599, %v592, 0
        %648 = vmatprep.subr.bf16.mxu0 0
        %649 = vmatpush1.bf16.msra.mxu0 0
        %650 = vmatprep.subr.bf16.mxu0 0
        %651 = vmatpush1.bf16.msra.mxu0 0
        %652 = vmatprep.subr.bf16.mxu0 0
        %653 = vmatpush1.bf16.msra.mxu0 0
        %654 = vmatprep.subr.bf16.mxu0 0
        %655 = vmatpush1.bf16.msra.mxu0 0
        %656 = vmatprep.subr.bf16.mxu0 0
        %657 = vmatpush1.bf16.msra.mxu0 0
        %658 = vmatprep.subr.bf16.mxu0 0
        %659 = vmatpush1.bf16.msra.mxu0 0
        %660 = vmatprep.subr.bf16.mxu0 0
        %661 = vmatpush1.bf16.msra.mxu0 0
        %662 = vmatprep.subr.bf16.mxu0 0
        %663 = vmatpush1.bf16.msra.mxu0 %v597
        %664 = vmatprep.subr.bf16.mxu0 0
        %665 = vmatpush2.bf16.msra.mxu0 0
        %666 = vmatprep.subr.bf16.mxu0 0
        %667 = vmatpush2.bf16.msra.mxu0 0
        %668 = vmatprep.subr.bf16.mxu0 0
        %669 = vmatpush2.bf16.msra.mxu0 0
        %670 = vmatprep.subr.bf16.mxu0 0
        %671 = vmatpush2.bf16.msra.mxu0 0
        %672 = vmatprep.subr.bf16.mxu0 0
        %673 = vmatpush2.bf16.msra.mxu0 0
        %674 = vmatprep.subr.bf16.mxu0 0
        %675 = vmatpush2.bf16.msra.mxu0 0
        %676 = vmatprep.subr.bf16.mxu0 0
        %677 = vmatpush2.bf16.msra.mxu0 0
        %678 = vmatprep.subr.bf16.mxu0 0
        %679 = vmatpush2.bf16.msra.mxu0 0
        %680 = vmatprep.mubr.bf16.mxu0 0
        %681 = vmatmul.mubr.bf16.gmra.mxu0 %v601
        %v682 = vpop.f32.mrf.mxu0
        %v683 = vadd.f32 %v511, %v682
        %v684 = vpop.f32.mrf.mxu0
        %v685 = vpop.f32.mrf.mxu0
        %v686 = vadd.f32 %v511, %v685
        %v687 = vpop.f32.mrf.mxu0
        %688 = vmatprep.mubr.bf16.mxu0 0
        %689 = vmatmul.mubr.bf16.gmra.mxu0 %v604
        %v690 = vpop.f32.mrf.mxu0
        %v691 = vadd.f32 %v511, %v690
        %v692 = vpop.f32.mrf.mxu0
        %v693 = vpop.f32.mrf.mxu0
        %v694 = vadd.f32 %v511, %v693
        %v695 = vpop.f32.mrf.mxu0
        %696 = vmatprep.mubr.bf16.mxu0 0
        %697 = vmatmul.mubr.bf16.gmra.mxu0 %v607
        %v698 = vpop.f32.mrf.mxu0
        %v699 = vadd.f32 %v511, %v698
        %v700 = vpop.f32.mrf.mxu0
        %v701 = vpop.f32.mrf.mxu0
        %v702 = vadd.f32 %v511, %v701
        %v703 = vpop.f32.mrf.mxu0
        %704 = vmatprep.mubr.bf16.mxu0 0
        %705 = vmatmul.mubr.bf16.gmra.mxu0 %v610
        %v706 = vpop.f32.mrf.mxu0
        %v707 = vadd.f32 %v511, %v706
        %v708 = vpop.f32.mrf.mxu0
        %v709 = vpop.f32.mrf.mxu0
        %v710 = vadd.f32 %v511, %v709
        %v711 = vpop.f32.mrf.mxu0
        %712 = vmatprep.mubr.bf16.mxu0 0
        %713 = vmatmul.mubr.bf16.gmra.mxu0 %v613
        %v714 = vpop.f32.mrf.mxu0
        %v715 = vadd.f32 %v511, %v714
        %v716 = vpop.f32.mrf.mxu0
        %v717 = vpop.f32.mrf.mxu0
        %v718 = vadd.f32 %v511, %v717
        %v719 = vpop.f32.mrf.mxu0
        %720 = vmatprep.mubr.bf16.mxu0 0
        %721 = vmatmul.mubr.bf16.gmra.mxu0 %v616
        %v722 = vpop.f32.mrf.mxu0
        %v723 = vadd.f32 %v511, %v722
        %v724 = vpop.f32.mrf.mxu0
        %v725 = vpop.f32.mrf.mxu0
        %v726 = vadd.f32 %v511, %v725
        %v727 = vpop.f32.mrf.mxu0
        %728 = vmatprep.mubr.bf16.mxu0 0
        %729 = vmatmul.mubr.bf16.gmra.mxu0 %v619
        %v730 = vpop.f32.mrf.mxu0
        %v731 = vadd.f32 %v511, %v730
        %v732 = vpop.f32.mrf.mxu0
        %v733 = vpop.f32.mrf.mxu0
        %v734 = vadd.f32 %v511, %v733
        %v735 = vpop.f32.mrf.mxu0
        %736 = vmatprep.mubr.bf16.mxu0 0
        %737 = vmatmul.mubr.bf16.gmra.mxu0 %v622
        %v738 = vpop.f32.mrf.mxu0
        %v739 = vadd.f32 %v511, %v738
        %v740 = vpop.f32.mrf.mxu0
        %v741 = vpop.f32.mrf.mxu0
        %v742 = vadd.f32 %v511, %v741
        %v743 = vpop.f32.mrf.mxu0
        %744 = vmatprep.mubr.bf16.mxu0 0
        %745 = vmatmul.mubr.bf16.gmra.mxu0 %v625
        %v746 = vpop.f32.mrf.mxu0
        %v747 = vadd.f32 %v511, %v746
        %v748 = vpop.f32.mrf.mxu0
        %v749 = vpop.f32.mrf.mxu0
        %v750 = vadd.f32 %v511, %v749
        %v751 = vpop.f32.mrf.mxu0
        %752 = vmatprep.mubr.bf16.mxu0 0
        %753 = vmatmul.mubr.bf16.gmra.mxu0 %v628
        %v754 = vpop.f32.mrf.mxu0
        %v755 = vadd.f32 %v511, %v754
        %v756 = vpop.f32.mrf.mxu0
        %v757 = vpop.f32.mrf.mxu0
        %v758 = vadd.f32 %v511, %v757
        %v759 = vpop.f32.mrf.mxu0
        %760 = vmatprep.mubr.bf16.mxu0 0
        %761 = vmatmul.mubr.bf16.gmra.mxu0 %v631
        %v762 = vpop.f32.mrf.mxu0
        %v763 = vadd.f32 %v511, %v762
        %v764 = vpop.f32.mrf.mxu0
        %v765 = vpop.f32.mrf.mxu0
        %v766 = vadd.f32 %v511, %v765
        %v767 = vpop.f32.mrf.mxu0
        %768 = vmatprep.mubr.bf16.mxu0 0
        %769 = vmatmul.mubr.bf16.gmra.mxu0 %v634
        %v770 = vpop.f32.mrf.mxu0
        %v771 = vadd.f32 %v511, %v770
        %v772 = vpop.f32.mrf.mxu0
        %v773 = vpop.f32.mrf.mxu0
        %v774 = vadd.f32 %v511, %v773
        %v775 = vpop.f32.mrf.mxu0
        %776 = vmatprep.mubr.bf16.mxu0 0
        %777 = vmatmul.mubr.bf16.gmra.mxu0 %v637
        %v778 = vpop.f32.mrf.mxu0
        %v779 = vadd.f32 %v511, %v778
        %v780 = vpop.f32.mrf.mxu0
        %v781 = vpop.f32.mrf.mxu0
        %v782 = vadd.f32 %v511, %v781
        %v783 = vpop.f32.mrf.mxu0
        %784 = vmatprep.mubr.bf16.mxu0 0
        %785 = vmatmul.mubr.bf16.gmra.mxu0 %v640
        %v786 = vpop.f32.mrf.mxu0
        %v787 = vadd.f32 %v511, %v786
        %v788 = vpop.f32.mrf.mxu0
        %v789 = vpop.f32.mrf.mxu0
        %v790 = vadd.f32 %v511, %v789
        %v791 = vpop.f32.mrf.mxu0
        %792 = vmatprep.mubr.bf16.mxu0 0
        %793 = vmatmul.mubr.bf16.gmra.mxu0 %v643
        %v794 = vpop.f32.mrf.mxu0
        %v795 = vadd.f32 %v511, %v794
        %v796 = vpop.f32.mrf.mxu0
        %v797 = vpop.f32.mrf.mxu0
        %v798 = vadd.f32 %v511, %v797
        %v799 = vpop.f32.mrf.mxu0
        %800 = vmatprep.mubr.bf16.mxu0 0
        %801 = vmatmul.mubr.bf16.gmra.mxu0 %v646
        %v802 = vpop.f32.mrf.mxu0
        %v803 = vadd.f32 %v511, %v802
        %v804 = vpop.f32.mrf.mxu0
        %v805 = vpop.f32.mrf.mxu0
        %v806 = vadd.f32 %v511, %v805
        %v807 = vpop.f32.mrf.mxu0
        %808 = vdwg.mxu0
        %809 = vadd.xlane.f32.xlu0 %v683
        %v810 = vpop.xlane.xlu0 %809
        %811 = vadd.xlane.f32.xlu0 %v686
        %v812 = vpop.xlane.xlu0 %811
        %813 = vadd.xlane.f32.xlu0 %v691
        %v814 = vpop.xlane.xlu0 %813
        %815 = vadd.xlane.f32.xlu0 %v694
        %v816 = vpop.xlane.xlu0 %815
        %817 = vadd.xlane.f32.xlu0 %v699
        %v818 = vpop.xlane.xlu0 %817
        %819 = vadd.xlane.f32.xlu0 %v702
        %v820 = vpop.xlane.xlu0 %819
        %821 = vadd.xlane.f32.xlu0 %v707
        %v822 = vpop.xlane.xlu0 %821
        %823 = vadd.xlane.f32.xlu0 %v710
        %v824 = vpop.xlane.xlu0 %823
        %825 = vadd.xlane.f32.xlu0 %v715
        %v826 = vpop.xlane.xlu0 %825
        %827 = vadd.xlane.f32.xlu0 %v718
        %v828 = vpop.xlane.xlu0 %827
        %829 = vadd.xlane.f32.xlu0 %v723
        %v830 = vpop.xlane.xlu0 %829
        %831 = vadd.xlane.f32.xlu0 %v726
        %v832 = vpop.xlane.xlu0 %831
        %833 = vadd.xlane.f32.xlu0 %v731
        %v834 = vpop.xlane.xlu0 %833
        %835 = vadd.xlane.f32.xlu0 %v734
        %v836 = vpop.xlane.xlu0 %835
        %837 = vadd.xlane.f32.xlu0 %v739
        %v838 = vpop.xlane.xlu0 %837
        %839 = vadd.xlane.f32.xlu0 %v742
        %v840 = vpop.xlane.xlu0 %839
        %841 = vadd.xlane.f32.xlu0 %v747
        %v842 = vpop.xlane.xlu0 %841
        %843 = vadd.xlane.f32.xlu0 %v750
        %v844 = vpop.xlane.xlu0 %843
        %845 = vadd.xlane.f32.xlu0 %v755
        %v846 = vpop.xlane.xlu0 %845
        %847 = vadd.xlane.f32.xlu0 %v758
        %v848 = vpop.xlane.xlu0 %847
        %849 = vadd.xlane.f32.xlu0 %v763
        %v850 = vpop.xlane.xlu0 %849
        %851 = vadd.xlane.f32.xlu0 %v766
        %v852 = vpop.xlane.xlu0 %851
        %853 = vadd.xlane.f32.xlu0 %v771
        %v854 = vpop.xlane.xlu0 %853
        %855 = vadd.xlane.f32.xlu0 %v774
        %v856 = vpop.xlane.xlu0 %855
        %857 = vadd.xlane.f32.xlu0 %v779
        %v858 = vpop.xlane.xlu0 %857
        %859 = vadd.xlane.f32.xlu0 %v782
        %v860 = vpop.xlane.xlu0 %859
        %861 = vadd.xlane.f32.xlu0 %v787
        %v862 = vpop.xlane.xlu0 %861
        %863 = vadd.xlane.f32.xlu0 %v790
        %v864 = vpop.xlane.xlu0 %863
        %865 = vadd.xlane.f32.xlu0 %v795
        %v866 = vpop.xlane.xlu0 %865
        %867 = vadd.xlane.f32.xlu0 %v798
        %v868 = vpop.xlane.xlu0 %867
        %869 = vadd.xlane.f32.xlu0 %v803
        %v870 = vpop.xlane.xlu0 %869
        %871 = vadd.xlane.f32.xlu0 %v806
        %v872 = vpop.xlane.xlu0 %871
        %v873 = vmul.f32 %v683, %v683
        %v874 = vmul.f32 %v686, %v686
        %v875 = vmul.f32 %v691, %v691
        %v876 = vmul.f32 %v694, %v694
        %v877 = vmul.f32 %v699, %v699
        %v878 = vmul.f32 %v702, %v702
        %v879 = vmul.f32 %v707, %v707
        %v880 = vmul.f32 %v710, %v710
        %v881 = vmul.f32 %v715, %v715
        %v882 = vmul.f32 %v718, %v718
        %v883 = vmul.f32 %v723, %v723
        %v884 = vmul.f32 %v726, %v726
        %v885 = vmul.f32 %v731, %v731
        %v886 = vmul.f32 %v734, %v734
        %v887 = vmul.f32 %v739, %v739
        %v888 = vmul.f32 %v742, %v742
        %v889 = vmul.f32 %v747, %v747
        %v890 = vmul.f32 %v750, %v750
        %v891 = vmul.f32 %v755, %v755
        %v892 = vmul.f32 %v758, %v758
        %v893 = vmul.f32 %v763, %v763
        %v894 = vmul.f32 %v766, %v766
        %v895 = vmul.f32 %v771, %v771
        %v896 = vmul.f32 %v774, %v774
        %v897 = vmul.f32 %v779, %v779
        %v898 = vmul.f32 %v782, %v782
        %v899 = vmul.f32 %v787, %v787
        %v900 = vmul.f32 %v790, %v790
        %v901 = vmul.f32 %v795, %v795
        %v902 = vmul.f32 %v798, %v798
        %v903 = vmul.f32 %v803, %v803
        %v904 = vmul.f32 %v806, %v806
        %905 = vadd.xlane.f32.xlu0 %v873
        %v906 = vpop.xlane.xlu0 %905
        %907 = vadd.xlane.f32.xlu0 %v874
        %v908 = vpop.xlane.xlu0 %907
        %909 = vadd.xlane.f32.xlu0 %v875
        %v910 = vpop.xlane.xlu0 %909
        %911 = vadd.xlane.f32.xlu0 %v876
        %v912 = vpop.xlane.xlu0 %911
        %913 = vadd.xlane.f32.xlu0 %v877
        %v914 = vpop.xlane.xlu0 %913
        %915 = vadd.xlane.f32.xlu0 %v878
        %v916 = vpop.xlane.xlu0 %915
        %917 = vadd.xlane.f32.xlu0 %v879
        %v918 = vpop.xlane.xlu0 %917
        %919 = vadd.xlane.f32.xlu0 %v880
        %v920 = vpop.xlane.xlu0 %919
        %921 = vadd.xlane.f32.xlu0 %v881
        %v922 = vpop.xlane.xlu0 %921
        %923 = vadd.xlane.f32.xlu0 %v882
        %v924 = vpop.xlane.xlu0 %923
        %925 = vadd.xlane.f32.xlu0 %v883
        %v926 = vpop.xlane.xlu0 %925
        %927 = vadd.xlane.f32.xlu0 %v884
        %v928 = vpop.xlane.xlu0 %927
        %929 = vadd.xlane.f32.xlu0 %v885
        %v930 = vpop.xlane.xlu0 %929
        %931 = vadd.xlane.f32.xlu0 %v886
        %v932 = vpop.xlane.xlu0 %931
        %933 = vadd.xlane.f32.xlu0 %v887
        %v934 = vpop.xlane.xlu0 %933
        %935 = vadd.xlane.f32.xlu0 %v888
        %v936 = vpop.xlane.xlu0 %935
        %937 = vadd.xlane.f32.xlu0 %v889
        %v938 = vpop.xlane.xlu0 %937
        %939 = vadd.xlane.f32.xlu0 %v890
        %v940 = vpop.xlane.xlu0 %939
        %941 = vadd.xlane.f32.xlu0 %v891
        %v942 = vpop.xlane.xlu0 %941
        %943 = vadd.xlane.f32.xlu0 %v892
        %v944 = vpop.xlane.xlu0 %943
        %945 = vadd.xlane.f32.xlu0 %v893
        %v946 = vpop.xlane.xlu0 %945
        %947 = vadd.xlane.f32.xlu0 %v894
        %v948 = vpop.xlane.xlu0 %947
        %949 = vadd.xlane.f32.xlu0 %v895
        %v950 = vpop.xlane.xlu0 %949
        %951 = vadd.xlane.f32.xlu0 %v896
        %v952 = vpop.xlane.xlu0 %951
        %953 = vadd.xlane.f32.xlu0 %v897
        %v954 = vpop.xlane.xlu0 %953
        %955 = vadd.xlane.f32.xlu0 %v898
        %v956 = vpop.xlane.xlu0 %955
        %957 = vadd.xlane.f32.xlu0 %v899
        %v958 = vpop.xlane.xlu0 %957
        %959 = vadd.xlane.f32.xlu0 %v900
        %v960 = vpop.xlane.xlu0 %959
        %961 = vadd.xlane.f32.xlu0 %v901
        %v962 = vpop.xlane.xlu0 %961
        %963 = vadd.xlane.f32.xlu0 %v902
        %v964 = vpop.xlane.xlu0 %963
        %965 = vadd.xlane.f32.xlu0 %v903
        %v966 = vpop.xlane.xlu0 %965
        %967 = vadd.xlane.f32.xlu0 %v904
        %v968 = vpop.xlane.xlu0 %967
        %v969 = vmul.f32 %v810, 0.010416667
        %v970 = vmul.f32 %v812, 0.010416667
        %v971 = vmul.f32 %v814, 0.010416667
        %v972 = vmul.f32 %v816, 0.010416667
        %v973 = vmul.f32 %v818, 0.010416667
        %v974 = vmul.f32 %v820, 0.010416667
        %v975 = vmul.f32 %v822, 0.010416667
        %v976 = vmul.f32 %v824, 0.010416667
        %v977 = vmul.f32 %v826, 0.010416667
        %v978 = vmul.f32 %v828, 0.010416667
        %v979 = vmul.f32 %v830, 0.010416667
        %v980 = vmul.f32 %v832, 0.010416667
        %v981 = vmul.f32 %v834, 0.010416667
        %v982 = vmul.f32 %v836, 0.010416667
        %v983 = vmul.f32 %v838, 0.010416667
        %v984 = vmul.f32 %v840, 0.010416667
        %v985 = vmul.f32 %v842, 0.010416667
        %v986 = vmul.f32 %v844, 0.010416667
        %v987 = vmul.f32 %v846, 0.010416667
        %v988 = vmul.f32 %v848, 0.010416667
        %v989 = vmul.f32 %v850, 0.010416667
        %v990 = vmul.f32 %v852, 0.010416667
        %v991 = vmul.f32 %v854, 0.010416667
        %v992 = vmul.f32 %v856, 0.010416667
        %v993 = vmul.f32 %v858, 0.010416667
        %v994 = vmul.f32 %v860, 0.010416667
        %v995 = vmul.f32 %v862, 0.010416667
        %v996 = vmul.f32 %v864, 0.010416667
        %v997 = vmul.f32 %v866, 0.010416667
        %v998 = vmul.f32 %v868, 0.010416667
        %v999 = vmul.f32 %v870, 0.010416667
        %v1000 = vmul.f32 %v872, 0.010416667
        %v1001 = vmul.f32 %v906, 0.010416667
        %v1002 = vmul.f32 %v908, 0.010416667
        %v1003 = vmul.f32 %v910, 0.010416667
        %v1004 = vmul.f32 %v912, 0.010416667
        %v1005 = vmul.f32 %v914, 0.010416667
        %v1006 = vmul.f32 %v916, 0.010416667
        %v1007 = vmul.f32 %v918, 0.010416667
        %v1008 = vmul.f32 %v920, 0.010416667
        %v1009 = vmul.f32 %v922, 0.010416667
        %v1010 = vmul.f32 %v924, 0.010416667
        %v1011 = vmul.f32 %v926, 0.010416667
        %v1012 = vmul.f32 %v928, 0.010416667
        %v1013 = vmul.f32 %v930, 0.010416667
        %v1014 = vmul.f32 %v932, 0.010416667
        %v1015 = vmul.f32 %v934, 0.010416667
        %v1016 = vmul.f32 %v936, 0.010416667
        %v1017 = vmul.f32 %v938, 0.010416667
        %v1018 = vmul.f32 %v940, 0.010416667
        %v1019 = vmul.f32 %v942, 0.010416667
        %v1020 = vmul.f32 %v944, 0.010416667
        %v1021 = vmul.f32 %v946, 0.010416667
        %v1022 = vmul.f32 %v948, 0.010416667
        %v1023 = vmul.f32 %v950, 0.010416667
        %v1024 = vmul.f32 %v952, 0.010416667
        %v1025 = vmul.f32 %v954, 0.010416667
        %v1026 = vmul.f32 %v956, 0.010416667
        %v1027 = vmul.f32 %v958, 0.010416667
        %v1028 = vmul.f32 %v960, 0.010416667
        %v1029 = vmul.f32 %v962, 0.010416667
        %v1030 = vmul.f32 %v964, 0.010416667
        %v1031 = vmul.f32 %v966, 0.010416667
        %v1032 = vmul.f32 %v968, 0.010416667
        %v1033 = vmul.f32 %v969, %v969
        %v1034 = vmul.f32 %v970, %v970
        %v1035 = vmul.f32 %v971, %v971
        %v1036 = vmul.f32 %v972, %v972
        %v1037 = vmul.f32 %v973, %v973
        %v1038 = vmul.f32 %v974, %v974
        %v1039 = vmul.f32 %v975, %v975
        %v1040 = vmul.f32 %v976, %v976
        %v1041 = vmul.f32 %v977, %v977
        %v1042 = vmul.f32 %v978, %v978
        %v1043 = vmul.f32 %v979, %v979
        %v1044 = vmul.f32 %v980, %v980
        %v1045 = vmul.f32 %v981, %v981
        %v1046 = vmul.f32 %v982, %v982
        %v1047 = vmul.f32 %v983, %v983
        %v1048 = vmul.f32 %v984, %v984
        %v1049 = vmul.f32 %v985, %v985
        %v1050 = vmul.f32 %v986, %v986
        %v1051 = vmul.f32 %v987, %v987
        %v1052 = vmul.f32 %v988, %v988
        %v1053 = vmul.f32 %v989, %v989
        %v1054 = vmul.f32 %v990, %v990
        %v1055 = vmul.f32 %v991, %v991
        %v1056 = vmul.f32 %v992, %v992
        %v1057 = vmul.f32 %v993, %v993
        %v1058 = vmul.f32 %v994, %v994
        %v1059 = vmul.f32 %v995, %v995
        %v1060 = vmul.f32 %v996, %v996
        %v1061 = vmul.f32 %v997, %v997
        %v1062 = vmul.f32 %v998, %v998
        %v1063 = vmul.f32 %v999, %v999
        %v1064 = vmul.f32 %v1000, %v1000
        %v1065 = vsub.f32 %v1001, %v1033
        %v1066 = vsub.f32 %v1002, %v1034
        %v1067 = vsub.f32 %v1003, %v1035
        %v1068 = vsub.f32 %v1004, %v1036
        %v1069 = vsub.f32 %v1005, %v1037
        %v1070 = vsub.f32 %v1006, %v1038
        %v1071 = vsub.f32 %v1007, %v1039
        %v1072 = vsub.f32 %v1008, %v1040
        %v1073 = vsub.f32 %v1009, %v1041
        %v1074 = vsub.f32 %v1010, %v1042
        %v1075 = vsub.f32 %v1011, %v1043
        %v1076 = vsub.f32 %v1012, %v1044
        %v1077 = vsub.f32 %v1013, %v1045
        %v1078 = vsub.f32 %v1014, %v1046
        %v1079 = vsub.f32 %v1015, %v1047
        %v1080 = vsub.f32 %v1016, %v1048
        %v1081 = vsub.f32 %v1017, %v1049
        %v1082 = vsub.f32 %v1018, %v1050
        %v1083 = vsub.f32 %v1019, %v1051
        %v1084 = vsub.f32 %v1020, %v1052
        %v1085 = vsub.f32 %v1021, %v1053
        %v1086 = vsub.f32 %v1022, %v1054
        %v1087 = vsub.f32 %v1023, %v1055
        %v1088 = vsub.f32 %v1024, %v1056
        %v1089 = vsub.f32 %v1025, %v1057
        %v1090 = vsub.f32 %v1026, %v1058
        %v1091 = vsub.f32 %v1027, %v1059
        %v1092 = vsub.f32 %v1028, %v1060
        %v1093 = vsub.f32 %v1029, %v1061
        %v1094 = vsub.f32 %v1030, %v1062
        %v1095 = vsub.f32 %v1031, %v1063
        %v1096 = vsub.f32 %v1032, %v1064
        %v1097 = vsub.f32 %v683, %v969
        %v1098 = vsub.f32 %v686, %v970
        %v1099 = vsub.f32 %v691, %v971
        %v1100 = vsub.f32 %v694, %v972
        %v1101 = vsub.f32 %v699, %v973
        %v1102 = vsub.f32 %v702, %v974
        %v1103 = vsub.f32 %v707, %v975
        %v1104 = vsub.f32 %v710, %v976
        %v1105 = vsub.f32 %v715, %v977
        %v1106 = vsub.f32 %v718, %v978
        %v1107 = vsub.f32 %v723, %v979
        %v1108 = vsub.f32 %v726, %v980
        %v1109 = vsub.f32 %v731, %v981
        %v1110 = vsub.f32 %v734, %v982
        %v1111 = vsub.f32 %v739, %v983
        %v1112 = vsub.f32 %v742, %v984
        %v1113 = vsub.f32 %v747, %v985
        %v1114 = vsub.f32 %v750, %v986
        %v1115 = vsub.f32 %v755, %v987
        %v1116 = vsub.f32 %v758, %v988
        %v1117 = vsub.f32 %v763, %v989
        %v1118 = vsub.f32 %v766, %v990
        %v1119 = vsub.f32 %v771, %v991
        %v1120 = vsub.f32 %v774, %v992
        %v1121 = vsub.f32 %v779, %v993
        %v1122 = vsub.f32 %v782, %v994
        %v1123 = vsub.f32 %v787, %v995
        %v1124 = vsub.f32 %v790, %v996
        %v1125 = vsub.f32 %v795, %v997
        %v1126 = vsub.f32 %v798, %v998
        %v1127 = vsub.f32 %v803, %v999
        %v1128 = vsub.f32 %v806, %v1000
        %v1129 = vadd.f32 %v1065, 1e-05
        %v1130 = vadd.f32 %v1066, 1e-05
        %v1131 = vadd.f32 %v1067, 1e-05
        %v1132 = vadd.f32 %v1068, 1e-05
        %v1133 = vadd.f32 %v1069, 1e-05
        %v1134 = vadd.f32 %v1070, 1e-05
        %v1135 = vadd.f32 %v1071, 1e-05
        %v1136 = vadd.f32 %v1072, 1e-05
        %v1137 = vadd.f32 %v1073, 1e-05
        %v1138 = vadd.f32 %v1074, 1e-05
        %v1139 = vadd.f32 %v1075, 1e-05
        %v1140 = vadd.f32 %v1076, 1e-05
        %v1141 = vadd.f32 %v1077, 1e-05
        %v1142 = vadd.f32 %v1078, 1e-05
        %v1143 = vadd.f32 %v1079, 1e-05
        %v1144 = vadd.f32 %v1080, 1e-05
        %v1145 = vadd.f32 %v1081, 1e-05
        %v1146 = vadd.f32 %v1082, 1e-05
        %v1147 = vadd.f32 %v1083, 1e-05
        %v1148 = vadd.f32 %v1084, 1e-05
        %v1149 = vadd.f32 %v1085, 1e-05
        %v1150 = vadd.f32 %v1086, 1e-05
        %v1151 = vadd.f32 %v1087, 1e-05
        %v1152 = vadd.f32 %v1088, 1e-05
        %v1153 = vadd.f32 %v1089, 1e-05
        %v1154 = vadd.f32 %v1090, 1e-05
        %v1155 = vadd.f32 %v1091, 1e-05
        %v1156 = vadd.f32 %v1092, 1e-05
        %v1157 = vadd.f32 %v1093, 1e-05
        %v1158 = vadd.f32 %v1094, 1e-05
        %v1159 = vadd.f32 %v1095, 1e-05
        %v1160 = vadd.f32 %v1096, 1e-05
        %v1161 = vrsqrt.pop %v1129
        %v1162 = vrsqrt.pop %v1130
        %v1163 = vrsqrt.pop %v1131
        %v1164 = vrsqrt.pop %v1132
        %v1165 = vrsqrt.pop %v1133
        %v1166 = vrsqrt.pop %v1134
        %v1167 = vrsqrt.pop %v1135
        %v1168 = vrsqrt.pop %v1136
        %v1169 = vrsqrt.pop %v1137
        %v1170 = vrsqrt.pop %v1138
        %v1171 = vrsqrt.pop %v1139
        %v1172 = vrsqrt.pop %v1140
        %v1173 = vrsqrt.pop %v1141
        %v1174 = vrsqrt.pop %v1142
        %v1175 = vrsqrt.pop %v1143
        %v1176 = vrsqrt.pop %v1144
        %v1177 = vrsqrt.pop %v1145
        %v1178 = vrsqrt.pop %v1146
        %v1179 = vrsqrt.pop %v1147
        %v1180 = vrsqrt.pop %v1148
        %v1181 = vrsqrt.pop %v1149
        %v1182 = vrsqrt.pop %v1150
        %v1183 = vrsqrt.pop %v1151
        %v1184 = vrsqrt.pop %v1152
        %v1185 = vrsqrt.pop %v1153
        %v1186 = vrsqrt.pop %v1154
        %v1187 = vrsqrt.pop %v1155
        %v1188 = vrsqrt.pop %v1156
        %v1189 = vrsqrt.pop %v1157
        %v1190 = vrsqrt.pop %v1158
        %v1191 = vrsqrt.pop %v1159
        %v1192 = vrsqrt.pop %v1160
        %v1193 = vmul.f32 %v1097, %v1161
        %v1194 = vmul.f32 %v1098, %v1162
        %v1195 = vmul.f32 %v1099, %v1163
        %v1196 = vmul.f32 %v1100, %v1164
        %v1197 = vmul.f32 %v1101, %v1165
        %v1198 = vmul.f32 %v1102, %v1166
        %v1199 = vmul.f32 %v1103, %v1167
        %v1200 = vmul.f32 %v1104, %v1168
        %v1201 = vmul.f32 %v1105, %v1169
        %v1202 = vmul.f32 %v1106, %v1170
        %v1203 = vmul.f32 %v1107, %v1171
        %v1204 = vmul.f32 %v1108, %v1172
        %v1205 = vmul.f32 %v1109, %v1173
        %v1206 = vmul.f32 %v1110, %v1174
        %v1207 = vmul.f32 %v1111, %v1175
        %v1208 = vmul.f32 %v1112, %v1176
        %v1209 = vmul.f32 %v1113, %v1177
        %v1210 = vmul.f32 %v1114, %v1178
        %v1211 = vmul.f32 %v1115, %v1179
        %v1212 = vmul.f32 %v1116, %v1180
        %v1213 = vmul.f32 %v1117, %v1181
        %v1214 = vmul.f32 %v1118, %v1182
        %v1215 = vmul.f32 %v1119, %v1183
        %v1216 = vmul.f32 %v1120, %v1184
        %v1217 = vmul.f32 %v1121, %v1185
        %v1218 = vmul.f32 %v1122, %v1186
        %v1219 = vmul.f32 %v1123, %v1187
        %v1220 = vmul.f32 %v1124, %v1188
        %v1221 = vmul.f32 %v1125, %v1189
        %v1222 = vmul.f32 %v1126, %v1190
        %v1223 = vmul.f32 %v1127, %v1191
        %v1224 = vmul.f32 %v1128, %v1192
        %v1225 = vld [vmem:[%s3] sm:$0x1]
        %v1227 = vlaneseq
        %v1228 = vshrl.u32 %v1227, 7
        %v1229 = vsub.s32 0, %v1228
        %v1230 = vrot.slane %v1225, %v1229
        %v1232 = vmul.f32 %v1193, %v1230
        %v1233 = vmul.f32 %v1194, %v1230
        %v1234 = vmul.f32 %v1195, %v1230
        %v1235 = vmul.f32 %v1196, %v1230
        %v1236 = vmul.f32 %v1197, %v1230
        %v1237 = vmul.f32 %v1198, %v1230
        %v1238 = vmul.f32 %v1199, %v1230
        %v1239 = vmul.f32 %v1200, %v1230
        %v1240 = vmul.f32 %v1201, %v1230
        %v1241 = vmul.f32 %v1202, %v1230
        %v1242 = vmul.f32 %v1203, %v1230
        %v1243 = vmul.f32 %v1204, %v1230
        %v1244 = vmul.f32 %v1205, %v1230
        %v1245 = vmul.f32 %v1206, %v1230
        %v1246 = vmul.f32 %v1207, %v1230
        %v1247 = vmul.f32 %v1208, %v1230
        %v1248 = vmul.f32 %v1209, %v1230
        %v1249 = vmul.f32 %v1210, %v1230
        %v1250 = vmul.f32 %v1211, %v1230
        %v1251 = vmul.f32 %v1212, %v1230
        %v1252 = vmul.f32 %v1213, %v1230
        %v1253 = vmul.f32 %v1214, %v1230
        %v1254 = vmul.f32 %v1215, %v1230
        %v1255 = vmul.f32 %v1216, %v1230
        %v1256 = vmul.f32 %v1217, %v1230
        %v1257 = vmul.f32 %v1218, %v1230
        %v1258 = vmul.f32 %v1219, %v1230
        %v1259 = vmul.f32 %v1220, %v1230
        %v1260 = vmul.f32 %v1221, %v1230
        %v1261 = vmul.f32 %v1222, %v1230
        %v1262 = vmul.f32 %v1223, %v1230
        %v1263 = vmul.f32 %v1224, %v1230
        %v1264 = vld [vmem:[%s4] sm:$0x1]
        %v1266 = vlaneseq
        %v1267 = vshrl.u32 %v1266, 7
        %v1268 = vsub.s32 0, %v1267
        %v1269 = vrot.slane %v1264, %v1268
        %v1271 = vadd.f32 %v1232, %v1269
        %v1272 = vadd.f32 %v1233, %v1269
        %v1273 = vadd.f32 %v1234, %v1269
        %v1274 = vadd.f32 %v1235, %v1269
        %v1275 = vadd.f32 %v1236, %v1269
        %v1276 = vadd.f32 %v1237, %v1269
        %v1277 = vadd.f32 %v1238, %v1269
        %v1278 = vadd.f32 %v1239, %v1269
        %v1279 = vadd.f32 %v1240, %v1269
        %v1280 = vadd.f32 %v1241, %v1269
        %v1281 = vadd.f32 %v1242, %v1269
        %v1282 = vadd.f32 %v1243, %v1269
        %v1283 = vadd.f32 %v1244, %v1269
        %v1284 = vadd.f32 %v1245, %v1269
        %v1285 = vadd.f32 %v1246, %v1269
        %v1286 = vadd.f32 %v1247, %v1269
        %v1287 = vadd.f32 %v1248, %v1269
        %v1288 = vadd.f32 %v1249, %v1269
        %v1289 = vadd.f32 %v1250, %v1269
        %v1290 = vadd.f32 %v1251, %v1269
        %v1291 = vadd.f32 %v1252, %v1269
        %v1292 = vadd.f32 %v1253, %v1269
        %v1293 = vadd.f32 %v1254, %v1269
        %v1294 = vadd.f32 %v1255, %v1269
        %v1295 = vadd.f32 %v1256, %v1269
        %v1296 = vadd.f32 %v1257, %v1269
        %v1297 = vadd.f32 %v1258, %v1269
        %v1298 = vadd.f32 %v1259, %v1269
        %v1299 = vadd.f32 %v1260, %v1269
        %v1300 = vadd.f32 %v1261, %v1269
        %v1301 = vadd.f32 %v1262, %v1269
        %v1302 = vadd.f32 %v1263, %v1269
        %v1303 = vpack.c.bf16 %v1272, %v1271
        %v1304 = vpack.c.bf16 %v1274, %v1273
        %v1305 = vpack.c.bf16 %v1276, %v1275
        %v1306 = vpack.c.bf16 %v1278, %v1277
        %v1307 = vpack.c.bf16 %v1280, %v1279
        %v1308 = vpack.c.bf16 %v1282, %v1281
        %v1309 = vpack.c.bf16 %v1284, %v1283
        %v1310 = vpack.c.bf16 %v1286, %v1285
        %v1311 = vpack.c.bf16 %v1288, %v1287
        %v1312 = vpack.c.bf16 %v1290, %v1289
        %v1313 = vpack.c.bf16 %v1292, %v1291
        %v1314 = vpack.c.bf16 %v1294, %v1293
        %v1315 = vpack.c.bf16 %v1296, %v1295
        %v1316 = vpack.c.bf16 %v1298, %v1297
        %v1317 = vpack.c.bf16 %v1300, %v1299
        %v1318 = vpack.c.bf16 %v1302, %v1301
        %v1319 = vld [vmem:[%s5] sm:$0xff]
        %v1320 = vld [vmem:[%s5 + $0x8] sm:$0xf]
        %v1321 = vld [vmem:[%s5 + $0xc] sm:$0xff]
        %v1322 = vld [vmem:[%s5 + $0x14] sm:$0xf]
        %v1323 = vld [vmem:[%s5 + $0x18] sm:$0xff]
        %v1324 = vld [vmem:[%s5 + $0x20] sm:$0xf]
        %v1325 = vld [vmem:[%s5 + $0x24] sm:$0xff]
        %v1326 = vld [vmem:[%s5 + $0x2c] sm:$0xf]
        %v1327 = vld [vmem:[%s5 + $0x30] sm:$0xff]
        %v1328 = vld [vmem:[%s5 + $0x38] sm:$0xf]
        %v1329 = vld [vmem:[%s5 + $0x3c] sm:$0xff]
        %v1330 = vld [vmem:[%s5 + $0x44] sm:$0xf]
        %v1331 = vld [vmem:[%s5 + $0x48] sm:$0xff]
        %v1332 = vld [vmem:[%s5 + $0x50] sm:$0xf]
        %v1333 = vld [vmem:[%s5 + $0x54] sm:$0xff]
        %v1334 = vld [vmem:[%s5 + $0x5c] sm:$0xf]
        %v1335 = vld [vmem:[%s5 + $0x60] sm:$0xff]
        %v1336 = vld [vmem:[%s5 + $0x68] sm:$0xf]
        %v1337 = vld [vmem:[%s5 + $0x6c] sm:$0xff]
        %v1338 = vld [vmem:[%s5 + $0x74] sm:$0xf]
        %v1339 = vld [vmem:[%s5 + $0x78] sm:$0xff]
        %v1340 = vld [vmem:[%s5 + $0x80] sm:$0xf]
        %v1341 = vld [vmem:[%s5 + $0x84] sm:$0xff]
        %v1342 = vld [vmem:[%s5 + $0x8c] sm:$0xf]
        %v1343 = vld [vmem:[%s5 + $0x90] sm:$0xff]
        %v1344 = vld [vmem:[%s5 + $0x98] sm:$0xf]
        %v1345 = vld [vmem:[%s5 + $0x9c] sm:$0xff]
        %v1346 = vld [vmem:[%s5 + $0xa4] sm:$0xf]
        %v1347 = vld [vmem:[%s5 + $0xa8] sm:$0xff]
        %v1348 = vld [vmem:[%s5 + $0xb0] sm:$0xf]
        %v1349 = vld [vmem:[%s5 + $0xb4] sm:$0xff]
        %v1350 = vld [vmem:[%s5 + $0xbc] sm:$0xf]
        %v1351 = vld [vmem:[%s6] sm:$0x7]
        %v1353 = vlaneseq
        %v1354 = vshrl.u32 %v1353, 7
        %v1355 = vsub.s32 0, %v1354
        %v1356 = vrot.slane %v1351, %v1355
        %v1357 = vlaneseq
        %v1358 = vshrl.u32 %v1357, 7
        %v1359 = vsub.s32 1, %v1358
        %v1360 = vrot.slane %v1351, %v1359
        %v1361 = vlaneseq
        %v1362 = vshrl.u32 %v1361, 7
        %v1363 = vsub.s32 2, %v1362
        %v1364 = vrot.slane %v1351, %v1363
        %v1400 = vunpack.c.l.b16 %v1319
        %v1401 = vunpack.c.h.b16 %v1319
        %v1402 = vunpack.c.l.b16 %v1320
        %v1403 = vunpack.c.l.b16 %v1321
        %v1404 = vunpack.c.h.b16 %v1321
        %v1405 = vunpack.c.l.b16 %v1322
        %v1406 = vunpack.c.l.b16 %v1323
        %v1407 = vunpack.c.h.b16 %v1323
        %v1408 = vunpack.c.l.b16 %v1324
        %v1409 = vunpack.c.l.b16 %v1325
        %v1410 = vunpack.c.h.b16 %v1325
        %v1411 = vunpack.c.l.b16 %v1326
        %v1412 = vunpack.c.l.b16 %v1327
        %v1413 = vunpack.c.h.b16 %v1327
        %v1414 = vunpack.c.l.b16 %v1328
        %v1415 = vunpack.c.l.b16 %v1329
        %v1416 = vunpack.c.h.b16 %v1329
        %v1417 = vunpack.c.l.b16 %v1330
        %v1418 = vunpack.c.l.b16 %v1331
        %v1419 = vunpack.c.h.b16 %v1331
        %v1420 = vunpack.c.l.b16 %v1332
        %v1421 = vunpack.c.l.b16 %v1333
        %v1422 = vunpack.c.h.b16 %v1333
        %v1423 = vunpack.c.l.b16 %v1334
        %v1424 = vunpack.c.l.b16 %v1335
        %v1425 = vunpack.c.h.b16 %v1335
        %v1426 = vunpack.c.l.b16 %v1336
        %v1427 = vunpack.c.l.b16 %v1337
        %v1428 = vunpack.c.h.b16 %v1337
        %v1429 = vunpack.c.l.b16 %v1338
        %v1430 = vunpack.c.l.b16 %v1339
        %v1431 = vunpack.c.h.b16 %v1339
        %v1432 = vunpack.c.l.b16 %v1340
        %v1433 = vunpack.c.l.b16 %v1341
        %v1434 = vunpack.c.h.b16 %v1341
        %v1435 = vunpack.c.l.b16 %v1342
        %v1436 = vunpack.c.l.b16 %v1343
        %v1437 = vunpack.c.h.b16 %v1343
        %v1438 = vunpack.c.l.b16 %v1344
        %v1439 = vunpack.c.l.b16 %v1345
        %v1440 = vunpack.c.h.b16 %v1345
        %v1441 = vunpack.c.l.b16 %v1346
        %v1442 = vunpack.c.l.b16 %v1347
        %v1443 = vunpack.c.h.b16 %v1347
        %v1444 = vunpack.c.l.b16 %v1348
        %v1445 = vunpack.c.l.b16 %v1349
        %v1446 = vunpack.c.h.b16 %v1349
        %v1447 = vunpack.c.l.b16 %v1350
        %v1448 = vpack.c.b16 %v1403, %v1400
        %v1449 = vpack.c.b16 %v1404, %v1401
        %v1450 = vpack.c.b16 %v1405, %v1402
        %v1451 = vpack.c.b16 %v1409, %v1406
        %v1452 = vpack.c.b16 %v1410, %v1407
        %v1453 = vpack.c.b16 %v1411, %v1408
        %v1454 = vpack.c.b16 %v1415, %v1412
        %v1455 = vpack.c.b16 %v1416, %v1413
        %v1456 = vpack.c.b16 %v1417, %v1414
        %v1457 = vpack.c.b16 %v1421, %v1418
        %v1458 = vpack.c.b16 %v1422, %v1419
        %v1459 = vpack.c.b16 %v1423, %v1420
        %v1460 = vpack.c.b16 %v1427, %v1424
        %v1461 = vpack.c.b16 %v1428, %v1425
        %v1462 = vpack.c.b16 %v1429, %v1426
        %v1463 = vpack.c.b16 %v1433, %v1430
        %v1464 = vpack.c.b16 %v1434, %v1431
        %v1465 = vpack.c.b16 %v1435, %v1432
        %v1466 = vpack.c.b16 %v1439, %v1436
        %v1467 = vpack.c.b16 %v1440, %v1437
        %v1468 = vpack.c.b16 %v1441, %v1438
        %v1469 = vpack.c.b16 %v1445, %v1442
        %v1470 = vpack.c.b16 %v1446, %v1443
        %v1471 = vpack.c.b16 %v1447, %v1444
        %1496 = vmatprep.subr.bf16.mxu0 %v1470
        %1497 = vmatpush1.bf16.msra.mxu0 %v1469
        %1498 = vmatprep.subr.bf16.mxu0 %v1467
        %1499 = vmatpush1.bf16.msra.mxu0 %v1466
        %1500 = vmatprep.subr.bf16.mxu0 %v1464
        %1501 = vmatpush1.bf16.msra.mxu0 %v1463
        %1502 = vmatprep.subr.bf16.mxu0 %v1461
        %1503 = vmatpush1.bf16.msra.mxu0 %v1460
        %1504 = vmatprep.subr.bf16.mxu0 %v1458
        %1505 = vmatpush1.bf16.msra.mxu0 %v1457
        %1506 = vmatprep.subr.bf16.mxu0 %v1455
        %1507 = vmatpush1.bf16.msra.mxu0 %v1454
        %1508 = vmatprep.subr.bf16.mxu0 %v1452
        %1509 = vmatpush1.bf16.msra.mxu0 %v1451
        %1510 = vmatprep.subr.bf16.mxu0 %v1449
        %1511 = vmatpush1.bf16.msra.mxu0 %v1448
        %1512 = vmatprep.subr.bf16.mxu0 0
        %1513 = vmatpush2.bf16.msra.mxu0 0
        %1514 = vmatprep.subr.bf16.mxu0 0
        %1515 = vmatpush2.bf16.msra.mxu0 0
        %1516 = vmatprep.subr.bf16.mxu0 0
        %1517 = vmatpush2.bf16.msra.mxu0 0
        %1518 = vmatprep.subr.bf16.mxu0 0
        %1519 = vmatpush2.bf16.msra.mxu0 0
        %1520 = vmatprep.subr.bf16.mxu0 0
        %1521 = vmatpush2.bf16.msra.mxu0 0
        %1522 = vmatprep.subr.bf16.mxu0 0
        %1523 = vmatpush2.bf16.msra.mxu0 0
        %1524 = vmatprep.subr.bf16.mxu0 0
        %1525 = vmatpush2.bf16.msra.mxu0 0
        %1526 = vmatprep.subr.bf16.mxu0 0
        %1527 = vmatpush2.bf16.msra.mxu0 0
        %1528 = vmatprep.mubr.bf16.mxu0 0
        %1529 = vmatmul.mubr.bf16.gmra.mxu0 %v1303
        %v1530 = vpop.f32.mrf.mxu0
        %v1531 = vadd.f32 %v1356, %v1530
        %v1532 = vpop.f32.mrf.mxu0
        %v1533 = vadd.f32 %v1360, %v1532
        %v1534 = vpop.f32.mrf.mxu0
        %v1535 = vadd.f32 %v1356, %v1534
        %v1536 = vpop.f32.mrf.mxu0
        %v1537 = vadd.f32 %v1360, %v1536
        %1538 = vmatprep.mubr.bf16.mxu0 0
        %1539 = vmatmul.mubr.bf16.gmra.mxu0 %v1304
        %v1540 = vpop.f32.mrf.mxu0
        %v1541 = vadd.f32 %v1356, %v1540
        %v1542 = vpop.f32.mrf.mxu0
        %v1543 = vadd.f32 %v1360, %v1542
        %v1544 = vpop.f32.mrf.mxu0
        %v1545 = vadd.f32 %v1356, %v1544
        %v1546 = vpop.f32.mrf.mxu0
        %v1547 = vadd.f32 %v1360, %v1546
        %1548 = vmatprep.mubr.bf16.mxu0 0
        %1549 = vmatmul.mubr.bf16.gmra.mxu0 %v1305
        %v1550 = vpop.f32.mrf.mxu0
        %v1551 = vadd.f32 %v1356, %v1550
        %v1552 = vpop.f32.mrf.mxu0
        %v1553 = vadd.f32 %v1360, %v1552
        %v1554 = vpop.f32.mrf.mxu0
        %v1555 = vadd.f32 %v1356, %v1554
        %v1556 = vpop.f32.mrf.mxu0
        %v1557 = vadd.f32 %v1360, %v1556
        %1558 = vmatprep.mubr.bf16.mxu0 0
        %1559 = vmatmul.mubr.bf16.gmra.mxu0 %v1306
        %v1560 = vpop.f32.mrf.mxu0
        %v1561 = vadd.f32 %v1356, %v1560
        %v1562 = vpop.f32.mrf.mxu0
        %v1563 = vadd.f32 %v1360, %v1562
        %v1564 = vpop.f32.mrf.mxu0
        %v1565 = vadd.f32 %v1356, %v1564
        %v1566 = vpop.f32.mrf.mxu0
        %v1567 = vadd.f32 %v1360, %v1566
        %1568 = vmatprep.mubr.bf16.mxu0 0
        %1569 = vmatmul.mubr.bf16.gmra.mxu0 %v1307
        %v1570 = vpop.f32.mrf.mxu0
        %v1571 = vadd.f32 %v1356, %v1570
        %v1572 = vpop.f32.mrf.mxu0
        %v1573 = vadd.f32 %v1360, %v1572
        %v1574 = vpop.f32.mrf.mxu0
        %v1575 = vadd.f32 %v1356, %v1574
        %v1576 = vpop.f32.mrf.mxu0
        %v1577 = vadd.f32 %v1360, %v1576
        %1578 = vmatprep.mubr.bf16.mxu0 0
        %1579 = vmatmul.mubr.bf16.gmra.mxu0 %v1308
        %v1580 = vpop.f32.mrf.mxu0
        %v1581 = vadd.f32 %v1356, %v1580
        %v1582 = vpop.f32.mrf.mxu0
        %v1583 = vadd.f32 %v1360, %v1582
        %v1584 = vpop.f32.mrf.mxu0
        %v1585 = vadd.f32 %v1356, %v1584
        %v1586 = vpop.f32.mrf.mxu0
        %v1587 = vadd.f32 %v1360, %v1586
        %1588 = vmatprep.mubr.bf16.mxu0 0
        %1589 = vmatmul.mubr.bf16.gmra.mxu0 %v1309
        %v1590 = vpop.f32.mrf.mxu0
        %v1591 = vadd.f32 %v1356, %v1590
        %v1592 = vpop.f32.mrf.mxu0
        %v1593 = vadd.f32 %v1360, %v1592
        %v1594 = vpop.f32.mrf.mxu0
        %v1595 = vadd.f32 %v1356, %v1594
        %v1596 = vpop.f32.mrf.mxu0
        %v1597 = vadd.f32 %v1360, %v1596
        %1598 = vmatprep.mubr.bf16.mxu0 0
        %1599 = vmatmul.mubr.bf16.gmra.mxu0 %v1310
        %v1600 = vpop.f32.mrf.mxu0
        %v1601 = vadd.f32 %v1356, %v1600
        %v1602 = vpop.f32.mrf.mxu0
        %v1603 = vadd.f32 %v1360, %v1602
        %v1604 = vpop.f32.mrf.mxu0
        %v1605 = vadd.f32 %v1356, %v1604
        %v1606 = vpop.f32.mrf.mxu0
        %v1607 = vadd.f32 %v1360, %v1606
        %1608 = vmatprep.mubr.bf16.mxu0 0
        %1609 = vmatmul.mubr.bf16.gmra.mxu0 %v1311
        %v1610 = vpop.f32.mrf.mxu0
        %v1611 = vadd.f32 %v1356, %v1610
        %v1612 = vpop.f32.mrf.mxu0
        %v1613 = vadd.f32 %v1360, %v1612
        %v1614 = vpop.f32.mrf.mxu0
        %v1615 = vadd.f32 %v1356, %v1614
        %v1616 = vpop.f32.mrf.mxu0
        %v1617 = vadd.f32 %v1360, %v1616
        %1618 = vmatprep.mubr.bf16.mxu0 0
        %1619 = vmatmul.mubr.bf16.gmra.mxu0 %v1312
        %v1620 = vpop.f32.mrf.mxu0
        %v1621 = vadd.f32 %v1356, %v1620
        %v1622 = vpop.f32.mrf.mxu0
        %v1623 = vadd.f32 %v1360, %v1622
        %v1624 = vpop.f32.mrf.mxu0
        %v1625 = vadd.f32 %v1356, %v1624
        %v1626 = vpop.f32.mrf.mxu0
        %v1627 = vadd.f32 %v1360, %v1626
        %1628 = vmatprep.mubr.bf16.mxu0 0
        %1629 = vmatmul.mubr.bf16.gmra.mxu0 %v1313
        %v1630 = vpop.f32.mrf.mxu0
        %v1631 = vadd.f32 %v1356, %v1630
        %v1632 = vpop.f32.mrf.mxu0
        %v1633 = vadd.f32 %v1360, %v1632
        %v1634 = vpop.f32.mrf.mxu0
        %v1635 = vadd.f32 %v1356, %v1634
        %v1636 = vpop.f32.mrf.mxu0
        %v1637 = vadd.f32 %v1360, %v1636
        %1638 = vmatprep.mubr.bf16.mxu0 0
        %1639 = vmatmul.mubr.bf16.gmra.mxu0 %v1314
        %v1640 = vpop.f32.mrf.mxu0
        %v1641 = vadd.f32 %v1356, %v1640
        %v1642 = vpop.f32.mrf.mxu0
        %v1643 = vadd.f32 %v1360, %v1642
        %v1644 = vpop.f32.mrf.mxu0
        %v1645 = vadd.f32 %v1356, %v1644
        %v1646 = vpop.f32.mrf.mxu0
        %v1647 = vadd.f32 %v1360, %v1646
        %1648 = vmatprep.mubr.bf16.mxu0 0
        %1649 = vmatmul.mubr.bf16.gmra.mxu0 %v1315
        %v1650 = vpop.f32.mrf.mxu0
        %v1651 = vadd.f32 %v1356, %v1650
        %v1652 = vpop.f32.mrf.mxu0
        %v1653 = vadd.f32 %v1360, %v1652
        %v1654 = vpop.f32.mrf.mxu0
        %v1655 = vadd.f32 %v1356, %v1654
        %v1656 = vpop.f32.mrf.mxu0
        %v1657 = vadd.f32 %v1360, %v1656
        %1658 = vmatprep.mubr.bf16.mxu0 0
        %1659 = vmatmul.mubr.bf16.gmra.mxu0 %v1316
        %v1660 = vpop.f32.mrf.mxu0
        %v1661 = vadd.f32 %v1356, %v1660
        %v1662 = vpop.f32.mrf.mxu0
        %v1663 = vadd.f32 %v1360, %v1662
        %v1664 = vpop.f32.mrf.mxu0
        %v1665 = vadd.f32 %v1356, %v1664
        %v1666 = vpop.f32.mrf.mxu0
        %v1667 = vadd.f32 %v1360, %v1666
        %1668 = vmatprep.mubr.bf16.mxu0 0
        %1669 = vmatmul.mubr.bf16.gmra.mxu0 %v1317
        %v1670 = vpop.f32.mrf.mxu0
        %v1671 = vadd.f32 %v1356, %v1670
        %v1672 = vpop.f32.mrf.mxu0
        %v1673 = vadd.f32 %v1360, %v1672
        %v1674 = vpop.f32.mrf.mxu0
        %v1675 = vadd.f32 %v1356, %v1674
        %v1676 = vpop.f32.mrf.mxu0
        %v1677 = vadd.f32 %v1360, %v1676
        %1678 = vmatprep.mubr.bf16.mxu0 0
        %1679 = vmatmul.mubr.bf16.gmra.mxu0 %v1318
        %v1680 = vpop.f32.mrf.mxu0
        %v1681 = vadd.f32 %v1356, %v1680
        %v1682 = vpop.f32.mrf.mxu0
        %v1683 = vadd.f32 %v1360, %v1682
        %v1684 = vpop.f32.mrf.mxu0
        %v1685 = vadd.f32 %v1356, %v1684
        %v1686 = vpop.f32.mrf.mxu0
        %v1687 = vadd.f32 %v1360, %v1686
        %1688 = vdwg.mxu0
        %1689 = vmatprep.subr.bf16.mxu0 0
        %1690 = vmatpush1.bf16.msra.mxu0 %v1471
        %1691 = vmatprep.subr.bf16.mxu0 0
        %1692 = vmatpush1.bf16.msra.mxu0 %v1468
        %1693 = vmatprep.subr.bf16.mxu0 0
        %1694 = vmatpush1.bf16.msra.mxu0 %v1465
        %1695 = vmatprep.subr.bf16.mxu0 0
        %1696 = vmatpush1.bf16.msra.mxu0 %v1462
        %1697 = vmatprep.subr.bf16.mxu0 0
        %1698 = vmatpush1.bf16.msra.mxu0 %v1459
        %1699 = vmatprep.subr.bf16.mxu0 0
        %1700 = vmatpush1.bf16.msra.mxu0 %v1456
        %1701 = vmatprep.subr.bf16.mxu0 0
        %1702 = vmatpush1.bf16.msra.mxu0 %v1453
        %1703 = vmatprep.subr.bf16.mxu0 0
        %1704 = vmatpush1.bf16.msra.mxu0 %v1450
        %1705 = vmatprep.subr.bf16.mxu0 0
        %1706 = vmatpush2.bf16.msra.mxu0 0
        %1707 = vmatprep.subr.bf16.mxu0 0
        %1708 = vmatpush2.bf16.msra.mxu0 0
        %1709 = vmatprep.subr.bf16.mxu0 0
        %1710 = vmatpush2.bf16.msra.mxu0 0
        %1711 = vmatprep.subr.bf16.mxu0 0
        %1712 = vmatpush2.bf16.msra.mxu0 0
        %1713 = vmatprep.subr.bf16.mxu0 0
        %1714 = vmatpush2.bf16.msra.mxu0 0
        %1715 = vmatprep.subr.bf16.mxu0 0
        %1716 = vmatpush2.bf16.msra.mxu0 0
        %1717 = vmatprep.subr.bf16.mxu0 0
        %1718 = vmatpush2.bf16.msra.mxu0 0
        %1719 = vmatprep.subr.bf16.mxu0 0
        %1720 = vmatpush2.bf16.msra.mxu0 0
        %1721 = vmatprep.mubr.bf16.mxu0 0
        %1722 = vmatmul.mubr.bf16.gmra.mxu0 %v1303
        %v1723 = vpop.f32.mrf.mxu0
        %v1724 = vadd.f32 %v1364, %v1723
        %v1725 = vpop.f32.mrf.mxu0
        %v1726 = vpop.f32.mrf.mxu0
        %v1727 = vadd.f32 %v1364, %v1726
        %v1728 = vpop.f32.mrf.mxu0
        %1729 = vmatprep.mubr.bf16.mxu0 0
        %1730 = vmatmul.mubr.bf16.gmra.mxu0 %v1304
        %v1731 = vpop.f32.mrf.mxu0
        %v1732 = vadd.f32 %v1364, %v1731
        %v1733 = vpop.f32.mrf.mxu0
        %v1734 = vpop.f32.mrf.mxu0
        %v1735 = vadd.f32 %v1364, %v1734
        %v1736 = vpop.f32.mrf.mxu0
        %1737 = vmatprep.mubr.bf16.mxu0 0
        %1738 = vmatmul.mubr.bf16.gmra.mxu0 %v1305
        %v1739 = vpop.f32.mrf.mxu0
        %v1740 = vadd.f32 %v1364, %v1739
        %v1741 = vpop.f32.mrf.mxu0
        %v1742 = vpop.f32.mrf.mxu0
        %v1743 = vadd.f32 %v1364, %v1742
        %v1744 = vpop.f32.mrf.mxu0
        %1745 = vmatprep.mubr.bf16.mxu0 0
        %1746 = vmatmul.mubr.bf16.gmra.mxu0 %v1306
        %v1747 = vpop.f32.mrf.mxu0
        %v1748 = vadd.f32 %v1364, %v1747
        %v1749 = vpop.f32.mrf.mxu0
        %v1750 = vpop.f32.mrf.mxu0
        %v1751 = vadd.f32 %v1364, %v1750
        %v1752 = vpop.f32.mrf.mxu0
        %1753 = vmatprep.mubr.bf16.mxu0 0
        %1754 = vmatmul.mubr.bf16.gmra.mxu0 %v1307
        %v1755 = vpop.f32.mrf.mxu0
        %v1756 = vadd.f32 %v1364, %v1755
        %v1757 = vpop.f32.mrf.mxu0
        %v1758 = vpop.f32.mrf.mxu0
        %v1759 = vadd.f32 %v1364, %v1758
        %v1760 = vpop.f32.mrf.mxu0
        %1761 = vmatprep.mubr.bf16.mxu0 0
        %1762 = vmatmul.mubr.bf16.gmra.mxu0 %v1308
        %v1763 = vpop.f32.mrf.mxu0
        %v1764 = vadd.f32 %v1364, %v1763
        %v1765 = vpop.f32.mrf.mxu0
        %v1766 = vpop.f32.mrf.mxu0
        %v1767 = vadd.f32 %v1364, %v1766
        %v1768 = vpop.f32.mrf.mxu0
        %1769 = vmatprep.mubr.bf16.mxu0 0
        %1770 = vmatmul.mubr.bf16.gmra.mxu0 %v1309
        %v1771 = vpop.f32.mrf.mxu0
        %v1772 = vadd.f32 %v1364, %v1771
        %v1773 = vpop.f32.mrf.mxu0
        %v1774 = vpop.f32.mrf.mxu0
        %v1775 = vadd.f32 %v1364, %v1774
        %v1776 = vpop.f32.mrf.mxu0
        %1777 = vmatprep.mubr.bf16.mxu0 0
        %1778 = vmatmul.mubr.bf16.gmra.mxu0 %v1310
        %v1779 = vpop.f32.mrf.mxu0
        %v1780 = vadd.f32 %v1364, %v1779
        %v1781 = vpop.f32.mrf.mxu0
        %v1782 = vpop.f32.mrf.mxu0
        %v1783 = vadd.f32 %v1364, %v1782
        %v1784 = vpop.f32.mrf.mxu0
        %1785 = vmatprep.mubr.bf16.mxu0 0
        %1786 = vmatmul.mubr.bf16.gmra.mxu0 %v1311
        %v1787 = vpop.f32.mrf.mxu0
        %v1788 = vadd.f32 %v1364, %v1787
        %v1789 = vpop.f32.mrf.mxu0
        %v1790 = vpop.f32.mrf.mxu0
        %v1791 = vadd.f32 %v1364, %v1790
        %v1792 = vpop.f32.mrf.mxu0
        %1793 = vmatprep.mubr.bf16.mxu0 0
        %1794 = vmatmul.mubr.bf16.gmra.mxu0 %v1312
        %v1795 = vpop.f32.mrf.mxu0
        %v1796 = vadd.f32 %v1364, %v1795
        %v1797 = vpop.f32.mrf.mxu0
        %v1798 = vpop.f32.mrf.mxu0
        %v1799 = vadd.f32 %v1364, %v1798
        %v1800 = vpop.f32.mrf.mxu0
        %1801 = vmatprep.mubr.bf16.mxu0 0
        %1802 = vmatmul.mubr.bf16.gmra.mxu0 %v1313
        %v1803 = vpop.f32.mrf.mxu0
        %v1804 = vadd.f32 %v1364, %v1803
        %v1805 = vpop.f32.mrf.mxu0
        %v1806 = vpop.f32.mrf.mxu0
        %v1807 = vadd.f32 %v1364, %v1806
        %v1808 = vpop.f32.mrf.mxu0
        %1809 = vmatprep.mubr.bf16.mxu0 0
        %1810 = vmatmul.mubr.bf16.gmra.mxu0 %v1314
        %v1811 = vpop.f32.mrf.mxu0
        %v1812 = vadd.f32 %v1364, %v1811
        %v1813 = vpop.f32.mrf.mxu0
        %v1814 = vpop.f32.mrf.mxu0
        %v1815 = vadd.f32 %v1364, %v1814
        %v1816 = vpop.f32.mrf.mxu0
        %1817 = vmatprep.mubr.bf16.mxu0 0
        %1818 = vmatmul.mubr.bf16.gmra.mxu0 %v1315
        %v1819 = vpop.f32.mrf.mxu0
        %v1820 = vadd.f32 %v1364, %v1819
        %v1821 = vpop.f32.mrf.mxu0
        %v1822 = vpop.f32.mrf.mxu0
        %v1823 = vadd.f32 %v1364, %v1822
        %v1824 = vpop.f32.mrf.mxu0
        %1825 = vmatprep.mubr.bf16.mxu0 0
        %1826 = vmatmul.mubr.bf16.gmra.mxu0 %v1316
        %v1827 = vpop.f32.mrf.mxu0
        %v1828 = vadd.f32 %v1364, %v1827
        %v1829 = vpop.f32.mrf.mxu0
        %v1830 = vpop.f32.mrf.mxu0
        %v1831 = vadd.f32 %v1364, %v1830
        %v1832 = vpop.f32.mrf.mxu0
        %1833 = vmatprep.mubr.bf16.mxu0 0
        %1834 = vmatmul.mubr.bf16.gmra.mxu0 %v1317
        %v1835 = vpop.f32.mrf.mxu0
        %v1836 = vadd.f32 %v1364, %v1835
        %v1837 = vpop.f32.mrf.mxu0
        %v1838 = vpop.f32.mrf.mxu0
        %v1839 = vadd.f32 %v1364, %v1838
        %v1840 = vpop.f32.mrf.mxu0
        %1841 = vmatprep.mubr.bf16.mxu0 0
        %1842 = vmatmul.mubr.bf16.gmra.mxu0 %v1318
        %v1843 = vpop.f32.mrf.mxu0
        %v1844 = vadd.f32 %v1364, %v1843
        %v1845 = vpop.f32.mrf.mxu0
        %v1846 = vpop.f32.mrf.mxu0
        %v1847 = vadd.f32 %v1364, %v1846
        %v1848 = vpop.f32.mrf.mxu0
        %1849 = vdwg.mxu0
        %v1850 = vmul.f32 %v1531, %v1531
        %v1851 = vmul.f32 %v1533, %v1533
        %v1852 = vmul.f32 %v1724, %v1724
        %v1853 = vmul.f32 %v1535, %v1535
        %v1854 = vmul.f32 %v1537, %v1537
        %v1855 = vmul.f32 %v1727, %v1727
        %v1856 = vmul.f32 %v1541, %v1541
        %v1857 = vmul.f32 %v1543, %v1543
        %v1858 = vmul.f32 %v1732, %v1732
        %v1859 = vmul.f32 %v1545, %v1545
        %v1860 = vmul.f32 %v1547, %v1547
        %v1861 = vmul.f32 %v1735, %v1735
        %v1862 = vmul.f32 %v1551, %v1551
        %v1863 = vmul.f32 %v1553, %v1553
        %v1864 = vmul.f32 %v1740, %v1740
        %v1865 = vmul.f32 %v1555, %v1555
        %v1866 = vmul.f32 %v1557, %v1557
        %v1867 = vmul.f32 %v1743, %v1743
        %v1868 = vmul.f32 %v1561, %v1561
        %v1869 = vmul.f32 %v1563, %v1563
        %v1870 = vmul.f32 %v1748, %v1748
        %v1871 = vmul.f32 %v1565, %v1565
        %v1872 = vmul.f32 %v1567, %v1567
        %v1873 = vmul.f32 %v1751, %v1751
        %v1874 = vmul.f32 %v1571, %v1571
        %v1875 = vmul.f32 %v1573, %v1573
        %v1876 = vmul.f32 %v1756, %v1756
        %v1877 = vmul.f32 %v1575, %v1575
        %v1878 = vmul.f32 %v1577, %v1577
        %v1879 = vmul.f32 %v1759, %v1759
        %v1880 = vmul.f32 %v1581, %v1581
        %v1881 = vmul.f32 %v1583, %v1583
        %v1882 = vmul.f32 %v1764, %v1764
        %v1883 = vmul.f32 %v1585, %v1585
        %v1884 = vmul.f32 %v1587, %v1587
        %v1885 = vmul.f32 %v1767, %v1767
        %v1886 = vmul.f32 %v1591, %v1591
        %v1887 = vmul.f32 %v1593, %v1593
        %v1888 = vmul.f32 %v1772, %v1772
        %v1889 = vmul.f32 %v1595, %v1595
        %v1890 = vmul.f32 %v1597, %v1597
        %v1891 = vmul.f32 %v1775, %v1775
        %v1892 = vmul.f32 %v1601, %v1601
        %v1893 = vmul.f32 %v1603, %v1603
        %v1894 = vmul.f32 %v1780, %v1780
        %v1895 = vmul.f32 %v1605, %v1605
        %v1896 = vmul.f32 %v1607, %v1607
        %v1897 = vmul.f32 %v1783, %v1783
        %v1898 = vmul.f32 %v1611, %v1611
        %v1899 = vmul.f32 %v1613, %v1613
        %v1900 = vmul.f32 %v1788, %v1788
        %v1901 = vmul.f32 %v1615, %v1615
        %v1902 = vmul.f32 %v1617, %v1617
        %v1903 = vmul.f32 %v1791, %v1791
        %v1904 = vmul.f32 %v1621, %v1621
        %v1905 = vmul.f32 %v1623, %v1623
        %v1906 = vmul.f32 %v1796, %v1796
        %v1907 = vmul.f32 %v1625, %v1625
        %v1908 = vmul.f32 %v1627, %v1627
        %v1909 = vmul.f32 %v1799, %v1799
        %v1910 = vmul.f32 %v1631, %v1631
        %v1911 = vmul.f32 %v1633, %v1633
        %v1912 = vmul.f32 %v1804, %v1804
        %v1913 = vmul.f32 %v1635, %v1635
        %v1914 = vmul.f32 %v1637, %v1637
        %v1915 = vmul.f32 %v1807, %v1807
        %v1916 = vmul.f32 %v1641, %v1641
        %v1917 = vmul.f32 %v1643, %v1643
        %v1918 = vmul.f32 %v1812, %v1812
        %v1919 = vmul.f32 %v1645, %v1645
        %v1920 = vmul.f32 %v1647, %v1647
        %v1921 = vmul.f32 %v1815, %v1815
        %v1922 = vmul.f32 %v1651, %v1651
        %v1923 = vmul.f32 %v1653, %v1653
        %v1924 = vmul.f32 %v1820, %v1820
        %v1925 = vmul.f32 %v1655, %v1655
        %v1926 = vmul.f32 %v1657, %v1657
        %v1927 = vmul.f32 %v1823, %v1823
        %v1928 = vmul.f32 %v1661, %v1661
        %v1929 = vmul.f32 %v1663, %v1663
        %v1930 = vmul.f32 %v1828, %v1828
        %v1931 = vmul.f32 %v1665, %v1665
        %v1932 = vmul.f32 %v1667, %v1667
        %v1933 = vmul.f32 %v1831, %v1831
        %v1934 = vmul.f32 %v1671, %v1671
        %v1935 = vmul.f32 %v1673, %v1673
        %v1936 = vmul.f32 %v1836, %v1836
        %v1937 = vmul.f32 %v1675, %v1675
        %v1938 = vmul.f32 %v1677, %v1677
        %v1939 = vmul.f32 %v1839, %v1839
        %v1940 = vmul.f32 %v1681, %v1681
        %v1941 = vmul.f32 %v1683, %v1683
        %v1942 = vmul.f32 %v1844, %v1844
        %v1943 = vmul.f32 %v1685, %v1685
        %v1944 = vmul.f32 %v1687, %v1687
        %v1945 = vmul.f32 %v1847, %v1847
        %v1946 = vmul.f32 %v1531, %v1850
        %v1947 = vmul.f32 %v1533, %v1851
        %v1948 = vmul.f32 %v1724, %v1852
        %v1949 = vmul.f32 %v1535, %v1853
        %v1950 = vmul.f32 %v1537, %v1854
        %v1951 = vmul.f32 %v1727, %v1855
        %v1952 = vmul.f32 %v1541, %v1856
        %v1953 = vmul.f32 %v1543, %v1857
        %v1954 = vmul.f32 %v1732, %v1858
        %v1955 = vmul.f32 %v1545, %v1859
        %v1956 = vmul.f32 %v1547, %v1860
        %v1957 = vmul.f32 %v1735, %v1861
        %v1958 = vmul.f32 %v1551, %v1862
        %v1959 = vmul.f32 %v1553, %v1863
        %v1960 = vmul.f32 %v1740, %v1864
        %v1961 = vmul.f32 %v1555, %v1865
        %v1962 = vmul.f32 %v1557, %v1866
        %v1963 = vmul.f32 %v1743, %v1867
        %v1964 = vmul.f32 %v1561, %v1868
        %v1965 = vmul.f32 %v1563, %v1869
        %v1966 = vmul.f32 %v1748, %v1870
        %v1967 = vmul.f32 %v1565, %v1871
        %v1968 = vmul.f32 %v1567, %v1872
        %v1969 = vmul.f32 %v1751, %v1873
        %v1970 = vmul.f32 %v1571, %v1874
        %v1971 = vmul.f32 %v1573, %v1875
        %v1972 = vmul.f32 %v1756, %v1876
        %v1973 = vmul.f32 %v1575, %v1877
        %v1974 = vmul.f32 %v1577, %v1878
        %v1975 = vmul.f32 %v1759, %v1879
        %v1976 = vmul.f32 %v1581, %v1880
        %v1977 = vmul.f32 %v1583, %v1881
        %v1978 = vmul.f32 %v1764, %v1882
        %v1979 = vmul.f32 %v1585, %v1883
        %v1980 = vmul.f32 %v1587, %v1884
        %v1981 = vmul.f32 %v1767, %v1885
        %v1982 = vmul.f32 %v1591, %v1886
        %v1983 = vmul.f32 %v1593, %v1887
        %v1984 = vmul.f32 %v1772, %v1888
        %v1985 = vmul.f32 %v1595, %v1889
        %v1986 = vmul.f32 %v1597, %v1890
        %v1987 = vmul.f32 %v1775, %v1891
        %v1988 = vmul.f32 %v1601, %v1892
        %v1989 = vmul.f32 %v1603, %v1893
        %v1990 = vmul.f32 %v1780, %v1894
        %v1991 = vmul.f32 %v1605, %v1895
        %v1992 = vmul.f32 %v1607, %v1896
        %v1993 = vmul.f32 %v1783, %v1897
        %v1994 = vmul.f32 %v1611, %v1898
        %v1995 = vmul.f32 %v1613, %v1899
        %v1996 = vmul.f32 %v1788, %v1900
        %v1997 = vmul.f32 %v1615, %v1901
        %v1998 = vmul.f32 %v1617, %v1902
        %v1999 = vmul.f32 %v1791, %v1903
        %v2000 = vmul.f32 %v1621, %v1904
        %v2001 = vmul.f32 %v1623, %v1905
        %v2002 = vmul.f32 %v1796, %v1906
        %v2003 = vmul.f32 %v1625, %v1907
        %v2004 = vmul.f32 %v1627, %v1908
        %v2005 = vmul.f32 %v1799, %v1909
        %v2006 = vmul.f32 %v1631, %v1910
        %v2007 = vmul.f32 %v1633, %v1911
        %v2008 = vmul.f32 %v1804, %v1912
        %v2009 = vmul.f32 %v1635, %v1913
        %v2010 = vmul.f32 %v1637, %v1914
        %v2011 = vmul.f32 %v1807, %v1915
        %v2012 = vmul.f32 %v1641, %v1916
        %v2013 = vmul.f32 %v1643, %v1917
        %v2014 = vmul.f32 %v1812, %v1918
        %v2015 = vmul.f32 %v1645, %v1919
        %v2016 = vmul.f32 %v1647, %v1920
        %v2017 = vmul.f32 %v1815, %v1921
        %v2018 = vmul.f32 %v1651, %v1922
        %v2019 = vmul.f32 %v1653, %v1923
        %v2020 = vmul.f32 %v1820, %v1924
        %v2021 = vmul.f32 %v1655, %v1925
        %v2022 = vmul.f32 %v1657, %v1926
        %v2023 = vmul.f32 %v1823, %v1927
        %v2024 = vmul.f32 %v1661, %v1928
        %v2025 = vmul.f32 %v1663, %v1929
        %v2026 = vmul.f32 %v1828, %v1930
        %v2027 = vmul.f32 %v1665, %v1931
        %v2028 = vmul.f32 %v1667, %v1932
        %v2029 = vmul.f32 %v1831, %v1933
        %v2030 = vmul.f32 %v1671, %v1934
        %v2031 = vmul.f32 %v1673, %v1935
        %v2032 = vmul.f32 %v1836, %v1936
        %v2033 = vmul.f32 %v1675, %v1937
        %v2034 = vmul.f32 %v1677, %v1938
        %v2035 = vmul.f32 %v1839, %v1939
        %v2036 = vmul.f32 %v1681, %v1940
        %v2037 = vmul.f32 %v1683, %v1941
        %v2038 = vmul.f32 %v1844, %v1942
        %v2039 = vmul.f32 %v1685, %v1943
        %v2040 = vmul.f32 %v1687, %v1944
        %v2041 = vmul.f32 %v1847, %v1945
        %v2042 = vmul.f32 %v1946, 0.044715
        %v2043 = vmul.f32 %v1947, 0.044715
        %v2044 = vmul.f32 %v1948, 0.044715
        %v2045 = vmul.f32 %v1949, 0.044715
        %v2046 = vmul.f32 %v1950, 0.044715
        %v2047 = vmul.f32 %v1951, 0.044715
        %v2048 = vmul.f32 %v1952, 0.044715
        %v2049 = vmul.f32 %v1953, 0.044715
        %v2050 = vmul.f32 %v1954, 0.044715
        %v2051 = vmul.f32 %v1955, 0.044715
        %v2052 = vmul.f32 %v1956, 0.044715
        %v2053 = vmul.f32 %v1957, 0.044715
        %v2054 = vmul.f32 %v1958, 0.044715
        %v2055 = vmul.f32 %v1959, 0.044715
        %v2056 = vmul.f32 %v1960, 0.044715
        %v2057 = vmul.f32 %v1961, 0.044715
        %v2058 = vmul.f32 %v1962, 0.044715
        %v2059 = vmul.f32 %v1963, 0.044715
        %v2060 = vmul.f32 %v1964, 0.044715
        %v2061 = vmul.f32 %v1965, 0.044715
        %v2062 = vmul.f32 %v1966, 0.044715
        %v2063 = vmul.f32 %v1967, 0.044715
        %v2064 = vmul.f32 %v1968, 0.044715
        %v2065 = vmul.f32 %v1969, 0.044715
        %v2066 = vmul.f32 %v1970, 0.044715
        %v2067 = vmul.f32 %v1971, 0.044715
        %v2068 = vmul.f32 %v1972, 0.044715
        %v2069 = vmul.f32 %v1973, 0.044715
        %v2070 = vmul.f32 %v1974, 0.044715
        %v2071 = vmul.f32 %v1975, 0.044715
        %v2072 = vmul.f32 %v1976, 0.044715
        %v2073 = vmul.f32 %v1977, 0.044715
        %v2074 = vmul.f32 %v1978, 0.044715
        %v2075 = vmul.f32 %v1979, 0.044715
        %v2076 = vmul.f32 %v1980, 0.044715
        %v2077 = vmul.f32 %v1981, 0.044715
        %v2078 = vmul.f32 %v1982, 0.044715
        %v2079 = vmul.f32 %v1983, 0.044715
        %v2080 = vmul.f32 %v1984, 0.044715
        %v2081 = vmul.f32 %v1985, 0.044715
        %v2082 = vmul.f32 %v1986, 0.044715
        %v2083 = vmul.f32 %v1987, 0.044715
        %v2084 = vmul.f32 %v1988, 0.044715
        %v2085 = vmul.f32 %v1989, 0.044715
        %v2086 = vmul.f32 %v1990, 0.044715
        %v2087 = vmul.f32 %v1991, 0.044715
        %v2088 = vmul.f32 %v1992, 0.044715
        %v2089 = vmul.f32 %v1993, 0.044715
        %v2090 = vmul.f32 %v1994, 0.044715
        %v2091 = vmul.f32 %v1995, 0.044715
        %v2092 = vmul.f32 %v1996, 0.044715
        %v2093 = vmul.f32 %v1997, 0.044715
        %v2094 = vmul.f32 %v1998, 0.044715
        %v2095 = vmul.f32 %v1999, 0.044715
        %v2096 = vmul.f32 %v2000, 0.044715
        %v2097 = vmul.f32 %v2001, 0.044715
        %v2098 = vmul.f32 %v2002, 0.044715
        %v2099 = vmul.f32 %v2003, 0.044715
        %v2100 = vmul.f32 %v2004, 0.044715
        %v2101 = vmul.f32 %v2005, 0.044715
        %v2102 = vmul.f32 %v2006, 0.044715
        %v2103 = vmul.f32 %v2007, 0.044715
        %v2104 = vmul.f32 %v2008, 0.044715
        %v2105 = vmul.f32 %v2009, 0.044715
        %v2106 = vmul.f32 %v2010, 0.044715
        %v2107 = vmul.f32 %v2011, 0.044715
        %v2108 = vmul.f32 %v2012, 0.044715
        %v2109 = vmul.f32 %v2013, 0.044715
        %v2110 = vmul.f32 %v2014, 0.044715
        %v2111 = vmul.f32 %v2015, 0.044715
        %v2112 = vmul.f32 %v2016, 0.044715
        %v2113 = vmul.f32 %v2017, 0.044715
        %v2114 = vmul.f32 %v2018, 0.044715
        %v2115 = vmul.f32 %v2019, 0.044715
        %v2116 = vmul.f32 %v2020, 0.044715
        %v2117 = vmul.f32 %v2021, 0.044715
        %v2118 = vmul.f32 %v2022, 0.044715
        %v2119 = vmul.f32 %v2023, 0.044715
        %v2120 = vmul.f32 %v2024, 0.044715
        %v2121 = vmul.f32 %v2025, 0.044715
        %v2122 = vmul.f32 %v2026, 0.044715
        %v2123 = vmul.f32 %v2027, 0.044715
        %v2124 = vmul.f32 %v2028, 0.044715
        %v2125 = vmul.f32 %v2029, 0.044715
        %v2126 = vmul.f32 %v2030, 0.044715
        %v2127 = vmul.f32 %v2031, 0.044715
        %v2128 = vmul.f32 %v2032, 0.044715
        %v2129 = vmul.f32 %v2033, 0.044715
        %v2130 = vmul.f32 %v2034, 0.044715
        %v2131 = vmul.f32 %v2035, 0.044715
        %v2132 = vmul.f32 %v2036, 0.044715
        %v2133 = vmul.f32 %v2037, 0.044715
        %v2134 = vmul.f32 %v2038, 0.044715
        %v2135 = vmul.f32 %v2039, 0.044715
        %v2136 = vmul.f32 %v2040, 0.044715
        %v2137 = vmul.f32 %v2041, 0.044715
        %v2138 = vadd.f32 %v1531, %v2042
        %v2139 = vadd.f32 %v1533, %v2043
        %v2140 = vadd.f32 %v1724, %v2044
        %v2141 = vadd.f32 %v1535, %v2045
        %v2142 = vadd.f32 %v1537, %v2046
        %v2143 = vadd.f32 %v1727, %v2047
        %v2144 = vadd.f32 %v1541, %v2048
        %v2145 = vadd.f32 %v1543, %v2049
        %v2146 = vadd.f32 %v1732, %v2050
        %v2147 = vadd.f32 %v1545, %v2051
        %v2148 = vadd.f32 %v1547, %v2052
        %v2149 = vadd.f32 %v1735, %v2053
        %v2150 = vadd.f32 %v1551, %v2054
        %v2151 = vadd.f32 %v1553, %v2055
        %v2152 = vadd.f32 %v1740, %v2056
        %v2153 = vadd.f32 %v1555, %v2057
        %v2154 = vadd.f32 %v1557, %v2058
        %v2155 = vadd.f32 %v1743, %v2059
        %v2156 = vadd.f32 %v1561, %v2060
        %v2157 = vadd.f32 %v1563, %v2061
        %v2158 = vadd.f32 %v1748, %v2062
        %v2159 = vadd.f32 %v1565, %v2063
        %v2160 = vadd.f32 %v1567, %v2064
        %v2161 = vadd.f32 %v1751, %v2065
        %v2162 = vadd.f32 %v1571, %v2066
        %v2163 = vadd.f32 %v1573, %v2067
        %v2164 = vadd.f32 %v1756, %v2068
        %v2165 = vadd.f32 %v1575, %v2069
        %v2166 = vadd.f32 %v1577, %v2070
        %v2167 = vadd.f32 %v1759, %v2071
        %v2168 = vadd.f32 %v1581, %v2072
        %v2169 = vadd.f32 %v1583, %v2073
        %v2170 = vadd.f32 %v1764, %v2074
        %v2171 = vadd.f32 %v1585, %v2075
        %v2172 = vadd.f32 %v1587, %v2076
        %v2173 = vadd.f32 %v1767, %v2077
        %v2174 = vadd.f32 %v1591, %v2078
        %v2175 = vadd.f32 %v1593, %v2079
        %v2176 = vadd.f32 %v1772, %v2080
        %v2177 = vadd.f32 %v1595, %v2081
        %v2178 = vadd.f32 %v1597, %v2082
        %v2179 = vadd.f32 %v1775, %v2083
        %v2180 = vadd.f32 %v1601, %v2084
        %v2181 = vadd.f32 %v1603, %v2085
        %v2182 = vadd.f32 %v1780, %v2086
        %v2183 = vadd.f32 %v1605, %v2087
        %v2184 = vadd.f32 %v1607, %v2088
        %v2185 = vadd.f32 %v1783, %v2089
        %v2186 = vadd.f32 %v1611, %v2090
        %v2187 = vadd.f32 %v1613, %v2091
        %v2188 = vadd.f32 %v1788, %v2092
        %v2189 = vadd.f32 %v1615, %v2093
        %v2190 = vadd.f32 %v1617, %v2094
        %v2191 = vadd.f32 %v1791, %v2095
        %v2192 = vadd.f32 %v1621, %v2096
        %v2193 = vadd.f32 %v1623, %v2097
        %v2194 = vadd.f32 %v1796, %v2098
        %v2195 = vadd.f32 %v1625, %v2099
        %v2196 = vadd.f32 %v1627, %v2100
        %v2197 = vadd.f32 %v1799, %v2101
        %v2198 = vadd.f32 %v1631, %v2102
        %v2199 = vadd.f32 %v1633, %v2103
        %v2200 = vadd.f32 %v1804, %v2104
        %v2201 = vadd.f32 %v1635, %v2105
        %v2202 = vadd.f32 %v1637, %v2106
        %v2203 = vadd.f32 %v1807, %v2107
        %v2204 = vadd.f32 %v1641, %v2108
        %v2205 = vadd.f32 %v1643, %v2109
        %v2206 = vadd.f32 %v1812, %v2110
        %v2207 = vadd.f32 %v1645, %v2111
        %v2208 = vadd.f32 %v1647, %v2112
        %v2209 = vadd.f32 %v1815, %v2113
        %v2210 = vadd.f32 %v1651, %v2114
        %v2211 = vadd.f32 %v1653, %v2115
        %v2212 = vadd.f32 %v1820, %v2116
        %v2213 = vadd.f32 %v1655, %v2117
        %v2214 = vadd.f32 %v1657, %v2118
        %v2215 = vadd.f32 %v1823, %v2119
        %v2216 = vadd.f32 %v1661, %v2120
        %v2217 = vadd.f32 %v1663, %v2121
        %v2218 = vadd.f32 %v1828, %v2122
        %v2219 = vadd.f32 %v1665, %v2123
        %v2220 = vadd.f32 %v1667, %v2124
        %v2221 = vadd.f32 %v1831, %v2125
        %v2222 = vadd.f32 %v1671, %v2126
        %v2223 = vadd.f32 %v1673, %v2127
        %v2224 = vadd.f32 %v1836, %v2128
        %v2225 = vadd.f32 %v1675, %v2129
        %v2226 = vadd.f32 %v1677, %v2130
        %v2227 = vadd.f32 %v1839, %v2131
        %v2228 = vadd.f32 %v1681, %v2132
        %v2229 = vadd.f32 %v1683, %v2133
        %v2230 = vadd.f32 %v1844, %v2134
        %v2231 = vadd.f32 %v1685, %v2135
        %v2232 = vadd.f32 %v1687, %v2136
        %v2233 = vadd.f32 %v1847, %v2137
        %v2234 = vmul.f32 %v2138, 0.7978846
        %v2235 = vmul.f32 %v2139, 0.7978846
        %v2236 = vmul.f32 %v2140, 0.7978846
        %v2237 = vmul.f32 %v2141, 0.7978846
        %v2238 = vmul.f32 %v2142, 0.7978846
        %v2239 = vmul.f32 %v2143, 0.7978846
        %v2240 = vmul.f32 %v2144, 0.7978846
        %v2241 = vmul.f32 %v2145, 0.7978846
        %v2242 = vmul.f32 %v2146, 0.7978846
        %v2243 = vmul.f32 %v2147, 0.7978846
        %v2244 = vmul.f32 %v2148, 0.7978846
        %v2245 = vmul.f32 %v2149, 0.7978846
        %v2246 = vmul.f32 %v2150, 0.7978846
        %v2247 = vmul.f32 %v2151, 0.7978846
        %v2248 = vmul.f32 %v2152, 0.7978846
        %v2249 = vmul.f32 %v2153, 0.7978846
        %v2250 = vmul.f32 %v2154, 0.7978846
        %v2251 = vmul.f32 %v2155, 0.7978846
        %v2252 = vmul.f32 %v2156, 0.7978846
        %v2253 = vmul.f32 %v2157, 0.7978846
        %v2254 = vmul.f32 %v2158, 0.7978846
        %v2255 = vmul.f32 %v2159, 0.7978846
        %v2256 = vmul.f32 %v2160, 0.7978846
        %v2257 = vmul.f32 %v2161, 0.7978846
        %v2258 = vmul.f32 %v2162, 0.7978846
        %v2259 = vmul.f32 %v2163, 0.7978846
        %v2260 = vmul.f32 %v2164, 0.7978846
        %v2261 = vmul.f32 %v2165, 0.7978846
        %v2262 = vmul.f32 %v2166, 0.7978846
        %v2263 = vmul.f32 %v2167, 0.7978846
        %v2264 = vmul.f32 %v2168, 0.7978846
        %v2265 = vmul.f32 %v2169, 0.7978846
        %v2266 = vmul.f32 %v2170, 0.7978846
        %v2267 = vmul.f32 %v2171, 0.7978846
        %v2268 = vmul.f32 %v2172, 0.7978846
        %v2269 = vmul.f32 %v2173, 0.7978846
        %v2270 = vmul.f32 %v2174, 0.7978846
        %v2271 = vmul.f32 %v2175, 0.7978846
        %v2272 = vmul.f32 %v2176, 0.7978846
        %v2273 = vmul.f32 %v2177, 0.7978846
        %v2274 = vmul.f32 %v2178, 0.7978846
        %v2275 = vmul.f32 %v2179, 0.7978846
        %v2276 = vmul.f32 %v2180, 0.7978846
        %v2277 = vmul.f32 %v2181, 0.7978846
        %v2278 = vmul.f32 %v2182, 0.7978846
        %v2279 = vmul.f32 %v2183, 0.7978846
        %v2280 = vmul.f32 %v2184, 0.7978846
        %v2281 = vmul.f32 %v2185, 0.7978846
        %v2282 = vmul.f32 %v2186, 0.7978846
        %v2283 = vmul.f32 %v2187, 0.7978846
        %v2284 = vmul.f32 %v2188, 0.7978846
        %v2285 = vmul.f32 %v2189, 0.7978846
        %v2286 = vmul.f32 %v2190, 0.7978846
        %v2287 = vmul.f32 %v2191, 0.7978846
        %v2288 = vmul.f32 %v2192, 0.7978846
        %v2289 = vmul.f32 %v2193, 0.7978846
        %v2290 = vmul.f32 %v2194, 0.7978846
        %v2291 = vmul.f32 %v2195, 0.7978846
        %v2292 = vmul.f32 %v2196, 0.7978846
        %v2293 = vmul.f32 %v2197, 0.7978846
        %v2294 = vmul.f32 %v2198, 0.7978846
        %v2295 = vmul.f32 %v2199, 0.7978846
        %v2296 = vmul.f32 %v2200, 0.7978846
        %v2297 = vmul.f32 %v2201, 0.7978846
        %v2298 = vmul.f32 %v2202, 0.7978846
        %v2299 = vmul.f32 %v2203, 0.7978846
        %v2300 = vmul.f32 %v2204, 0.7978846
        %v2301 = vmul.f32 %v2205, 0.7978846
        %v2302 = vmul.f32 %v2206, 0.7978846
        %v2303 = vmul.f32 %v2207, 0.7978846
        %v2304 = vmul.f32 %v2208, 0.7978846
        %v2305 = vmul.f32 %v2209, 0.7978846
        %v2306 = vmul.f32 %v2210, 0.7978846
        %v2307 = vmul.f32 %v2211, 0.7978846
        %v2308 = vmul.f32 %v2212, 0.7978846
        %v2309 = vmul.f32 %v2213, 0.7978846
        %v2310 = vmul.f32 %v2214, 0.7978846
        %v2311 = vmul.f32 %v2215, 0.7978846
        %v2312 = vmul.f32 %v2216, 0.7978846
        %v2313 = vmul.f32 %v2217, 0.7978846
        %v2314 = vmul.f32 %v2218, 0.7978846
        %v2315 = vmul.f32 %v2219, 0.7978846
        %v2316 = vmul.f32 %v2220, 0.7978846
        %v2317 = vmul.f32 %v2221, 0.7978846
        %v2318 = vmul.f32 %v2222, 0.7978846
        %v2319 = vmul.f32 %v2223, 0.7978846
        %v2320 = vmul.f32 %v2224, 0.7978846
        %v2321 = vmul.f32 %v2225, 0.7978846
        %v2322 = vmul.f32 %v2226, 0.7978846
        %v2323 = vmul.f32 %v2227, 0.7978846
        %v2324 = vmul.f32 %v2228, 0.7978846
        %v2325 = vmul.f32 %v2229, 0.7978846
        %v2326 = vmul.f32 %v2230, 0.7978846
        %v2327 = vmul.f32 %v2231, 0.7978846
        %v2328 = vmul.f32 %v2232, 0.7978846
        %v2329 = vmul.f32 %v2233, 0.7978846
        %v2330 = vtanh.pop %v2234
        %v2331 = vtanh.pop %v2235
        %v2332 = vtanh.pop %v2236
        %v2333 = vtanh.pop %v2237
        %v2334 = vtanh.pop %v2238
        %v2335 = vtanh.pop %v2239
        %v2336 = vtanh.pop %v2240
        %v2337 = vtanh.pop %v2241
        %v2338 = vtanh.pop %v2242
        %v2339 = vtanh.pop %v2243
        %v2340 = vtanh.pop %v2244
        %v2341 = vtanh.pop %v2245
        %v2342 = vtanh.pop %v2246
        %v2343 = vtanh.pop %v2247
        %v2344 = vtanh.pop %v2248
        %v2345 = vtanh.pop %v2249
        %v2346 = vtanh.pop %v2250
        %v2347 = vtanh.pop %v2251
        %v2348 = vtanh.pop %v2252
        %v2349 = vtanh.pop %v2253
        %v2350 = vtanh.pop %v2254
        %v2351 = vtanh.pop %v2255
        %v2352 = vtanh.pop %v2256
        %v2353 = vtanh.pop %v2257
        %v2354 = vtanh.pop %v2258
        %v2355 = vtanh.pop %v2259
        %v2356 = vtanh.pop %v2260
        %v2357 = vtanh.pop %v2261
        %v2358 = vtanh.pop %v2262
        %v2359 = vtanh.pop %v2263
        %v2360 = vtanh.pop %v2264
        %v2361 = vtanh.pop %v2265
        %v2362 = vtanh.pop %v2266
        %v2363 = vtanh.pop %v2267
        %v2364 = vtanh.pop %v2268
        %v2365 = vtanh.pop %v2269
        %v2366 = vtanh.pop %v2270
        %v2367 = vtanh.pop %v2271
        %v2368 = vtanh.pop %v2272
        %v2369 = vtanh.pop %v2273
        %v2370 = vtanh.pop %v2274
        %v2371 = vtanh.pop %v2275
        %v2372 = vtanh.pop %v2276
        %v2373 = vtanh.pop %v2277
        %v2374 = vtanh.pop %v2278
        %v2375 = vtanh.pop %v2279
        %v2376 = vtanh.pop %v2280
        %v2377 = vtanh.pop %v2281
        %v2378 = vtanh.pop %v2282
        %v2379 = vtanh.pop %v2283
        %v2380 = vtanh.pop %v2284
        %v2381 = vtanh.pop %v2285
        %v2382 = vtanh.pop %v2286
        %v2383 = vtanh.pop %v2287
        %v2384 = vtanh.pop %v2288
        %v2385 = vtanh.pop %v2289
        %v2386 = vtanh.pop %v2290
        %v2387 = vtanh.pop %v2291
        %v2388 = vtanh.pop %v2292
        %v2389 = vtanh.pop %v2293
        %v2390 = vtanh.pop %v2294
        %v2391 = vtanh.pop %v2295
        %v2392 = vtanh.pop %v2296
        %v2393 = vtanh.pop %v2297
        %v2394 = vtanh.pop %v2298
        %v2395 = vtanh.pop %v2299
        %v2396 = vtanh.pop %v2300
        %v2397 = vtanh.pop %v2301
        %v2398 = vtanh.pop %v2302
        %v2399 = vtanh.pop %v2303
        %v2400 = vtanh.pop %v2304
        %v2401 = vtanh.pop %v2305
        %v2402 = vtanh.pop %v2306
        %v2403 = vtanh.pop %v2307
        %v2404 = vtanh.pop %v2308
        %v2405 = vtanh.pop %v2309
        %v2406 = vtanh.pop %v2310
        %v2407 = vtanh.pop %v2311
        %v2408 = vtanh.pop %v2312
        %v2409 = vtanh.pop %v2313
        %v2410 = vtanh.pop %v2314
        %v2411 = vtanh.pop %v2315
        %v2412 = vtanh.pop %v2316
        %v2413 = vtanh.pop %v2317
        %v2414 = vtanh.pop %v2318
        %v2415 = vtanh.pop %v2319
        %v2416 = vtanh.pop %v2320
        %v2417 = vtanh.pop %v2321
        %v2418 = vtanh.pop %v2322
        %v2419 = vtanh.pop %v2323
        %v2420 = vtanh.pop %v2324
        %v2421 = vtanh.pop %v2325
        %v2422 = vtanh.pop %v2326
        %v2423 = vtanh.pop %v2327
        %v2424 = vtanh.pop %v2328
        %v2425 = vtanh.pop %v2329
        %v2426 = vadd.f32 %v2330, 1.0
        %v2427 = vadd.f32 %v2331, 1.0
        %v2428 = vadd.f32 %v2332, 1.0
        %v2429 = vadd.f32 %v2333, 1.0
        %v2430 = vadd.f32 %v2334, 1.0
        %v2431 = vadd.f32 %v2335, 1.0
        %v2432 = vadd.f32 %v2336, 1.0
        %v2433 = vadd.f32 %v2337, 1.0
        %v2434 = vadd.f32 %v2338, 1.0
        %v2435 = vadd.f32 %v2339, 1.0
        %v2436 = vadd.f32 %v2340, 1.0
        %v2437 = vadd.f32 %v2341, 1.0
        %v2438 = vadd.f32 %v2342, 1.0
        %v2439 = vadd.f32 %v2343, 1.0
        %v2440 = vadd.f32 %v2344, 1.0
        %v2441 = vadd.f32 %v2345, 1.0
        %v2442 = vadd.f32 %v2346, 1.0
        %v2443 = vadd.f32 %v2347, 1.0
        %v2444 = vadd.f32 %v2348, 1.0
        %v2445 = vadd.f32 %v2349, 1.0
        %v2446 = vadd.f32 %v2350, 1.0
        %v2447 = vadd.f32 %v2351, 1.0
        %v2448 = vadd.f32 %v2352, 1.0
        %v2449 = vadd.f32 %v2353, 1.0
        %v2450 = vadd.f32 %v2354, 1.0
        %v2451 = vadd.f32 %v2355, 1.0
        %v2452 = vadd.f32 %v2356, 1.0
        %v2453 = vadd.f32 %v2357, 1.0
        %v2454 = vadd.f32 %v2358, 1.0
        %v2455 = vadd.f32 %v2359, 1.0
        %v2456 = vadd.f32 %v2360, 1.0
        %v2457 = vadd.f32 %v2361, 1.0
        %v2458 = vadd.f32 %v2362, 1.0
        %v2459 = vadd.f32 %v2363, 1.0
        %v2460 = vadd.f32 %v2364, 1.0
        %v2461 = vadd.f32 %v2365, 1.0
        %v2462 = vadd.f32 %v2366, 1.0
        %v2463 = vadd.f32 %v2367, 1.0
        %v2464 = vadd.f32 %v2368, 1.0
        %v2465 = vadd.f32 %v2369, 1.0
        %v2466 = vadd.f32 %v2370, 1.0
        %v2467 = vadd.f32 %v2371, 1.0
        %v2468 = vadd.f32 %v2372, 1.0
        %v2469 = vadd.f32 %v2373, 1.0
        %v2470 = vadd.f32 %v2374, 1.0
        %v2471 = vadd.f32 %v2375, 1.0
        %v2472 = vadd.f32 %v2376, 1.0
        %v2473 = vadd.f32 %v2377, 1.0
        %v2474 = vadd.f32 %v2378, 1.0
        %v2475 = vadd.f32 %v2379, 1.0
        %v2476 = vadd.f32 %v2380, 1.0
        %v2477 = vadd.f32 %v2381, 1.0
        %v2478 = vadd.f32 %v2382, 1.0
        %v2479 = vadd.f32 %v2383, 1.0
        %v2480 = vadd.f32 %v2384, 1.0
        %v2481 = vadd.f32 %v2385, 1.0
        %v2482 = vadd.f32 %v2386, 1.0
        %v2483 = vadd.f32 %v2387, 1.0
        %v2484 = vadd.f32 %v2388, 1.0
        %v2485 = vadd.f32 %v2389, 1.0
        %v2486 = vadd.f32 %v2390, 1.0
        %v2487 = vadd.f32 %v2391, 1.0
        %v2488 = vadd.f32 %v2392, 1.0
        %v2489 = vadd.f32 %v2393, 1.0
        %v2490 = vadd.f32 %v2394, 1.0
        %v2491 = vadd.f32 %v2395, 1.0
        %v2492 = vadd.f32 %v2396, 1.0
        %v2493 = vadd.f32 %v2397, 1.0
        %v2494 = vadd.f32 %v2398, 1.0
        %v2495 = vadd.f32 %v2399, 1.0
        %v2496 = vadd.f32 %v2400, 1.0
        %v2497 = vadd.f32 %v2401, 1.0
        %v2498 = vadd.f32 %v2402, 1.0
        %v2499 = vadd.f32 %v2403, 1.0
        %v2500 = vadd.f32 %v2404, 1.0
        %v2501 = vadd.f32 %v2405, 1.0
        %v2502 = vadd.f32 %v2406, 1.0
        %v2503 = vadd.f32 %v2407, 1.0
        %v2504 = vadd.f32 %v2408, 1.0
        %v2505 = vadd.f32 %v2409, 1.0
        %v2506 = vadd.f32 %v2410, 1.0
        %v2507 = vadd.f32 %v2411, 1.0
        %v2508 = vadd.f32 %v2412, 1.0
        %v2509 = vadd.f32 %v2413, 1.0
        %v2510 = vadd.f32 %v2414, 1.0
        %v2511 = vadd.f32 %v2415, 1.0
        %v2512 = vadd.f32 %v2416, 1.0
        %v2513 = vadd.f32 %v2417, 1.0
        %v2514 = vadd.f32 %v2418, 1.0
        %v2515 = vadd.f32 %v2419, 1.0
        %v2516 = vadd.f32 %v2420, 1.0
        %v2517 = vadd.f32 %v2421, 1.0
        %v2518 = vadd.f32 %v2422, 1.0
        %v2519 = vadd.f32 %v2423, 1.0
        %v2520 = vadd.f32 %v2424, 1.0
        %v2521 = vadd.f32 %v2425, 1.0
        %v2522 = vmul.f32 %v2426, 0.5
        %v2523 = vmul.f32 %v2427, 0.5
        %v2524 = vmul.f32 %v2428, 0.5
        %v2525 = vmul.f32 %v2429, 0.5
        %v2526 = vmul.f32 %v2430, 0.5
        %v2527 = vmul.f32 %v2431, 0.5
        %v2528 = vmul.f32 %v2432, 0.5
        %v2529 = vmul.f32 %v2433, 0.5
        %v2530 = vmul.f32 %v2434, 0.5
        %v2531 = vmul.f32 %v2435, 0.5
        %v2532 = vmul.f32 %v2436, 0.5
        %v2533 = vmul.f32 %v2437, 0.5
        %v2534 = vmul.f32 %v2438, 0.5
        %v2535 = vmul.f32 %v2439, 0.5
        %v2536 = vmul.f32 %v2440, 0.5
        %v2537 = vmul.f32 %v2441, 0.5
        %v2538 = vmul.f32 %v2442, 0.5
        %v2539 = vmul.f32 %v2443, 0.5
        %v2540 = vmul.f32 %v2444, 0.5
        %v2541 = vmul.f32 %v2445, 0.5
        %v2542 = vmul.f32 %v2446, 0.5
        %v2543 = vmul.f32 %v2447, 0.5
        %v2544 = vmul.f32 %v2448, 0.5
        %v2545 = vmul.f32 %v2449, 0.5
        %v2546 = vmul.f32 %v2450, 0.5
        %v2547 = vmul.f32 %v2451, 0.5
        %v2548 = vmul.f32 %v2452, 0.5
        %v2549 = vmul.f32 %v2453, 0.5
        %v2550 = vmul.f32 %v2454, 0.5
        %v2551 = vmul.f32 %v2455, 0.5
        %v2552 = vmul.f32 %v2456, 0.5
        %v2553 = vmul.f32 %v2457, 0.5
        %v2554 = vmul.f32 %v2458, 0.5
        %v2555 = vmul.f32 %v2459, 0.5
        %v2556 = vmul.f32 %v2460, 0.5
        %v2557 = vmul.f32 %v2461, 0.5
        %v2558 = vmul.f32 %v2462, 0.5
        %v2559 = vmul.f32 %v2463, 0.5
        %v2560 = vmul.f32 %v2464, 0.5
        %v2561 = vmul.f32 %v2465, 0.5
        %v2562 = vmul.f32 %v2466, 0.5
        %v2563 = vmul.f32 %v2467, 0.5
        %v2564 = vmul.f32 %v2468, 0.5
        %v2565 = vmul.f32 %v2469, 0.5
        %v2566 = vmul.f32 %v2470, 0.5
        %v2567 = vmul.f32 %v2471, 0.5
        %v2568 = vmul.f32 %v2472, 0.5
        %v2569 = vmul.f32 %v2473, 0.5
        %v2570 = vmul.f32 %v2474, 0.5
        %v2571 = vmul.f32 %v2475, 0.5
        %v2572 = vmul.f32 %v2476, 0.5
        %v2573 = vmul.f32 %v2477, 0.5
        %v2574 = vmul.f32 %v2478, 0.5
        %v2575 = vmul.f32 %v2479, 0.5
        %v2576 = vmul.f32 %v2480, 0.5
        %v2577 = vmul.f32 %v2481, 0.5
        %v2578 = vmul.f32 %v2482, 0.5
        %v2579 = vmul.f32 %v2483, 0.5
        %v2580 = vmul.f32 %v2484, 0.5
        %v2581 = vmul.f32 %v2485, 0.5
        %v2582 = vmul.f32 %v2486, 0.5
        %v2583 = vmul.f32 %v2487, 0.5
        %v2584 = vmul.f32 %v2488, 0.5
        %v2585 = vmul.f32 %v2489, 0.5
        %v2586 = vmul.f32 %v2490, 0.5
        %v2587 = vmul.f32 %v2491, 0.5
        %v2588 = vmul.f32 %v2492, 0.5
        %v2589 = vmul.f32 %v2493, 0.5
        %v2590 = vmul.f32 %v2494, 0.5
        %v2591 = vmul.f32 %v2495, 0.5
        %v2592 = vmul.f32 %v2496, 0.5
        %v2593 = vmul.f32 %v2497, 0.5
        %v2594 = vmul.f32 %v2498, 0.5
        %v2595 = vmul.f32 %v2499, 0.5
        %v2596 = vmul.f32 %v2500, 0.5
        %v2597 = vmul.f32 %v2501, 0.5
        %v2598 = vmul.f32 %v2502, 0.5
        %v2599 = vmul.f32 %v2503, 0.5
        %v2600 = vmul.f32 %v2504, 0.5
        %v2601 = vmul.f32 %v2505, 0.5
        %v2602 = vmul.f32 %v2506, 0.5
        %v2603 = vmul.f32 %v2507, 0.5
        %v2604 = vmul.f32 %v2508, 0.5
        %v2605 = vmul.f32 %v2509, 0.5
        %v2606 = vmul.f32 %v2510, 0.5
        %v2607 = vmul.f32 %v2511, 0.5
        %v2608 = vmul.f32 %v2512, 0.5
        %v2609 = vmul.f32 %v2513, 0.5
        %v2610 = vmul.f32 %v2514, 0.5
        %v2611 = vmul.f32 %v2515, 0.5
        %v2612 = vmul.f32 %v2516, 0.5
        %v2613 = vmul.f32 %v2517, 0.5
        %v2614 = vmul.f32 %v2518, 0.5
        %v2615 = vmul.f32 %v2519, 0.5
        %v2616 = vmul.f32 %v2520, 0.5
        %v2617 = vmul.f32 %v2521, 0.5
        %v2618 = vmul.f32 %v1531, %v2522
        %v2619 = vmul.f32 %v1533, %v2523
        %v2620 = vmul.f32 %v1724, %v2524
        %v2621 = vmul.f32 %v1535, %v2525
        %v2622 = vmul.f32 %v1537, %v2526
        %v2623 = vmul.f32 %v1727, %v2527
        %v2624 = vmul.f32 %v1541, %v2528
        %v2625 = vmul.f32 %v1543, %v2529
        %v2626 = vmul.f32 %v1732, %v2530
        %v2627 = vmul.f32 %v1545, %v2531
        %v2628 = vmul.f32 %v1547, %v2532
        %v2629 = vmul.f32 %v1735, %v2533
        %v2630 = vmul.f32 %v1551, %v2534
        %v2631 = vmul.f32 %v1553, %v2535
        %v2632 = vmul.f32 %v1740, %v2536
        %v2633 = vmul.f32 %v1555, %v2537
        %v2634 = vmul.f32 %v1557, %v2538
        %v2635 = vmul.f32 %v1743, %v2539
        %v2636 = vmul.f32 %v1561, %v2540
        %v2637 = vmul.f32 %v1563, %v2541
        %v2638 = vmul.f32 %v1748, %v2542
        %v2639 = vmul.f32 %v1565, %v2543
        %v2640 = vmul.f32 %v1567, %v2544
        %v2641 = vmul.f32 %v1751, %v2545
        %v2642 = vmul.f32 %v1571, %v2546
        %v2643 = vmul.f32 %v1573, %v2547
        %v2644 = vmul.f32 %v1756, %v2548
        %v2645 = vmul.f32 %v1575, %v2549
        %v2646 = vmul.f32 %v1577, %v2550
        %v2647 = vmul.f32 %v1759, %v2551
        %v2648 = vmul.f32 %v1581, %v2552
        %v2649 = vmul.f32 %v1583, %v2553
        %v2650 = vmul.f32 %v1764, %v2554
        %v2651 = vmul.f32 %v1585, %v2555
        %v2652 = vmul.f32 %v1587, %v2556
        %v2653 = vmul.f32 %v1767, %v2557
        %v2654 = vmul.f32 %v1591, %v2558
        %v2655 = vmul.f32 %v1593, %v2559
        %v2656 = vmul.f32 %v1772, %v2560
        %v2657 = vmul.f32 %v1595, %v2561
        %v2658 = vmul.f32 %v1597, %v2562
        %v2659 = vmul.f32 %v1775, %v2563
        %v2660 = vmul.f32 %v1601, %v2564
        %v2661 = vmul.f32 %v1603, %v2565
        %v2662 = vmul.f32 %v1780, %v2566
        %v2663 = vmul.f32 %v1605, %v2567
        %v2664 = vmul.f32 %v1607, %v2568
        %v2665 = vmul.f32 %v1783, %v2569
        %v2666 = vmul.f32 %v1611, %v2570
        %v2667 = vmul.f32 %v1613, %v2571
        %v2668 = vmul.f32 %v1788, %v2572
        %v2669 = vmul.f32 %v1615, %v2573
        %v2670 = vmul.f32 %v1617, %v2574
        %v2671 = vmul.f32 %v1791, %v2575
        %v2672 = vmul.f32 %v1621, %v2576
        %v2673 = vmul.f32 %v1623, %v2577
        %v2674 = vmul.f32 %v1796, %v2578
        %v2675 = vmul.f32 %v1625, %v2579
        %v2676 = vmul.f32 %v1627, %v2580
        %v2677 = vmul.f32 %v1799, %v2581
        %v2678 = vmul.f32 %v1631, %v2582
        %v2679 = vmul.f32 %v1633, %v2583
        %v2680 = vmul.f32 %v1804, %v2584
        %v2681 = vmul.f32 %v1635, %v2585
        %v2682 = vmul.f32 %v1637, %v2586
        %v2683 = vmul.f32 %v1807, %v2587
        %v2684 = vmul.f32 %v1641, %v2588
        %v2685 = vmul.f32 %v1643, %v2589
        %v2686 = vmul.f32 %v1812, %v2590
        %v2687 = vmul.f32 %v1645, %v2591
        %v2688 = vmul.f32 %v1647, %v2592
        %v2689 = vmul.f32 %v1815, %v2593
        %v2690 = vmul.f32 %v1651, %v2594
        %v2691 = vmul.f32 %v1653, %v2595
        %v2692 = vmul.f32 %v1820, %v2596
        %v2693 = vmul.f32 %v1655, %v2597
        %v2694 = vmul.f32 %v1657, %v2598
        %v2695 = vmul.f32 %v1823, %v2599
        %v2696 = vmul.f32 %v1661, %v2600
        %v2697 = vmul.f32 %v1663, %v2601
        %v2698 = vmul.f32 %v1828, %v2602
        %v2699 = vmul.f32 %v1665, %v2603
        %v2700 = vmul.f32 %v1667, %v2604
        %v2701 = vmul.f32 %v1831, %v2605
        %v2702 = vmul.f32 %v1671, %v2606
        %v2703 = vmul.f32 %v1673, %v2607
        %v2704 = vmul.f32 %v1836, %v2608
        %v2705 = vmul.f32 %v1675, %v2609
        %v2706 = vmul.f32 %v1677, %v2610
        %v2707 = vmul.f32 %v1839, %v2611
        %v2708 = vmul.f32 %v1681, %v2612
        %v2709 = vmul.f32 %v1683, %v2613
        %v2710 = vmul.f32 %v1844, %v2614
        %v2711 = vmul.f32 %v1685, %v2615
        %v2712 = vmul.f32 %v1687, %v2616
        %v2713 = vmul.f32 %v1847, %v2617
        %v2714 = vpack.c.bf16 %v2621, %v2618
        %v2715 = vpack.c.bf16 %v2622, %v2619
        %v2716 = vpack.c.bf16 %v2623, %v2620
        %v2717 = vpack.c.bf16 %v2627, %v2624
        %v2718 = vpack.c.bf16 %v2628, %v2625
        %v2719 = vpack.c.bf16 %v2629, %v2626
        %v2720 = vpack.c.bf16 %v2633, %v2630
        %v2721 = vpack.c.bf16 %v2634, %v2631
        %v2722 = vpack.c.bf16 %v2635, %v2632
        %v2723 = vpack.c.bf16 %v2639, %v2636
        %v2724 = vpack.c.bf16 %v2640, %v2637
        %v2725 = vpack.c.bf16 %v2641, %v2638
        %v2726 = vpack.c.bf16 %v2645, %v2642
        %v2727 = vpack.c.bf16 %v2646, %v2643
        %v2728 = vpack.c.bf16 %v2647, %v2644
        %v2729 = vpack.c.bf16 %v2651, %v2648
        %v2730 = vpack.c.bf16 %v2652, %v2649
        %v2731 = vpack.c.bf16 %v2653, %v2650
        %v2732 = vpack.c.bf16 %v2657, %v2654
        %v2733 = vpack.c.bf16 %v2658, %v2655
        %v2734 = vpack.c.bf16 %v2659, %v2656
        %v2735 = vpack.c.bf16 %v2663, %v2660
        %v2736 = vpack.c.bf16 %v2664, %v2661
        %v2737 = vpack.c.bf16 %v2665, %v2662
        %v2738 = vpack.c.bf16 %v2669, %v2666
        %v2739 = vpack.c.bf16 %v2670, %v2667
        %v2740 = vpack.c.bf16 %v2671, %v2668
        %v2741 = vpack.c.bf16 %v2675, %v2672
        %v2742 = vpack.c.bf16 %v2676, %v2673
        %v2743 = vpack.c.bf16 %v2677, %v2674
        %v2744 = vpack.c.bf16 %v2681, %v2678
        %v2745 = vpack.c.bf16 %v2682, %v2679
        %v2746 = vpack.c.bf16 %v2683, %v2680
        %v2747 = vpack.c.bf16 %v2687, %v2684
        %v2748 = vpack.c.bf16 %v2688, %v2685
        %v2749 = vpack.c.bf16 %v2689, %v2686
        %v2750 = vpack.c.bf16 %v2693, %v2690
        %v2751 = vpack.c.bf16 %v2694, %v2691
        %v2752 = vpack.c.bf16 %v2695, %v2692
        %v2753 = vpack.c.bf16 %v2699, %v2696
        %v2754 = vpack.c.bf16 %v2700, %v2697
        %v2755 = vpack.c.bf16 %v2701, %v2698
        %v2756 = vpack.c.bf16 %v2705, %v2702
        %v2757 = vpack.c.bf16 %v2706, %v2703
        %v2758 = vpack.c.bf16 %v2707, %v2704
        %v2759 = vpack.c.bf16 %v2711, %v2708
        %v2760 = vpack.c.bf16 %v2712, %v2709
        %v2761 = vpack.c.bf16 %v2713, %v2710
        %v2762 = vld [vmem:[%s7] sm:$0xf]
        %v2763 = vld [vmem:[%s7 + $0x4] sm:$0xf]
        %v2764 = vld [vmem:[%s7 + $0x8] sm:$0xf]
        %v2765 = vld [vmem:[%s7 + $0xc] sm:$0xf]
        %v2766 = vld [vmem:[%s7 + $0x10] sm:$0xf]
        %v2767 = vld [vmem:[%s7 + $0x14] sm:$0xf]
        %v2768 = vld [vmem:[%s7 + $0x18] sm:$0xf]
        %v2769 = vld [vmem:[%s7 + $0x1c] sm:$0xf]
        %v2770 = vld [vmem:[%s7 + $0x20] sm:$0xf]
        %v2771 = vld [vmem:[%s7 + $0x24] sm:$0xf]
        %v2772 = vld [vmem:[%s7 + $0x28] sm:$0xf]
        %v2773 = vld [vmem:[%s7 + $0x2c] sm:$0xf]
        %v2774 = vld [vmem:[%s7 + $0x30] sm:$0xf]
        %v2775 = vld [vmem:[%s7 + $0x34] sm:$0xf]
        %v2776 = vld [vmem:[%s7 + $0x38] sm:$0xf]
        %v2777 = vld [vmem:[%s7 + $0x3c] sm:$0xf]
        %v2778 = vld [vmem:[%s7 + $0x40] sm:$0xf]
        %v2779 = vld [vmem:[%s7 + $0x44] sm:$0xf]
        %v2780 = vld [vmem:[%s7 + $0x48] sm:$0xf]
        %v2781 = vld [vmem:[%s7 + $0x4c] sm:$0xf]
        %v2782 = vld [vmem:[%s7 + $0x50] sm:$0xf]
        %v2783 = vld [vmem:[%s7 + $0x54] sm:$0xf]
        %v2784 = vld [vmem:[%s7 + $0x58] sm:$0xf]
        %v2785 = vld [vmem:[%s7 + $0x5c] sm:$0xf]
        %v2786 = vld [vmem:[%s7 + $0x60] sm:$0xf]
        %v2787 = vld [vmem:[%s7 + $0x64] sm:$0xf]
        %v2788 = vld [vmem:[%s7 + $0x68] sm:$0xf]
        %v2789 = vld [vmem:[%s7 + $0x6c] sm:$0xf]
        %v2790 = vld [vmem:[%s7 + $0x70] sm:$0xf]
        %v2791 = vld [vmem:[%s7 + $0x74] sm:$0xf]
        %v2792 = vld [vmem:[%s7 + $0x78] sm:$0xf]
        %v2793 = vld [vmem:[%s7 + $0x7c] sm:$0xf]
        %v2794 = vld [vmem:[%s7 + $0x80] sm:$0xf]
        %v2795 = vld [vmem:[%s7 + $0x84] sm:$0xf]
        %v2796 = vld [vmem:[%s7 + $0x88] sm:$0xf]
        %v2797 = vld [vmem:[%s7 + $0x8c] sm:$0xf]
        %v2798 = vld [vmem:[%s7 + $0x90] sm:$0xf]
        %v2799 = vld [vmem:[%s7 + $0x94] sm:$0xf]
        %v2800 = vld [vmem:[%s7 + $0x98] sm:$0xf]
        %v2801 = vld [vmem:[%s7 + $0x9c] sm:$0xf]
        %v2802 = vld [vmem:[%s7 + $0xa0] sm:$0xf]
        %v2803 = vld [vmem:[%s7 + $0xa4] sm:$0xf]
        %v2804 = vld [vmem:[%s7 + $0xa8] sm:$0xf]
        %v2805 = vld [vmem:[%s7 + $0xac] sm:$0xf]
        %v2806 = vld [vmem:[%s7 + $0xb0] sm:$0xf]
        %v2807 = vld [vmem:[%s7 + $0xb4] sm:$0xf]
        %v2808 = vld [vmem:[%s7 + $0xb8] sm:$0xf]
        %v2809 = vld [vmem:[%s7 + $0xbc] sm:$0xf]
        %v2810 = vld [vmem:[%s8] sm:$0x1]
        %v2812 = vlaneseq
        %v2813 = vshrl.u32 %v2812, 7
        %v2814 = vsub.s32 0, %v2813
        %v2815 = vrot.slane %v2810, %v2814
        %v2865 = vunpack.c.l.b16 %v2762
        %v2866 = vunpack.c.l.b16 %v2763
        %v2867 = vunpack.c.l.b16 %v2764
        %v2868 = vunpack.c.l.b16 %v2765
        %v2869 = vunpack.c.l.b16 %v2766
        %v2870 = vunpack.c.l.b16 %v2767
        %v2871 = vunpack.c.l.b16 %v2768
        %v2872 = vunpack.c.l.b16 %v2769
        %v2873 = vunpack.c.l.b16 %v2770
        %v2874 = vunpack.c.l.b16 %v2771
        %v2875 = vunpack.c.l.b16 %v2772
        %v2876 = vunpack.c.l.b16 %v2773
        %v2877 = vunpack.c.l.b16 %v2774
        %v2878 = vunpack.c.l.b16 %v2775
        %v2879 = vunpack.c.l.b16 %v2776
        %v2880 = vunpack.c.l.b16 %v2777
        %v2881 = vunpack.c.l.b16 %v2778
        %v2882 = vunpack.c.l.b16 %v2779
        %v2883 = vunpack.c.l.b16 %v2780
        %v2884 = vunpack.c.l.b16 %v2781
        %v2885 = vunpack.c.l.b16 %v2782
        %v2886 = vunpack.c.l.b16 %v2783
        %v2887 = vunpack.c.l.b16 %v2784
        %v2888 = vunpack.c.l.b16 %v2785
        %v2889 = vunpack.c.l.b16 %v2786
        %v2890 = vunpack.c.l.b16 %v2787
        %v2891 = vunpack.c.l.b16 %v2788
        %v2892 = vunpack.c.l.b16 %v2789
        %v2893 = vunpack.c.l.b16 %v2790
        %v2894 = vunpack.c.l.b16 %v2791
        %v2895 = vunpack.c.l.b16 %v2792
        %v2896 = vunpack.c.l.b16 %v2793
        %v2897 = vunpack.c.l.b16 %v2794
        %v2898 = vunpack.c.l.b16 %v2795
        %v2899 = vunpack.c.l.b16 %v2796
        %v2900 = vunpack.c.l.b16 %v2797
        %v2901 = vunpack.c.l.b16 %v2798
        %v2902 = vunpack.c.l.b16 %v2799
        %v2903 = vunpack.c.l.b16 %v2800
        %v2904 = vunpack.c.l.b16 %v2801
        %v2905 = vunpack.c.l.b16 %v2802
        %v2906 = vunpack.c.l.b16 %v2803
        %v2907 = vunpack.c.l.b16 %v2804
        %v2908 = vunpack.c.l.b16 %v2805
        %v2909 = vunpack.c.l.b16 %v2806
        %v2910 = vunpack.c.l.b16 %v2807
        %v2911 = vunpack.c.l.b16 %v2808
        %v2912 = vunpack.c.l.b16 %v2809
        %v2913 = vpack.c.b16 %v2866, %v2865
        %v2914 = vpack.c.b16 %v2868, %v2867
        %v2915 = vpack.c.b16 %v2870, %v2869
        %v2916 = vpack.c.b16 %v2872, %v2871
        %v2917 = vpack.c.b16 %v2874, %v2873
        %v2918 = vpack.c.b16 %v2876, %v2875
        %v2919 = vpack.c.b16 %v2878, %v2877
        %v2920 = vpack.c.b16 %v2880, %v2879
        %v2921 = vpack.c.b16 %v2882, %v2881
        %v2922 = vpack.c.b16 %v2884, %v2883
        %v2923 = vpack.c.b16 %v2886, %v2885
        %v2924 = vpack.c.b16 %v2888, %v2887
        %v2925 = vpack.c.b16 %v2890, %v2889
        %v2926 = vpack.c.b16 %v2892, %v2891
        %v2927 = vpack.c.b16 %v2894, %v2893
        %v2928 = vpack.c.b16 %v2896, %v2895
        %v2929 = vpack.c.b16 %v2898, %v2897
        %v2930 = vpack.c.b16 %v2900, %v2899
        %v2931 = vpack.c.b16 %v2902, %v2901
        %v2932 = vpack.c.b16 %v2904, %v2903
        %v2933 = vpack.c.b16 %v2906, %v2905
        %v2934 = vpack.c.b16 %v2908, %v2907
        %v2935 = vpack.c.b16 %v2910, %v2909
        %v2936 = vpack.c.b16 %v2912, %v2911
        %2961 = vmatprep.subr.bf16.mxu0 0
        %2962 = vmatpush1.bf16.msra.mxu0 %v2920
        %2963 = vmatprep.subr.bf16.mxu0 0
        %2964 = vmatpush1.bf16.msra.mxu0 %v2919
        %2965 = vmatprep.subr.bf16.mxu0 0
        %2966 = vmatpush1.bf16.msra.mxu0 %v2918
        %2967 = vmatprep.subr.bf16.mxu0 0
        %2968 = vmatpush1.bf16.msra.mxu0 %v2917
        %2969 = vmatprep.subr.bf16.mxu0 0
        %2970 = vmatpush1.bf16.msra.mxu0 %v2916
        %2971 = vmatprep.subr.bf16.mxu0 0
        %2972 = vmatpush1.bf16.msra.mxu0 %v2915
        %2973 = vmatprep.subr.bf16.mxu0 0
        %2974 = vmatpush1.bf16.msra.mxu0 %v2914
        %2975 = vmatprep.subr.bf16.mxu0 0
        %2976 = vmatpush1.bf16.msra.mxu0 %v2913
        %2977 = vmatprep.subr.bf16.mxu0 0
        %2978 = vmatpush2.bf16.msra.mxu0 %v2928
        %2979 = vmatprep.subr.bf16.mxu0 0
        %2980 = vmatpush2.bf16.msra.mxu0 %v2927
        %2981 = vmatprep.subr.bf16.mxu0 0
        %2982 = vmatpush2.bf16.msra.mxu0 %v2926
        %2983 = vmatprep.subr.bf16.mxu0 0
        %2984 = vmatpush2.bf16.msra.mxu0 %v2925
        %2985 = vmatprep.subr.bf16.mxu0 0
        %2986 = vmatpush2.bf16.msra.mxu0 %v2924
        %2987 = vmatprep.subr.bf16.mxu0 0
        %2988 = vmatpush2.bf16.msra.mxu0 %v2923
        %2989 = vmatprep.subr.bf16.mxu0 0
        %2990 = vmatpush2.bf16.msra.mxu0 %v2922
        %2991 = vmatprep.subr.bf16.mxu0 0
        %2992 = vmatpush2.bf16.msra.mxu0 %v2921
        %2993 = vmatprep.mubr.bf16.mxu0 %v2715
        %2994 = vmatmul.mubr.bf16.gmra.mxu0 %v2714
        %v2995 = vpop.f32.mrf.mxu0
        %v2996 = vadd.f32 %v2815, %v2995
        %v2997 = vpop.f32.mrf.mxu0
        %v2998 = vpop.f32.mrf.mxu0
        %v2999 = vadd.f32 %v2815, %v2998
        %v3000 = vpop.f32.mrf.mxu0
        %3001 = vmatprep.mubr.bf16.mxu0 %v2718
        %3002 = vmatmul.mubr.bf16.gmra.mxu0 %v2717
        %v3003 = vpop.f32.mrf.mxu0
        %v3004 = vadd.f32 %v2815, %v3003
        %v3005 = vpop.f32.mrf.mxu0
        %v3006 = vpop.f32.mrf.mxu0
        %v3007 = vadd.f32 %v2815, %v3006
        %v3008 = vpop.f32.mrf.mxu0
        %3009 = vmatprep.mubr.bf16.mxu0 %v2721
        %3010 = vmatmul.mubr.bf16.gmra.mxu0 %v2720
        %v3011 = vpop.f32.mrf.mxu0
        %v3012 = vadd.f32 %v2815, %v3011
        %v3013 = vpop.f32.mrf.mxu0
        %v3014 = vpop.f32.mrf.mxu0
        %v3015 = vadd.f32 %v2815, %v3014
        %v3016 = vpop.f32.mrf.mxu0
        %3017 = vmatprep.mubr.bf16.mxu0 %v2724
        %3018 = vmatmul.mubr.bf16.gmra.mxu0 %v2723
        %v3019 = vpop.f32.mrf.mxu0
        %v3020 = vadd.f32 %v2815, %v3019
        %v3021 = vpop.f32.mrf.mxu0
        %v3022 = vpop.f32.mrf.mxu0
        %v3023 = vadd.f32 %v2815, %v3022
        %v3024 = vpop.f32.mrf.mxu0
        %3025 = vmatprep.mubr.bf16.mxu0 %v2727
        %3026 = vmatmul.mubr.bf16.gmra.mxu0 %v2726
        %v3027 = vpop.f32.mrf.mxu0
        %v3028 = vadd.f32 %v2815, %v3027
        %v3029 = vpop.f32.mrf.mxu0
        %v3030 = vpop.f32.mrf.mxu0
        %v3031 = vadd.f32 %v2815, %v3030
        %v3032 = vpop.f32.mrf.mxu0
        %3033 = vmatprep.mubr.bf16.mxu0 %v2730
        %3034 = vmatmul.mubr.bf16.gmra.mxu0 %v2729
        %v3035 = vpop.f32.mrf.mxu0
        %v3036 = vadd.f32 %v2815, %v3035
        %v3037 = vpop.f32.mrf.mxu0
        %v3038 = vpop.f32.mrf.mxu0
        %v3039 = vadd.f32 %v2815, %v3038
        %v3040 = vpop.f32.mrf.mxu0
        %3041 = vmatprep.mubr.bf16.mxu0 %v2733
        %3042 = vmatmul.mubr.bf16.gmra.mxu0 %v2732
        %v3043 = vpop.f32.mrf.mxu0
        %v3044 = vadd.f32 %v2815, %v3043
        %v3045 = vpop.f32.mrf.mxu0
        %v3046 = vpop.f32.mrf.mxu0
        %v3047 = vadd.f32 %v2815, %v3046
        %v3048 = vpop.f32.mrf.mxu0
        %3049 = vmatprep.mubr.bf16.mxu0 %v2736
        %3050 = vmatmul.mubr.bf16.gmra.mxu0 %v2735
        %v3051 = vpop.f32.mrf.mxu0
        %v3052 = vadd.f32 %v2815, %v3051
        %v3053 = vpop.f32.mrf.mxu0
        %v3054 = vpop.f32.mrf.mxu0
        %v3055 = vadd.f32 %v2815, %v3054
        %v3056 = vpop.f32.mrf.mxu0
        %3057 = vmatprep.mubr.bf16.mxu0 %v2739
        %3058 = vmatmul.mubr.bf16.gmra.mxu0 %v2738
        %v3059 = vpop.f32.mrf.mxu0
        %v3060 = vadd.f32 %v2815, %v3059
        %v3061 = vpop.f32.mrf.mxu0
        %v3062 = vpop.f32.mrf.mxu0
        %v3063 = vadd.f32 %v2815, %v3062
        %v3064 = vpop.f32.mrf.mxu0
        %3065 = vmatprep.mubr.bf16.mxu0 %v2742
        %3066 = vmatmul.mubr.bf16.gmra.mxu0 %v2741
        %v3067 = vpop.f32.mrf.mxu0
        %v3068 = vadd.f32 %v2815, %v3067
        %v3069 = vpop.f32.mrf.mxu0
        %v3070 = vpop.f32.mrf.mxu0
        %v3071 = vadd.f32 %v2815, %v3070
        %v3072 = vpop.f32.mrf.mxu0
        %3073 = vmatprep.mubr.bf16.mxu0 %v2745
        %3074 = vmatmul.mubr.bf16.gmra.mxu0 %v2744
        %v3075 = vpop.f32.mrf.mxu0
        %v3076 = vadd.f32 %v2815, %v3075
        %v3077 = vpop.f32.mrf.mxu0
        %v3078 = vpop.f32.mrf.mxu0
        %v3079 = vadd.f32 %v2815, %v3078
        %v3080 = vpop.f32.mrf.mxu0
        %3081 = vmatprep.mubr.bf16.mxu0 %v2748
        %3082 = vmatmul.mubr.bf16.gmra.mxu0 %v2747
        %v3083 = vpop.f32.mrf.mxu0
        %v3084 = vadd.f32 %v2815, %v3083
        %v3085 = vpop.f32.mrf.mxu0
        %v3086 = vpop.f32.mrf.mxu0
        %v3087 = vadd.f32 %v2815, %v3086
        %v3088 = vpop.f32.mrf.mxu0
        %3089 = vmatprep.mubr.bf16.mxu0 %v2751
        %3090 = vmatmul.mubr.bf16.gmra.mxu0 %v2750
        %v3091 = vpop.f32.mrf.mxu0
        %v3092 = vadd.f32 %v2815, %v3091
        %v3093 = vpop.f32.mrf.mxu0
        %v3094 = vpop.f32.mrf.mxu0
        %v3095 = vadd.f32 %v2815, %v3094
        %v3096 = vpop.f32.mrf.mxu0
        %3097 = vmatprep.mubr.bf16.mxu0 %v2754
        %3098 = vmatmul.mubr.bf16.gmra.mxu0 %v2753
        %v3099 = vpop.f32.mrf.mxu0
        %v3100 = vadd.f32 %v2815, %v3099
        %v3101 = vpop.f32.mrf.mxu0
        %v3102 = vpop.f32.mrf.mxu0
        %v3103 = vadd.f32 %v2815, %v3102
        %v3104 = vpop.f32.mrf.mxu0
        %3105 = vmatprep.mubr.bf16.mxu0 %v2757
        %3106 = vmatmul.mubr.bf16.gmra.mxu0 %v2756
        %v3107 = vpop.f32.mrf.mxu0
        %v3108 = vadd.f32 %v2815, %v3107
        %v3109 = vpop.f32.mrf.mxu0
        %v3110 = vpop.f32.mrf.mxu0
        %v3111 = vadd.f32 %v2815, %v3110
        %v3112 = vpop.f32.mrf.mxu0
        %3113 = vmatprep.mubr.bf16.mxu0 %v2760
        %3114 = vmatmul.mubr.bf16.gmra.mxu0 %v2759
        %v3115 = vpop.f32.mrf.mxu0
        %v3116 = vadd.f32 %v2815, %v3115
        %v3117 = vpop.f32.mrf.mxu0
        %v3118 = vpop.f32.mrf.mxu0
        %v3119 = vadd.f32 %v2815, %v3118
        %v3120 = vpop.f32.mrf.mxu0
        %3121 = vdwg.mxu0
        %3122 = vmatprep.subr.bf16.mxu0 0
        %3123 = vmatpush1.bf16.msra.mxu0 %v2936
        %3124 = vmatprep.subr.bf16.mxu0 0
        %3125 = vmatpush1.bf16.msra.mxu0 %v2935
        %3126 = vmatprep.subr.bf16.mxu0 0
        %3127 = vmatpush1.bf16.msra.mxu0 %v2934
        %3128 = vmatprep.subr.bf16.mxu0 0
        %3129 = vmatpush1.bf16.msra.mxu0 %v2933
        %3130 = vmatprep.subr.bf16.mxu0 0
        %3131 = vmatpush1.bf16.msra.mxu0 %v2932
        %3132 = vmatprep.subr.bf16.mxu0 0
        %3133 = vmatpush1.bf16.msra.mxu0 %v2931
        %3134 = vmatprep.subr.bf16.mxu0 0
        %3135 = vmatpush1.bf16.msra.mxu0 %v2930
        %3136 = vmatprep.subr.bf16.mxu0 0
        %3137 = vmatpush1.bf16.msra.mxu0 %v2929
        %3138 = vmatprep.subr.bf16.mxu0 0
        %3139 = vmatpush2.bf16.msra.mxu0 0
        %3140 = vmatprep.subr.bf16.mxu0 0
        %3141 = vmatpush2.bf16.msra.mxu0 0
        %3142 = vmatprep.subr.bf16.mxu0 0
        %3143 = vmatpush2.bf16.msra.mxu0 0
        %3144 = vmatprep.subr.bf16.mxu0 0
        %3145 = vmatpush2.bf16.msra.mxu0 0
        %3146 = vmatprep.subr.bf16.mxu0 0
        %3147 = vmatpush2.bf16.msra.mxu0 0
        %3148 = vmatprep.subr.bf16.mxu0 0
        %3149 = vmatpush2.bf16.msra.mxu0 0
        %3150 = vmatprep.subr.bf16.mxu0 0
        %3151 = vmatpush2.bf16.msra.mxu0 0
        %3152 = vmatprep.subr.bf16.mxu0 0
        %3153 = vmatpush2.bf16.msra.mxu0 0
        %3154 = vmatprep.mubr.bf16.mxu0 0
        %3155 = vmatmul.mubr.bf16.gmra.mxu0 %v2716
        %v3156 = vpop.f32.mrf.mxu0
        %v3157 = vadd.f32 %v2996, %v3156
        %v3158 = vpop.f32.mrf.mxu0
        %v3159 = vpop.f32.mrf.mxu0
        %v3160 = vadd.f32 %v2999, %v3159
        %v3161 = vpop.f32.mrf.mxu0
        %3162 = vmatprep.mubr.bf16.mxu0 0
        %3163 = vmatmul.mubr.bf16.gmra.mxu0 %v2719
        %v3164 = vpop.f32.mrf.mxu0
        %v3165 = vadd.f32 %v3004, %v3164
        %v3166 = vpop.f32.mrf.mxu0
        %v3167 = vpop.f32.mrf.mxu0
        %v3168 = vadd.f32 %v3007, %v3167
        %v3169 = vpop.f32.mrf.mxu0
        %3170 = vmatprep.mubr.bf16.mxu0 0
        %3171 = vmatmul.mubr.bf16.gmra.mxu0 %v2722
        %v3172 = vpop.f32.mrf.mxu0
        %v3173 = vadd.f32 %v3012, %v3172
        %v3174 = vpop.f32.mrf.mxu0
        %v3175 = vpop.f32.mrf.mxu0
        %v3176 = vadd.f32 %v3015, %v3175
        %v3177 = vpop.f32.mrf.mxu0
        %3178 = vmatprep.mubr.bf16.mxu0 0
        %3179 = vmatmul.mubr.bf16.gmra.mxu0 %v2725
        %v3180 = vpop.f32.mrf.mxu0
        %v3181 = vadd.f32 %v3020, %v3180
        %v3182 = vpop.f32.mrf.mxu0
        %v3183 = vpop.f32.mrf.mxu0
        %v3184 = vadd.f32 %v3023, %v3183
        %v3185 = vpop.f32.mrf.mxu0
        %3186 = vmatprep.mubr.bf16.mxu0 0
        %3187 = vmatmul.mubr.bf16.gmra.mxu0 %v2728
        %v3188 = vpop.f32.mrf.mxu0
        %v3189 = vadd.f32 %v3028, %v3188
        %v3190 = vpop.f32.mrf.mxu0
        %v3191 = vpop.f32.mrf.mxu0
        %v3192 = vadd.f32 %v3031, %v3191
        %v3193 = vpop.f32.mrf.mxu0
        %3194 = vmatprep.mubr.bf16.mxu0 0
        %3195 = vmatmul.mubr.bf16.gmra.mxu0 %v2731
        %v3196 = vpop.f32.mrf.mxu0
        %v3197 = vadd.f32 %v3036, %v3196
        %v3198 = vpop.f32.mrf.mxu0
        %v3199 = vpop.f32.mrf.mxu0
        %v3200 = vadd.f32 %v3039, %v3199
        %v3201 = vpop.f32.mrf.mxu0
        %3202 = vmatprep.mubr.bf16.mxu0 0
        %3203 = vmatmul.mubr.bf16.gmra.mxu0 %v2734
        %v3204 = vpop.f32.mrf.mxu0
        %v3205 = vadd.f32 %v3044, %v3204
        %v3206 = vpop.f32.mrf.mxu0
        %v3207 = vpop.f32.mrf.mxu0
        %v3208 = vadd.f32 %v3047, %v3207
        %v3209 = vpop.f32.mrf.mxu0
        %3210 = vmatprep.mubr.bf16.mxu0 0
        %3211 = vmatmul.mubr.bf16.gmra.mxu0 %v2737
        %v3212 = vpop.f32.mrf.mxu0
        %v3213 = vadd.f32 %v3052, %v3212
        %v3214 = vpop.f32.mrf.mxu0
        %v3215 = vpop.f32.mrf.mxu0
        %v3216 = vadd.f32 %v3055, %v3215
        %v3217 = vpop.f32.mrf.mxu0
        %3218 = vmatprep.mubr.bf16.mxu0 0
        %3219 = vmatmul.mubr.bf16.gmra.mxu0 %v2740
        %v3220 = vpop.f32.mrf.mxu0
        %v3221 = vadd.f32 %v3060, %v3220
        %v3222 = vpop.f32.mrf.mxu0
        %v3223 = vpop.f32.mrf.mxu0
        %v3224 = vadd.f32 %v3063, %v3223
        %v3225 = vpop.f32.mrf.mxu0
        %3226 = vmatprep.mubr.bf16.mxu0 0
        %3227 = vmatmul.mubr.bf16.gmra.mxu0 %v2743
        %v3228 = vpop.f32.mrf.mxu0
        %v3229 = vadd.f32 %v3068, %v3228
        %v3230 = vpop.f32.mrf.mxu0
        %v3231 = vpop.f32.mrf.mxu0
        %v3232 = vadd.f32 %v3071, %v3231
        %v3233 = vpop.f32.mrf.mxu0
        %3234 = vmatprep.mubr.bf16.mxu0 0
        %3235 = vmatmul.mubr.bf16.gmra.mxu0 %v2746
        %v3236 = vpop.f32.mrf.mxu0
        %v3237 = vadd.f32 %v3076, %v3236
        %v3238 = vpop.f32.mrf.mxu0
        %v3239 = vpop.f32.mrf.mxu0
        %v3240 = vadd.f32 %v3079, %v3239
        %v3241 = vpop.f32.mrf.mxu0
        %3242 = vmatprep.mubr.bf16.mxu0 0
        %3243 = vmatmul.mubr.bf16.gmra.mxu0 %v2749
        %v3244 = vpop.f32.mrf.mxu0
        %v3245 = vadd.f32 %v3084, %v3244
        %v3246 = vpop.f32.mrf.mxu0
        %v3247 = vpop.f32.mrf.mxu0
        %v3248 = vadd.f32 %v3087, %v3247
        %v3249 = vpop.f32.mrf.mxu0
        %3250 = vmatprep.mubr.bf16.mxu0 0
        %3251 = vmatmul.mubr.bf16.gmra.mxu0 %v2752
        %v3252 = vpop.f32.mrf.mxu0
        %v3253 = vadd.f32 %v3092, %v3252
        %v3254 = vpop.f32.mrf.mxu0
        %v3255 = vpop.f32.mrf.mxu0
        %v3256 = vadd.f32 %v3095, %v3255
        %v3257 = vpop.f32.mrf.mxu0
        %3258 = vmatprep.mubr.bf16.mxu0 0
        %3259 = vmatmul.mubr.bf16.gmra.mxu0 %v2755
        %v3260 = vpop.f32.mrf.mxu0
        %v3261 = vadd.f32 %v3100, %v3260
        %v3262 = vpop.f32.mrf.mxu0
        %v3263 = vpop.f32.mrf.mxu0
        %v3264 = vadd.f32 %v3103, %v3263
        %v3265 = vpop.f32.mrf.mxu0
        %3266 = vmatprep.mubr.bf16.mxu0 0
        %3267 = vmatmul.mubr.bf16.gmra.mxu0 %v2758
        %v3268 = vpop.f32.mrf.mxu0
        %v3269 = vadd.f32 %v3108, %v3268
        %v3270 = vpop.f32.mrf.mxu0
        %v3271 = vpop.f32.mrf.mxu0
        %v3272 = vadd.f32 %v3111, %v3271
        %v3273 = vpop.f32.mrf.mxu0
        %3274 = vmatprep.mubr.bf16.mxu0 0
        %3275 = vmatmul.mubr.bf16.gmra.mxu0 %v2761
        %v3276 = vpop.f32.mrf.mxu0
        %v3277 = vadd.f32 %v3116, %v3276
        %v3278 = vpop.f32.mrf.mxu0
        %v3279 = vpop.f32.mrf.mxu0
        %v3280 = vadd.f32 %v3119, %v3279
        %v3281 = vpop.f32.mrf.mxu0
        %3282 = vdwg.mxu0
        %v3283 = vadd.f32 %v683, %v3157
        %v3284 = vadd.f32 %v686, %v3160
        %v3285 = vadd.f32 %v691, %v3165
        %v3286 = vadd.f32 %v694, %v3168
        %v3287 = vadd.f32 %v699, %v3173
        %v3288 = vadd.f32 %v702, %v3176
        %v3289 = vadd.f32 %v707, %v3181
        %v3290 = vadd.f32 %v710, %v3184
        %v3291 = vadd.f32 %v715, %v3189
        %v3292 = vadd.f32 %v718, %v3192
        %v3293 = vadd.f32 %v723, %v3197
        %v3294 = vadd.f32 %v726, %v3200
        %v3295 = vadd.f32 %v731, %v3205
        %v3296 = vadd.f32 %v734, %v3208
        %v3297 = vadd.f32 %v739, %v3213
        %v3298 = vadd.f32 %v742, %v3216
        %v3299 = vadd.f32 %v747, %v3221
        %v3300 = vadd.f32 %v750, %v3224
        %v3301 = vadd.f32 %v755, %v3229
        %v3302 = vadd.f32 %v758, %v3232
        %v3303 = vadd.f32 %v763, %v3237
        %v3304 = vadd.f32 %v766, %v3240
        %v3305 = vadd.f32 %v771, %v3245
        %v3306 = vadd.f32 %v774, %v3248
        %v3307 = vadd.f32 %v779, %v3253
        %v3308 = vadd.f32 %v782, %v3256
        %v3309 = vadd.f32 %v787, %v3261
        %v3310 = vadd.f32 %v790, %v3264
        %v3311 = vadd.f32 %v795, %v3269
        %v3312 = vadd.f32 %v798, %v3272
        %v3313 = vadd.f32 %v803, %v3277
        %v3314 = vadd.f32 %v806, %v3280
        %v3315 = vadd.f32 %v3283, %v3284
        %v3316 = vadd.f32 %v3315, %v3285
        %v3317 = vadd.f32 %v3316, %v3286
        %v3318 = vadd.f32 %v3317, %v3287
        %v3319 = vadd.f32 %v3318, %v3288
        %v3320 = vadd.f32 %v3319, %v3289
        %v3321 = vadd.f32 %v3320, %v3290
        %v3322 = vadd.f32 %v3321, %v3291
        %v3323 = vadd.f32 %v3322, %v3292
        %v3324 = vadd.f32 %v3323, %v3293
        %v3325 = vadd.f32 %v3324, %v3294
        %v3326 = vadd.f32 %v3325, %v3295
        %v3327 = vadd.f32 %v3326, %v3296
        %v3328 = vadd.f32 %v3327, %v3297
        %v3329 = vadd.f32 %v3328, %v3298
        %v3330 = vadd.f32 %v3329, %v3299
        %v3331 = vadd.f32 %v3330, %v3300
        %v3332 = vadd.f32 %v3331, %v3301
        %v3333 = vadd.f32 %v3332, %v3302
        %v3334 = vadd.f32 %v3333, %v3303
        %v3335 = vadd.f32 %v3334, %v3304
        %v3336 = vadd.f32 %v3335, %v3305
        %v3337 = vadd.f32 %v3336, %v3306
        %v3338 = vadd.f32 %v3337, %v3307
        %v3339 = vadd.f32 %v3338, %v3308
        %v3340 = vadd.f32 %v3339, %v3309
        %v3341 = vadd.f32 %v3340, %v3310
        %v3342 = vadd.f32 %v3341, %v3311
        %v3343 = vadd.f32 %v3342, %v3312
        %v3344 = vadd.f32 %v3343, %v3313
        %v3345 = vadd.f32 %v3344, %v3314
        %v3346 = vrot.slane %v3345, 4
        %v3347 = vadd.f32 %v3345, %v3346
        %v3348 = vrot.slane %v3347, 2
        %v3349 = vadd.f32 %v3347, %v3348
        %v3350 = vrot.slane %v3349, 1
        %v3351 = vadd.f32 %v3349, %v3350
        %v3352 = vadd.f32 %v3351, 0.0
        %s3353 = scalar_lea.vmem %s464, 128
        %v3354 = vld [vmem:[%s3353] sm:$0xf]
        %v3355 = vld [vmem:[%s3353 + $0x4] sm:$0xf]
        %v3356 = vld [vmem:[%s3353 + $0x8] sm:$0xf]
        %v3357 = vld [vmem:[%s3353 + $0xc] sm:$0xf]
        %v3358 = vld [vmem:[%s3353 + $0x10] sm:$0xf]
        %v3359 = vld [vmem:[%s3353 + $0x14] sm:$0xf]
        %v3360 = vld [vmem:[%s3353 + $0x18] sm:$0xf]
        %v3361 = vld [vmem:[%s3353 + $0x1c] sm:$0xf]
        %v3362 = vld [vmem:[%s3353 + $0x20] sm:$0xf]
        %v3363 = vld [vmem:[%s3353 + $0x24] sm:$0xf]
        %v3364 = vld [vmem:[%s3353 + $0x28] sm:$0xf]
        %v3365 = vld [vmem:[%s3353 + $0x2c] sm:$0xf]
        %v3366 = vld [vmem:[%s3353 + $0x30] sm:$0xf]
        %v3367 = vld [vmem:[%s3353 + $0x34] sm:$0xf]
        %v3368 = vld [vmem:[%s3353 + $0x38] sm:$0xf]
        %v3369 = vld [vmem:[%s3353 + $0x3c] sm:$0xf]
        %v3370 = vld [vmem:[%s3353 + $0x40] sm:$0xf]
        %v3371 = vld [vmem:[%s3353 + $0x44] sm:$0xf]
        %v3372 = vld [vmem:[%s3353 + $0x48] sm:$0xf]
        %v3373 = vld [vmem:[%s3353 + $0x4c] sm:$0xf]
        %v3374 = vld [vmem:[%s3353 + $0x50] sm:$0xf]
        %v3375 = vld [vmem:[%s3353 + $0x54] sm:$0xf]
        %v3376 = vld [vmem:[%s3353 + $0x58] sm:$0xf]
        %v3377 = vld [vmem:[%s3353 + $0x5c] sm:$0xf]
        %v3378 = vld [vmem:[%s3353 + $0x60] sm:$0xf]
        %v3379 = vld [vmem:[%s3353 + $0x64] sm:$0xf]
        %v3380 = vld [vmem:[%s3353 + $0x68] sm:$0xf]
        %v3381 = vld [vmem:[%s3353 + $0x6c] sm:$0xf]
        %v3382 = vld [vmem:[%s3353 + $0x70] sm:$0xf]
        %v3383 = vld [vmem:[%s3353 + $0x74] sm:$0xf]
        %v3384 = vld [vmem:[%s3353 + $0x78] sm:$0xf]
        %v3385 = vld [vmem:[%s3353 + $0x7c] sm:$0xf]
        %v3418 = vunpack.c.l.b16 %v3354
        %v3419 = vunpack.c.l.b16 %v3355
        %v3420 = vunpack.c.l.b16 %v3356
        %v3421 = vunpack.c.l.b16 %v3357
        %v3422 = vunpack.c.l.b16 %v3358
        %v3423 = vunpack.c.l.b16 %v3359
        %v3424 = vunpack.c.l.b16 %v3360
        %v3425 = vunpack.c.l.b16 %v3361
        %v3426 = vunpack.c.l.b16 %v3362
        %v3427 = vunpack.c.l.b16 %v3363
        %v3428 = vunpack.c.l.b16 %v3364
        %v3429 = vunpack.c.l.b16 %v3365
        %v3430 = vunpack.c.l.b16 %v3366
        %v3431 = vunpack.c.l.b16 %v3367
        %v3432 = vunpack.c.l.b16 %v3368
        %v3433 = vunpack.c.l.b16 %v3369
        %v3434 = vunpack.c.l.b16 %v3370
        %v3435 = vunpack.c.l.b16 %v3371
        %v3436 = vunpack.c.l.b16 %v3372
        %v3437 = vunpack.c.l.b16 %v3373
        %v3438 = vunpack.c.l.b16 %v3374
        %v3439 = vunpack.c.l.b16 %v3375
        %v3440 = vunpack.c.l.b16 %v3376
        %v3441 = vunpack.c.l.b16 %v3377
        %v3442 = vunpack.c.l.b16 %v3378
        %v3443 = vunpack.c.l.b16 %v3379
        %v3444 = vunpack.c.l.b16 %v3380
        %v3445 = vunpack.c.l.b16 %v3381
        %v3446 = vunpack.c.l.b16 %v3382
        %v3447 = vunpack.c.l.b16 %v3383
        %v3448 = vunpack.c.l.b16 %v3384
        %v3449 = vunpack.c.l.b16 %v3385
        %v3450 = vpack.c.b16 %v3419, %v3418
        %v3451 = vpack.c.b16 %v3421, %v3420
        %v3452 = vpack.c.b16 %v3423, %v3422
        %v3453 = vpack.c.b16 %v3425, %v3424
        %v3454 = vpack.c.b16 %v3427, %v3426
        %v3455 = vpack.c.b16 %v3429, %v3428
        %v3456 = vpack.c.b16 %v3431, %v3430
        %v3457 = vpack.c.b16 %v3433, %v3432
        %v3458 = vpack.c.b16 %v3435, %v3434
        %v3459 = vpack.c.b16 %v3437, %v3436
        %v3460 = vpack.c.b16 %v3439, %v3438
        %v3461 = vpack.c.b16 %v3441, %v3440
        %v3462 = vpack.c.b16 %v3443, %v3442
        %v3463 = vpack.c.b16 %v3445, %v3444
        %v3464 = vpack.c.b16 %v3447, %v3446
        %v3465 = vpack.c.b16 %v3449, %v3448
        %v3467 = vsel %vm599, %v3450, 0
        %v3470 = vsel %vm599, %v3451, 0
        %v3473 = vsel %vm599, %v3452, 0
        %v3476 = vsel %vm599, %v3453, 0
        %v3479 = vsel %vm599, %v3454, 0
        %v3482 = vsel %vm599, %v3455, 0
        %v3485 = vsel %vm599, %v3456, 0
        %v3488 = vsel %vm599, %v3457, 0
        %v3491 = vsel %vm599, %v3458, 0
        %v3494 = vsel %vm599, %v3459, 0
        %v3497 = vsel %vm599, %v3460, 0
        %v3500 = vsel %vm599, %v3461, 0
        %v3503 = vsel %vm599, %v3462, 0
        %v3506 = vsel %vm599, %v3463, 0
        %v3509 = vsel %vm599, %v3464, 0
        %v3512 = vsel %vm599, %v3465, 0
        %3514 = vmatprep.subr.bf16.mxu0 0
        %3515 = vmatpush1.bf16.msra.mxu0 0
        %3516 = vmatprep.subr.bf16.mxu0 0
        %3517 = vmatpush1.bf16.msra.mxu0 0
        %3518 = vmatprep.subr.bf16.mxu0 0
        %3519 = vmatpush1.bf16.msra.mxu0 0
        %3520 = vmatprep.subr.bf16.mxu0 0
        %3521 = vmatpush1.bf16.msra.mxu0 0
        %3522 = vmatprep.subr.bf16.mxu0 0
        %3523 = vmatpush1.bf16.msra.mxu0 0
        %3524 = vmatprep.subr.bf16.mxu0 0
        %3525 = vmatpush1.bf16.msra.mxu0 0
        %3526 = vmatprep.subr.bf16.mxu0 0
        %3527 = vmatpush1.bf16.msra.mxu0 0
        %3528 = vmatprep.subr.bf16.mxu0 0
        %3529 = vmatpush1.bf16.msra.mxu0 %v597
        %3530 = vmatprep.subr.bf16.mxu0 0
        %3531 = vmatpush2.bf16.msra.mxu0 0
        %3532 = vmatprep.subr.bf16.mxu0 0
        %3533 = vmatpush2.bf16.msra.mxu0 0
        %3534 = vmatprep.subr.bf16.mxu0 0
        %3535 = vmatpush2.bf16.msra.mxu0 0
        %3536 = vmatprep.subr.bf16.mxu0 0
        %3537 = vmatpush2.bf16.msra.mxu0 0
        %3538 = vmatprep.subr.bf16.mxu0 0
        %3539 = vmatpush2.bf16.msra.mxu0 0
        %3540 = vmatprep.subr.bf16.mxu0 0
        %3541 = vmatpush2.bf16.msra.mxu0 0
        %3542 = vmatprep.subr.bf16.mxu0 0
        %3543 = vmatpush2.bf16.msra.mxu0 0
        %3544 = vmatprep.subr.bf16.mxu0 0
        %3545 = vmatpush2.bf16.msra.mxu0 0
        %3546 = vmatprep.mubr.bf16.mxu0 0
        %3547 = vmatmul.mubr.bf16.gmra.mxu0 %v3467
        %v3548 = vpop.f32.mrf.mxu0
        %v3549 = vadd.f32 %v511, %v3548
        %v3550 = vpop.f32.mrf.mxu0
        %v3551 = vpop.f32.mrf.mxu0
        %v3552 = vadd.f32 %v511, %v3551
        %v3553 = vpop.f32.mrf.mxu0
        %3554 = vmatprep.mubr.bf16.mxu0 0
        %3555 = vmatmul.mubr.bf16.gmra.mxu0 %v3470
        %v3556 = vpop.f32.mrf.mxu0
        %v3557 = vadd.f32 %v511, %v3556
        %v3558 = vpop.f32.mrf.mxu0
        %v3559 = vpop.f32.mrf.mxu0
        %v3560 = vadd.f32 %v511, %v3559
        %v3561 = vpop.f32.mrf.mxu0
        %3562 = vmatprep.mubr.bf16.mxu0 0
        %3563 = vmatmul.mubr.bf16.gmra.mxu0 %v3473
        %v3564 = vpop.f32.mrf.mxu0
        %v3565 = vadd.f32 %v511, %v3564
        %v3566 = vpop.f32.mrf.mxu0
        %v3567 = vpop.f32.mrf.mxu0
        %v3568 = vadd.f32 %v511, %v3567
        %v3569 = vpop.f32.mrf.mxu0
        %3570 = vmatprep.mubr.bf16.mxu0 0
        %3571 = vmatmul.mubr.bf16.gmra.mxu0 %v3476
        %v3572 = vpop.f32.mrf.mxu0
        %v3573 = vadd.f32 %v511, %v3572
        %v3574 = vpop.f32.mrf.mxu0
        %v3575 = vpop.f32.mrf.mxu0
        %v3576 = vadd.f32 %v511, %v3575
        %v3577 = vpop.f32.mrf.mxu0
        %3578 = vmatprep.mubr.bf16.mxu0 0
        %3579 = vmatmul.mubr.bf16.gmra.mxu0 %v3479
        %v3580 = vpop.f32.mrf.mxu0
        %v3581 = vadd.f32 %v511, %v3580
        %v3582 = vpop.f32.mrf.mxu0
        %v3583 = vpop.f32.mrf.mxu0
        %v3584 = vadd.f32 %v511, %v3583
        %v3585 = vpop.f32.mrf.mxu0
        %3586 = vmatprep.mubr.bf16.mxu0 0
        %3587 = vmatmul.mubr.bf16.gmra.mxu0 %v3482
        %v3588 = vpop.f32.mrf.mxu0
        %v3589 = vadd.f32 %v511, %v3588
        %v3590 = vpop.f32.mrf.mxu0
        %v3591 = vpop.f32.mrf.mxu0
        %v3592 = vadd.f32 %v511, %v3591
        %v3593 = vpop.f32.mrf.mxu0
        %3594 = vmatprep.mubr.bf16.mxu0 0
        %3595 = vmatmul.mubr.bf16.gmra.mxu0 %v3485
        %v3596 = vpop.f32.mrf.mxu0
        %v3597 = vadd.f32 %v511, %v3596
        %v3598 = vpop.f32.mrf.mxu0
        %v3599 = vpop.f32.mrf.mxu0
        %v3600 = vadd.f32 %v511, %v3599
        %v3601 = vpop.f32.mrf.mxu0
        %3602 = vmatprep.mubr.bf16.mxu0 0
        %3603 = vmatmul.mubr.bf16.gmra.mxu0 %v3488
        %v3604 = vpop.f32.mrf.mxu0
        %v3605 = vadd.f32 %v511, %v3604
        %v3606 = vpop.f32.mrf.mxu0
        %v3607 = vpop.f32.mrf.mxu0
        %v3608 = vadd.f32 %v511, %v3607
        %v3609 = vpop.f32.mrf.mxu0
        %3610 = vmatprep.mubr.bf16.mxu0 0
        %3611 = vmatmul.mubr.bf16.gmra.mxu0 %v3491
        %v3612 = vpop.f32.mrf.mxu0
        %v3613 = vadd.f32 %v511, %v3612
        %v3614 = vpop.f32.mrf.mxu0
        %v3615 = vpop.f32.mrf.mxu0
        %v3616 = vadd.f32 %v511, %v3615
        %v3617 = vpop.f32.mrf.mxu0
        %3618 = vmatprep.mubr.bf16.mxu0 0
        %3619 = vmatmul.mubr.bf16.gmra.mxu0 %v3494
        %v3620 = vpop.f32.mrf.mxu0
        %v3621 = vadd.f32 %v511, %v3620
        %v3622 = vpop.f32.mrf.mxu0
        %v3623 = vpop.f32.mrf.mxu0
        %v3624 = vadd.f32 %v511, %v3623
        %v3625 = vpop.f32.mrf.mxu0
        %3626 = vmatprep.mubr.bf16.mxu0 0
        %3627 = vmatmul.mubr.bf16.gmra.mxu0 %v3497
        %v3628 = vpop.f32.mrf.mxu0
        %v3629 = vadd.f32 %v511, %v3628
        %v3630 = vpop.f32.mrf.mxu0
        %v3631 = vpop.f32.mrf.mxu0
        %v3632 = vadd.f32 %v511, %v3631
        %v3633 = vpop.f32.mrf.mxu0
        %3634 = vmatprep.mubr.bf16.mxu0 0
        %3635 = vmatmul.mubr.bf16.gmra.mxu0 %v3500
        %v3636 = vpop.f32.mrf.mxu0
        %v3637 = vadd.f32 %v511, %v3636
        %v3638 = vpop.f32.mrf.mxu0
        %v3639 = vpop.f32.mrf.mxu0
        %v3640 = vadd.f32 %v511, %v3639
        %v3641 = vpop.f32.mrf.mxu0
        %3642 = vmatprep.mubr.bf16.mxu0 0
        %3643 = vmatmul.mubr.bf16.gmra.mxu0 %v3503
        %v3644 = vpop.f32.mrf.mxu0
        %v3645 = vadd.f32 %v511, %v3644
        %v3646 = vpop.f32.mrf.mxu0
        %v3647 = vpop.f32.mrf.mxu0
        %v3648 = vadd.f32 %v511, %v3647
        %v3649 = vpop.f32.mrf.mxu0
        %3650 = vmatprep.mubr.bf16.mxu0 0
        %3651 = vmatmul.mubr.bf16.gmra.mxu0 %v3506
        %v3652 = vpop.f32.mrf.mxu0
        %v3653 = vadd.f32 %v511, %v3652
        %v3654 = vpop.f32.mrf.mxu0
        %v3655 = vpop.f32.mrf.mxu0
        %v3656 = vadd.f32 %v511, %v3655
        %v3657 = vpop.f32.mrf.mxu0
        %3658 = vmatprep.mubr.bf16.mxu0 0
        %3659 = vmatmul.mubr.bf16.gmra.mxu0 %v3509
        %v3660 = vpop.f32.mrf.mxu0
        %v3661 = vadd.f32 %v511, %v3660
        %v3662 = vpop.f32.mrf.mxu0
        %v3663 = vpop.f32.mrf.mxu0
        %v3664 = vadd.f32 %v511, %v3663
        %v3665 = vpop.f32.mrf.mxu0
        %3666 = vmatprep.mubr.bf16.mxu0 0
        %3667 = vmatmul.mubr.bf16.gmra.mxu0 %v3512
        %v3668 = vpop.f32.mrf.mxu0
        %v3669 = vadd.f32 %v511, %v3668
        %v3670 = vpop.f32.mrf.mxu0
        %v3671 = vpop.f32.mrf.mxu0
        %v3672 = vadd.f32 %v511, %v3671
        %v3673 = vpop.f32.mrf.mxu0
        %3674 = vdwg.mxu0
        %3675 = vadd.xlane.f32.xlu0 %v3549
        %v3676 = vpop.xlane.xlu0 %3675
        %3677 = vadd.xlane.f32.xlu0 %v3552
        %v3678 = vpop.xlane.xlu0 %3677
        %3679 = vadd.xlane.f32.xlu0 %v3557
        %v3680 = vpop.xlane.xlu0 %3679
        %3681 = vadd.xlane.f32.xlu0 %v3560
        %v3682 = vpop.xlane.xlu0 %3681
        %3683 = vadd.xlane.f32.xlu0 %v3565
        %v3684 = vpop.xlane.xlu0 %3683
        %3685 = vadd.xlane.f32.xlu0 %v3568
        %v3686 = vpop.xlane.xlu0 %3685
        %3687 = vadd.xlane.f32.xlu0 %v3573
        %v3688 = vpop.xlane.xlu0 %3687
        %3689 = vadd.xlane.f32.xlu0 %v3576
        %v3690 = vpop.xlane.xlu0 %3689
        %3691 = vadd.xlane.f32.xlu0 %v3581
        %v3692 = vpop.xlane.xlu0 %3691
        %3693 = vadd.xlane.f32.xlu0 %v3584
        %v3694 = vpop.xlane.xlu0 %3693
        %3695 = vadd.xlane.f32.xlu0 %v3589
        %v3696 = vpop.xlane.xlu0 %3695
        %3697 = vadd.xlane.f32.xlu0 %v3592
        %v3698 = vpop.xlane.xlu0 %3697
        %3699 = vadd.xlane.f32.xlu0 %v3597
        %v3700 = vpop.xlane.xlu0 %3699
        %3701 = vadd.xlane.f32.xlu0 %v3600
        %v3702 = vpop.xlane.xlu0 %3701
        %3703 = vadd.xlane.f32.xlu0 %v3605
        %v3704 = vpop.xlane.xlu0 %3703
        %3705 = vadd.xlane.f32.xlu0 %v3608
        %v3706 = vpop.xlane.xlu0 %3705
        %3707 = vadd.xlane.f32.xlu0 %v3613
        %v3708 = vpop.xlane.xlu0 %3707
        %3709 = vadd.xlane.f32.xlu0 %v3616
        %v3710 = vpop.xlane.xlu0 %3709
        %3711 = vadd.xlane.f32.xlu0 %v3621
        %v3712 = vpop.xlane.xlu0 %3711
        %3713 = vadd.xlane.f32.xlu0 %v3624
        %v3714 = vpop.xlane.xlu0 %3713
        %3715 = vadd.xlane.f32.xlu0 %v3629
        %v3716 = vpop.xlane.xlu0 %3715
        %3717 = vadd.xlane.f32.xlu0 %v3632
        %v3718 = vpop.xlane.xlu0 %3717
        %3719 = vadd.xlane.f32.xlu0 %v3637
        %v3720 = vpop.xlane.xlu0 %3719
        %3721 = vadd.xlane.f32.xlu0 %v3640
        %v3722 = vpop.xlane.xlu0 %3721
        %3723 = vadd.xlane.f32.xlu0 %v3645
        %v3724 = vpop.xlane.xlu0 %3723
        %3725 = vadd.xlane.f32.xlu0 %v3648
        %v3726 = vpop.xlane.xlu0 %3725
        %3727 = vadd.xlane.f32.xlu0 %v3653
        %v3728 = vpop.xlane.xlu0 %3727
        %3729 = vadd.xlane.f32.xlu0 %v3656
        %v3730 = vpop.xlane.xlu0 %3729
        %3731 = vadd.xlane.f32.xlu0 %v3661
        %v3732 = vpop.xlane.xlu0 %3731
        %3733 = vadd.xlane.f32.xlu0 %v3664
        %v3734 = vpop.xlane.xlu0 %3733
        %3735 = vadd.xlane.f32.xlu0 %v3669
        %v3736 = vpop.xlane.xlu0 %3735
        %3737 = vadd.xlane.f32.xlu0 %v3672
        %v3738 = vpop.xlane.xlu0 %3737
        %v3739 = vmul.f32 %v3549, %v3549
        %v3740 = vmul.f32 %v3552, %v3552
        %v3741 = vmul.f32 %v3557, %v3557
        %v3742 = vmul.f32 %v3560, %v3560
        %v3743 = vmul.f32 %v3565, %v3565
        %v3744 = vmul.f32 %v3568, %v3568
        %v3745 = vmul.f32 %v3573, %v3573
        %v3746 = vmul.f32 %v3576, %v3576
        %v3747 = vmul.f32 %v3581, %v3581
        %v3748 = vmul.f32 %v3584, %v3584
        %v3749 = vmul.f32 %v3589, %v3589
        %v3750 = vmul.f32 %v3592, %v3592
        %v3751 = vmul.f32 %v3597, %v3597
        %v3752 = vmul.f32 %v3600, %v3600
        %v3753 = vmul.f32 %v3605, %v3605
        %v3754 = vmul.f32 %v3608, %v3608
        %v3755 = vmul.f32 %v3613, %v3613
        %v3756 = vmul.f32 %v3616, %v3616
        %v3757 = vmul.f32 %v3621, %v3621
        %v3758 = vmul.f32 %v3624, %v3624
        %v3759 = vmul.f32 %v3629, %v3629
        %v3760 = vmul.f32 %v3632, %v3632
        %v3761 = vmul.f32 %v3637, %v3637
        %v3762 = vmul.f32 %v3640, %v3640
        %v3763 = vmul.f32 %v3645, %v3645
        %v3764 = vmul.f32 %v3648, %v3648
        %v3765 = vmul.f32 %v3653, %v3653
        %v3766 = vmul.f32 %v3656, %v3656
        %v3767 = vmul.f32 %v3661, %v3661
        %v3768 = vmul.f32 %v3664, %v3664
        %v3769 = vmul.f32 %v3669, %v3669
        %v3770 = vmul.f32 %v3672, %v3672
        %3771 = vadd.xlane.f32.xlu0 %v3739
        %v3772 = vpop.xlane.xlu0 %3771
        %3773 = vadd.xlane.f32.xlu0 %v3740
        %v3774 = vpop.xlane.xlu0 %3773
        %3775 = vadd.xlane.f32.xlu0 %v3741
        %v3776 = vpop.xlane.xlu0 %3775
        %3777 = vadd.xlane.f32.xlu0 %v3742
        %v3778 = vpop.xlane.xlu0 %3777
        %3779 = vadd.xlane.f32.xlu0 %v3743
        %v3780 = vpop.xlane.xlu0 %3779
        %3781 = vadd.xlane.f32.xlu0 %v3744
        %v3782 = vpop.xlane.xlu0 %3781
        %3783 = vadd.xlane.f32.xlu0 %v3745
        %v3784 = vpop.xlane.xlu0 %3783
        %3785 = vadd.xlane.f32.xlu0 %v3746
        %v3786 = vpop.xlane.xlu0 %3785
        %3787 = vadd.xlane.f32.xlu0 %v3747
        %v3788 = vpop.xlane.xlu0 %3787
        %3789 = vadd.xlane.f32.xlu0 %v3748
        %v3790 = vpop.xlane.xlu0 %3789
        %3791 = vadd.xlane.f32.xlu0 %v3749
        %v3792 = vpop.xlane.xlu0 %3791
        %3793 = vadd.xlane.f32.xlu0 %v3750
        %v3794 = vpop.xlane.xlu0 %3793
        %3795 = vadd.xlane.f32.xlu0 %v3751
        %v3796 = vpop.xlane.xlu0 %3795
        %3797 = vadd.xlane.f32.xlu0 %v3752
        %v3798 = vpop.xlane.xlu0 %3797
        %3799 = vadd.xlane.f32.xlu0 %v3753
        %v3800 = vpop.xlane.xlu0 %3799
        %3801 = vadd.xlane.f32.xlu0 %v3754
        %v3802 = vpop.xlane.xlu0 %3801
        %3803 = vadd.xlane.f32.xlu0 %v3755
        %v3804 = vpop.xlane.xlu0 %3803
        %3805 = vadd.xlane.f32.xlu0 %v3756
        %v3806 = vpop.xlane.xlu0 %3805
        %3807 = vadd.xlane.f32.xlu0 %v3757
        %v3808 = vpop.xlane.xlu0 %3807
        %3809 = vadd.xlane.f32.xlu0 %v3758
        %v3810 = vpop.xlane.xlu0 %3809
        %3811 = vadd.xlane.f32.xlu0 %v3759
        %v3812 = vpop.xlane.xlu0 %3811
        %3813 = vadd.xlane.f32.xlu0 %v3760
        %v3814 = vpop.xlane.xlu0 %3813
        %3815 = vadd.xlane.f32.xlu0 %v3761
        %v3816 = vpop.xlane.xlu0 %3815
        %3817 = vadd.xlane.f32.xlu0 %v3762
        %v3818 = vpop.xlane.xlu0 %3817
        %3819 = vadd.xlane.f32.xlu0 %v3763
        %v3820 = vpop.xlane.xlu0 %3819
        %3821 = vadd.xlane.f32.xlu0 %v3764
        %v3822 = vpop.xlane.xlu0 %3821
        %3823 = vadd.xlane.f32.xlu0 %v3765
        %v3824 = vpop.xlane.xlu0 %3823
        %3825 = vadd.xlane.f32.xlu0 %v3766
        %v3826 = vpop.xlane.xlu0 %3825
        %3827 = vadd.xlane.f32.xlu0 %v3767
        %v3828 = vpop.xlane.xlu0 %3827
        %3829 = vadd.xlane.f32.xlu0 %v3768
        %v3830 = vpop.xlane.xlu0 %3829
        %3831 = vadd.xlane.f32.xlu0 %v3769
        %v3832 = vpop.xlane.xlu0 %3831
        %3833 = vadd.xlane.f32.xlu0 %v3770
        %v3834 = vpop.xlane.xlu0 %3833
        %v3835 = vmul.f32 %v3676, 0.010416667
        %v3836 = vmul.f32 %v3678, 0.010416667
        %v3837 = vmul.f32 %v3680, 0.010416667
        %v3838 = vmul.f32 %v3682, 0.010416667
        %v3839 = vmul.f32 %v3684, 0.010416667
        %v3840 = vmul.f32 %v3686, 0.010416667
        %v3841 = vmul.f32 %v3688, 0.010416667
        %v3842 = vmul.f32 %v3690, 0.010416667
        %v3843 = vmul.f32 %v3692, 0.010416667
        %v3844 = vmul.f32 %v3694, 0.010416667
        %v3845 = vmul.f32 %v3696, 0.010416667
        %v3846 = vmul.f32 %v3698, 0.010416667
        %v3847 = vmul.f32 %v3700, 0.010416667
        %v3848 = vmul.f32 %v3702, 0.010416667
        %v3849 = vmul.f32 %v3704, 0.010416667
        %v3850 = vmul.f32 %v3706, 0.010416667
        %v3851 = vmul.f32 %v3708, 0.010416667
        %v3852 = vmul.f32 %v3710, 0.010416667
        %v3853 = vmul.f32 %v3712, 0.010416667
        %v3854 = vmul.f32 %v3714, 0.010416667
        %v3855 = vmul.f32 %v3716, 0.010416667
        %v3856 = vmul.f32 %v3718, 0.010416667
        %v3857 = vmul.f32 %v3720, 0.010416667
        %v3858 = vmul.f32 %v3722, 0.010416667
        %v3859 = vmul.f32 %v3724, 0.010416667
        %v3860 = vmul.f32 %v3726, 0.010416667
        %v3861 = vmul.f32 %v3728, 0.010416667
        %v3862 = vmul.f32 %v3730, 0.010416667
        %v3863 = vmul.f32 %v3732, 0.010416667
        %v3864 = vmul.f32 %v3734, 0.010416667
        %v3865 = vmul.f32 %v3736, 0.010416667
        %v3866 = vmul.f32 %v3738, 0.010416667
        %v3867 = vmul.f32 %v3772, 0.010416667
        %v3868 = vmul.f32 %v3774, 0.010416667
        %v3869 = vmul.f32 %v3776, 0.010416667
        %v3870 = vmul.f32 %v3778, 0.010416667
        %v3871 = vmul.f32 %v3780, 0.010416667
        %v3872 = vmul.f32 %v3782, 0.010416667
        %v3873 = vmul.f32 %v3784, 0.010416667
        %v3874 = vmul.f32 %v3786, 0.010416667
        %v3875 = vmul.f32 %v3788, 0.010416667
        %v3876 = vmul.f32 %v3790, 0.010416667
        %v3877 = vmul.f32 %v3792, 0.010416667
        %v3878 = vmul.f32 %v3794, 0.010416667
        %v3879 = vmul.f32 %v3796, 0.010416667
        %v3880 = vmul.f32 %v3798, 0.010416667
        %v3881 = vmul.f32 %v3800, 0.010416667
        %v3882 = vmul.f32 %v3802, 0.010416667
        %v3883 = vmul.f32 %v3804, 0.010416667
        %v3884 = vmul.f32 %v3806, 0.010416667
        %v3885 = vmul.f32 %v3808, 0.010416667
        %v3886 = vmul.f32 %v3810, 0.010416667
        %v3887 = vmul.f32 %v3812, 0.010416667
        %v3888 = vmul.f32 %v3814, 0.010416667
        %v3889 = vmul.f32 %v3816, 0.010416667
        %v3890 = vmul.f32 %v3818, 0.010416667
        %v3891 = vmul.f32 %v3820, 0.010416667
        %v3892 = vmul.f32 %v3822, 0.010416667
        %v3893 = vmul.f32 %v3824, 0.010416667
        %v3894 = vmul.f32 %v3826, 0.010416667
        %v3895 = vmul.f32 %v3828, 0.010416667
        %v3896 = vmul.f32 %v3830, 0.010416667
        %v3897 = vmul.f32 %v3832, 0.010416667
        %v3898 = vmul.f32 %v3834, 0.010416667
        %v3899 = vmul.f32 %v3835, %v3835
        %v3900 = vmul.f32 %v3836, %v3836
        %v3901 = vmul.f32 %v3837, %v3837
        %v3902 = vmul.f32 %v3838, %v3838
        %v3903 = vmul.f32 %v3839, %v3839
        %v3904 = vmul.f32 %v3840, %v3840
        %v3905 = vmul.f32 %v3841, %v3841
        %v3906 = vmul.f32 %v3842, %v3842
        %v3907 = vmul.f32 %v3843, %v3843
        %v3908 = vmul.f32 %v3844, %v3844
        %v3909 = vmul.f32 %v3845, %v3845
        %v3910 = vmul.f32 %v3846, %v3846
        %v3911 = vmul.f32 %v3847, %v3847
        %v3912 = vmul.f32 %v3848, %v3848
        %v3913 = vmul.f32 %v3849, %v3849
        %v3914 = vmul.f32 %v3850, %v3850
        %v3915 = vmul.f32 %v3851, %v3851
        %v3916 = vmul.f32 %v3852, %v3852
        %v3917 = vmul.f32 %v3853, %v3853
        %v3918 = vmul.f32 %v3854, %v3854
        %v3919 = vmul.f32 %v3855, %v3855
        %v3920 = vmul.f32 %v3856, %v3856
        %v3921 = vmul.f32 %v3857, %v3857
        %v3922 = vmul.f32 %v3858, %v3858
        %v3923 = vmul.f32 %v3859, %v3859
        %v3924 = vmul.f32 %v3860, %v3860
        %v3925 = vmul.f32 %v3861, %v3861
        %v3926 = vmul.f32 %v3862, %v3862
        %v3927 = vmul.f32 %v3863, %v3863
        %v3928 = vmul.f32 %v3864, %v3864
        %v3929 = vmul.f32 %v3865, %v3865
        %v3930 = vmul.f32 %v3866, %v3866
        %v3931 = vsub.f32 %v3867, %v3899
        %v3932 = vsub.f32 %v3868, %v3900
        %v3933 = vsub.f32 %v3869, %v3901
        %v3934 = vsub.f32 %v3870, %v3902
        %v3935 = vsub.f32 %v3871, %v3903
        %v3936 = vsub.f32 %v3872, %v3904
        %v3937 = vsub.f32 %v3873, %v3905
        %v3938 = vsub.f32 %v3874, %v3906
        %v3939 = vsub.f32 %v3875, %v3907
        %v3940 = vsub.f32 %v3876, %v3908
        %v3941 = vsub.f32 %v3877, %v3909
        %v3942 = vsub.f32 %v3878, %v3910
        %v3943 = vsub.f32 %v3879, %v3911
        %v3944 = vsub.f32 %v3880, %v3912
        %v3945 = vsub.f32 %v3881, %v3913
        %v3946 = vsub.f32 %v3882, %v3914
        %v3947 = vsub.f32 %v3883, %v3915
        %v3948 = vsub.f32 %v3884, %v3916
        %v3949 = vsub.f32 %v3885, %v3917
        %v3950 = vsub.f32 %v3886, %v3918
        %v3951 = vsub.f32 %v3887, %v3919
        %v3952 = vsub.f32 %v3888, %v3920
        %v3953 = vsub.f32 %v3889, %v3921
        %v3954 = vsub.f32 %v3890, %v3922
        %v3955 = vsub.f32 %v3891, %v3923
        %v3956 = vsub.f32 %v3892, %v3924
        %v3957 = vsub.f32 %v3893, %v3925
        %v3958 = vsub.f32 %v3894, %v3926
        %v3959 = vsub.f32 %v3895, %v3927
        %v3960 = vsub.f32 %v3896, %v3928
        %v3961 = vsub.f32 %v3897, %v3929
        %v3962 = vsub.f32 %v3898, %v3930
        %v3963 = vsub.f32 %v3549, %v3835
        %v3964 = vsub.f32 %v3552, %v3836
        %v3965 = vsub.f32 %v3557, %v3837
        %v3966 = vsub.f32 %v3560, %v3838
        %v3967 = vsub.f32 %v3565, %v3839
        %v3968 = vsub.f32 %v3568, %v3840
        %v3969 = vsub.f32 %v3573, %v3841
        %v3970 = vsub.f32 %v3576, %v3842
        %v3971 = vsub.f32 %v3581, %v3843
        %v3972 = vsub.f32 %v3584, %v3844
        %v3973 = vsub.f32 %v3589, %v3845
        %v3974 = vsub.f32 %v3592, %v3846
        %v3975 = vsub.f32 %v3597, %v3847
        %v3976 = vsub.f32 %v3600, %v3848
        %v3977 = vsub.f32 %v3605, %v3849
        %v3978 = vsub.f32 %v3608, %v3850
        %v3979 = vsub.f32 %v3613, %v3851
        %v3980 = vsub.f32 %v3616, %v3852
        %v3981 = vsub.f32 %v3621, %v3853
        %v3982 = vsub.f32 %v3624, %v3854
        %v3983 = vsub.f32 %v3629, %v3855
        %v3984 = vsub.f32 %v3632, %v3856
        %v3985 = vsub.f32 %v3637, %v3857
        %v3986 = vsub.f32 %v3640, %v3858
        %v3987 = vsub.f32 %v3645, %v3859
        %v3988 = vsub.f32 %v3648, %v3860
        %v3989 = vsub.f32 %v3653, %v3861
        %v3990 = vsub.f32 %v3656, %v3862
        %v3991 = vsub.f32 %v3661, %v3863
        %v3992 = vsub.f32 %v3664, %v3864
        %v3993 = vsub.f32 %v3669, %v3865
        %v3994 = vsub.f32 %v3672, %v3866
        %v3995 = vadd.f32 %v3931, 1e-05
        %v3996 = vadd.f32 %v3932, 1e-05
        %v3997 = vadd.f32 %v3933, 1e-05
        %v3998 = vadd.f32 %v3934, 1e-05
        %v3999 = vadd.f32 %v3935, 1e-05
        %v4000 = vadd.f32 %v3936, 1e-05
        %v4001 = vadd.f32 %v3937, 1e-05
        %v4002 = vadd.f32 %v3938, 1e-05
        %v4003 = vadd.f32 %v3939, 1e-05
        %v4004 = vadd.f32 %v3940, 1e-05
        %v4005 = vadd.f32 %v3941, 1e-05
        %v4006 = vadd.f32 %v3942, 1e-05
        %v4007 = vadd.f32 %v3943, 1e-05
        %v4008 = vadd.f32 %v3944, 1e-05
        %v4009 = vadd.f32 %v3945, 1e-05
        %v4010 = vadd.f32 %v3946, 1e-05
        %v4011 = vadd.f32 %v3947, 1e-05
        %v4012 = vadd.f32 %v3948, 1e-05
        %v4013 = vadd.f32 %v3949, 1e-05
        %v4014 = vadd.f32 %v3950, 1e-05
        %v4015 = vadd.f32 %v3951, 1e-05
        %v4016 = vadd.f32 %v3952, 1e-05
        %v4017 = vadd.f32 %v3953, 1e-05
        %v4018 = vadd.f32 %v3954, 1e-05
        %v4019 = vadd.f32 %v3955, 1e-05
        %v4020 = vadd.f32 %v3956, 1e-05
        %v4021 = vadd.f32 %v3957, 1e-05
        %v4022 = vadd.f32 %v3958, 1e-05
        %v4023 = vadd.f32 %v3959, 1e-05
        %v4024 = vadd.f32 %v3960, 1e-05
        %v4025 = vadd.f32 %v3961, 1e-05
        %v4026 = vadd.f32 %v3962, 1e-05
        %v4027 = vrsqrt.pop %v3995
        %v4028 = vrsqrt.pop %v3996
        %v4029 = vrsqrt.pop %v3997
        %v4030 = vrsqrt.pop %v3998
        %v4031 = vrsqrt.pop %v3999
        %v4032 = vrsqrt.pop %v4000
        %v4033 = vrsqrt.pop %v4001
        %v4034 = vrsqrt.pop %v4002
        %v4035 = vrsqrt.pop %v4003
        %v4036 = vrsqrt.pop %v4004
        %v4037 = vrsqrt.pop %v4005
        %v4038 = vrsqrt.pop %v4006
        %v4039 = vrsqrt.pop %v4007
        %v4040 = vrsqrt.pop %v4008
        %v4041 = vrsqrt.pop %v4009
        %v4042 = vrsqrt.pop %v4010
        %v4043 = vrsqrt.pop %v4011
        %v4044 = vrsqrt.pop %v4012
        %v4045 = vrsqrt.pop %v4013
        %v4046 = vrsqrt.pop %v4014
        %v4047 = vrsqrt.pop %v4015
        %v4048 = vrsqrt.pop %v4016
        %v4049 = vrsqrt.pop %v4017
        %v4050 = vrsqrt.pop %v4018
        %v4051 = vrsqrt.pop %v4019
        %v4052 = vrsqrt.pop %v4020
        %v4053 = vrsqrt.pop %v4021
        %v4054 = vrsqrt.pop %v4022
        %v4055 = vrsqrt.pop %v4023
        %v4056 = vrsqrt.pop %v4024
        %v4057 = vrsqrt.pop %v4025
        %v4058 = vrsqrt.pop %v4026
        %v4059 = vmul.f32 %v3963, %v4027
        %v4060 = vmul.f32 %v3964, %v4028
        %v4061 = vmul.f32 %v3965, %v4029
        %v4062 = vmul.f32 %v3966, %v4030
        %v4063 = vmul.f32 %v3967, %v4031
        %v4064 = vmul.f32 %v3968, %v4032
        %v4065 = vmul.f32 %v3969, %v4033
        %v4066 = vmul.f32 %v3970, %v4034
        %v4067 = vmul.f32 %v3971, %v4035
        %v4068 = vmul.f32 %v3972, %v4036
        %v4069 = vmul.f32 %v3973, %v4037
        %v4070 = vmul.f32 %v3974, %v4038
        %v4071 = vmul.f32 %v3975, %v4039
        %v4072 = vmul.f32 %v3976, %v4040
        %v4073 = vmul.f32 %v3977, %v4041
        %v4074 = vmul.f32 %v3978, %v4042
        %v4075 = vmul.f32 %v3979, %v4043
        %v4076 = vmul.f32 %v3980, %v4044
        %v4077 = vmul.f32 %v3981, %v4045
        %v4078 = vmul.f32 %v3982, %v4046
        %v4079 = vmul.f32 %v3983, %v4047
        %v4080 = vmul.f32 %v3984, %v4048
        %v4081 = vmul.f32 %v3985, %v4049
        %v4082 = vmul.f32 %v3986, %v4050
        %v4083 = vmul.f32 %v3987, %v4051
        %v4084 = vmul.f32 %v3988, %v4052
        %v4085 = vmul.f32 %v3989, %v4053
        %v4086 = vmul.f32 %v3990, %v4054
        %v4087 = vmul.f32 %v3991, %v4055
        %v4088 = vmul.f32 %v3992, %v4056
        %v4089 = vmul.f32 %v3993, %v4057
        %v4090 = vmul.f32 %v3994, %v4058
        %v4091 = vmul.f32 %v4059, %v1230
        %v4092 = vmul.f32 %v4060, %v1230
        %v4093 = vmul.f32 %v4061, %v1230
        %v4094 = vmul.f32 %v4062, %v1230
        %v4095 = vmul.f32 %v4063, %v1230
        %v4096 = vmul.f32 %v4064, %v1230
        %v4097 = vmul.f32 %v4065, %v1230
        %v4098 = vmul.f32 %v4066, %v1230
        %v4099 = vmul.f32 %v4067, %v1230
        %v4100 = vmul.f32 %v4068, %v1230
        %v4101 = vmul.f32 %v4069, %v1230
        %v4102 = vmul.f32 %v4070, %v1230
        %v4103 = vmul.f32 %v4071, %v1230
        %v4104 = vmul.f32 %v4072, %v1230
        %v4105 = vmul.f32 %v4073, %v1230
        %v4106 = vmul.f32 %v4074, %v1230
        %v4107 = vmul.f32 %v4075, %v1230
        %v4108 = vmul.f32 %v4076, %v1230
        %v4109 = vmul.f32 %v4077, %v1230
        %v4110 = vmul.f32 %v4078, %v1230
        %v4111 = vmul.f32 %v4079, %v1230
        %v4112 = vmul.f32 %v4080, %v1230
        %v4113 = vmul.f32 %v4081, %v1230
        %v4114 = vmul.f32 %v4082, %v1230
        %v4115 = vmul.f32 %v4083, %v1230
        %v4116 = vmul.f32 %v4084, %v1230
        %v4117 = vmul.f32 %v4085, %v1230
        %v4118 = vmul.f32 %v4086, %v1230
        %v4119 = vmul.f32 %v4087, %v1230
        %v4120 = vmul.f32 %v4088, %v1230
        %v4121 = vmul.f32 %v4089, %v1230
        %v4122 = vmul.f32 %v4090, %v1230
        %v4123 = vadd.f32 %v4091, %v1269
        %v4124 = vadd.f32 %v4092, %v1269
        %v4125 = vadd.f32 %v4093, %v1269
        %v4126 = vadd.f32 %v4094, %v1269
        %v4127 = vadd.f32 %v4095, %v1269
        %v4128 = vadd.f32 %v4096, %v1269
        %v4129 = vadd.f32 %v4097, %v1269
        %v4130 = vadd.f32 %v4098, %v1269
        %v4131 = vadd.f32 %v4099, %v1269
        %v4132 = vadd.f32 %v4100, %v1269
        %v4133 = vadd.f32 %v4101, %v1269
        %v4134 = vadd.f32 %v4102, %v1269
        %v4135 = vadd.f32 %v4103, %v1269
        %v4136 = vadd.f32 %v4104, %v1269
        %v4137 = vadd.f32 %v4105, %v1269
        %v4138 = vadd.f32 %v4106, %v1269
        %v4139 = vadd.f32 %v4107, %v1269
        %v4140 = vadd.f32 %v4108, %v1269
        %v4141 = vadd.f32 %v4109, %v1269
        %v4142 = vadd.f32 %v4110, %v1269
        %v4143 = vadd.f32 %v4111, %v1269
        %v4144 = vadd.f32 %v4112, %v1269
        %v4145 = vadd.f32 %v4113, %v1269
        %v4146 = vadd.f32 %v4114, %v1269
        %v4147 = vadd.f32 %v4115, %v1269
        %v4148 = vadd.f32 %v4116, %v1269
        %v4149 = vadd.f32 %v4117, %v1269
        %v4150 = vadd.f32 %v4118, %v1269
        %v4151 = vadd.f32 %v4119, %v1269
        %v4152 = vadd.f32 %v4120, %v1269
        %v4153 = vadd.f32 %v4121, %v1269
        %v4154 = vadd.f32 %v4122, %v1269
        %v4155 = vpack.c.bf16 %v4124, %v4123
        %v4156 = vpack.c.bf16 %v4126, %v4125
        %v4157 = vpack.c.bf16 %v4128, %v4127
        %v4158 = vpack.c.bf16 %v4130, %v4129
        %v4159 = vpack.c.bf16 %v4132, %v4131
        %v4160 = vpack.c.bf16 %v4134, %v4133
        %v4161 = vpack.c.bf16 %v4136, %v4135
        %v4162 = vpack.c.bf16 %v4138, %v4137
        %v4163 = vpack.c.bf16 %v4140, %v4139
        %v4164 = vpack.c.bf16 %v4142, %v4141
        %v4165 = vpack.c.bf16 %v4144, %v4143
        %v4166 = vpack.c.bf16 %v4146, %v4145
        %v4167 = vpack.c.bf16 %v4148, %v4147
        %v4168 = vpack.c.bf16 %v4150, %v4149
        %v4169 = vpack.c.bf16 %v4152, %v4151
        %v4170 = vpack.c.bf16 %v4154, %v4153
        %4171 = vmatprep.subr.bf16.mxu0 %v1470
        %4172 = vmatpush1.bf16.msra.mxu0 %v1469
        %4173 = vmatprep.subr.bf16.mxu0 %v1467
        %4174 = vmatpush1.bf16.msra.mxu0 %v1466
        %4175 = vmatprep.subr.bf16.mxu0 %v1464
        %4176 = vmatpush1.bf16.msra.mxu0 %v1463
        %4177 = vmatprep.subr.bf16.mxu0 %v1461
        %4178 = vmatpush1.bf16.msra.mxu0 %v1460
        %4179 = vmatprep.subr.bf16.mxu0 %v1458
        %4180 = vmatpush1.bf16.msra.mxu0 %v1457
        %4181 = vmatprep.subr.bf16.mxu0 %v1455
        %4182 = vmatpush1.bf16.msra.mxu0 %v1454
        %4183 = vmatprep.subr.bf16.mxu0 %v1452
        %4184 = vmatpush1.bf16.msra.mxu0 %v1451
        %4185 = vmatprep.subr.bf16.mxu0 %v1449
        %4186 = vmatpush1.bf16.msra.mxu0 %v1448
        %4187 = vmatprep.subr.bf16.mxu0 0
        %4188 = vmatpush2.bf16.msra.mxu0 0
        %4189 = vmatprep.subr.bf16.mxu0 0
        %4190 = vmatpush2.bf16.msra.mxu0 0
        %4191 = vmatprep.subr.bf16.mxu0 0
        %4192 = vmatpush2.bf16.msra.mxu0 0
        %4193 = vmatprep.subr.bf16.mxu0 0
        %4194 = vmatpush2.bf16.msra.mxu0 0
        %4195 = vmatprep.subr.bf16.mxu0 0
        %4196 = vmatpush2.bf16.msra.mxu0 0
        %4197 = vmatprep.subr.bf16.mxu0 0
        %4198 = vmatpush2.bf16.msra.mxu0 0
        %4199 = vmatprep.subr.bf16.mxu0 0
        %4200 = vmatpush2.bf16.msra.mxu0 0
        %4201 = vmatprep.subr.bf16.mxu0 0
        %4202 = vmatpush2.bf16.msra.mxu0 0
        %4203 = vmatprep.mubr.bf16.mxu0 0
        %4204 = vmatmul.mubr.bf16.gmra.mxu0 %v4155
        %v4205 = vpop.f32.mrf.mxu0
        %v4206 = vadd.f32 %v1356, %v4205
        %v4207 = vpop.f32.mrf.mxu0
        %v4208 = vadd.f32 %v1360, %v4207
        %v4209 = vpop.f32.mrf.mxu0
        %v4210 = vadd.f32 %v1356, %v4209
        %v4211 = vpop.f32.mrf.mxu0
        %v4212 = vadd.f32 %v1360, %v4211
        %4213 = vmatprep.mubr.bf16.mxu0 0
        %4214 = vmatmul.mubr.bf16.gmra.mxu0 %v4156
        %v4215 = vpop.f32.mrf.mxu0
        %v4216 = vadd.f32 %v1356, %v4215
        %v4217 = vpop.f32.mrf.mxu0
        %v4218 = vadd.f32 %v1360, %v4217
        %v4219 = vpop.f32.mrf.mxu0
        %v4220 = vadd.f32 %v1356, %v4219
        %v4221 = vpop.f32.mrf.mxu0
        %v4222 = vadd.f32 %v1360, %v4221
        %4223 = vmatprep.mubr.bf16.mxu0 0
        %4224 = vmatmul.mubr.bf16.gmra.mxu0 %v4157
        %v4225 = vpop.f32.mrf.mxu0
        %v4226 = vadd.f32 %v1356, %v4225
        %v4227 = vpop.f32.mrf.mxu0
        %v4228 = vadd.f32 %v1360, %v4227
        %v4229 = vpop.f32.mrf.mxu0
        %v4230 = vadd.f32 %v1356, %v4229
        %v4231 = vpop.f32.mrf.mxu0
        %v4232 = vadd.f32 %v1360, %v4231
        %4233 = vmatprep.mubr.bf16.mxu0 0
        %4234 = vmatmul.mubr.bf16.gmra.mxu0 %v4158
        %v4235 = vpop.f32.mrf.mxu0
        %v4236 = vadd.f32 %v1356, %v4235
        %v4237 = vpop.f32.mrf.mxu0
        %v4238 = vadd.f32 %v1360, %v4237
        %v4239 = vpop.f32.mrf.mxu0
        %v4240 = vadd.f32 %v1356, %v4239
        %v4241 = vpop.f32.mrf.mxu0
        %v4242 = vadd.f32 %v1360, %v4241
        %4243 = vmatprep.mubr.bf16.mxu0 0
        %4244 = vmatmul.mubr.bf16.gmra.mxu0 %v4159
        %v4245 = vpop.f32.mrf.mxu0
        %v4246 = vadd.f32 %v1356, %v4245
        %v4247 = vpop.f32.mrf.mxu0
        %v4248 = vadd.f32 %v1360, %v4247
        %v4249 = vpop.f32.mrf.mxu0
        %v4250 = vadd.f32 %v1356, %v4249
        %v4251 = vpop.f32.mrf.mxu0
        %v4252 = vadd.f32 %v1360, %v4251
        %4253 = vmatprep.mubr.bf16.mxu0 0
        %4254 = vmatmul.mubr.bf16.gmra.mxu0 %v4160
        %v4255 = vpop.f32.mrf.mxu0
        %v4256 = vadd.f32 %v1356, %v4255
        %v4257 = vpop.f32.mrf.mxu0
        %v4258 = vadd.f32 %v1360, %v4257
        %v4259 = vpop.f32.mrf.mxu0
        %v4260 = vadd.f32 %v1356, %v4259
        %v4261 = vpop.f32.mrf.mxu0
        %v4262 = vadd.f32 %v1360, %v4261
        %4263 = vmatprep.mubr.bf16.mxu0 0
        %4264 = vmatmul.mubr.bf16.gmra.mxu0 %v4161
        %v4265 = vpop.f32.mrf.mxu0
        %v4266 = vadd.f32 %v1356, %v4265
        %v4267 = vpop.f32.mrf.mxu0
        %v4268 = vadd.f32 %v1360, %v4267
        %v4269 = vpop.f32.mrf.mxu0
        %v4270 = vadd.f32 %v1356, %v4269
        %v4271 = vpop.f32.mrf.mxu0
        %v4272 = vadd.f32 %v1360, %v4271
        %4273 = vmatprep.mubr.bf16.mxu0 0
        %4274 = vmatmul.mubr.bf16.gmra.mxu0 %v4162
        %v4275 = vpop.f32.mrf.mxu0
        %v4276 = vadd.f32 %v1356, %v4275
        %v4277 = vpop.f32.mrf.mxu0
        %v4278 = vadd.f32 %v1360, %v4277
        %v4279 = vpop.f32.mrf.mxu0
        %v4280 = vadd.f32 %v1356, %v4279
        %v4281 = vpop.f32.mrf.mxu0
        %v4282 = vadd.f32 %v1360, %v4281
        %4283 = vmatprep.mubr.bf16.mxu0 0
        %4284 = vmatmul.mubr.bf16.gmra.mxu0 %v4163
        %v4285 = vpop.f32.mrf.mxu0
        %v4286 = vadd.f32 %v1356, %v4285
        %v4287 = vpop.f32.mrf.mxu0
        %v4288 = vadd.f32 %v1360, %v4287
        %v4289 = vpop.f32.mrf.mxu0
        %v4290 = vadd.f32 %v1356, %v4289
        %v4291 = vpop.f32.mrf.mxu0
        %v4292 = vadd.f32 %v1360, %v4291
        %4293 = vmatprep.mubr.bf16.mxu0 0
        %4294 = vmatmul.mubr.bf16.gmra.mxu0 %v4164
        %v4295 = vpop.f32.mrf.mxu0
        %v4296 = vadd.f32 %v1356, %v4295
        %v4297 = vpop.f32.mrf.mxu0
        %v4298 = vadd.f32 %v1360, %v4297
        %v4299 = vpop.f32.mrf.mxu0
        %v4300 = vadd.f32 %v1356, %v4299
        %v4301 = vpop.f32.mrf.mxu0
        %v4302 = vadd.f32 %v1360, %v4301
        %4303 = vmatprep.mubr.bf16.mxu0 0
        %4304 = vmatmul.mubr.bf16.gmra.mxu0 %v4165
        %v4305 = vpop.f32.mrf.mxu0
        %v4306 = vadd.f32 %v1356, %v4305
        %v4307 = vpop.f32.mrf.mxu0
        %v4308 = vadd.f32 %v1360, %v4307
        %v4309 = vpop.f32.mrf.mxu0
        %v4310 = vadd.f32 %v1356, %v4309
        %v4311 = vpop.f32.mrf.mxu0
        %v4312 = vadd.f32 %v1360, %v4311
        %4313 = vmatprep.mubr.bf16.mxu0 0
        %4314 = vmatmul.mubr.bf16.gmra.mxu0 %v4166
        %v4315 = vpop.f32.mrf.mxu0
        %v4316 = vadd.f32 %v1356, %v4315
        %v4317 = vpop.f32.mrf.mxu0
        %v4318 = vadd.f32 %v1360, %v4317
        %v4319 = vpop.f32.mrf.mxu0
        %v4320 = vadd.f32 %v1356, %v4319
        %v4321 = vpop.f32.mrf.mxu0
        %v4322 = vadd.f32 %v1360, %v4321
        %4323 = vmatprep.mubr.bf16.mxu0 0
        %4324 = vmatmul.mubr.bf16.gmra.mxu0 %v4167
        %v4325 = vpop.f32.mrf.mxu0
        %v4326 = vadd.f32 %v1356, %v4325
        %v4327 = vpop.f32.mrf.mxu0
        %v4328 = vadd.f32 %v1360, %v4327
        %v4329 = vpop.f32.mrf.mxu0
        %v4330 = vadd.f32 %v1356, %v4329
        %v4331 = vpop.f32.mrf.mxu0
        %v4332 = vadd.f32 %v1360, %v4331
        %4333 = vmatprep.mubr.bf16.mxu0 0
        %4334 = vmatmul.mubr.bf16.gmra.mxu0 %v4168
        %v4335 = vpop.f32.mrf.mxu0
        %v4336 = vadd.f32 %v1356, %v4335
        %v4337 = vpop.f32.mrf.mxu0
        %v4338 = vadd.f32 %v1360, %v4337
        %v4339 = vpop.f32.mrf.mxu0
        %v4340 = vadd.f32 %v1356, %v4339
        %v4341 = vpop.f32.mrf.mxu0
        %v4342 = vadd.f32 %v1360, %v4341
        %4343 = vmatprep.mubr.bf16.mxu0 0
        %4344 = vmatmul.mubr.bf16.gmra.mxu0 %v4169
        %v4345 = vpop.f32.mrf.mxu0
        %v4346 = vadd.f32 %v1356, %v4345
        %v4347 = vpop.f32.mrf.mxu0
        %v4348 = vadd.f32 %v1360, %v4347
        %v4349 = vpop.f32.mrf.mxu0
        %v4350 = vadd.f32 %v1356, %v4349
        %v4351 = vpop.f32.mrf.mxu0
        %v4352 = vadd.f32 %v1360, %v4351
        %4353 = vmatprep.mubr.bf16.mxu0 0
        %4354 = vmatmul.mubr.bf16.gmra.mxu0 %v4170
        %v4355 = vpop.f32.mrf.mxu0
        %v4356 = vadd.f32 %v1356, %v4355
        %v4357 = vpop.f32.mrf.mxu0
        %v4358 = vadd.f32 %v1360, %v4357
        %v4359 = vpop.f32.mrf.mxu0
        %v4360 = vadd.f32 %v1356, %v4359
        %v4361 = vpop.f32.mrf.mxu0
        %v4362 = vadd.f32 %v1360, %v4361
        %4363 = vdwg.mxu0
        %4364 = vmatprep.subr.bf16.mxu0 0
        %4365 = vmatpush1.bf16.msra.mxu0 %v1471
        %4366 = vmatprep.subr.bf16.mxu0 0
        %4367 = vmatpush1.bf16.msra.mxu0 %v1468
        %4368 = vmatprep.subr.bf16.mxu0 0
        %4369 = vmatpush1.bf16.msra.mxu0 %v1465
        %4370 = vmatprep.subr.bf16.mxu0 0
        %4371 = vmatpush1.bf16.msra.mxu0 %v1462
        %4372 = vmatprep.subr.bf16.mxu0 0
        %4373 = vmatpush1.bf16.msra.mxu0 %v1459
        %4374 = vmatprep.subr.bf16.mxu0 0
        %4375 = vmatpush1.bf16.msra.mxu0 %v1456
        %4376 = vmatprep.subr.bf16.mxu0 0
        %4377 = vmatpush1.bf16.msra.mxu0 %v1453
        %4378 = vmatprep.subr.bf16.mxu0 0
        %4379 = vmatpush1.bf16.msra.mxu0 %v1450
        %4380 = vmatprep.subr.bf16.mxu0 0
        %4381 = vmatpush2.bf16.msra.mxu0 0
        %4382 = vmatprep.subr.bf16.mxu0 0
        %4383 = vmatpush2.bf16.msra.mxu0 0
        %4384 = vmatprep.subr.bf16.mxu0 0
        %4385 = vmatpush2.bf16.msra.mxu0 0
        %4386 = vmatprep.subr.bf16.mxu0 0
        %4387 = vmatpush2.bf16.msra.mxu0 0
        %4388 = vmatprep.subr.bf16.mxu0 0
        %4389 = vmatpush2.bf16.msra.mxu0 0
        %4390 = vmatprep.subr.bf16.mxu0 0
        %4391 = vmatpush2.bf16.msra.mxu0 0
        %4392 = vmatprep.subr.bf16.mxu0 0
        %4393 = vmatpush2.bf16.msra.mxu0 0
        %4394 = vmatprep.subr.bf16.mxu0 0
        %4395 = vmatpush2.bf16.msra.mxu0 0
        %4396 = vmatprep.mubr.bf16.mxu0 0
        %4397 = vmatmul.mubr.bf16.gmra.mxu0 %v4155
        %v4398 = vpop.f32.mrf.mxu0
        %v4399 = vadd.f32 %v1364, %v4398
        %v4400 = vpop.f32.mrf.mxu0
        %v4401 = vpop.f32.mrf.mxu0
        %v4402 = vadd.f32 %v1364, %v4401
        %v4403 = vpop.f32.mrf.mxu0
        %4404 = vmatprep.mubr.bf16.mxu0 0
        %4405 = vmatmul.mubr.bf16.gmra.mxu0 %v4156
        %v4406 = vpop.f32.mrf.mxu0
        %v4407 = vadd.f32 %v1364, %v4406
        %v4408 = vpop.f32.mrf.mxu0
        %v4409 = vpop.f32.mrf.mxu0
        %v4410 = vadd.f32 %v1364, %v4409
        %v4411 = vpop.f32.mrf.mxu0
        %4412 = vmatprep.mubr.bf16.mxu0 0
        %4413 = vmatmul.mubr.bf16.gmra.mxu0 %v4157
        %v4414 = vpop.f32.mrf.mxu0
        %v4415 = vadd.f32 %v1364, %v4414
        %v4416 = vpop.f32.mrf.mxu0
        %v4417 = vpop.f32.mrf.mxu0
        %v4418 = vadd.f32 %v1364, %v4417
        %v4419 = vpop.f32.mrf.mxu0
        %4420 = vmatprep.mubr.bf16.mxu0 0
        %4421 = vmatmul.mubr.bf16.gmra.mxu0 %v4158
        %v4422 = vpop.f32.mrf.mxu0
        %v4423 = vadd.f32 %v1364, %v4422
        %v4424 = vpop.f32.mrf.mxu0
        %v4425 = vpop.f32.mrf.mxu0
        %v4426 = vadd.f32 %v1364, %v4425
        %v4427 = vpop.f32.mrf.mxu0
        %4428 = vmatprep.mubr.bf16.mxu0 0
        %4429 = vmatmul.mubr.bf16.gmra.mxu0 %v4159
        %v4430 = vpop.f32.mrf.mxu0
        %v4431 = vadd.f32 %v1364, %v4430
        %v4432 = vpop.f32.mrf.mxu0
        %v4433 = vpop.f32.mrf.mxu0
        %v4434 = vadd.f32 %v1364, %v4433
        %v4435 = vpop.f32.mrf.mxu0
        %4436 = vmatprep.mubr.bf16.mxu0 0
        %4437 = vmatmul.mubr.bf16.gmra.mxu0 %v4160
        %v4438 = vpop.f32.mrf.mxu0
        %v4439 = vadd.f32 %v1364, %v4438
        %v4440 = vpop.f32.mrf.mxu0
        %v4441 = vpop.f32.mrf.mxu0
        %v4442 = vadd.f32 %v1364, %v4441
        %v4443 = vpop.f32.mrf.mxu0
        %4444 = vmatprep.mubr.bf16.mxu0 0
        %4445 = vmatmul.mubr.bf16.gmra.mxu0 %v4161
        %v4446 = vpop.f32.mrf.mxu0
        %v4447 = vadd.f32 %v1364, %v4446
        %v4448 = vpop.f32.mrf.mxu0
        %v4449 = vpop.f32.mrf.mxu0
        %v4450 = vadd.f32 %v1364, %v4449
        %v4451 = vpop.f32.mrf.mxu0
        %4452 = vmatprep.mubr.bf16.mxu0 0
        %4453 = vmatmul.mubr.bf16.gmra.mxu0 %v4162
        %v4454 = vpop.f32.mrf.mxu0
        %v4455 = vadd.f32 %v1364, %v4454
        %v4456 = vpop.f32.mrf.mxu0
        %v4457 = vpop.f32.mrf.mxu0
        %v4458 = vadd.f32 %v1364, %v4457
        %v4459 = vpop.f32.mrf.mxu0
        %4460 = vmatprep.mubr.bf16.mxu0 0
        %4461 = vmatmul.mubr.bf16.gmra.mxu0 %v4163
        %v4462 = vpop.f32.mrf.mxu0
        %v4463 = vadd.f32 %v1364, %v4462
        %v4464 = vpop.f32.mrf.mxu0
        %v4465 = vpop.f32.mrf.mxu0
        %v4466 = vadd.f32 %v1364, %v4465
        %v4467 = vpop.f32.mrf.mxu0
        %4468 = vmatprep.mubr.bf16.mxu0 0
        %4469 = vmatmul.mubr.bf16.gmra.mxu0 %v4164
        %v4470 = vpop.f32.mrf.mxu0
        %v4471 = vadd.f32 %v1364, %v4470
        %v4472 = vpop.f32.mrf.mxu0
        %v4473 = vpop.f32.mrf.mxu0
        %v4474 = vadd.f32 %v1364, %v4473
        %v4475 = vpop.f32.mrf.mxu0
        %4476 = vmatprep.mubr.bf16.mxu0 0
        %4477 = vmatmul.mubr.bf16.gmra.mxu0 %v4165
        %v4478 = vpop.f32.mrf.mxu0
        %v4479 = vadd.f32 %v1364, %v4478
        %v4480 = vpop.f32.mrf.mxu0
        %v4481 = vpop.f32.mrf.mxu0
        %v4482 = vadd.f32 %v1364, %v4481
        %v4483 = vpop.f32.mrf.mxu0
        %4484 = vmatprep.mubr.bf16.mxu0 0
        %4485 = vmatmul.mubr.bf16.gmra.mxu0 %v4166
        %v4486 = vpop.f32.mrf.mxu0
        %v4487 = vadd.f32 %v1364, %v4486
        %v4488 = vpop.f32.mrf.mxu0
        %v4489 = vpop.f32.mrf.mxu0
        %v4490 = vadd.f32 %v1364, %v4489
        %v4491 = vpop.f32.mrf.mxu0
        %4492 = vmatprep.mubr.bf16.mxu0 0
        %4493 = vmatmul.mubr.bf16.gmra.mxu0 %v4167
        %v4494 = vpop.f32.mrf.mxu0
        %v4495 = vadd.f32 %v1364, %v4494
        %v4496 = vpop.f32.mrf.mxu0
        %v4497 = vpop.f32.mrf.mxu0
        %v4498 = vadd.f32 %v1364, %v4497
        %v4499 = vpop.f32.mrf.mxu0
        %4500 = vmatprep.mubr.bf16.mxu0 0
        %4501 = vmatmul.mubr.bf16.gmra.mxu0 %v4168
        %v4502 = vpop.f32.mrf.mxu0
        %v4503 = vadd.f32 %v1364, %v4502
        %v4504 = vpop.f32.mrf.mxu0
        %v4505 = vpop.f32.mrf.mxu0
        %v4506 = vadd.f32 %v1364, %v4505
        %v4507 = vpop.f32.mrf.mxu0
        %4508 = vmatprep.mubr.bf16.mxu0 0
        %4509 = vmatmul.mubr.bf16.gmra.mxu0 %v4169
        %v4510 = vpop.f32.mrf.mxu0
        %v4511 = vadd.f32 %v1364, %v4510
        %v4512 = vpop.f32.mrf.mxu0
        %v4513 = vpop.f32.mrf.mxu0
        %v4514 = vadd.f32 %v1364, %v4513
        %v4515 = vpop.f32.mrf.mxu0
        %4516 = vmatprep.mubr.bf16.mxu0 0
        %4517 = vmatmul.mubr.bf16.gmra.mxu0 %v4170
        %v4518 = vpop.f32.mrf.mxu0
        %v4519 = vadd.f32 %v1364, %v4518
        %v4520 = vpop.f32.mrf.mxu0
        %v4521 = vpop.f32.mrf.mxu0
        %v4522 = vadd.f32 %v1364, %v4521
        %v4523 = vpop.f32.mrf.mxu0
        %4524 = vdwg.mxu0
        %v4525 = vmul.f32 %v4206, %v4206
        %v4526 = vmul.f32 %v4208, %v4208
        %v4527 = vmul.f32 %v4399, %v4399
        %v4528 = vmul.f32 %v4210, %v4210
        %v4529 = vmul.f32 %v4212, %v4212
        %v4530 = vmul.f32 %v4402, %v4402
        %v4531 = vmul.f32 %v4216, %v4216
        %v4532 = vmul.f32 %v4218, %v4218
        %v4533 = vmul.f32 %v4407, %v4407
        %v4534 = vmul.f32 %v4220, %v4220
        %v4535 = vmul.f32 %v4222, %v4222
        %v4536 = vmul.f32 %v4410, %v4410
        %v4537 = vmul.f32 %v4226, %v4226
        %v4538 = vmul.f32 %v4228, %v4228
        %v4539 = vmul.f32 %v4415, %v4415
        %v4540 = vmul.f32 %v4230, %v4230
        %v4541 = vmul.f32 %v4232, %v4232
        %v4542 = vmul.f32 %v4418, %v4418
        %v4543 = vmul.f32 %v4236, %v4236
        %v4544 = vmul.f32 %v4238, %v4238
        %v4545 = vmul.f32 %v4423, %v4423
        %v4546 = vmul.f32 %v4240, %v4240
        %v4547 = vmul.f32 %v4242, %v4242
        %v4548 = vmul.f32 %v4426, %v4426
        %v4549 = vmul.f32 %v4246, %v4246
        %v4550 = vmul.f32 %v4248, %v4248
        %v4551 = vmul.f32 %v4431, %v4431
        %v4552 = vmul.f32 %v4250, %v4250
        %v4553 = vmul.f32 %v4252, %v4252
        %v4554 = vmul.f32 %v4434, %v4434
        %v4555 = vmul.f32 %v4256, %v4256
        %v4556 = vmul.f32 %v4258, %v4258
        %v4557 = vmul.f32 %v4439, %v4439
        %v4558 = vmul.f32 %v4260, %v4260
        %v4559 = vmul.f32 %v4262, %v4262
        %v4560 = vmul.f32 %v4442, %v4442
        %v4561 = vmul.f32 %v4266, %v4266
        %v4562 = vmul.f32 %v4268, %v4268
        %v4563 = vmul.f32 %v4447, %v4447
        %v4564 = vmul.f32 %v4270, %v4270
        %v4565 = vmul.f32 %v4272, %v4272
        %v4566 = vmul.f32 %v4450, %v4450
        %v4567 = vmul.f32 %v4276, %v4276
        %v4568 = vmul.f32 %v4278, %v4278
        %v4569 = vmul.f32 %v4455, %v4455
        %v4570 = vmul.f32 %v4280, %v4280
        %v4571 = vmul.f32 %v4282, %v4282
        %v4572 = vmul.f32 %v4458, %v4458
        %v4573 = vmul.f32 %v4286, %v4286
        %v4574 = vmul.f32 %v4288, %v4288
        %v4575 = vmul.f32 %v4463, %v4463
        %v4576 = vmul.f32 %v4290, %v4290
        %v4577 = vmul.f32 %v4292, %v4292
        %v4578 = vmul.f32 %v4466, %v4466
        %v4579 = vmul.f32 %v4296, %v4296
        %v4580 = vmul.f32 %v4298, %v4298
        %v4581 = vmul.f32 %v4471, %v4471
        %v4582 = vmul.f32 %v4300, %v4300
        %v4583 = vmul.f32 %v4302, %v4302
        %v4584 = vmul.f32 %v4474, %v4474
        %v4585 = vmul.f32 %v4306, %v4306
        %v4586 = vmul.f32 %v4308, %v4308
        %v4587 = vmul.f32 %v4479, %v4479
        %v4588 = vmul.f32 %v4310, %v4310
        %v4589 = vmul.f32 %v4312, %v4312
        %v4590 = vmul.f32 %v4482, %v4482
        %v4591 = vmul.f32 %v4316, %v4316
        %v4592 = vmul.f32 %v4318, %v4318
        %v4593 = vmul.f32 %v4487, %v4487
        %v4594 = vmul.f32 %v4320, %v4320
        %v4595 = vmul.f32 %v4322, %v4322
        %v4596 = vmul.f32 %v4490, %v4490
        %v4597 = vmul.f32 %v4326, %v4326
        %v4598 = vmul.f32 %v4328, %v4328
        %v4599 = vmul.f32 %v4495, %v4495
        %v4600 = vmul.f32 %v4330, %v4330
        %v4601 = vmul.f32 %v4332, %v4332
        %v4602 = vmul.f32 %v4498, %v4498
        %v4603 = vmul.f32 %v4336, %v4336
        %v4604 = vmul.f32 %v4338, %v4338
        %v4605 = vmul.f32 %v4503, %v4503
        %v4606 = vmul.f32 %v4340, %v4340
        %v4607 = vmul.f32 %v4342, %v4342
        %v4608 = vmul.f32 %v4506, %v4506
        %v4609 = vmul.f32 %v4346, %v4346
        %v4610 = vmul.f32 %v4348, %v4348
        %v4611 = vmul.f32 %v4511, %v4511
        %v4612 = vmul.f32 %v4350, %v4350
        %v4613 = vmul.f32 %v4352, %v4352
        %v4614 = vmul.f32 %v4514, %v4514
        %v4615 = vmul.f32 %v4356, %v4356
        %v4616 = vmul.f32 %v4358, %v4358
        %v4617 = vmul.f32 %v4519, %v4519
        %v4618 = vmul.f32 %v4360, %v4360
        %v4619 = vmul.f32 %v4362, %v4362
        %v4620 = vmul.f32 %v4522, %v4522
        %v4621 = vmul.f32 %v4206, %v4525
        %v4622 = vmul.f32 %v4208, %v4526
        %v4623 = vmul.f32 %v4399, %v4527
        %v4624 = vmul.f32 %v4210, %v4528
        %v4625 = vmul.f32 %v4212, %v4529
        %v4626 = vmul.f32 %v4402, %v4530
        %v4627 = vmul.f32 %v4216, %v4531
        %v4628 = vmul.f32 %v4218, %v4532
        %v4629 = vmul.f32 %v4407, %v4533
        %v4630 = vmul.f32 %v4220, %v4534
        %v4631 = vmul.f32 %v4222, %v4535
        %v4632 = vmul.f32 %v4410, %v4536
        %v4633 = vmul.f32 %v4226, %v4537
        %v4634 = vmul.f32 %v4228, %v4538
        %v4635 = vmul.f32 %v4415, %v4539
        %v4636 = vmul.f32 %v4230, %v4540
        %v4637 = vmul.f32 %v4232, %v4541
        %v4638 = vmul.f32 %v4418, %v4542
        %v4639 = vmul.f32 %v4236, %v4543
        %v4640 = vmul.f32 %v4238, %v4544
        %v4641 = vmul.f32 %v4423, %v4545
        %v4642 = vmul.f32 %v4240, %v4546
        %v4643 = vmul.f32 %v4242, %v4547
        %v4644 = vmul.f32 %v4426, %v4548
        %v4645 = vmul.f32 %v4246, %v4549
        %v4646 = vmul.f32 %v4248, %v4550
        %v4647 = vmul.f32 %v4431, %v4551
        %v4648 = vmul.f32 %v4250, %v4552
        %v4649 = vmul.f32 %v4252, %v4553
        %v4650 = vmul.f32 %v4434, %v4554
        %v4651 = vmul.f32 %v4256, %v4555
        %v4652 = vmul.f32 %v4258, %v4556
        %v4653 = vmul.f32 %v4439, %v4557
        %v4654 = vmul.f32 %v4260, %v4558
        %v4655 = vmul.f32 %v4262, %v4559
        %v4656 = vmul.f32 %v4442, %v4560
        %v4657 = vmul.f32 %v4266, %v4561
        %v4658 = vmul.f32 %v4268, %v4562
        %v4659 = vmul.f32 %v4447, %v4563
        %v4660 = vmul.f32 %v4270, %v4564
        %v4661 = vmul.f32 %v4272, %v4565
        %v4662 = vmul.f32 %v4450, %v4566
        %v4663 = vmul.f32 %v4276, %v4567
        %v4664 = vmul.f32 %v4278, %v4568
        %v4665 = vmul.f32 %v4455, %v4569
        %v4666 = vmul.f32 %v4280, %v4570
        %v4667 = vmul.f32 %v4282, %v4571
        %v4668 = vmul.f32 %v4458, %v4572
        %v4669 = vmul.f32 %v4286, %v4573
        %v4670 = vmul.f32 %v4288, %v4574
        %v4671 = vmul.f32 %v4463, %v4575
        %v4672 = vmul.f32 %v4290, %v4576
        %v4673 = vmul.f32 %v4292, %v4577
        %v4674 = vmul.f32 %v4466, %v4578
        %v4675 = vmul.f32 %v4296, %v4579
        %v4676 = vmul.f32 %v4298, %v4580
        %v4677 = vmul.f32 %v4471, %v4581
        %v4678 = vmul.f32 %v4300, %v4582
        %v4679 = vmul.f32 %v4302, %v4583
        %v4680 = vmul.f32 %v4474, %v4584
        %v4681 = vmul.f32 %v4306, %v4585
        %v4682 = vmul.f32 %v4308, %v4586
        %v4683 = vmul.f32 %v4479, %v4587
        %v4684 = vmul.f32 %v4310, %v4588
        %v4685 = vmul.f32 %v4312, %v4589
        %v4686 = vmul.f32 %v4482, %v4590
        %v4687 = vmul.f32 %v4316, %v4591
        %v4688 = vmul.f32 %v4318, %v4592
        %v4689 = vmul.f32 %v4487, %v4593
        %v4690 = vmul.f32 %v4320, %v4594
        %v4691 = vmul.f32 %v4322, %v4595
        %v4692 = vmul.f32 %v4490, %v4596
        %v4693 = vmul.f32 %v4326, %v4597
        %v4694 = vmul.f32 %v4328, %v4598
        %v4695 = vmul.f32 %v4495, %v4599
        %v4696 = vmul.f32 %v4330, %v4600
        %v4697 = vmul.f32 %v4332, %v4601
        %v4698 = vmul.f32 %v4498, %v4602
        %v4699 = vmul.f32 %v4336, %v4603
        %v4700 = vmul.f32 %v4338, %v4604
        %v4701 = vmul.f32 %v4503, %v4605
        %v4702 = vmul.f32 %v4340, %v4606
        %v4703 = vmul.f32 %v4342, %v4607
        %v4704 = vmul.f32 %v4506, %v4608
        %v4705 = vmul.f32 %v4346, %v4609
        %v4706 = vmul.f32 %v4348, %v4610
        %v4707 = vmul.f32 %v4511, %v4611
        %v4708 = vmul.f32 %v4350, %v4612
        %v4709 = vmul.f32 %v4352, %v4613
        %v4710 = vmul.f32 %v4514, %v4614
        %v4711 = vmul.f32 %v4356, %v4615
        %v4712 = vmul.f32 %v4358, %v4616
        %v4713 = vmul.f32 %v4519, %v4617
        %v4714 = vmul.f32 %v4360, %v4618
        %v4715 = vmul.f32 %v4362, %v4619
        %v4716 = vmul.f32 %v4522, %v4620
        %v4717 = vmul.f32 %v4621, 0.044715
        %v4718 = vmul.f32 %v4622, 0.044715
        %v4719 = vmul.f32 %v4623, 0.044715
        %v4720 = vmul.f32 %v4624, 0.044715
        %v4721 = vmul.f32 %v4625, 0.044715
        %v4722 = vmul.f32 %v4626, 0.044715
        %v4723 = vmul.f32 %v4627, 0.044715
        %v4724 = vmul.f32 %v4628, 0.044715
        %v4725 = vmul.f32 %v4629, 0.044715
        %v4726 = vmul.f32 %v4630, 0.044715
        %v4727 = vmul.f32 %v4631, 0.044715
        %v4728 = vmul.f32 %v4632, 0.044715
        %v4729 = vmul.f32 %v4633, 0.044715
        %v4730 = vmul.f32 %v4634, 0.044715
        %v4731 = vmul.f32 %v4635, 0.044715
        %v4732 = vmul.f32 %v4636, 0.044715
        %v4733 = vmul.f32 %v4637, 0.044715
        %v4734 = vmul.f32 %v4638, 0.044715
        %v4735 = vmul.f32 %v4639, 0.044715
        %v4736 = vmul.f32 %v4640, 0.044715
        %v4737 = vmul.f32 %v4641, 0.044715
        %v4738 = vmul.f32 %v4642, 0.044715
        %v4739 = vmul.f32 %v4643, 0.044715
        %v4740 = vmul.f32 %v4644, 0.044715
        %v4741 = vmul.f32 %v4645, 0.044715
        %v4742 = vmul.f32 %v4646, 0.044715
        %v4743 = vmul.f32 %v4647, 0.044715
        %v4744 = vmul.f32 %v4648, 0.044715
        %v4745 = vmul.f32 %v4649, 0.044715
        %v4746 = vmul.f32 %v4650, 0.044715
        %v4747 = vmul.f32 %v4651, 0.044715
        %v4748 = vmul.f32 %v4652, 0.044715
        %v4749 = vmul.f32 %v4653, 0.044715
        %v4750 = vmul.f32 %v4654, 0.044715
        %v4751 = vmul.f32 %v4655, 0.044715
        %v4752 = vmul.f32 %v4656, 0.044715
        %v4753 = vmul.f32 %v4657, 0.044715
        %v4754 = vmul.f32 %v4658, 0.044715
        %v4755 = vmul.f32 %v4659, 0.044715
        %v4756 = vmul.f32 %v4660, 0.044715
        %v4757 = vmul.f32 %v4661, 0.044715
        %v4758 = vmul.f32 %v4662, 0.044715
        %v4759 = vmul.f32 %v4663, 0.044715
        %v4760 = vmul.f32 %v4664, 0.044715
        %v4761 = vmul.f32 %v4665, 0.044715
        %v4762 = vmul.f32 %v4666, 0.044715
        %v4763 = vmul.f32 %v4667, 0.044715
        %v4764 = vmul.f32 %v4668, 0.044715
        %v4765 = vmul.f32 %v4669, 0.044715
        %v4766 = vmul.f32 %v4670, 0.044715
        %v4767 = vmul.f32 %v4671, 0.044715
        %v4768 = vmul.f32 %v4672, 0.044715
        %v4769 = vmul.f32 %v4673, 0.044715
        %v4770 = vmul.f32 %v4674, 0.044715
        %v4771 = vmul.f32 %v4675, 0.044715
        %v4772 = vmul.f32 %v4676, 0.044715
        %v4773 = vmul.f32 %v4677, 0.044715
        %v4774 = vmul.f32 %v4678, 0.044715
        %v4775 = vmul.f32 %v4679, 0.044715
        %v4776 = vmul.f32 %v4680, 0.044715
        %v4777 = vmul.f32 %v4681, 0.044715
        %v4778 = vmul.f32 %v4682, 0.044715
        %v4779 = vmul.f32 %v4683, 0.044715
        %v4780 = vmul.f32 %v4684, 0.044715
        %v4781 = vmul.f32 %v4685, 0.044715
        %v4782 = vmul.f32 %v4686, 0.044715
        %v4783 = vmul.f32 %v4687, 0.044715
        %v4784 = vmul.f32 %v4688, 0.044715
        %v4785 = vmul.f32 %v4689, 0.044715
        %v4786 = vmul.f32 %v4690, 0.044715
        %v4787 = vmul.f32 %v4691, 0.044715
        %v4788 = vmul.f32 %v4692, 0.044715
        %v4789 = vmul.f32 %v4693, 0.044715
        %v4790 = vmul.f32 %v4694, 0.044715
        %v4791 = vmul.f32 %v4695, 0.044715
        %v4792 = vmul.f32 %v4696, 0.044715
        %v4793 = vmul.f32 %v4697, 0.044715
        %v4794 = vmul.f32 %v4698, 0.044715
        %v4795 = vmul.f32 %v4699, 0.044715
        %v4796 = vmul.f32 %v4700, 0.044715
        %v4797 = vmul.f32 %v4701, 0.044715
        %v4798 = vmul.f32 %v4702, 0.044715
        %v4799 = vmul.f32 %v4703, 0.044715
        %v4800 = vmul.f32 %v4704, 0.044715
        %v4801 = vmul.f32 %v4705, 0.044715
        %v4802 = vmul.f32 %v4706, 0.044715
        %v4803 = vmul.f32 %v4707, 0.044715
        %v4804 = vmul.f32 %v4708, 0.044715
        %v4805 = vmul.f32 %v4709, 0.044715
        %v4806 = vmul.f32 %v4710, 0.044715
        %v4807 = vmul.f32 %v4711, 0.044715
        %v4808 = vmul.f32 %v4712, 0.044715
        %v4809 = vmul.f32 %v4713, 0.044715
        %v4810 = vmul.f32 %v4714, 0.044715
        %v4811 = vmul.f32 %v4715, 0.044715
        %v4812 = vmul.f32 %v4716, 0.044715
        %v4813 = vadd.f32 %v4206, %v4717
        %v4814 = vadd.f32 %v4208, %v4718
        %v4815 = vadd.f32 %v4399, %v4719
        %v4816 = vadd.f32 %v4210, %v4720
        %v4817 = vadd.f32 %v4212, %v4721
        %v4818 = vadd.f32 %v4402, %v4722
        %v4819 = vadd.f32 %v4216, %v4723
        %v4820 = vadd.f32 %v4218, %v4724
        %v4821 = vadd.f32 %v4407, %v4725
        %v4822 = vadd.f32 %v4220, %v4726
        %v4823 = vadd.f32 %v4222, %v4727
        %v4824 = vadd.f32 %v4410, %v4728
        %v4825 = vadd.f32 %v4226, %v4729
        %v4826 = vadd.f32 %v4228, %v4730
        %v4827 = vadd.f32 %v4415, %v4731
        %v4828 = vadd.f32 %v4230, %v4732
        %v4829 = vadd.f32 %v4232, %v4733
        %v4830 = vadd.f32 %v4418, %v4734
        %v4831 = vadd.f32 %v4236, %v4735
        %v4832 = vadd.f32 %v4238, %v4736
        %v4833 = vadd.f32 %v4423, %v4737
        %v4834 = vadd.f32 %v4240, %v4738
        %v4835 = vadd.f32 %v4242, %v4739
        %v4836 = vadd.f32 %v4426, %v4740
        %v4837 = vadd.f32 %v4246, %v4741
        %v4838 = vadd.f32 %v4248, %v4742
        %v4839 = vadd.f32 %v4431, %v4743
        %v4840 = vadd.f32 %v4250, %v4744
        %v4841 = vadd.f32 %v4252, %v4745
        %v4842 = vadd.f32 %v4434, %v4746
        %v4843 = vadd.f32 %v4256, %v4747
        %v4844 = vadd.f32 %v4258, %v4748
        %v4845 = vadd.f32 %v4439, %v4749
        %v4846 = vadd.f32 %v4260, %v4750
        %v4847 = vadd.f32 %v4262, %v4751
        %v4848 = vadd.f32 %v4442, %v4752
        %v4849 = vadd.f32 %v4266, %v4753
        %v4850 = vadd.f32 %v4268, %v4754
        %v4851 = vadd.f32 %v4447, %v4755
        %v4852 = vadd.f32 %v4270, %v4756
        %v4853 = vadd.f32 %v4272, %v4757
        %v4854 = vadd.f32 %v4450, %v4758
        %v4855 = vadd.f32 %v4276, %v4759
        %v4856 = vadd.f32 %v4278, %v4760
        %v4857 = vadd.f32 %v4455, %v4761
        %v4858 = vadd.f32 %v4280, %v4762
        %v4859 = vadd.f32 %v4282, %v4763
        %v4860 = vadd.f32 %v4458, %v4764
        %v4861 = vadd.f32 %v4286, %v4765
        %v4862 = vadd.f32 %v4288, %v4766
        %v4863 = vadd.f32 %v4463, %v4767
        %v4864 = vadd.f32 %v4290, %v4768
        %v4865 = vadd.f32 %v4292, %v4769
        %v4866 = vadd.f32 %v4466, %v4770
        %v4867 = vadd.f32 %v4296, %v4771
        %v4868 = vadd.f32 %v4298, %v4772
        %v4869 = vadd.f32 %v4471, %v4773
        %v4870 = vadd.f32 %v4300, %v4774
        %v4871 = vadd.f32 %v4302, %v4775
        %v4872 = vadd.f32 %v4474, %v4776
        %v4873 = vadd.f32 %v4306, %v4777
        %v4874 = vadd.f32 %v4308, %v4778
        %v4875 = vadd.f32 %v4479, %v4779
        %v4876 = vadd.f32 %v4310, %v4780
        %v4877 = vadd.f32 %v4312, %v4781
        %v4878 = vadd.f32 %v4482, %v4782
        %v4879 = vadd.f32 %v4316, %v4783
        %v4880 = vadd.f32 %v4318, %v4784
        %v4881 = vadd.f32 %v4487, %v4785
        %v4882 = vadd.f32 %v4320, %v4786
        %v4883 = vadd.f32 %v4322, %v4787
        %v4884 = vadd.f32 %v4490, %v4788
        %v4885 = vadd.f32 %v4326, %v4789
        %v4886 = vadd.f32 %v4328, %v4790
        %v4887 = vadd.f32 %v4495, %v4791
        %v4888 = vadd.f32 %v4330, %v4792
        %v4889 = vadd.f32 %v4332, %v4793
        %v4890 = vadd.f32 %v4498, %v4794
        %v4891 = vadd.f32 %v4336, %v4795
        %v4892 = vadd.f32 %v4338, %v4796
        %v4893 = vadd.f32 %v4503, %v4797
        %v4894 = vadd.f32 %v4340, %v4798
        %v4895 = vadd.f32 %v4342, %v4799
        %v4896 = vadd.f32 %v4506, %v4800
        %v4897 = vadd.f32 %v4346, %v4801
        %v4898 = vadd.f32 %v4348, %v4802
        %v4899 = vadd.f32 %v4511, %v4803
        %v4900 = vadd.f32 %v4350, %v4804
        %v4901 = vadd.f32 %v4352, %v4805
        %v4902 = vadd.f32 %v4514, %v4806
        %v4903 = vadd.f32 %v4356, %v4807
        %v4904 = vadd.f32 %v4358, %v4808
        %v4905 = vadd.f32 %v4519, %v4809
        %v4906 = vadd.f32 %v4360, %v4810
        %v4907 = vadd.f32 %v4362, %v4811
        %v4908 = vadd.f32 %v4522, %v4812
        %v4909 = vmul.f32 %v4813, 0.7978846
        %v4910 = vmul.f32 %v4814, 0.7978846
        %v4911 = vmul.f32 %v4815, 0.7978846
        %v4912 = vmul.f32 %v4816, 0.7978846
        %v4913 = vmul.f32 %v4817, 0.7978846
        %v4914 = vmul.f32 %v4818, 0.7978846
        %v4915 = vmul.f32 %v4819, 0.7978846
        %v4916 = vmul.f32 %v4820, 0.7978846
        %v4917 = vmul.f32 %v4821, 0.7978846
        %v4918 = vmul.f32 %v4822, 0.7978846
        %v4919 = vmul.f32 %v4823, 0.7978846
        %v4920 = vmul.f32 %v4824, 0.7978846
        %v4921 = vmul.f32 %v4825, 0.7978846
        %v4922 = vmul.f32 %v4826, 0.7978846
        %v4923 = vmul.f32 %v4827, 0.7978846
        %v4924 = vmul.f32 %v4828, 0.7978846
        %v4925 = vmul.f32 %v4829, 0.7978846
        %v4926 = vmul.f32 %v4830, 0.7978846
        %v4927 = vmul.f32 %v4831, 0.7978846
        %v4928 = vmul.f32 %v4832, 0.7978846
        %v4929 = vmul.f32 %v4833, 0.7978846
        %v4930 = vmul.f32 %v4834, 0.7978846
        %v4931 = vmul.f32 %v4835, 0.7978846
        %v4932 = vmul.f32 %v4836, 0.7978846
        %v4933 = vmul.f32 %v4837, 0.7978846
        %v4934 = vmul.f32 %v4838, 0.7978846
        %v4935 = vmul.f32 %v4839, 0.7978846
        %v4936 = vmul.f32 %v4840, 0.7978846
        %v4937 = vmul.f32 %v4841, 0.7978846
        %v4938 = vmul.f32 %v4842, 0.7978846
        %v4939 = vmul.f32 %v4843, 0.7978846
        %v4940 = vmul.f32 %v4844, 0.7978846
        %v4941 = vmul.f32 %v4845, 0.7978846
        %v4942 = vmul.f32 %v4846, 0.7978846
        %v4943 = vmul.f32 %v4847, 0.7978846
        %v4944 = vmul.f32 %v4848, 0.7978846
        %v4945 = vmul.f32 %v4849, 0.7978846
        %v4946 = vmul.f32 %v4850, 0.7978846
        %v4947 = vmul.f32 %v4851, 0.7978846
        %v4948 = vmul.f32 %v4852, 0.7978846
        %v4949 = vmul.f32 %v4853, 0.7978846
        %v4950 = vmul.f32 %v4854, 0.7978846
        %v4951 = vmul.f32 %v4855, 0.7978846
        %v4952 = vmul.f32 %v4856, 0.7978846
        %v4953 = vmul.f32 %v4857, 0.7978846
        %v4954 = vmul.f32 %v4858, 0.7978846
        %v4955 = vmul.f32 %v4859, 0.7978846
        %v4956 = vmul.f32 %v4860, 0.7978846
        %v4957 = vmul.f32 %v4861, 0.7978846
        %v4958 = vmul.f32 %v4862, 0.7978846
        %v4959 = vmul.f32 %v4863, 0.7978846
        %v4960 = vmul.f32 %v4864, 0.7978846
        %v4961 = vmul.f32 %v4865, 0.7978846
        %v4962 = vmul.f32 %v4866, 0.7978846
        %v4963 = vmul.f32 %v4867, 0.7978846
        %v4964 = vmul.f32 %v4868, 0.7978846
        %v4965 = vmul.f32 %v4869, 0.7978846
        %v4966 = vmul.f32 %v4870, 0.7978846
        %v4967 = vmul.f32 %v4871, 0.7978846
        %v4968 = vmul.f32 %v4872, 0.7978846
        %v4969 = vmul.f32 %v4873, 0.7978846
        %v4970 = vmul.f32 %v4874, 0.7978846
        %v4971 = vmul.f32 %v4875, 0.7978846
        %v4972 = vmul.f32 %v4876, 0.7978846
        %v4973 = vmul.f32 %v4877, 0.7978846
        %v4974 = vmul.f32 %v4878, 0.7978846
        %v4975 = vmul.f32 %v4879, 0.7978846
        %v4976 = vmul.f32 %v4880, 0.7978846
        %v4977 = vmul.f32 %v4881, 0.7978846
        %v4978 = vmul.f32 %v4882, 0.7978846
        %v4979 = vmul.f32 %v4883, 0.7978846
        %v4980 = vmul.f32 %v4884, 0.7978846
        %v4981 = vmul.f32 %v4885, 0.7978846
        %v4982 = vmul.f32 %v4886, 0.7978846
        %v4983 = vmul.f32 %v4887, 0.7978846
        %v4984 = vmul.f32 %v4888, 0.7978846
        %v4985 = vmul.f32 %v4889, 0.7978846
        %v4986 = vmul.f32 %v4890, 0.7978846
        %v4987 = vmul.f32 %v4891, 0.7978846
        %v4988 = vmul.f32 %v4892, 0.7978846
        %v4989 = vmul.f32 %v4893, 0.7978846
        %v4990 = vmul.f32 %v4894, 0.7978846
        %v4991 = vmul.f32 %v4895, 0.7978846
        %v4992 = vmul.f32 %v4896, 0.7978846
        %v4993 = vmul.f32 %v4897, 0.7978846
        %v4994 = vmul.f32 %v4898, 0.7978846
        %v4995 = vmul.f32 %v4899, 0.7978846
        %v4996 = vmul.f32 %v4900, 0.7978846
        %v4997 = vmul.f32 %v4901, 0.7978846
        %v4998 = vmul.f32 %v4902, 0.7978846
        %v4999 = vmul.f32 %v4903, 0.7978846
        %v5000 = vmul.f32 %v4904, 0.7978846
        %v5001 = vmul.f32 %v4905, 0.7978846
        %v5002 = vmul.f32 %v4906, 0.7978846
        %v5003 = vmul.f32 %v4907, 0.7978846
        %v5004 = vmul.f32 %v4908, 0.7978846
        %v5005 = vtanh.pop %v4909
        %v5006 = vtanh.pop %v4910
        %v5007 = vtanh.pop %v4911
        %v5008 = vtanh.pop %v4912
        %v5009 = vtanh.pop %v4913
        %v5010 = vtanh.pop %v4914
        %v5011 = vtanh.pop %v4915
        %v5012 = vtanh.pop %v4916
        %v5013 = vtanh.pop %v4917
        %v5014 = vtanh.pop %v4918
        %v5015 = vtanh.pop %v4919
        %v5016 = vtanh.pop %v4920
        %v5017 = vtanh.pop %v4921
        %v5018 = vtanh.pop %v4922
        %v5019 = vtanh.pop %v4923
        %v5020 = vtanh.pop %v4924
        %v5021 = vtanh.pop %v4925
        %v5022 = vtanh.pop %v4926
        %v5023 = vtanh.pop %v4927
        %v5024 = vtanh.pop %v4928
        %v5025 = vtanh.pop %v4929
        %v5026 = vtanh.pop %v4930
        %v5027 = vtanh.pop %v4931
        %v5028 = vtanh.pop %v4932
        %v5029 = vtanh.pop %v4933
        %v5030 = vtanh.pop %v4934
        %v5031 = vtanh.pop %v4935
        %v5032 = vtanh.pop %v4936
        %v5033 = vtanh.pop %v4937
        %v5034 = vtanh.pop %v4938
        %v5035 = vtanh.pop %v4939
        %v5036 = vtanh.pop %v4940
        %v5037 = vtanh.pop %v4941
        %v5038 = vtanh.pop %v4942
        %v5039 = vtanh.pop %v4943
        %v5040 = vtanh.pop %v4944
        %v5041 = vtanh.pop %v4945
        %v5042 = vtanh.pop %v4946
        %v5043 = vtanh.pop %v4947
        %v5044 = vtanh.pop %v4948
        %v5045 = vtanh.pop %v4949
        %v5046 = vtanh.pop %v4950
        %v5047 = vtanh.pop %v4951
        %v5048 = vtanh.pop %v4952
        %v5049 = vtanh.pop %v4953
        %v5050 = vtanh.pop %v4954
        %v5051 = vtanh.pop %v4955
        %v5052 = vtanh.pop %v4956
        %v5053 = vtanh.pop %v4957
        %v5054 = vtanh.pop %v4958
        %v5055 = vtanh.pop %v4959
        %v5056 = vtanh.pop %v4960
        %v5057 = vtanh.pop %v4961
        %v5058 = vtanh.pop %v4962
        %v5059 = vtanh.pop %v4963
        %v5060 = vtanh.pop %v4964
        %v5061 = vtanh.pop %v4965
        %v5062 = vtanh.pop %v4966
        %v5063 = vtanh.pop %v4967
        %v5064 = vtanh.pop %v4968
        %v5065 = vtanh.pop %v4969
        %v5066 = vtanh.pop %v4970
        %v5067 = vtanh.pop %v4971
        %v5068 = vtanh.pop %v4972
        %v5069 = vtanh.pop %v4973
        %v5070 = vtanh.pop %v4974
        %v5071 = vtanh.pop %v4975
        %v5072 = vtanh.pop %v4976
        %v5073 = vtanh.pop %v4977
        %v5074 = vtanh.pop %v4978
        %v5075 = vtanh.pop %v4979
        %v5076 = vtanh.pop %v4980
        %v5077 = vtanh.pop %v4981
        %v5078 = vtanh.pop %v4982
        %v5079 = vtanh.pop %v4983
        %v5080 = vtanh.pop %v4984
        %v5081 = vtanh.pop %v4985
        %v5082 = vtanh.pop %v4986
        %v5083 = vtanh.pop %v4987
        %v5084 = vtanh.pop %v4988
        %v5085 = vtanh.pop %v4989
        %v5086 = vtanh.pop %v4990
        %v5087 = vtanh.pop %v4991
        %v5088 = vtanh.pop %v4992
        %v5089 = vtanh.pop %v4993
        %v5090 = vtanh.pop %v4994
        %v5091 = vtanh.pop %v4995
        %v5092 = vtanh.pop %v4996
        %v5093 = vtanh.pop %v4997
        %v5094 = vtanh.pop %v4998
        %v5095 = vtanh.pop %v4999
        %v5096 = vtanh.pop %v5000
        %v5097 = vtanh.pop %v5001
        %v5098 = vtanh.pop %v5002
        %v5099 = vtanh.pop %v5003
        %v5100 = vtanh.pop %v5004
        %v5101 = vadd.f32 %v5005, 1.0
        %v5102 = vadd.f32 %v5006, 1.0
        %v5103 = vadd.f32 %v5007, 1.0
        %v5104 = vadd.f32 %v5008, 1.0
        %v5105 = vadd.f32 %v5009, 1.0
        %v5106 = vadd.f32 %v5010, 1.0
        %v5107 = vadd.f32 %v5011, 1.0
        %v5108 = vadd.f32 %v5012, 1.0
        %v5109 = vadd.f32 %v5013, 1.0
        %v5110 = vadd.f32 %v5014, 1.0
        %v5111 = vadd.f32 %v5015, 1.0
        %v5112 = vadd.f32 %v5016, 1.0
        %v5113 = vadd.f32 %v5017, 1.0
        %v5114 = vadd.f32 %v5018, 1.0
        %v5115 = vadd.f32 %v5019, 1.0
        %v5116 = vadd.f32 %v5020, 1.0
        %v5117 = vadd.f32 %v5021, 1.0
        %v5118 = vadd.f32 %v5022, 1.0
        %v5119 = vadd.f32 %v5023, 1.0
        %v5120 = vadd.f32 %v5024, 1.0
        %v5121 = vadd.f32 %v5025, 1.0
        %v5122 = vadd.f32 %v5026, 1.0
        %v5123 = vadd.f32 %v5027, 1.0
        %v5124 = vadd.f32 %v5028, 1.0
        %v5125 = vadd.f32 %v5029, 1.0
        %v5126 = vadd.f32 %v5030, 1.0
        %v5127 = vadd.f32 %v5031, 1.0
        %v5128 = vadd.f32 %v5032, 1.0
        %v5129 = vadd.f32 %v5033, 1.0
        %v5130 = vadd.f32 %v5034, 1.0
        %v5131 = vadd.f32 %v5035, 1.0
        %v5132 = vadd.f32 %v5036, 1.0
        %v5133 = vadd.f32 %v5037, 1.0
        %v5134 = vadd.f32 %v5038, 1.0
        %v5135 = vadd.f32 %v5039, 1.0
        %v5136 = vadd.f32 %v5040, 1.0
        %v5137 = vadd.f32 %v5041, 1.0
        %v5138 = vadd.f32 %v5042, 1.0
        %v5139 = vadd.f32 %v5043, 1.0
        %v5140 = vadd.f32 %v5044, 1.0
        %v5141 = vadd.f32 %v5045, 1.0
        %v5142 = vadd.f32 %v5046, 1.0
        %v5143 = vadd.f32 %v5047, 1.0
        %v5144 = vadd.f32 %v5048, 1.0
        %v5145 = vadd.f32 %v5049, 1.0
        %v5146 = vadd.f32 %v5050, 1.0
        %v5147 = vadd.f32 %v5051, 1.0
        %v5148 = vadd.f32 %v5052, 1.0
        %v5149 = vadd.f32 %v5053, 1.0
        %v5150 = vadd.f32 %v5054, 1.0
        %v5151 = vadd.f32 %v5055, 1.0
        %v5152 = vadd.f32 %v5056, 1.0
        %v5153 = vadd.f32 %v5057, 1.0
        %v5154 = vadd.f32 %v5058, 1.0
        %v5155 = vadd.f32 %v5059, 1.0
        %v5156 = vadd.f32 %v5060, 1.0
        %v5157 = vadd.f32 %v5061, 1.0
        %v5158 = vadd.f32 %v5062, 1.0
        %v5159 = vadd.f32 %v5063, 1.0
        %v5160 = vadd.f32 %v5064, 1.0
        %v5161 = vadd.f32 %v5065, 1.0
        %v5162 = vadd.f32 %v5066, 1.0
        %v5163 = vadd.f32 %v5067, 1.0
        %v5164 = vadd.f32 %v5068, 1.0
        %v5165 = vadd.f32 %v5069, 1.0
        %v5166 = vadd.f32 %v5070, 1.0
        %v5167 = vadd.f32 %v5071, 1.0
        %v5168 = vadd.f32 %v5072, 1.0
        %v5169 = vadd.f32 %v5073, 1.0
        %v5170 = vadd.f32 %v5074, 1.0
        %v5171 = vadd.f32 %v5075, 1.0
        %v5172 = vadd.f32 %v5076, 1.0
        %v5173 = vadd.f32 %v5077, 1.0
        %v5174 = vadd.f32 %v5078, 1.0
        %v5175 = vadd.f32 %v5079, 1.0
        %v5176 = vadd.f32 %v5080, 1.0
        %v5177 = vadd.f32 %v5081, 1.0
        %v5178 = vadd.f32 %v5082, 1.0
        %v5179 = vadd.f32 %v5083, 1.0
        %v5180 = vadd.f32 %v5084, 1.0
        %v5181 = vadd.f32 %v5085, 1.0
        %v5182 = vadd.f32 %v5086, 1.0
        %v5183 = vadd.f32 %v5087, 1.0
        %v5184 = vadd.f32 %v5088, 1.0
        %v5185 = vadd.f32 %v5089, 1.0
        %v5186 = vadd.f32 %v5090, 1.0
        %v5187 = vadd.f32 %v5091, 1.0
        %v5188 = vadd.f32 %v5092, 1.0
        %v5189 = vadd.f32 %v5093, 1.0
        %v5190 = vadd.f32 %v5094, 1.0
        %v5191 = vadd.f32 %v5095, 1.0
        %v5192 = vadd.f32 %v5096, 1.0
        %v5193 = vadd.f32 %v5097, 1.0
        %v5194 = vadd.f32 %v5098, 1.0
        %v5195 = vadd.f32 %v5099, 1.0
        %v5196 = vadd.f32 %v5100, 1.0
        %v5197 = vmul.f32 %v5101, 0.5
        %v5198 = vmul.f32 %v5102, 0.5
        %v5199 = vmul.f32 %v5103, 0.5
        %v5200 = vmul.f32 %v5104, 0.5
        %v5201 = vmul.f32 %v5105, 0.5
        %v5202 = vmul.f32 %v5106, 0.5
        %v5203 = vmul.f32 %v5107, 0.5
        %v5204 = vmul.f32 %v5108, 0.5
        %v5205 = vmul.f32 %v5109, 0.5
        %v5206 = vmul.f32 %v5110, 0.5
        %v5207 = vmul.f32 %v5111, 0.5
        %v5208 = vmul.f32 %v5112, 0.5
        %v5209 = vmul.f32 %v5113, 0.5
        %v5210 = vmul.f32 %v5114, 0.5
        %v5211 = vmul.f32 %v5115, 0.5
        %v5212 = vmul.f32 %v5116, 0.5
        %v5213 = vmul.f32 %v5117, 0.5
        %v5214 = vmul.f32 %v5118, 0.5
        %v5215 = vmul.f32 %v5119, 0.5
        %v5216 = vmul.f32 %v5120, 0.5
        %v5217 = vmul.f32 %v5121, 0.5
        %v5218 = vmul.f32 %v5122, 0.5
        %v5219 = vmul.f32 %v5123, 0.5
        %v5220 = vmul.f32 %v5124, 0.5
        %v5221 = vmul.f32 %v5125, 0.5
        %v5222 = vmul.f32 %v5126, 0.5
        %v5223 = vmul.f32 %v5127, 0.5
        %v5224 = vmul.f32 %v5128, 0.5
        %v5225 = vmul.f32 %v5129, 0.5
        %v5226 = vmul.f32 %v5130, 0.5
        %v5227 = vmul.f32 %v5131, 0.5
        %v5228 = vmul.f32 %v5132, 0.5
        %v5229 = vmul.f32 %v5133, 0.5
        %v5230 = vmul.f32 %v5134, 0.5
        %v5231 = vmul.f32 %v5135, 0.5
        %v5232 = vmul.f32 %v5136, 0.5
        %v5233 = vmul.f32 %v5137, 0.5
        %v5234 = vmul.f32 %v5138, 0.5
        %v5235 = vmul.f32 %v5139, 0.5
        %v5236 = vmul.f32 %v5140, 0.5
        %v5237 = vmul.f32 %v5141, 0.5
        %v5238 = vmul.f32 %v5142, 0.5
        %v5239 = vmul.f32 %v5143, 0.5
        %v5240 = vmul.f32 %v5144, 0.5
        %v5241 = vmul.f32 %v5145, 0.5
        %v5242 = vmul.f32 %v5146, 0.5
        %v5243 = vmul.f32 %v5147, 0.5
        %v5244 = vmul.f32 %v5148, 0.5
        %v5245 = vmul.f32 %v5149, 0.5
        %v5246 = vmul.f32 %v5150, 0.5
        %v5247 = vmul.f32 %v5151, 0.5
        %v5248 = vmul.f32 %v5152, 0.5
        %v5249 = vmul.f32 %v5153, 0.5
        %v5250 = vmul.f32 %v5154, 0.5
        %v5251 = vmul.f32 %v5155, 0.5
        %v5252 = vmul.f32 %v5156, 0.5
        %v5253 = vmul.f32 %v5157, 0.5
        %v5254 = vmul.f32 %v5158, 0.5
        %v5255 = vmul.f32 %v5159, 0.5
        %v5256 = vmul.f32 %v5160, 0.5
        %v5257 = vmul.f32 %v5161, 0.5
        %v5258 = vmul.f32 %v5162, 0.5
        %v5259 = vmul.f32 %v5163, 0.5
        %v5260 = vmul.f32 %v5164, 0.5
        %v5261 = vmul.f32 %v5165, 0.5
        %v5262 = vmul.f32 %v5166, 0.5
        %v5263 = vmul.f32 %v5167, 0.5
        %v5264 = vmul.f32 %v5168, 0.5
        %v5265 = vmul.f32 %v5169, 0.5
        %v5266 = vmul.f32 %v5170, 0.5
        %v5267 = vmul.f32 %v5171, 0.5
        %v5268 = vmul.f32 %v5172, 0.5
        %v5269 = vmul.f32 %v5173, 0.5
        %v5270 = vmul.f32 %v5174, 0.5
        %v5271 = vmul.f32 %v5175, 0.5
        %v5272 = vmul.f32 %v5176, 0.5
        %v5273 = vmul.f32 %v5177, 0.5
        %v5274 = vmul.f32 %v5178, 0.5
        %v5275 = vmul.f32 %v5179, 0.5
        %v5276 = vmul.f32 %v5180, 0.5
        %v5277 = vmul.f32 %v5181, 0.5
        %v5278 = vmul.f32 %v5182, 0.5
        %v5279 = vmul.f32 %v5183, 0.5
        %v5280 = vmul.f32 %v5184, 0.5
        %v5281 = vmul.f32 %v5185, 0.5
        %v5282 = vmul.f32 %v5186, 0.5
        %v5283 = vmul.f32 %v5187, 0.5
        %v5284 = vmul.f32 %v5188, 0.5
        %v5285 = vmul.f32 %v5189, 0.5
        %v5286 = vmul.f32 %v5190, 0.5
        %v5287 = vmul.f32 %v5191, 0.5
        %v5288 = vmul.f32 %v5192, 0.5
        %v5289 = vmul.f32 %v5193, 0.5
        %v5290 = vmul.f32 %v5194, 0.5
        %v5291 = vmul.f32 %v5195, 0.5
        %v5292 = vmul.f32 %v5196, 0.5
        %v5293 = vmul.f32 %v4206, %v5197
        %v5294 = vmul.f32 %v4208, %v5198
        %v5295 = vmul.f32 %v4399, %v5199
        %v5296 = vmul.f32 %v4210, %v5200
        %v5297 = vmul.f32 %v4212, %v5201
        %v5298 = vmul.f32 %v4402, %v5202
        %v5299 = vmul.f32 %v4216, %v5203
        %v5300 = vmul.f32 %v4218, %v5204
        %v5301 = vmul.f32 %v4407, %v5205
        %v5302 = vmul.f32 %v4220, %v5206
        %v5303 = vmul.f32 %v4222, %v5207
        %v5304 = vmul.f32 %v4410, %v5208
        %v5305 = vmul.f32 %v4226, %v5209
        %v5306 = vmul.f32 %v4228, %v5210
        %v5307 = vmul.f32 %v4415, %v5211
        %v5308 = vmul.f32 %v4230, %v5212
        %v5309 = vmul.f32 %v4232, %v5213
        %v5310 = vmul.f32 %v4418, %v5214
        %v5311 = vmul.f32 %v4236, %v5215
        %v5312 = vmul.f32 %v4238, %v5216
        %v5313 = vmul.f32 %v4423, %v5217
        %v5314 = vmul.f32 %v4240, %v5218
        %v5315 = vmul.f32 %v4242, %v5219
        %v5316 = vmul.f32 %v4426, %v5220
        %v5317 = vmul.f32 %v4246, %v5221
        %v5318 = vmul.f32 %v4248, %v5222
        %v5319 = vmul.f32 %v4431, %v5223
        %v5320 = vmul.f32 %v4250, %v5224
        %v5321 = vmul.f32 %v4252, %v5225
        %v5322 = vmul.f32 %v4434, %v5226
        %v5323 = vmul.f32 %v4256, %v5227
        %v5324 = vmul.f32 %v4258, %v5228
        %v5325 = vmul.f32 %v4439, %v5229
        %v5326 = vmul.f32 %v4260, %v5230
        %v5327 = vmul.f32 %v4262, %v5231
        %v5328 = vmul.f32 %v4442, %v5232
        %v5329 = vmul.f32 %v4266, %v5233
        %v5330 = vmul.f32 %v4268, %v5234
        %v5331 = vmul.f32 %v4447, %v5235
        %v5332 = vmul.f32 %v4270, %v5236
        %v5333 = vmul.f32 %v4272, %v5237
        %v5334 = vmul.f32 %v4450, %v5238
        %v5335 = vmul.f32 %v4276, %v5239
        %v5336 = vmul.f32 %v4278, %v5240
        %v5337 = vmul.f32 %v4455, %v5241
        %v5338 = vmul.f32 %v4280, %v5242
        %v5339 = vmul.f32 %v4282, %v5243
        %v5340 = vmul.f32 %v4458, %v5244
        %v5341 = vmul.f32 %v4286, %v5245
        %v5342 = vmul.f32 %v4288, %v5246
        %v5343 = vmul.f32 %v4463, %v5247
        %v5344 = vmul.f32 %v4290, %v5248
        %v5345 = vmul.f32 %v4292, %v5249
        %v5346 = vmul.f32 %v4466, %v5250
        %v5347 = vmul.f32 %v4296, %v5251
        %v5348 = vmul.f32 %v4298, %v5252
        %v5349 = vmul.f32 %v4471, %v5253
        %v5350 = vmul.f32 %v4300, %v5254
        %v5351 = vmul.f32 %v4302, %v5255
        %v5352 = vmul.f32 %v4474, %v5256
        %v5353 = vmul.f32 %v4306, %v5257
        %v5354 = vmul.f32 %v4308, %v5258
        %v5355 = vmul.f32 %v4479, %v5259
        %v5356 = vmul.f32 %v4310, %v5260
        %v5357 = vmul.f32 %v4312, %v5261
        %v5358 = vmul.f32 %v4482, %v5262
        %v5359 = vmul.f32 %v4316, %v5263
        %v5360 = vmul.f32 %v4318, %v5264
        %v5361 = vmul.f32 %v4487, %v5265
        %v5362 = vmul.f32 %v4320, %v5266
        %v5363 = vmul.f32 %v4322, %v5267
        %v5364 = vmul.f32 %v4490, %v5268
        %v5365 = vmul.f32 %v4326, %v5269
        %v5366 = vmul.f32 %v4328, %v5270
        %v5367 = vmul.f32 %v4495, %v5271
        %v5368 = vmul.f32 %v4330, %v5272
        %v5369 = vmul.f32 %v4332, %v5273
        %v5370 = vmul.f32 %v4498, %v5274
        %v5371 = vmul.f32 %v4336, %v5275
        %v5372 = vmul.f32 %v4338, %v5276
        %v5373 = vmul.f32 %v4503, %v5277
        %v5374 = vmul.f32 %v4340, %v5278
        %v5375 = vmul.f32 %v4342, %v5279
        %v5376 = vmul.f32 %v4506, %v5280
        %v5377 = vmul.f32 %v4346, %v5281
        %v5378 = vmul.f32 %v4348, %v5282
        %v5379 = vmul.f32 %v4511, %v5283
        %v5380 = vmul.f32 %v4350, %v5284
        %v5381 = vmul.f32 %v4352, %v5285
        %v5382 = vmul.f32 %v4514, %v5286
        %v5383 = vmul.f32 %v4356, %v5287
        %v5384 = vmul.f32 %v4358, %v5288
        %v5385 = vmul.f32 %v4519, %v5289
        %v5386 = vmul.f32 %v4360, %v5290
        %v5387 = vmul.f32 %v4362, %v5291
        %v5388 = vmul.f32 %v4522, %v5292
        %v5389 = vpack.c.bf16 %v5296, %v5293
        %v5390 = vpack.c.bf16 %v5297, %v5294
        %v5391 = vpack.c.bf16 %v5298, %v5295
        %v5392 = vpack.c.bf16 %v5302, %v5299
        %v5393 = vpack.c.bf16 %v5303, %v5300
        %v5394 = vpack.c.bf16 %v5304, %v5301
        %v5395 = vpack.c.bf16 %v5308, %v5305
        %v5396 = vpack.c.bf16 %v5309, %v5306
        %v5397 = vpack.c.bf16 %v5310, %v5307
        %v5398 = vpack.c.bf16 %v5314, %v5311
        %v5399 = vpack.c.bf16 %v5315, %v5312
        %v5400 = vpack.c.bf16 %v5316, %v5313
        %v5401 = vpack.c.bf16 %v5320, %v5317
        %v5402 = vpack.c.bf16 %v5321, %v5318
        %v5403 = vpack.c.bf16 %v5322, %v5319
        %v5404 = vpack.c.bf16 %v5326, %v5323
        %v5405 = vpack.c.bf16 %v5327, %v5324
        %v5406 = vpack.c.bf16 %v5328, %v5325
        %v5407 = vpack.c.bf16 %v5332, %v5329
        %v5408 = vpack.c.bf16 %v5333, %v5330
        %v5409 = vpack.c.bf16 %v5334, %v5331
        %v5410 = vpack.c.bf16 %v5338, %v5335
        %v5411 = vpack.c.bf16 %v5339, %v5336
        %v5412 = vpack.c.bf16 %v5340, %v5337
        %v5413 = vpack.c.bf16 %v5344, %v5341
        %v5414 = vpack.c.bf16 %v5345, %v5342
        %v5415 = vpack.c.bf16 %v5346, %v5343
        %v5416 = vpack.c.bf16 %v5350, %v5347
        %v5417 = vpack.c.bf16 %v5351, %v5348
        %v5418 = vpack.c.bf16 %v5352, %v5349
        %v5419 = vpack.c.bf16 %v5356, %v5353
        %v5420 = vpack.c.bf16 %v5357, %v5354
        %v5421 = vpack.c.bf16 %v5358, %v5355
        %v5422 = vpack.c.bf16 %v5362, %v5359
        %v5423 = vpack.c.bf16 %v5363, %v5360
        %v5424 = vpack.c.bf16 %v5364, %v5361
        %v5425 = vpack.c.bf16 %v5368, %v5365
        %v5426 = vpack.c.bf16 %v5369, %v5366
        %v5427 = vpack.c.bf16 %v5370, %v5367
        %v5428 = vpack.c.bf16 %v5374, %v5371
        %v5429 = vpack.c.bf16 %v5375, %v5372
        %v5430 = vpack.c.bf16 %v5376, %v5373
        %v5431 = vpack.c.bf16 %v5380, %v5377
        %v5432 = vpack.c.bf16 %v5381, %v5378
        %v5433 = vpack.c.bf16 %v5382, %v5379
        %v5434 = vpack.c.bf16 %v5386, %v5383
        %v5435 = vpack.c.bf16 %v5387, %v5384
        %v5436 = vpack.c.bf16 %v5388, %v5385
        %5437 = vmatprep.subr.bf16.mxu0 0
        %5438 = vmatpush1.bf16.msra.mxu0 %v2920
        %5439 = vmatprep.subr.bf16.mxu0 0
        %5440 = vmatpush1.bf16.msra.mxu0 %v2919
        %5441 = vmatprep.subr.bf16.mxu0 0
        %5442 = vmatpush1.bf16.msra.mxu0 %v2918
        %5443 = vmatprep.subr.bf16.mxu0 0
        %5444 = vmatpush1.bf16.msra.mxu0 %v2917
        %5445 = vmatprep.subr.bf16.mxu0 0
        %5446 = vmatpush1.bf16.msra.mxu0 %v2916
        %5447 = vmatprep.subr.bf16.mxu0 0
        %5448 = vmatpush1.bf16.msra.mxu0 %v2915
        %5449 = vmatprep.subr.bf16.mxu0 0
        %5450 = vmatpush1.bf16.msra.mxu0 %v2914
        %5451 = vmatprep.subr.bf16.mxu0 0
        %5452 = vmatpush1.bf16.msra.mxu0 %v2913
        %5453 = vmatprep.subr.bf16.mxu0 0
        %5454 = vmatpush2.bf16.msra.mxu0 %v2928
        %5455 = vmatprep.subr.bf16.mxu0 0
        %5456 = vmatpush2.bf16.msra.mxu0 %v2927
        %5457 = vmatprep.subr.bf16.mxu0 0
        %5458 = vmatpush2.bf16.msra.mxu0 %v2926
        %5459 = vmatprep.subr.bf16.mxu0 0
        %5460 = vmatpush2.bf16.msra.mxu0 %v2925
        %5461 = vmatprep.subr.bf16.mxu0 0
        %5462 = vmatpush2.bf16.msra.mxu0 %v2924
        %5463 = vmatprep.subr.bf16.mxu0 0
        %5464 = vmatpush2.bf16.msra.mxu0 %v2923
        %5465 = vmatprep.subr.bf16.mxu0 0
        %5466 = vmatpush2.bf16.msra.mxu0 %v2922
        %5467 = vmatprep.subr.bf16.mxu0 0
        %5468 = vmatpush2.bf16.msra.mxu0 %v2921
        %5469 = vmatprep.mubr.bf16.mxu0 %v5390
        %5470 = vmatmul.mubr.bf16.gmra.mxu0 %v5389
        %v5471 = vpop.f32.mrf.mxu0
        %v5472 = vadd.f32 %v2815, %v5471
        %v5473 = vpop.f32.mrf.mxu0
        %v5474 = vpop.f32.mrf.mxu0
        %v5475 = vadd.f32 %v2815, %v5474
        %v5476 = vpop.f32.mrf.mxu0
        %5477 = vmatprep.mubr.bf16.mxu0 %v5393
        %5478 = vmatmul.mubr.bf16.gmra.mxu0 %v5392
        %v5479 = vpop.f32.mrf.mxu0
        %v5480 = vadd.f32 %v2815, %v5479
        %v5481 = vpop.f32.mrf.mxu0
        %v5482 = vpop.f32.mrf.mxu0
        %v5483 = vadd.f32 %v2815, %v5482
        %v5484 = vpop.f32.mrf.mxu0
        %5485 = vmatprep.mubr.bf16.mxu0 %v5396
        %5486 = vmatmul.mubr.bf16.gmra.mxu0 %v5395
        %v5487 = vpop.f32.mrf.mxu0
        %v5488 = vadd.f32 %v2815, %v5487
        %v5489 = vpop.f32.mrf.mxu0
        %v5490 = vpop.f32.mrf.mxu0
        %v5491 = vadd.f32 %v2815, %v5490
        %v5492 = vpop.f32.mrf.mxu0
        %5493 = vmatprep.mubr.bf16.mxu0 %v5399
        %5494 = vmatmul.mubr.bf16.gmra.mxu0 %v5398
        %v5495 = vpop.f32.mrf.mxu0
        %v5496 = vadd.f32 %v2815, %v5495
        %v5497 = vpop.f32.mrf.mxu0
        %v5498 = vpop.f32.mrf.mxu0
        %v5499 = vadd.f32 %v2815, %v5498
        %v5500 = vpop.f32.mrf.mxu0
        %5501 = vmatprep.mubr.bf16.mxu0 %v5402
        %5502 = vmatmul.mubr.bf16.gmra.mxu0 %v5401
        %v5503 = vpop.f32.mrf.mxu0
        %v5504 = vadd.f32 %v2815, %v5503
        %v5505 = vpop.f32.mrf.mxu0
        %v5506 = vpop.f32.mrf.mxu0
        %v5507 = vadd.f32 %v2815, %v5506
        %v5508 = vpop.f32.mrf.mxu0
        %5509 = vmatprep.mubr.bf16.mxu0 %v5405
        %5510 = vmatmul.mubr.bf16.gmra.mxu0 %v5404
        %v5511 = vpop.f32.mrf.mxu0
        %v5512 = vadd.f32 %v2815, %v5511
        %v5513 = vpop.f32.mrf.mxu0
        %v5514 = vpop.f32.mrf.mxu0
        %v5515 = vadd.f32 %v2815, %v5514
        %v5516 = vpop.f32.mrf.mxu0
        %5517 = vmatprep.mubr.bf16.mxu0 %v5408
        %5518 = vmatmul.mubr.bf16.gmra.mxu0 %v5407
        %v5519 = vpop.f32.mrf.mxu0
        %v5520 = vadd.f32 %v2815, %v5519
        %v5521 = vpop.f32.mrf.mxu0
        %v5522 = vpop.f32.mrf.mxu0
        %v5523 = vadd.f32 %v2815, %v5522
        %v5524 = vpop.f32.mrf.mxu0
        %5525 = vmatprep.mubr.bf16.mxu0 %v5411
        %5526 = vmatmul.mubr.bf16.gmra.mxu0 %v5410
        %v5527 = vpop.f32.mrf.mxu0
        %v5528 = vadd.f32 %v2815, %v5527
        %v5529 = vpop.f32.mrf.mxu0
        %v5530 = vpop.f32.mrf.mxu0
        %v5531 = vadd.f32 %v2815, %v5530
        %v5532 = vpop.f32.mrf.mxu0
        %5533 = vmatprep.mubr.bf16.mxu0 %v5414
        %5534 = vmatmul.mubr.bf16.gmra.mxu0 %v5413
        %v5535 = vpop.f32.mrf.mxu0
        %v5536 = vadd.f32 %v2815, %v5535
        %v5537 = vpop.f32.mrf.mxu0
        %v5538 = vpop.f32.mrf.mxu0
        %v5539 = vadd.f32 %v2815, %v5538
        %v5540 = vpop.f32.mrf.mxu0
        %5541 = vmatprep.mubr.bf16.mxu0 %v5417
        %5542 = vmatmul.mubr.bf16.gmra.mxu0 %v5416
        %v5543 = vpop.f32.mrf.mxu0
        %v5544 = vadd.f32 %v2815, %v5543
        %v5545 = vpop.f32.mrf.mxu0
        %v5546 = vpop.f32.mrf.mxu0
        %v5547 = vadd.f32 %v2815, %v5546
        %v5548 = vpop.f32.mrf.mxu0
        %5549 = vmatprep.mubr.bf16.mxu0 %v5420
        %5550 = vmatmul.mubr.bf16.gmra.mxu0 %v5419
        %v5551 = vpop.f32.mrf.mxu0
        %v5552 = vadd.f32 %v2815, %v5551
        %v5553 = vpop.f32.mrf.mxu0
        %v5554 = vpop.f32.mrf.mxu0
        %v5555 = vadd.f32 %v2815, %v5554
        %v5556 = vpop.f32.mrf.mxu0
        %5557 = vmatprep.mubr.bf16.mxu0 %v5423
        %5558 = vmatmul.mubr.bf16.gmra.mxu0 %v5422
        %v5559 = vpop.f32.mrf.mxu0
        %v5560 = vadd.f32 %v2815, %v5559
        %v5561 = vpop.f32.mrf.mxu0
        %v5562 = vpop.f32.mrf.mxu0
        %v5563 = vadd.f32 %v2815, %v5562
        %v5564 = vpop.f32.mrf.mxu0
        %5565 = vmatprep.mubr.bf16.mxu0 %v5426
        %5566 = vmatmul.mubr.bf16.gmra.mxu0 %v5425
        %v5567 = vpop.f32.mrf.mxu0
        %v5568 = vadd.f32 %v2815, %v5567
        %v5569 = vpop.f32.mrf.mxu0
        %v5570 = vpop.f32.mrf.mxu0
        %v5571 = vadd.f32 %v2815, %v5570
        %v5572 = vpop.f32.mrf.mxu0
        %5573 = vmatprep.mubr.bf16.mxu0 %v5429
        %5574 = vmatmul.mubr.bf16.gmra.mxu0 %v5428
        %v5575 = vpop.f32.mrf.mxu0
        %v5576 = vadd.f32 %v2815, %v5575
        %v5577 = vpop.f32.mrf.mxu0
        %v5578 = vpop.f32.mrf.mxu0
        %v5579 = vadd.f32 %v2815, %v5578
        %v5580 = vpop.f32.mrf.mxu0
        %5581 = vmatprep.mubr.bf16.mxu0 %v5432
        %5582 = vmatmul.mubr.bf16.gmra.mxu0 %v5431
        %v5583 = vpop.f32.mrf.mxu0
        %v5584 = vadd.f32 %v2815, %v5583
        %v5585 = vpop.f32.mrf.mxu0
        %v5586 = vpop.f32.mrf.mxu0
        %v5587 = vadd.f32 %v2815, %v5586
        %v5588 = vpop.f32.mrf.mxu0
        %5589 = vmatprep.mubr.bf16.mxu0 %v5435
        %5590 = vmatmul.mubr.bf16.gmra.mxu0 %v5434
        %v5591 = vpop.f32.mrf.mxu0
        %v5592 = vadd.f32 %v2815, %v5591
        %v5593 = vpop.f32.mrf.mxu0
        %v5594 = vpop.f32.mrf.mxu0
        %v5595 = vadd.f32 %v2815, %v5594
        %v5596 = vpop.f32.mrf.mxu0
        %5597 = vdwg.mxu0
        %5598 = vmatprep.subr.bf16.mxu0 0
        %5599 = vmatpush1.bf16.msra.mxu0 %v2936
        %5600 = vmatprep.subr.bf16.mxu0 0
        %5601 = vmatpush1.bf16.msra.mxu0 %v2935
        %5602 = vmatprep.subr.bf16.mxu0 0
        %5603 = vmatpush1.bf16.msra.mxu0 %v2934
        %5604 = vmatprep.subr.bf16.mxu0 0
        %5605 = vmatpush1.bf16.msra.mxu0 %v2933
        %5606 = vmatprep.subr.bf16.mxu0 0
        %5607 = vmatpush1.bf16.msra.mxu0 %v2932
        %5608 = vmatprep.subr.bf16.mxu0 0
        %5609 = vmatpush1.bf16.msra.mxu0 %v2931
        %5610 = vmatprep.subr.bf16.mxu0 0
        %5611 = vmatpush1.bf16.msra.mxu0 %v2930
        %5612 = vmatprep.subr.bf16.mxu0 0
        %5613 = vmatpush1.bf16.msra.mxu0 %v2929
        %5614 = vmatprep.subr.bf16.mxu0 0
        %5615 = vmatpush2.bf16.msra.mxu0 0
        %5616 = vmatprep.subr.bf16.mxu0 0
        %5617 = vmatpush2.bf16.msra.mxu0 0
        %5618 = vmatprep.subr.bf16.mxu0 0
        %5619 = vmatpush2.bf16.msra.mxu0 0
        %5620 = vmatprep.subr.bf16.mxu0 0
        %5621 = vmatpush2.bf16.msra.mxu0 0
        %5622 = vmatprep.subr.bf16.mxu0 0
        %5623 = vmatpush2.bf16.msra.mxu0 0
        %5624 = vmatprep.subr.bf16.mxu0 0
        %5625 = vmatpush2.bf16.msra.mxu0 0
        %5626 = vmatprep.subr.bf16.mxu0 0
        %5627 = vmatpush2.bf16.msra.mxu0 0
        %5628 = vmatprep.subr.bf16.mxu0 0
        %5629 = vmatpush2.bf16.msra.mxu0 0
        %5630 = vmatprep.mubr.bf16.mxu0 0
        %5631 = vmatmul.mubr.bf16.gmra.mxu0 %v5391
        %v5632 = vpop.f32.mrf.mxu0
        %v5633 = vadd.f32 %v5472, %v5632
        %v5634 = vpop.f32.mrf.mxu0
        %v5635 = vpop.f32.mrf.mxu0
        %v5636 = vadd.f32 %v5475, %v5635
        %v5637 = vpop.f32.mrf.mxu0
        %5638 = vmatprep.mubr.bf16.mxu0 0
        %5639 = vmatmul.mubr.bf16.gmra.mxu0 %v5394
        %v5640 = vpop.f32.mrf.mxu0
        %v5641 = vadd.f32 %v5480, %v5640
        %v5642 = vpop.f32.mrf.mxu0
        %v5643 = vpop.f32.mrf.mxu0
        %v5644 = vadd.f32 %v5483, %v5643
        %v5645 = vpop.f32.mrf.mxu0
        %5646 = vmatprep.mubr.bf16.mxu0 0
        %5647 = vmatmul.mubr.bf16.gmra.mxu0 %v5397
        %v5648 = vpop.f32.mrf.mxu0
        %v5649 = vadd.f32 %v5488, %v5648
        %v5650 = vpop.f32.mrf.mxu0
        %v5651 = vpop.f32.mrf.mxu0
        %v5652 = vadd.f32 %v5491, %v5651
        %v5653 = vpop.f32.mrf.mxu0
        %5654 = vmatprep.mubr.bf16.mxu0 0
        %5655 = vmatmul.mubr.bf16.gmra.mxu0 %v5400
        %v5656 = vpop.f32.mrf.mxu0
        %v5657 = vadd.f32 %v5496, %v5656
        %v5658 = vpop.f32.mrf.mxu0
        %v5659 = vpop.f32.mrf.mxu0
        %v5660 = vadd.f32 %v5499, %v5659
        %v5661 = vpop.f32.mrf.mxu0
        %5662 = vmatprep.mubr.bf16.mxu0 0
        %5663 = vmatmul.mubr.bf16.gmra.mxu0 %v5403
        %v5664 = vpop.f32.mrf.mxu0
        %v5665 = vadd.f32 %v5504, %v5664
        %v5666 = vpop.f32.mrf.mxu0
        %v5667 = vpop.f32.mrf.mxu0
        %v5668 = vadd.f32 %v5507, %v5667
        %v5669 = vpop.f32.mrf.mxu0
        %5670 = vmatprep.mubr.bf16.mxu0 0
        %5671 = vmatmul.mubr.bf16.gmra.mxu0 %v5406
        %v5672 = vpop.f32.mrf.mxu0
        %v5673 = vadd.f32 %v5512, %v5672
        %v5674 = vpop.f32.mrf.mxu0
        %v5675 = vpop.f32.mrf.mxu0
        %v5676 = vadd.f32 %v5515, %v5675
        %v5677 = vpop.f32.mrf.mxu0
        %5678 = vmatprep.mubr.bf16.mxu0 0
        %5679 = vmatmul.mubr.bf16.gmra.mxu0 %v5409
        %v5680 = vpop.f32.mrf.mxu0
        %v5681 = vadd.f32 %v5520, %v5680
        %v5682 = vpop.f32.mrf.mxu0
        %v5683 = vpop.f32.mrf.mxu0
        %v5684 = vadd.f32 %v5523, %v5683
        %v5685 = vpop.f32.mrf.mxu0
        %5686 = vmatprep.mubr.bf16.mxu0 0
        %5687 = vmatmul.mubr.bf16.gmra.mxu0 %v5412
        %v5688 = vpop.f32.mrf.mxu0
        %v5689 = vadd.f32 %v5528, %v5688
        %v5690 = vpop.f32.mrf.mxu0
        %v5691 = vpop.f32.mrf.mxu0
        %v5692 = vadd.f32 %v5531, %v5691
        %v5693 = vpop.f32.mrf.mxu0
        %5694 = vmatprep.mubr.bf16.mxu0 0
        %5695 = vmatmul.mubr.bf16.gmra.mxu0 %v5415
        %v5696 = vpop.f32.mrf.mxu0
        %v5697 = vadd.f32 %v5536, %v5696
        %v5698 = vpop.f32.mrf.mxu0
        %v5699 = vpop.f32.mrf.mxu0
        %v5700 = vadd.f32 %v5539, %v5699
        %v5701 = vpop.f32.mrf.mxu0
        %5702 = vmatprep.mubr.bf16.mxu0 0
        %5703 = vmatmul.mubr.bf16.gmra.mxu0 %v5418
        %v5704 = vpop.f32.mrf.mxu0
        %v5705 = vadd.f32 %v5544, %v5704
        %v5706 = vpop.f32.mrf.mxu0
        %v5707 = vpop.f32.mrf.mxu0
        %v5708 = vadd.f32 %v5547, %v5707
        %v5709 = vpop.f32.mrf.mxu0
        %5710 = vmatprep.mubr.bf16.mxu0 0
        %5711 = vmatmul.mubr.bf16.gmra.mxu0 %v5421
        %v5712 = vpop.f32.mrf.mxu0
        %v5713 = vadd.f32 %v5552, %v5712
        %v5714 = vpop.f32.mrf.mxu0
        %v5715 = vpop.f32.mrf.mxu0
        %v5716 = vadd.f32 %v5555, %v5715
        %v5717 = vpop.f32.mrf.mxu0
        %5718 = vmatprep.mubr.bf16.mxu0 0
        %5719 = vmatmul.mubr.bf16.gmra.mxu0 %v5424
        %v5720 = vpop.f32.mrf.mxu0
        %v5721 = vadd.f32 %v5560, %v5720
        %v5722 = vpop.f32.mrf.mxu0
        %v5723 = vpop.f32.mrf.mxu0
        %v5724 = vadd.f32 %v5563, %v5723
        %v5725 = vpop.f32.mrf.mxu0
        %5726 = vmatprep.mubr.bf16.mxu0 0
        %5727 = vmatmul.mubr.bf16.gmra.mxu0 %v5427
        %v5728 = vpop.f32.mrf.mxu0
        %v5729 = vadd.f32 %v5568, %v5728
        %v5730 = vpop.f32.mrf.mxu0
        %v5731 = vpop.f32.mrf.mxu0
        %v5732 = vadd.f32 %v5571, %v5731
        %v5733 = vpop.f32.mrf.mxu0
        %5734 = vmatprep.mubr.bf16.mxu0 0
        %5735 = vmatmul.mubr.bf16.gmra.mxu0 %v5430
        %v5736 = vpop.f32.mrf.mxu0
        %v5737 = vadd.f32 %v5576, %v5736
        %v5738 = vpop.f32.mrf.mxu0
        %v5739 = vpop.f32.mrf.mxu0
        %v5740 = vadd.f32 %v5579, %v5739
        %v5741 = vpop.f32.mrf.mxu0
        %5742 = vmatprep.mubr.bf16.mxu0 0
        %5743 = vmatmul.mubr.bf16.gmra.mxu0 %v5433
        %v5744 = vpop.f32.mrf.mxu0
        %v5745 = vadd.f32 %v5584, %v5744
        %v5746 = vpop.f32.mrf.mxu0
        %v5747 = vpop.f32.mrf.mxu0
        %v5748 = vadd.f32 %v5587, %v5747
        %v5749 = vpop.f32.mrf.mxu0
        %5750 = vmatprep.mubr.bf16.mxu0 0
        %5751 = vmatmul.mubr.bf16.gmra.mxu0 %v5436
        %v5752 = vpop.f32.mrf.mxu0
        %v5753 = vadd.f32 %v5592, %v5752
        %v5754 = vpop.f32.mrf.mxu0
        %v5755 = vpop.f32.mrf.mxu0
        %v5756 = vadd.f32 %v5595, %v5755
        %v5757 = vpop.f32.mrf.mxu0
        %5758 = vdwg.mxu0
        %v5759 = vadd.f32 %v3549, %v5633
        %v5760 = vadd.f32 %v3552, %v5636
        %v5761 = vadd.f32 %v3557, %v5641
        %v5762 = vadd.f32 %v3560, %v5644
        %v5763 = vadd.f32 %v3565, %v5649
        %v5764 = vadd.f32 %v3568, %v5652
        %v5765 = vadd.f32 %v3573, %v5657
        %v5766 = vadd.f32 %v3576, %v5660
        %v5767 = vadd.f32 %v3581, %v5665
        %v5768 = vadd.f32 %v3584, %v5668
        %v5769 = vadd.f32 %v3589, %v5673
        %v5770 = vadd.f32 %v3592, %v5676
        %v5771 = vadd.f32 %v3597, %v5681
        %v5772 = vadd.f32 %v3600, %v5684
        %v5773 = vadd.f32 %v3605, %v5689
        %v5774 = vadd.f32 %v3608, %v5692
        %v5775 = vadd.f32 %v3613, %v5697
        %v5776 = vadd.f32 %v3616, %v5700
        %v5777 = vadd.f32 %v3621, %v5705
        %v5778 = vadd.f32 %v3624, %v5708
        %v5779 = vadd.f32 %v3629, %v5713
        %v5780 = vadd.f32 %v3632, %v5716
        %v5781 = vadd.f32 %v3637, %v5721
        %v5782 = vadd.f32 %v3640, %v5724
        %v5783 = vadd.f32 %v3645, %v5729
        %v5784 = vadd.f32 %v3648, %v5732
        %v5785 = vadd.f32 %v3653, %v5737
        %v5786 = vadd.f32 %v3656, %v5740
        %v5787 = vadd.f32 %v3661, %v5745
        %v5788 = vadd.f32 %v3664, %v5748
        %v5789 = vadd.f32 %v3669, %v5753
        %v5790 = vadd.f32 %v3672, %v5756
        %v5791 = vadd.f32 %v5759, %v5760
        %v5792 = vadd.f32 %v5791, %v5761
        %v5793 = vadd.f32 %v5792, %v5762
        %v5794 = vadd.f32 %v5793, %v5763
        %v5795 = vadd.f32 %v5794, %v5764
        %v5796 = vadd.f32 %v5795, %v5765
        %v5797 = vadd.f32 %v5796, %v5766
        %v5798 = vadd.f32 %v5797, %v5767
        %v5799 = vadd.f32 %v5798, %v5768
        %v5800 = vadd.f32 %v5799, %v5769
        %v5801 = vadd.f32 %v5800, %v5770
        %v5802 = vadd.f32 %v5801, %v5771
        %v5803 = vadd.f32 %v5802, %v5772
        %v5804 = vadd.f32 %v5803, %v5773
        %v5805 = vadd.f32 %v5804, %v5774
        %v5806 = vadd.f32 %v5805, %v5775
        %v5807 = vadd.f32 %v5806, %v5776
        %v5808 = vadd.f32 %v5807, %v5777
        %v5809 = vadd.f32 %v5808, %v5778
        %v5810 = vadd.f32 %v5809, %v5779
        %v5811 = vadd.f32 %v5810, %v5780
        %v5812 = vadd.f32 %v5811, %v5781
        %v5813 = vadd.f32 %v5812, %v5782
        %v5814 = vadd.f32 %v5813, %v5783
        %v5815 = vadd.f32 %v5814, %v5784
        %v5816 = vadd.f32 %v5815, %v5785
        %v5817 = vadd.f32 %v5816, %v5786
        %v5818 = vadd.f32 %v5817, %v5787
        %v5819 = vadd.f32 %v5818, %v5788
        %v5820 = vadd.f32 %v5819, %v5789
        %v5821 = vadd.f32 %v5820, %v5790
        %v5822 = vrot.slane %v5821, 4
        %v5823 = vadd.f32 %v5821, %v5822
        %v5824 = vrot.slane %v5823, 2
        %v5825 = vadd.f32 %v5823, %v5824
        %v5826 = vrot.slane %v5825, 1
        %v5827 = vadd.f32 %v5825, %v5826
        %v5828 = vadd.f32 %v3352, %v5827
        %v5829 = vld [vmem:[#allocation2] sm:$0x1]
        %v5830 = vadd.f32 %v5829, %v5828
        %5831 = vst [vmem:[#allocation2] sm:$0x1] %v5830
        // Predicated region
        $region77: #{forward.1} parent=71 // pred_check
          %p5832 = pneg %p467
        $region78: #{forward.1} parent=71 // pred_check_branch
          %5834 = sbr.rel (%p5832) target = $region80
        $region79: #{forward.1} parent=71 // pred_region
          %v5835 = vld [vmem:[#allocation2] sm:$0x1]
          %v5836 = vmul.f32 %v5835, 0.001953125
          %v5837 = vld [vmem:[%s9] sm:$0xff]
          %v5838 = vld [vmem:[%s9 + $0x8] sm:$0xff]
          %v5839 = vld [vmem:[%s9 + $0x10] sm:$0xff]
          %v5840 = vld [vmem:[%s9 + $0x18] sm:$0xff]
          %v5841 = vld [vmem:[%s9 + $0x20] sm:$0xff]
          %v5842 = vld [vmem:[%s9 + $0x28] sm:$0xff]
          %v5843 = vld [vmem:[%s9 + $0x30] sm:$0xff]
          %v5844 = vld [vmem:[%s9 + $0x38] sm:$0xff]
          %v5845 = vld [vmem:[%s9 + $0x40] sm:$0xff]
          %v5846 = vld [vmem:[%s9 + $0x48] sm:$0xff]
          %v5847 = vld [vmem:[%s9 + $0x50] sm:$0xff]
          %v5848 = vld [vmem:[%s9 + $0x58] sm:$0xff]
          %v5849 = vld [vmem:[%s9 + $0x60] sm:$0xff]
          %v5850 = vld [vmem:[%s9 + $0x68] sm:$0xff]
          %v5851 = vld [vmem:[%s9 + $0x70] sm:$0xff]
          %v5852 = vld [vmem:[%s9 + $0x78] sm:$0xff]
          %v5853 = vld [vmem:[%s9 + $0x80] sm:$0xff]
          %v5854 = vld [vmem:[%s9 + $0x88] sm:$0xff]
          %v5855 = vld [vmem:[%s9 + $0x90] sm:$0xff]
          %v5856 = vld [vmem:[%s9 + $0x98] sm:$0xff]
          %v5857 = vld [vmem:[%s9 + $0xa0] sm:$0xff]
          %v5858 = vld [vmem:[%s9 + $0xa8] sm:$0xff]
          %v5859 = vld [vmem:[%s9 + $0xb0] sm:$0xff]
          %v5860 = vld [vmem:[%s9 + $0xb8] sm:$0xff]
          %v5861 = vld [vmem:[%s9 + $0xc0] sm:$0xff]
          %v5862 = vld [vmem:[%s9 + $0xc8] sm:$0xff]
          %v5863 = vld [vmem:[%s9 + $0xd0] sm:$0xff]
          %v5864 = vld [vmem:[%s9 + $0xd8] sm:$0xff]
          %v5865 = vld [vmem:[%s9 + $0xe0] sm:$0xff]
          %v5866 = vld [vmem:[%s9 + $0xe8] sm:$0xff]
          %v5867 = vld [vmem:[%s9 + $0xf0] sm:$0xff]
          %v5868 = vld [vmem:[%s9 + $0xf8] sm:$0xff]
          %v5869 = vld [vmem:[%s9 + $0x100] sm:$0xff]
          %v5870 = vld [vmem:[%s9 + $0x108] sm:$0xff]
          %v5871 = vld [vmem:[%s9 + $0x110] sm:$0xff]
          %v5872 = vld [vmem:[%s9 + $0x118] sm:$0xff]
          %v5873 = vld [vmem:[%s9 + $0x120] sm:$0xff]
          %v5874 = vld [vmem:[%s9 + $0x128] sm:$0xff]
          %v5875 = vld [vmem:[%s9 + $0x130] sm:$0xff]
          %v5876 = vld [vmem:[%s9 + $0x138] sm:$0xff]
          %v5877 = vld [vmem:[%s9 + $0x140] sm:$0xff]
          %v5878 = vld [vmem:[%s9 + $0x148] sm:$0xff]
          %v5879 = vld [vmem:[%s9 + $0x150] sm:$0xff]
          %v5880 = vld [vmem:[%s9 + $0x158] sm:$0xff]
          %v5881 = vld [vmem:[%s9 + $0x160] sm:$0xff]
          %v5882 = vld [vmem:[%s9 + $0x168] sm:$0xff]
          %v5883 = vld [vmem:[%s9 + $0x170] sm:$0xff]
          %v5884 = vld [vmem:[%s9 + $0x178] sm:$0xff]
          %v5885 = vld [vmem:[%s9 + $0x180] sm:$0xff]
          %v5886 = vld [vmem:[%s9 + $0x188] sm:$0xff]
          %v5887 = vld [vmem:[%s9 + $0x190] sm:$0xff]
          %v5888 = vld [vmem:[%s9 + $0x198] sm:$0xff]
          %v5889 = vld [vmem:[%s9 + $0x1a0] sm:$0xff]
          %v5890 = vld [vmem:[%s9 + $0x1a8] sm:$0xff]
          %v5891 = vld [vmem:[%s9 + $0x1b0] sm:$0xff]
          %v5892 = vld [vmem:[%s9 + $0x1b8] sm:$0xff]
          %v5893 = vld [vmem:[%s9 + $0x1c0] sm:$0xff]
          %v5894 = vld [vmem:[%s9 + $0x1c8] sm:$0xff]
          %v5895 = vld [vmem:[%s9 + $0x1d0] sm:$0xff]
          %v5896 = vld [vmem:[%s9 + $0x1d8] sm:$0xff]
          %v5897 = vld [vmem:[%s9 + $0x1e0] sm:$0xff]
          %v5898 = vld [vmem:[%s9 + $0x1e8] sm:$0xff]
          %v5899 = vld [vmem:[%s9 + $0x1f0] sm:$0xff]
          %v5900 = vld [vmem:[%s9 + $0x1f8] sm:$0xff]
          %v5901 = vld [vmem:[%s9 + $0x200] sm:$0xff]
          %v5902 = vld [vmem:[%s9 + $0x208] sm:$0xff]
          %v5903 = vld [vmem:[%s9 + $0x210] sm:$0xff]
          %v5904 = vld [vmem:[%s9 + $0x218] sm:$0xff]
          %v5905 = vld [vmem:[%s9 + $0x220] sm:$0xff]
          %v5906 = vld [vmem:[%s9 + $0x228] sm:$0xff]
          %v5907 = vld [vmem:[%s9 + $0x230] sm:$0xff]
          %v5908 = vld [vmem:[%s9 + $0x238] sm:$0xff]
          %v5909 = vld [vmem:[%s9 + $0x240] sm:$0xff]
          %v5910 = vld [vmem:[%s9 + $0x248] sm:$0xff]
          %v5911 = vld [vmem:[%s9 + $0x250] sm:$0xff]
          %v5912 = vld [vmem:[%s9 + $0x258] sm:$0xff]
          %v5913 = vld [vmem:[%s9 + $0x260] sm:$0xff]
          %v5914 = vld [vmem:[%s9 + $0x268] sm:$0xff]
          %v5915 = vld [vmem:[%s9 + $0x270] sm:$0xff]
          %v5916 = vld [vmem:[%s9 + $0x278] sm:$0xff]
          %v5917 = vld [vmem:[%s9 + $0x280] sm:$0xff]
          %v5918 = vld [vmem:[%s9 + $0x288] sm:$0xff]
          %v5919 = vld [vmem:[%s9 + $0x290] sm:$0xff]
          %v5920 = vld [vmem:[%s9 + $0x298] sm:$0xff]
          %v5921 = vld [vmem:[%s9 + $0x2a0] sm:$0xff]
          %v5922 = vld [vmem:[%s9 + $0x2a8] sm:$0xff]
          %v5923 = vld [vmem:[%s9 + $0x2b0] sm:$0xff]
          %v5924 = vld [vmem:[%s9 + $0x2b8] sm:$0xff]
          %v5925 = vld [vmem:[%s9 + $0x2c0] sm:$0xff]
          %v5926 = vld [vmem:[%s9 + $0x2c8] sm:$0xff]
          %v5927 = vld [vmem:[%s9 + $0x2d0] sm:$0xff]
          %v5928 = vld [vmem:[%s9 + $0x2d8] sm:$0xff]
          %v5929 = vld [vmem:[%s9 + $0x2e0] sm:$0xff]
          %v5930 = vld [vmem:[%s9 + $0x2e8] sm:$0xff]
          %v5931 = vld [vmem:[%s9 + $0x2f0] sm:$0xff]
          %v5932 = vld [vmem:[%s9 + $0x2f8] sm:$0xff]
          %v5933 = vld [vmem:[%s10] sm:$0x3f]
          %v5935 = vlaneseq
          %v5936 = vshrl.u32 %v5935, 7
          %v5937 = vsub.s32 0, %v5936
          %v5938 = vrot.slane %v5933, %v5937
          %v5939 = vlaneseq
          %v5940 = vshrl.u32 %v5939, 7
          %v5941 = vsub.s32 1, %v5940
          %v5942 = vrot.slane %v5933, %v5941
          %v5943 = vlaneseq
          %v5944 = vshrl.u32 %v5943, 7
          %v5945 = vsub.s32 2, %v5944
          %v5946 = vrot.slane %v5933, %v5945
          %v5947 = vlaneseq
          %v5948 = vshrl.u32 %v5947, 7
          %v5949 = vsub.s32 3, %v5948
          %v5950 = vrot.slane %v5933, %v5949
          %v5951 = vlaneseq
          %v5952 = vshrl.u32 %v5951, 7
          %v5953 = vsub.s32 4, %v5952
          %v5954 = vrot.slane %v5933, %v5953
          %v5955 = vlaneseq
          %v5956 = vshrl.u32 %v5955, 7
          %v5957 = vsub.s32 5, %v5956
          %v5958 = vrot.slane %v5933, %v5957
          %5965 = vmatprep.subr.mxu0 %v5928
          %5966 = vmatpush1.msra.mxu0 %v5927
          %5967 = vmatprep.subr.mxu0 %v5922
          %5968 = vmatpush1.msra.mxu0 %v5921
          %5969 = vmatprep.subr.mxu0 %v5916
          %5970 = vmatpush1.msra.mxu0 %v5915
          %5971 = vmatprep.subr.mxu0 %v5910
          %5972 = vmatpush1.msra.mxu0 %v5909
          %5973 = vmatprep.subr.mxu0 %v5904
          %5974 = vmatpush1.msra.mxu0 %v5903
          %5975 = vmatprep.subr.mxu0 %v5898
          %5976 = vmatpush1.msra.mxu0 %v5897
          %5977 = vmatprep.subr.mxu0 %v5892
          %5978 = vmatpush1.msra.mxu0 %v5891
          %5979 = vmatprep.subr.mxu0 %v5886
          %5980 = vmatpush1.msra.mxu0 %v5885
          %5981 = vmatprep.subr.mxu0 %v5880
          %5982 = vmatpush1.msra.mxu0 %v5879
          %5983 = vmatprep.subr.mxu0 %v5874
          %5984 = vmatpush1.msra.mxu0 %v5873
          %5985 = vmatprep.subr.mxu0 %v5868
          %5986 = vmatpush1.msra.mxu0 %v5867
          %5987 = vmatprep.subr.mxu0 %v5862
          %5988 = vmatpush1.msra.mxu0 %v5861
          %5989 = vmatprep.subr.mxu0 %v5856
          %5990 = vmatpush1.msra.mxu0 %v5855
          %5991 = vmatprep.subr.mxu0 %v5850
          %5992 = vmatpush1.msra.mxu0 %v5849
          %5993 = vmatprep.subr.mxu0 %v5844
          %5994 = vmatpush1.msra.mxu0 %v5843
          %5995 = vmatprep.subr.mxu0 %v5838
          %5996 = vmatpush1.msra.mxu0 %v5837
          %5997 = vmatprep.subr.mxu0 0.0
          %5998 = vmatpush2.msra.mxu0 0.0
          %5999 = vmatprep.subr.mxu0 0.0
          %6000 = vmatpush2.msra.mxu0 0.0
          %6001 = vmatprep.subr.mxu0 0.0
          %6002 = vmatpush2.msra.mxu0 0.0
          %6003 = vmatprep.subr.mxu0 0.0
          %6004 = vmatpush2.msra.mxu0 0.0
          %6005 = vmatprep.subr.mxu0 0.0
          %6006 = vmatpush2.msra.mxu0 0.0
          %6007 = vmatprep.subr.mxu0 0.0
          %6008 = vmatpush2.msra.mxu0 0.0
          %6009 = vmatprep.subr.mxu0 0.0
          %6010 = vmatpush2.msra.mxu0 0.0
          %6011 = vmatprep.subr.mxu0 0.0
          %6012 = vmatpush2.msra.mxu0 0.0
          %6013 = vmatprep.subr.mxu0 0.0
          %6014 = vmatpush2.msra.mxu0 0.0
          %6015 = vmatprep.subr.mxu0 0.0
          %6016 = vmatpush2.msra.mxu0 0.0
          %6017 = vmatprep.subr.mxu0 0.0
          %6018 = vmatpush2.msra.mxu0 0.0
          %6019 = vmatprep.subr.mxu0 0.0
          %6020 = vmatpush2.msra.mxu0 0.0
          %6021 = vmatprep.subr.mxu0 0.0
          %6022 = vmatpush2.msra.mxu0 0.0
          %6023 = vmatprep.subr.mxu0 0.0
          %6024 = vmatpush2.msra.mxu0 0.0
          %6025 = vmatprep.subr.mxu0 0.0
          %6026 = vmatpush2.msra.mxu0 0.0
          %6027 = vmatprep.subr.mxu0 0.0
          %6028 = vmatpush2.msra.mxu0 0.0
          %6029 = vmatprep.mubr.f32.mxu0 0.0
          %6030 = vmatmul.mubr.f32.gmra.mxu0 %v5836
          %v6031 = vpop.f32.mrf.mxu0
          %v6032 = vadd.f32 %v5938, %v6031
          %v6033 = vpop.f32.mrf.mxu0
          %v6034 = vadd.f32 %v5942, %v6033
          %6035 = vdwg.mxu0
          %6036 = vmatprep.subr.mxu0 %v5930
          %6037 = vmatpush1.msra.mxu0 %v5929
          %6038 = vmatprep.subr.mxu0 %v5924
          %6039 = vmatpush1.msra.mxu0 %v5923
          %6040 = vmatprep.subr.mxu0 %v5918
          %6041 = vmatpush1.msra.mxu0 %v5917
          %6042 = vmatprep.subr.mxu0 %v5912
          %6043 = vmatpush1.msra.mxu0 %v5911
          %6044 = vmatprep.subr.mxu0 %v5906
          %6045 = vmatpush1.msra.mxu0 %v5905
          %6046 = vmatprep.subr.mxu0 %v5900
          %6047 = vmatpush1.msra.mxu0 %v5899
          %6048 = vmatprep.subr.mxu0 %v5894
          %6049 = vmatpush1.msra.mxu0 %v5893
          %6050 = vmatprep.subr.mxu0 %v5888
          %6051 = vmatpush1.msra.mxu0 %v5887
          %6052 = vmatprep.subr.mxu0 %v5882
          %6053 = vmatpush1.msra.mxu0 %v5881
          %6054 = vmatprep.subr.mxu0 %v5876
          %6055 = vmatpush1.msra.mxu0 %v5875
          %6056 = vmatprep.subr.mxu0 %v5870
          %6057 = vmatpush1.msra.mxu0 %v5869
          %6058 = vmatprep.subr.mxu0 %v5864
          %6059 = vmatpush1.msra.mxu0 %v5863
          %6060 = vmatprep.subr.mxu0 %v5858
          %6061 = vmatpush1.msra.mxu0 %v5857
          %6062 = vmatprep.subr.mxu0 %v5852
          %6063 = vmatpush1.msra.mxu0 %v5851
          %6064 = vmatprep.subr.mxu0 %v5846
          %6065 = vmatpush1.msra.mxu0 %v5845
          %6066 = vmatprep.subr.mxu0 %v5840
          %6067 = vmatpush1.msra.mxu0 %v5839
          %6068 = vmatprep.subr.mxu0 0.0
          %6069 = vmatpush2.msra.mxu0 0.0
          %6070 = vmatprep.subr.mxu0 0.0
          %6071 = vmatpush2.msra.mxu0 0.0
          %6072 = vmatprep.subr.mxu0 0.0
          %6073 = vmatpush2.msra.mxu0 0.0
          %6074 = vmatprep.subr.mxu0 0.0
          %6075 = vmatpush2.msra.mxu0 0.0
          %6076 = vmatprep.subr.mxu0 0.0
          %6077 = vmatpush2.msra.mxu0 0.0
          %6078 = vmatprep.subr.mxu0 0.0
          %6079 = vmatpush2.msra.mxu0 0.0
          %6080 = vmatprep.subr.mxu0 0.0
          %6081 = vmatpush2.msra.mxu0 0.0
          %6082 = vmatprep.subr.mxu0 0.0
          %6083 = vmatpush2.msra.mxu0 0.0
          %6084 = vmatprep.subr.mxu0 0.0
          %6085 = vmatpush2.msra.mxu0 0.0
          %6086 = vmatprep.subr.mxu0 0.0
          %6087 = vmatpush2.msra.mxu0 0.0
          %6088 = vmatprep.subr.mxu0 0.0
          %6089 = vmatpush2.msra.mxu0 0.0
          %6090 = vmatprep.subr.mxu0 0.0
          %6091 = vmatpush2.msra.mxu0 0.0
          %6092 = vmatprep.subr.mxu0 0.0
          %6093 = vmatpush2.msra.mxu0 0.0
          %6094 = vmatprep.subr.mxu0 0.0
          %6095 = vmatpush2.msra.mxu0 0.0
          %6096 = vmatprep.subr.mxu0 0.0
          %6097 = vmatpush2.msra.mxu0 0.0
          %6098 = vmatprep.subr.mxu0 0.0
          %6099 = vmatpush2.msra.mxu0 0.0
          %6100 = vmatprep.mubr.f32.mxu0 0.0
          %6101 = vmatmul.mubr.f32.gmra.mxu0 %v5836
          %v6102 = vpop.f32.mrf.mxu0
          %v6103 = vadd.f32 %v5946, %v6102
          %v6104 = vpop.f32.mrf.mxu0
          %v6105 = vadd.f32 %v5950, %v6104
          %6106 = vdwg.mxu0
          %6107 = vmatprep.subr.mxu0 %v5932
          %6108 = vmatpush1.msra.mxu0 %v5931
          %6109 = vmatprep.subr.mxu0 %v5926
          %6110 = vmatpush1.msra.mxu0 %v5925
          %6111 = vmatprep.subr.mxu0 %v5920
          %6112 = vmatpush1.msra.mxu0 %v5919
          %6113 = vmatprep.subr.mxu0 %v5914
          %6114 = vmatpush1.msra.mxu0 %v5913
          %6115 = vmatprep.subr.mxu0 %v5908
          %6116 = vmatpush1.msra.mxu0 %v5907
          %6117 = vmatprep.subr.mxu0 %v5902
          %6118 = vmatpush1.msra.mxu0 %v5901
          %6119 = vmatprep.subr.mxu0 %v5896
          %6120 = vmatpush1.msra.mxu0 %v5895
          %6121 = vmatprep.subr.mxu0 %v5890
          %6122 = vmatpush1.msra.mxu0 %v5889
          %6123 = vmatprep.subr.mxu0 %v5884
          %6124 = vmatpush1.msra.mxu0 %v5883
          %6125 = vmatprep.subr.mxu0 %v5878
          %6126 = vmatpush1.msra.mxu0 %v5877
          %6127 = vmatprep.subr.mxu0 %v5872
          %6128 = vmatpush1.msra.mxu0 %v5871
          %6129 = vmatprep.subr.mxu0 %v5866
          %6130 = vmatpush1.msra.mxu0 %v5865
          %6131 = vmatprep.subr.mxu0 %v5860
          %6132 = vmatpush1.msra.mxu0 %v5859
          %6133 = vmatprep.subr.mxu0 %v5854
          %6134 = vmatpush1.msra.mxu0 %v5853
          %6135 = vmatprep.subr.mxu0 %v5848
          %6136 = vmatpush1.msra.mxu0 %v5847
          %6137 = vmatprep.subr.mxu0 %v5842
          %6138 = vmatpush1.msra.mxu0 %v5841
          %6139 = vmatprep.subr.mxu0 0.0
          %6140 = vmatpush2.msra.mxu0 0.0
          %6141 = vmatprep.subr.mxu0 0.0
          %6142 = vmatpush2.msra.mxu0 0.0
          %6143 = vmatprep.subr.mxu0 0.0
          %6144 = vmatpush2.msra.mxu0 0.0
          %6145 = vmatprep.subr.mxu0 0.0
          %6146 = vmatpush2.msra.mxu0 0.0
          %6147 = vmatprep.subr.mxu0 0.0
          %6148 = vmatpush2.msra.mxu0 0.0
          %6149 = vmatprep.subr.mxu0 0.0
          %6150 = vmatpush2.msra.mxu0 0.0
          %6151 = vmatprep.subr.mxu0 0.0
          %6152 = vmatpush2.msra.mxu0 0.0
          %6153 = vmatprep.subr.mxu0 0.0
          %6154 = vmatpush2.msra.mxu0 0.0
          %6155 = vmatprep.subr.mxu0 0.0
          %6156 = vmatpush2.msra.mxu0 0.0
          %6157 = vmatprep.subr.mxu0 0.0
          %6158 = vmatpush2.msra.mxu0 0.0
          %6159 = vmatprep.subr.mxu0 0.0
          %6160 = vmatpush2.msra.mxu0 0.0
          %6161 = vmatprep.subr.mxu0 0.0
          %6162 = vmatpush2.msra.mxu0 0.0
          %6163 = vmatprep.subr.mxu0 0.0
          %6164 = vmatpush2.msra.mxu0 0.0
          %6165 = vmatprep.subr.mxu0 0.0
          %6166 = vmatpush2.msra.mxu0 0.0
          %6167 = vmatprep.subr.mxu0 0.0
          %6168 = vmatpush2.msra.mxu0 0.0
          %6169 = vmatprep.subr.mxu0 0.0
          %6170 = vmatpush2.msra.mxu0 0.0
          %6171 = vmatprep.mubr.f32.mxu0 0.0
          %6172 = vmatmul.mubr.f32.gmra.mxu0 %v5836
          %v6173 = vpop.f32.mrf.mxu0
          %v6174 = vadd.f32 %v5954, %v6173
          %v6175 = vpop.f32.mrf.mxu0
          %v6176 = vadd.f32 %v5958, %v6175
          %6177 = vdwg.mxu0
          %v6178 = vld [vmem:[%s11] sm:$0xff]
          %v6179 = vld [vmem:[%s11 + $0x8] sm:$0xff]
          %v6180 = vld [vmem:[%s11 + $0x10] sm:$0xff]
          %v6181 = vld [vmem:[%s11 + $0x18] sm:$0xff]
          %v6182 = vld [vmem:[%s11 + $0x20] sm:$0xff]
          %v6183 = vld [vmem:[%s11 + $0x28] sm:$0xff]
          %v6184 = vld [vmem:[%s11 + $0x30] sm:$0xff]
          %v6185 = vld [vmem:[%s11 + $0x38] sm:$0xff]
          %v6186 = vld [vmem:[%s11 + $0x40] sm:$0xff]
          %v6187 = vld [vmem:[%s11 + $0x48] sm:$0xff]
          %v6188 = vld [vmem:[%s11 + $0x50] sm:$0xff]
          %v6189 = vld [vmem:[%s11 + $0x58] sm:$0xff]
          %v6190 = vld [vmem:[%s11 + $0x60] sm:$0xff]
          %v6191 = vld [vmem:[%s11 + $0x68] sm:$0xff]
          %v6192 = vld [vmem:[%s11 + $0x70] sm:$0xff]
          %v6193 = vld [vmem:[%s11 + $0x78] sm:$0xff]
          %v6194 = vld [vmem:[%s11 + $0x80] sm:$0xff]
          %v6195 = vld [vmem:[%s11 + $0x88] sm:$0xff]
          %v6196 = vld [vmem:[%s11 + $0x90] sm:$0xff]
          %v6197 = vld [vmem:[%s11 + $0x98] sm:$0xff]
          %v6198 = vld [vmem:[%s11 + $0xa0] sm:$0xff]
          %v6199 = vld [vmem:[%s11 + $0xa8] sm:$0xff]
          %v6200 = vld [vmem:[%s11 + $0xb0] sm:$0xff]
          %v6201 = vld [vmem:[%s11 + $0xb8] sm:$0xff]
          %v6202 = vld [vmem:[%s11 + $0xc0] sm:$0xff]
          %v6203 = vld [vmem:[%s11 + $0xc8] sm:$0xff]
          %v6204 = vld [vmem:[%s11 + $0xd0] sm:$0xff]
          %v6205 = vld [vmem:[%s11 + $0xd8] sm:$0xff]
          %v6206 = vld [vmem:[%s11 + $0xe0] sm:$0xff]
          %v6207 = vld [vmem:[%s11 + $0xe8] sm:$0xff]
          %v6208 = vld [vmem:[%s11 + $0xf0] sm:$0xff]
          %v6209 = vld [vmem:[%s11 + $0xf8] sm:$0xff]
          %v6210 = vld [vmem:[%s11 + $0x100] sm:$0xff]
          %v6211 = vld [vmem:[%s11 + $0x108] sm:$0xff]
          %v6212 = vld [vmem:[%s11 + $0x110] sm:$0xff]
          %v6213 = vld [vmem:[%s11 + $0x118] sm:$0xff]
          %v6214 = vld [vmem:[%s11 + $0x120] sm:$0xff]
          %v6215 = vld [vmem:[%s11 + $0x128] sm:$0xff]
          %v6216 = vld [vmem:[%s11 + $0x130] sm:$0xff]
          %v6217 = vld [vmem:[%s11 + $0x138] sm:$0xff]
          %v6218 = vld [vmem:[%s11 + $0x140] sm:$0xff]
          %v6219 = vld [vmem:[%s11 + $0x148] sm:$0xff]
          %v6220 = vld [vmem:[%s11 + $0x150] sm:$0xff]
          %v6221 = vld [vmem:[%s11 + $0x158] sm:$0xff]
          %v6222 = vld [vmem:[%s11 + $0x160] sm:$0xff]
          %v6223 = vld [vmem:[%s11 + $0x168] sm:$0xff]
          %v6224 = vld [vmem:[%s11 + $0x170] sm:$0xff]
          %v6225 = vld [vmem:[%s11 + $0x178] sm:$0xff]
          %v6226 = vld [vmem:[%s11 + $0x180] sm:$0xff]
          %v6227 = vld [vmem:[%s11 + $0x188] sm:$0xff]
          %v6228 = vld [vmem:[%s11 + $0x190] sm:$0xff]
          %v6229 = vld [vmem:[%s11 + $0x198] sm:$0xff]
          %v6230 = vld [vmem:[%s11 + $0x1a0] sm:$0xff]
          %v6231 = vld [vmem:[%s11 + $0x1a8] sm:$0xff]
          %v6232 = vld [vmem:[%s11 + $0x1b0] sm:$0xff]
          %v6233 = vld [vmem:[%s11 + $0x1b8] sm:$0xff]
          %v6234 = vld [vmem:[%s11 + $0x1c0] sm:$0xff]
          %v6235 = vld [vmem:[%s11 + $0x1c8] sm:$0xff]
          %v6236 = vld [vmem:[%s11 + $0x1d0] sm:$0xff]
          %v6237 = vld [vmem:[%s11 + $0x1d8] sm:$0xff]
          %v6238 = vld [vmem:[%s11 + $0x1e0] sm:$0xff]
          %v6239 = vld [vmem:[%s11 + $0x1e8] sm:$0xff]
          %v6240 = vld [vmem:[%s11 + $0x1f0] sm:$0xff]
          %v6241 = vld [vmem:[%s11 + $0x1f8] sm:$0xff]
          %v6242 = vld [vmem:[%s11 + $0x200] sm:$0xff]
          %v6243 = vld [vmem:[%s11 + $0x208] sm:$0xff]
          %v6244 = vld [vmem:[%s11 + $0x210] sm:$0xff]
          %v6245 = vld [vmem:[%s11 + $0x218] sm:$0xff]
          %v6246 = vld [vmem:[%s11 + $0x220] sm:$0xff]
          %v6247 = vld [vmem:[%s11 + $0x228] sm:$0xff]
          %v6248 = vld [vmem:[%s11 + $0x230] sm:$0xff]
          %v6249 = vld [vmem:[%s11 + $0x238] sm:$0xff]
          %v6250 = vld [vmem:[%s11 + $0x240] sm:$0xff]
          %v6251 = vld [vmem:[%s11 + $0x248] sm:$0xff]
          %v6252 = vld [vmem:[%s11 + $0x250] sm:$0xff]
          %v6253 = vld [vmem:[%s11 + $0x258] sm:$0xff]
          %v6254 = vld [vmem:[%s11 + $0x260] sm:$0xff]
          %v6255 = vld [vmem:[%s11 + $0x268] sm:$0xff]
          %v6256 = vld [vmem:[%s11 + $0x270] sm:$0xff]
          %v6257 = vld [vmem:[%s11 + $0x278] sm:$0xff]
          %v6258 = vld [vmem:[%s11 + $0x280] sm:$0xff]
          %v6259 = vld [vmem:[%s11 + $0x288] sm:$0xff]
          %v6260 = vld [vmem:[%s11 + $0x290] sm:$0xff]
          %v6261 = vld [vmem:[%s11 + $0x298] sm:$0xff]
          %v6262 = vld [vmem:[%s11 + $0x2a0] sm:$0xff]
          %v6263 = vld [vmem:[%s11 + $0x2a8] sm:$0xff]
          %v6264 = vld [vmem:[%s11 + $0x2b0] sm:$0xff]
          %v6265 = vld [vmem:[%s11 + $0x2b8] sm:$0xff]
          %v6266 = vld [vmem:[%s11 + $0x2c0] sm:$0xff]
          %v6267 = vld [vmem:[%s11 + $0x2c8] sm:$0xff]
          %v6268 = vld [vmem:[%s11 + $0x2d0] sm:$0xff]
          %v6269 = vld [vmem:[%s11 + $0x2d8] sm:$0xff]
          %v6270 = vld [vmem:[%s11 + $0x2e0] sm:$0xff]
          %v6271 = vld [vmem:[%s11 + $0x2e8] sm:$0xff]
          %v6272 = vld [vmem:[%s11 + $0x2f0] sm:$0xff]
          %v6273 = vld [vmem:[%s11 + $0x2f8] sm:$0xff]
          %v6274 = vld [vmem:[%s12] sm:$0x1]
          %6275 = vmatprep.subr.mxu0 0.0
          %6276 = vmatpush1.msra.mxu0 %v6193
          %6277 = vmatprep.subr.mxu0 0.0
          %6278 = vmatpush1.msra.mxu0 %v6192
          %6279 = vmatprep.subr.mxu0 0.0
          %6280 = vmatpush1.msra.mxu0 %v6191
          %6281 = vmatprep.subr.mxu0 0.0
          %6282 = vmatpush1.msra.mxu0 %v6190
          %6283 = vmatprep.subr.mxu0 0.0
          %6284 = vmatpush1.msra.mxu0 %v6189
          %6285 = vmatprep.subr.mxu0 0.0
          %6286 = vmatpush1.msra.mxu0 %v6188
          %6287 = vmatprep.subr.mxu0 0.0
          %6288 = vmatpush1.msra.mxu0 %v6187
          %6289 = vmatprep.subr.mxu0 0.0
          %6290 = vmatpush1.msra.mxu0 %v6186
          %6291 = vmatprep.subr.mxu0 0.0
          %6292 = vmatpush1.msra.mxu0 %v6185
          %6293 = vmatprep.subr.mxu0 0.0
          %6294 = vmatpush1.msra.mxu0 %v6184
          %6295 = vmatprep.subr.mxu0 0.0
          %6296 = vmatpush1.msra.mxu0 %v6183
          %6297 = vmatprep.subr.mxu0 0.0
          %6298 = vmatpush1.msra.mxu0 %v6182
          %6299 = vmatprep.subr.mxu0 0.0
          %6300 = vmatpush1.msra.mxu0 %v6181
          %6301 = vmatprep.subr.mxu0 0.0
          %6302 = vmatpush1.msra.mxu0 %v6180
          %6303 = vmatprep.subr.mxu0 0.0
          %6304 = vmatpush1.msra.mxu0 %v6179
          %6305 = vmatprep.subr.mxu0 0.0
          %6306 = vmatpush1.msra.mxu0 %v6178
          %6307 = vmatprep.subr.mxu0 0.0
          %6308 = vmatpush2.msra.mxu0 %v6209
          %6309 = vmatprep.subr.mxu0 0.0
          %6310 = vmatpush2.msra.mxu0 %v6208
          %6311 = vmatprep.subr.mxu0 0.0
          %6312 = vmatpush2.msra.mxu0 %v6207
          %6313 = vmatprep.subr.mxu0 0.0
          %6314 = vmatpush2.msra.mxu0 %v6206
          %6315 = vmatprep.subr.mxu0 0.0
          %6316 = vmatpush2.msra.mxu0 %v6205
          %6317 = vmatprep.subr.mxu0 0.0
          %6318 = vmatpush2.msra.mxu0 %v6204
          %6319 = vmatprep.subr.mxu0 0.0
          %6320 = vmatpush2.msra.mxu0 %v6203
          %6321 = vmatprep.subr.mxu0 0.0
          %6322 = vmatpush2.msra.mxu0 %v6202
          %6323 = vmatprep.subr.mxu0 0.0
          %6324 = vmatpush2.msra.mxu0 %v6201
          %6325 = vmatprep.subr.mxu0 0.0
          %6326 = vmatpush2.msra.mxu0 %v6200
          %6327 = vmatprep.subr.mxu0 0.0
          %6328 = vmatpush2.msra.mxu0 %v6199
          %6329 = vmatprep.subr.mxu0 0.0
          %6330 = vmatpush2.msra.mxu0 %v6198
          %6331 = vmatprep.subr.mxu0 0.0
          %6332 = vmatpush2.msra.mxu0 %v6197
          %6333 = vmatprep.subr.mxu0 0.0
          %6334 = vmatpush2.msra.mxu0 %v6196
          %6335 = vmatprep.subr.mxu0 0.0
          %6336 = vmatpush2.msra.mxu0 %v6195
          %6337 = vmatprep.subr.mxu0 0.0
          %6338 = vmatpush2.msra.mxu0 %v6194
          %6339 = vmatprep.mubr.f32.mxu0 %v6034
          %6340 = vmatmul.mubr.f32.gmra.mxu0 %v6032
          %v6341 = vpop.f32.mrf.mxu0
          %v6342 = vadd.f32 %v6274, %v6341
          %v6343 = vpop.f32.mrf.mxu0
          %6344 = vdwg.mxu0
          %6345 = vmatprep.subr.mxu0 0.0
          %6346 = vmatpush1.msra.mxu0 %v6225
          %6347 = vmatprep.subr.mxu0 0.0
          %6348 = vmatpush1.msra.mxu0 %v6224
          %6349 = vmatprep.subr.mxu0 0.0
          %6350 = vmatpush1.msra.mxu0 %v6223
          %6351 = vmatprep.subr.mxu0 0.0
          %6352 = vmatpush1.msra.mxu0 %v6222
          %6353 = vmatprep.subr.mxu0 0.0
          %6354 = vmatpush1.msra.mxu0 %v6221
          %6355 = vmatprep.subr.mxu0 0.0
          %6356 = vmatpush1.msra.mxu0 %v6220
          %6357 = vmatprep.subr.mxu0 0.0
          %6358 = vmatpush1.msra.mxu0 %v6219
          %6359 = vmatprep.subr.mxu0 0.0
          %6360 = vmatpush1.msra.mxu0 %v6218
          %6361 = vmatprep.subr.mxu0 0.0
          %6362 = vmatpush1.msra.mxu0 %v6217
          %6363 = vmatprep.subr.mxu0 0.0
          %6364 = vmatpush1.msra.mxu0 %v6216
          %6365 = vmatprep.subr.mxu0 0.0
          %6366 = vmatpush1.msra.mxu0 %v6215
          %6367 = vmatprep.subr.mxu0 0.0
          %6368 = vmatpush1.msra.mxu0 %v6214
          %6369 = vmatprep.subr.mxu0 0.0
          %6370 = vmatpush1.msra.mxu0 %v6213
          %6371 = vmatprep.subr.mxu0 0.0
          %6372 = vmatpush1.msra.mxu0 %v6212
          %6373 = vmatprep.subr.mxu0 0.0
          %6374 = vmatpush1.msra.mxu0 %v6211
          %6375 = vmatprep.subr.mxu0 0.0
          %6376 = vmatpush1.msra.mxu0 %v6210
          %6377 = vmatprep.subr.mxu0 0.0
          %6378 = vmatpush2.msra.mxu0 %v6241
          %6379 = vmatprep.subr.mxu0 0.0
          %6380 = vmatpush2.msra.mxu0 %v6240
          %6381 = vmatprep.subr.mxu0 0.0
          %6382 = vmatpush2.msra.mxu0 %v6239
          %6383 = vmatprep.subr.mxu0 0.0
          %6384 = vmatpush2.msra.mxu0 %v6238
          %6385 = vmatprep.subr.mxu0 0.0
          %6386 = vmatpush2.msra.mxu0 %v6237
          %6387 = vmatprep.subr.mxu0 0.0
          %6388 = vmatpush2.msra.mxu0 %v6236
          %6389 = vmatprep.subr.mxu0 0.0
          %6390 = vmatpush2.msra.mxu0 %v6235
          %6391 = vmatprep.subr.mxu0 0.0
          %6392 = vmatpush2.msra.mxu0 %v6234
          %6393 = vmatprep.subr.mxu0 0.0
          %6394 = vmatpush2.msra.mxu0 %v6233
          %6395 = vmatprep.subr.mxu0 0.0
          %6396 = vmatpush2.msra.mxu0 %v6232
          %6397 = vmatprep.subr.mxu0 0.0
          %6398 = vmatpush2.msra.mxu0 %v6231
          %6399 = vmatprep.subr.mxu0 0.0
          %6400 = vmatpush2.msra.mxu0 %v6230
          %6401 = vmatprep.subr.mxu0 0.0
          %6402 = vmatpush2.msra.mxu0 %v6229
          %6403 = vmatprep.subr.mxu0 0.0
          %6404 = vmatpush2.msra.mxu0 %v6228
          %6405 = vmatprep.subr.mxu0 0.0
          %6406 = vmatpush2.msra.mxu0 %v6227
          %6407 = vmatprep.subr.mxu0 0.0
          %6408 = vmatpush2.msra.mxu0 %v6226
          %6409 = vmatprep.mubr.f32.mxu0 %v6105
          %6410 = vmatmul.mubr.f32.gmra.mxu0 %v6103
          %v6411 = vpop.f32.mrf.mxu0
          %v6412 = vadd.f32 %v6342, %v6411
          %v6413 = vpop.f32.mrf.mxu0
          %6414 = vdwg.mxu0
          %6415 = vmatprep.subr.mxu0 0.0
          %6416 = vmatpush1.msra.mxu0 %v6257
          %6417 = vmatprep.subr.mxu0 0.0
          %6418 = vmatpush1.msra.mxu0 %v6256
          %6419 = vmatprep.subr.mxu0 0.0
          %6420 = vmatpush1.msra.mxu0 %v6255
          %6421 = vmatprep.subr.mxu0 0.0
          %6422 = vmatpush1.msra.mxu0 %v6254
          %6423 = vmatprep.subr.mxu0 0.0
          %6424 = vmatpush1.msra.mxu0 %v6253
          %6425 = vmatprep.subr.mxu0 0.0
          %6426 = vmatpush1.msra.mxu0 %v6252
          %6427 = vmatprep.subr.mxu0 0.0
          %6428 = vmatpush1.msra.mxu0 %v6251
          %6429 = vmatprep.subr.mxu0 0.0
          %6430 = vmatpush1.msra.mxu0 %v6250
          %6431 = vmatprep.subr.mxu0 0.0
          %6432 = vmatpush1.msra.mxu0 %v6249
          %6433 = vmatprep.subr.mxu0 0.0
          %6434 = vmatpush1.msra.mxu0 %v6248
          %6435 = vmatprep.subr.mxu0 0.0
          %6436 = vmatpush1.msra.mxu0 %v6247
          %6437 = vmatprep.subr.mxu0 0.0
          %6438 = vmatpush1.msra.mxu0 %v6246
          %6439 = vmatprep.subr.mxu0 0.0
          %6440 = vmatpush1.msra.mxu0 %v6245
          %6441 = vmatprep.subr.mxu0 0.0
          %6442 = vmatpush1.msra.mxu0 %v6244
          %6443 = vmatprep.subr.mxu0 0.0
          %6444 = vmatpush1.msra.mxu0 %v6243
          %6445 = vmatprep.subr.mxu0 0.0
          %6446 = vmatpush1.msra.mxu0 %v6242
          %6447 = vmatprep.subr.mxu0 0.0
          %6448 = vmatpush2.msra.mxu0 %v6273
          %6449 = vmatprep.subr.mxu0 0.0
          %6450 = vmatpush2.msra.mxu0 %v6272
          %6451 = vmatprep.subr.mxu0 0.0
          %6452 = vmatpush2.msra.mxu0 %v6271
          %6453 = vmatprep.subr.mxu0 0.0
          %6454 = vmatpush2.msra.mxu0 %v6270
          %6455 = vmatprep.subr.mxu0 0.0
          %6456 = vmatpush2.msra.mxu0 %v6269
          %6457 = vmatprep.subr.mxu0 0.0
          %6458 = vmatpush2.msra.mxu0 %v6268
          %6459 = vmatprep.subr.mxu0 0.0
          %6460 = vmatpush2.msra.mxu0 %v6267
          %6461 = vmatprep.subr.mxu0 0.0
          %6462 = vmatpush2.msra.mxu0 %v6266
          %6463 = vmatprep.subr.mxu0 0.0
          %6464 = vmatpush2.msra.mxu0 %v6265
          %6465 = vmatprep.subr.mxu0 0.0
          %6466 = vmatpush2.msra.mxu0 %v6264
          %6467 = vmatprep.subr.mxu0 0.0
          %6468 = vmatpush2.msra.mxu0 %v6263
          %6469 = vmatprep.subr.mxu0 0.0
          %6470 = vmatpush2.msra.mxu0 %v6262
          %6471 = vmatprep.subr.mxu0 0.0
          %6472 = vmatpush2.msra.mxu0 %v6261
          %6473 = vmatprep.subr.mxu0 0.0
          %6474 = vmatpush2.msra.mxu0 %v6260
          %6475 = vmatprep.subr.mxu0 0.0
          %6476 = vmatpush2.msra.mxu0 %v6259
          %6477 = vmatprep.subr.mxu0 0.0
          %6478 = vmatpush2.msra.mxu0 %v6258
          %6479 = vmatprep.mubr.f32.mxu0 %v6176
          %6480 = vmatmul.mubr.f32.gmra.mxu0 %v6174
          %v6481 = vpop.f32.mrf.mxu0
          %v6482 = vadd.f32 %v6412, %v6481
          %v6483 = vpop.f32.mrf.mxu0
          %6484 = vdwg.mxu0
          %vm6485 = vcmask 24576
          %6486 = vst.msk [vmem:[%s455] sm:$0x1] %vm6485, %v6482
        $region80: #{forward.1} parent=71 // pred_fallthru
          _
        %s6487 = sand.u32 %s327, 1
        %s6488 = scalar_lea.sflag [#allocation4], %s6487
        %s6489 = sand.u32 %s327, 1
        %s6490 = scalar_lea.vmem [#allocation3], %s6489
        // Predicated region
        $region81: #{forward.1} parent=71 // pred_check
          %p6491 = pneg %p337
        $region82: #{forward.1} parent=71 // pred_check_branch
          %6493 = sbr.rel (%p6491) target = $region84
        $region83: #{forward.1} parent=71 // pred_region
          %s6495 = ssub.s32 16, 16
          %6496 = vsyncadd %s6488, %s6495
          %s6497 = smul.addr %s31, 16
          %s6498 = scalar_lea.hbm %s13, %s6497
          %s6500 = sshll.u32 %s6490, 4
          %s6501 = int_to_ptr.vmem [resolvable:$true] %s6500
          %6503 = dma.vmem_to_hbm [thread:$0]  %s6501, 16, %s6498, %s6488
        $region84: #{forward.1} parent=71 // pred_fallthru
          _
      $region72: #{forward.1} parent=5 // pred_fallthru
        _
      %p6504 = scmp.le.s32.totalorder 2, %s22
      // Predicated region
      $region85: #{forward.1} parent=5 // pred_check
        %p6505 = pneg %p6504
      $region86: #{forward.1} parent=5 // pred_check_branch
        %6507 = sbr.rel (%p6505) target = $region88
      $region87: #{forward.1} parent=5 // pred_region
        %s6508 = ssub.s32 %s22, 2
        // Predicated region
        $region89: #{forward.1} parent=87 // pred_check
          %p6509 = pneg %p343
        $region90: #{forward.1} parent=87 // pred_check_branch
          %6511 = sbr.rel (%p6509) target = $region92
        $region91: #{forward.1} parent=87 // pred_region
          %s6512 = sand.u32 %s328, 1
          %s6513 = scalar_lea.sflag [#allocation4], %s6512
          %s6514 = sand.u32 %s328, 1
          %s6515 = scalar_lea.vmem [#allocation3], %s6514
          %6516 = dma.done %s6513, 16
        $region92: #{forward.1} parent=87 // pred_fallthru
          _
      $region88: #{forward.1} parent=5 // pred_fallthru
        _
    $region6: #{forward.1} parent=1 // loop_footer
      %s26 = sadd.s32 1, %s22
    $region7: #{forward.1} parent=1 // loop_footer_branch
      %21 = sbr.rel target = $region3
    $region8: #{forward.1} parent=1 // loop_exit
      _
    %6517 = vsyncpa [#allocation4], 1
    %s6518 = scalar_lea.sflag [#allocation4], 1
    %6519 = vsyncpa %s6518, 1

</llo_original>
